<compile_context>
chip_gen: v7x
topology: tpu7x:2x2x1
jax: 0.10.0
libtpu: 0.0.40
codegen_flags: <defaults>
</compile_context>

<pallas_src>
import numpy as np
import jax
import jax.numpy as jnp
from jax.experimental import pallas as pl
from jax.experimental.pallas import tpu as pltpu

ORDER = 16
OUT_FEATURES = 3
HIDDEN = 128
NUM_HIDDEN_LAYERS = 4            # in-layer + 4 residual hidden + out-layer = 6 linears
ENC_FREQS = (1.0, 2.0, 4.0, 8.0, 16.0, 32.0)
IN_DIMS = 3
ENC_DIMS = IN_DIMS * (1 + 2 * len(ENC_FREQS))    # 39
ENC_PAD = 40                                     # padded to a multiple of 8
TILE_N = 512                                     # points per grid step (sweep 512-2048)


def _normalize3(x, y, z, eps):
    # F.normalize semantics: v / max(||v||, eps)
    norm = jnp.sqrt(x * x + y * y + z * z)
    inv = 1.0 / jnp.maximum(norm, eps)
    return x * inv, y * inv, z * inv


def _leaky_relu(h, slope=0.01):
    return jnp.where(h >= 0, h, slope * h)


def fourier_basis_kernel(x_ref, view_ref, normal_ref, light_ref,
                         enc_mat_ref, enc_sel_ref, kmask_ref, red_ref,
                         w_in_ref, b_in_ref, w_hid_ref, b_hid_ref,
                         w_out_ref, b_out_ref, rgb_ref):
    # ---------------- coordinate frame (VPU, lane-dense [1, TN] rows) ----------------
    nx, ny, nz = _normalize3(normal_ref[0:1, :], normal_ref[1:2, :],
                             normal_ref[2:3, :], 1e-6)
    sign = jnp.where(nz >= 0, 1.0, -1.0)
    s_z = sign + nz
    safe = jnp.where(jnp.abs(s_z) < 1e-6,
                     jnp.where(s_z >= 0, 1e-6, -1e-6), s_z)
    a = -1.0 / safe
    b = nx * ny * a
    sx = nx * nx * a * sign + 1.0
    sy = b * sign
    sz = nx * (-sign)
    sx, sy, sz = _normalize3(sx, sy, sz, 1e-6)
    # t = normalize(cross(s, n))
    tx = sy * nz - sz * ny
    ty = sz * nx - sx * nz
    tz = sx * ny - sy * nx
    tx, ty, tz = _normalize3(tx, ty, tz, 1e-6)
    # s = normalize(cross(n, t))
    sx = ny * tz - nz * ty
    sy = nz * tx - nx * tz
    sz = nx * ty - ny * tx
    sx, sy, sz = _normalize3(sx, sy, sz, 1e-6)

    def to_local(w0, w1, w2):
        lx = sx * w0 + sy * w1 + sz * w2
        ly = tx * w0 + ty * w1 + tz * w2
        lz = nx * w0 + ny * w1 + nz * w2
        return _normalize3(lx, ly, lz, 1e-7)

    vx, vy, vz = _normalize3(view_ref[0:1, :], view_ref[1:2, :],
                             view_ref[2:3, :], 1e-12)
    wox, woy, _ = to_local(vx, vy, vz)
    wix, wiy, _ = to_local(light_ref[0:1, :], light_ref[1:2, :], light_ref[2:3, :])

    # cos_D_phi(-wi, wo)  (small eps clamp on the denominator to avoid Inf/NaN)
    ax_, ay_ = -wix, -wiy
    bx_, by_ = wox, woy
    denom_sq = (ax_ * ax_ + ay_ * ay_) * (bx_ * bx_ + by_ * by_)
    cos_phi = (ax_ * bx_ + ay_ * by_) / jnp.sqrt(jnp.maximum(denom_sq, 1e-24))
    cos_phi = jnp.clip(cos_phi, -1.0, 1.0)

    # cos(k*phi) replicated onto the 48 coefficient rows (row r <-> k = r mod ORDER)
    # via Chebyshev recurrence + constant one-hot column masks (no sublane concats).
    km = kmask_ref[...]                     # [48, ORDER] f32 one-hot
    t_prev = jnp.ones_like(cos_phi)         # T_0
    t_cur = cos_phi                         # T_1
    cos_k48 = km[:, 0:1] * t_prev + km[:, 1:2] * t_cur
    for k in range(2, ORDER):
        t_next = 2.0 * cos_phi * t_cur - t_prev
        cos_k48 = cos_k48 + km[:, k:k + 1] * t_next
        t_prev, t_cur = t_cur, t_next

    # ---------------- fused Fourier positional encoding [ENC_PAD, TN] ----------------
    fm = enc_mat_ref[...]                   # [ENC_PAD, 3] frequency/coord selector
    sel = enc_sel_ref[...]                  # [ENC_PAD, 3] (identity, sin, cos) masks
    scaled = (fm[:, 0:1] * x_ref[0:1, :] + fm[:, 1:2] * x_ref[1:2, :]
              + fm[:, 2:3] * x_ref[2:3, :])
    enc = (sel[:, 0:1] * scaled + sel[:, 1:2] * jnp.sin(scaled)
           + sel[:, 2:3] * jnp.cos(scaled))

    # ---------------- SkipConnMLP (MXU, bf16 operands, f32 accumulation) -------------
    h = jnp.dot(w_in_ref[...], enc.astype(jnp.bfloat16),
                preferred_element_type=jnp.float32) + b_in_ref[...]
    h = _leaky_relu(h)
    for l in range(NUM_HIDDEN_LAYERS):      # static unroll
        h2 = jnp.dot(w_hid_ref[l], h.astype(jnp.bfloat16),
                     preferred_element_type=jnp.float32) + b_hid_ref[l]
        h = _leaky_relu(h2) + h             # skip connection kept in f32
    coeffs = jnp.dot(w_out_ref[...], h.astype(jnp.bfloat16),
                     preferred_element_type=jnp.float32) + b_out_ref[...]  # [48, TN]

    # ---------------- combine: rgb[c] = sum_k coeffs[c*ORDER+k] * cos(k*phi) ---------
    prod = coeffs * cos_k48                               # [48, TN] full-lane VPU
    rgb_ref[...] = jnp.dot(red_ref[...], prod,            # [3,48] x [48,TN] -> [3,TN]
                           preferred_element_type=jnp.float32)


def fourier_encode(x):
    feats = [x]
    for f in ENC_FREQS:
        feats.append(jnp.sin(x * f))
        feats.append(jnp.cos(x * f))
    return jnp.concatenate(feats, axis=-1)


def _encoding_constants():
    """Frequency / selector matrices describing the Fourier encoding row layout."""
    m = np.zeros((ENC_PAD, 3), np.float32)
    sel = np.zeros((ENC_PAD, 3), np.float32)   # columns: (identity, sin, cos)
    for c in range(3):                         # rows 0..2 : x itself
        m[c, c] = 1.0
        sel[c, 0] = 1.0
    r = 3
    for f in ENC_FREQS:                        # [sin(f*x), cos(f*x)] per frequency
        for c in range(3):
            m[r, c] = f
            sel[r, 1] = 1.0
            r += 1
        for c in range(3):
            m[r, c] = f
            sel[r, 2] = 1.0
            r += 1
    assert r == ENC_DIMS
    return m, sel                              # padded rows stay all-zero


def init_params(key):
    def xavier(k, shape):
        fan_in, fan_out = shape[-2], shape[-1]
        limit = float(np.sqrt(6.0 / (fan_in + fan_out)))
        return jax.random.uniform(k, shape, jnp.float32, -limit, limit)

    k0, k1, k2 = jax.random.split(key, 3)
    return dict(
        w_in=xavier(k0, (ENC_DIMS, HIDDEN)),
        b_in=jnp.zeros((1, HIDDEN), jnp.float32),
        w_hid=xavier(k1, (NUM_HIDDEN_LAYERS, HIDDEN, HIDDEN)),
        b_hid=jnp.zeros((NUM_HIDDEN_LAYERS, 1, HIDDEN), jnp.float32),
        w_out=xavier(k2, (HIDDEN, OUT_FEATURES * ORDER)),
        b_out=jnp.zeros((1, OUT_FEATURES * ORDER), jnp.float32),
    )


def fourier_basis_forward(params, x, view, normal, light, *, tile_n=TILE_N):
    lead = x.shape[:-1]
    n = int(np.prod(lead))

    def chan_first(a):
        return a.reshape(n, 3).T                     # channels-first [3, n]

    xs, vs, ns, ls = map(chan_first, (x, view, normal, light))

    n_pad = (-n) % tile_n
    if n_pad:
        pad = lambda a: jnp.pad(a, ((0, 0), (0, n_pad)), constant_values=1.0)
        xs, vs, ns, ls = map(pad, (xs, vs, ns, ls))
    n_total = n + n_pad
    grid = (n_total // tile_n,)

    # ---- small constant matrices (encoding layout, one-hot combine masks) ----
    enc_mat, enc_sel = _encoding_constants()
    kmask = np.zeros((OUT_FEATURES * ORDER, ORDER), np.float32)
    kmask[np.arange(OUT_FEATURES * ORDER), np.arange(OUT_FEATURES * ORDER) % ORDER] = 1.0
    red = np.zeros((OUT_FEATURES, OUT_FEATURES * ORDER), np.float32)
    red[np.arange(OUT_FEATURES * ORDER) // ORDER, np.arange(OUT_FEATURES * ORDER)] = 1.0
    enc_mat, enc_sel, kmask, red = map(jnp.asarray, (enc_mat, enc_sel, kmask, red))

    # ---- weights: transposed (channels-first), zero-padded K, bf16 on the MXU ----
    w_in_t = jnp.pad(params["w_in"].T,
                     ((0, 0), (0, ENC_PAD - ENC_DIMS))).astype(jnp.bfloat16)   # [H, 40]
    w_hid_t = jnp.transpose(params["w_hid"], (0, 2, 1)).astype(jnp.bfloat16)   # [L, H, H]
    w_out_t = params["w_out"].T.astype(jnp.bfloat16)                           # [48, H]
    b_in_t = params["b_in"].T                                                  # [H, 1] f32
    b_hid_t = jnp.transpose(params["b_hid"], (0, 2, 1))                        # [L, H, 1]
    b_out_t = params["b_out"].T                                                # [48, 1]

    const_args = (enc_mat, enc_sel, kmask, red,
                  w_in_t, b_in_t, w_hid_t, b_hid_t, w_out_t, b_out_t)

    pt_spec = pl.BlockSpec((3, tile_n), lambda i: (0, i))

    def full(a):
        nd = a.ndim
        return pl.BlockSpec(a.shape, lambda i, _nd=nd: (0,) * _nd)

    flops = 2 * n_total * (ENC_PAD * HIDDEN
                           + NUM_HIDDEN_LAYERS * HIDDEN * HIDDEN
                           + HIDDEN * OUT_FEATURES * ORDER
                           + OUT_FEATURES * OUT_FEATURES * ORDER) + 400 * n_total
    transcendentals = n_total * (2 * ENC_PAD + 10)
    bytes_accessed = (5 * 3 * 4) * n_total + sum(
        int(a.size) * int(a.dtype.itemsize) for a in const_args)

    rgb_t = pl.pallas_call(
        fourier_basis_kernel,
        out_shape=jax.ShapeDtypeStruct((OUT_FEATURES, n_total), jnp.float32),
        grid=grid,
        in_specs=[pt_spec, pt_spec, pt_spec, pt_spec] + [full(a) for a in const_args],
        out_specs=pl.BlockSpec((OUT_FEATURES, tile_n), lambda i: (0, i)),
        compiler_params=pltpu.CompilerParams(dimension_semantics=("parallel",)),
        cost_estimate=pl.CostEstimate(flops=int(flops),
                                      transcendentals=int(transcendentals),
                                      bytes_accessed=int(bytes_accessed)),
    )(xs, vs, ns, ls, *const_args)

    return rgb_t[:, :n].T.reshape(lead + (OUT_FEATURES,))


# ------------------------- pure-JAX reference -------------------------
# Mirrors the kernel's numerics (bf16 matmul operands, f32 accumulation) so the
# comparison isolates kernel/layout bugs rather than bf16 quantization.
def reference_forward(params, x, view, normal, light):
    def normalize(v, eps):
        nrm = jnp.linalg.norm(v, axis=-1, keepdims=True)
        return v / jnp.maximum(nrm, eps)

    nrm = normalize(normal, 1e-6)
    nx, ny, nz = nrm[..., 0:1], nrm[..., 1:2], nrm[..., 2:3]
    sign = jnp.where(nz >= 0, 1.0, -1.0)
    s_z = sign + nz
    safe = jnp.where(jnp.abs(s_z) < 1e-6, jnp.where(s_z >= 0, 1e-6, -1e-6), s_z)
    a = -1.0 / safe
    b = nx * ny * a
    s = jnp.concatenate([nx * nx * a * sign + 1, b * sign, nx * (-sign)], axis=-1)
    s = normalize(s, 1e-6)
    t = normalize(jnp.cross(s, nrm), 1e-6)
    s = normalize(jnp.cross(nrm, t), 1e-6)
    frame = jnp.stack([s, t, nrm], axis=-1)

    def to_local(w):
        return normalize(jnp.einsum("...ij,...i->...j", frame, w), 1e-7)

    wo = to_local(normalize(view, 1e-12))
    wi = to_local(light)
    a2, b2 = -wi, wo
    denom_sq = (a2[..., 0:1] ** 2 + a2[..., 1:2] ** 2) * (b2[..., 0:1] ** 2 + b2[..., 1:2] ** 2)
    cos_phi = (a2[..., 0:1] * b2[..., 0:1] + a2[..., 1:2] * b2[..., 1:2]) / jnp.sqrt(
        jnp.maximum(denom_sq, 1e-24))
    cos_phi = jnp.clip(cos_phi, -1.0, 1.0)
    cheb = [jnp.ones_like(cos_phi), cos_phi]
    for _ in range(2, ORDER):
        cheb.append(2.0 * cos_phi * cheb[-1] - cheb[-2])
    cos_k = jnp.concatenate(cheb, axis=-1)

    enc = fourier_encode(x)
    bf = jnp.bfloat16
    mm = lambda a_, w_: jnp.dot(a_.astype(bf), w_.astype(bf),
                                preferred_element_type=jnp.float32)
    h = jax.nn.leaky_relu(mm(enc, params["w_in"]) + params["b_in"][0], 0.01)
    for l in range(NUM_HIDDEN_LAYERS):
        h = jax.nn.leaky_relu(mm(h, params["w_hid"][l]) + params["b_hid"][l, 0], 0.01) + h
    coeffs = mm(h, params["w_out"]) + params["b_out"][0]
    coeffs = coeffs.reshape(x.shape[:-1] + (OUT_FEATURES, ORDER))
    return jnp.sum(coeffs * cos_k[..., None, :], axis=-1)


if __name__ == "__main__":
    key = jax.random.PRNGKey(0)
    kx, kv, kn, kl, kp = jax.random.split(key, 5)
    B, S = 2, 600                      # 1200 points -> pads to 1536, grid = 3 tiles
    x = jax.random.normal(kx, (B, S, 3), jnp.float32)
    view = jax.random.normal(kv, (B, S, 3), jnp.float32)
    normal = jax.random.normal(kn, (B, S, 3), jnp.float32)
    light = jax.random.normal(kl, (B, S, 3), jnp.float32)
    params = init_params(kp)

    rgb = fourier_basis_forward(params, x, view, normal, light)
    jax.block_until_ready(rgb)

    ref = reference_forward(params, x, view, normal, light)
    # bf16 MXU operands + Mosaic-vs-XLA transcendental impl differences -> 1e-2 tol.
    np.testing.assert_allclose(np.asarray(rgb), np.asarray(ref),
                               rtol=1e-2, atol=1e-2)
    print("KERNEL_OK")
</pallas_src>

<mosaic_0001>
module attributes {stable_mosaic.version = 11 : i64} {
  func.func @fourier_basis_kernel(%arg0: i32, %arg1: memref<3x512xf32, #tpu.memory_space<vmem>>, %arg2: memref<3x512xf32, #tpu.memory_space<vmem>>, %arg3: memref<3x512xf32, #tpu.memory_space<vmem>>, %arg4: memref<3x512xf32, #tpu.memory_space<vmem>>, %arg5: memref<40x3xf32, #tpu.memory_space<vmem>>, %arg6: memref<40x3xf32, #tpu.memory_space<vmem>>, %arg7: memref<48x16xf32, #tpu.memory_space<vmem>>, %arg8: memref<3x48xf32, #tpu.memory_space<vmem>>, %arg9: memref<128x40xbf16, #tpu.memory_space<vmem>>, %arg10: memref<128x1xf32, #tpu.memory_space<vmem>>, %arg11: memref<4x128x128xbf16, #tpu.memory_space<vmem>>, %arg12: memref<4x128x1xf32, #tpu.memory_space<vmem>>, %arg13: memref<48x128xbf16, #tpu.memory_space<vmem>>, %arg14: memref<48x1xf32, #tpu.memory_space<vmem>>, %arg15: memref<3x512xf32, #tpu.memory_space<vmem>>) attributes {dimension_semantics = [#tpu.dimension_semantics<parallel>], iteration_bounds = array<i64: 3>, scalar_prefetch = 0 : i64, scratch_operands = 0 : i64, tpu.core_type = #tpu.core_type<tc>, window_params = [{transform_indices = @transform_0, window_bounds = array<i64: 3, 512>}, {transform_indices = @transform_1, window_bounds = array<i64: 3, 512>}, {transform_indices = @transform_2, window_bounds = array<i64: 3, 512>}, {transform_indices = @transform_3, window_bounds = array<i64: 3, 512>}, {pipeline_mode = #tpu.pipeline_mode<synchronous>, transform_indices = @transform_4, window_bounds = array<i64: 40, 3>}, {pipeline_mode = #tpu.pipeline_mode<synchronous>, transform_indices = @transform_5, window_bounds = array<i64: 40, 3>}, {pipeline_mode = #tpu.pipeline_mode<synchronous>, transform_indices = @transform_6, window_bounds = array<i64: 48, 16>}, {pipeline_mode = #tpu.pipeline_mode<synchronous>, transform_indices = @transform_7, window_bounds = array<i64: 3, 48>}, {pipeline_mode = #tpu.pipeline_mode<synchronous>, transform_indices = @transform_8, window_bounds = array<i64: 128, 40>}, {pipeline_mode = #tpu.pipeline_mode<synchronous>, transform_indices = @transform_9, window_bounds = array<i64: 128, 1>}, {pipeline_mode = #tpu.pipeline_mode<synchronous>, transform_indices = @transform_10, window_bounds = array<i64: 4, 128, 128>}, {pipeline_mode = #tpu.pipeline_mode<synchronous>, transform_indices = @transform_11, window_bounds = array<i64: 4, 128, 1>}, {pipeline_mode = #tpu.pipeline_mode<synchronous>, transform_indices = @transform_12, window_bounds = array<i64: 48, 128>}, {pipeline_mode = #tpu.pipeline_mode<synchronous>, transform_indices = @transform_13, window_bounds = array<i64: 48, 1>}, {transform_indices = @transform_14, window_bounds = array<i64: 3, 512>}]} {
    %c0 = arith.constant 0 : index
    %c0_0 = arith.constant 0 : index
    %0 = vector.load %arg3[%c0, %c0_0] : memref<3x512xf32, #tpu.memory_space<vmem>>, vector<1x512xf32>
    %c1 = arith.constant 1 : index
    %c0_1 = arith.constant 0 : index
    %1 = vector.load %arg3[%c1, %c0_1] : memref<3x512xf32, #tpu.memory_space<vmem>>, vector<1x512xf32>
    %c2 = arith.constant 2 : index
    %c0_2 = arith.constant 0 : index
    %2 = vector.load %arg3[%c2, %c0_2] : memref<3x512xf32, #tpu.memory_space<vmem>>, vector<1x512xf32>
    %3 = arith.mulf %0, %0 : vector<1x512xf32>
    %4 = arith.mulf %1, %1 : vector<1x512xf32>
    %5 = arith.addf %3, %4 : vector<1x512xf32>
    %6 = arith.mulf %2, %2 : vector<1x512xf32>
    %7 = arith.addf %5, %6 : vector<1x512xf32>
    %8 = math.sqrt %7 : vector<1x512xf32>
    %cst = arith.constant 9.99999997E-7 : f32
    %9 = vector.broadcast %cst : f32 to vector<1x512xf32>
    %10 = arith.maximumf %8, %9 : vector<1x512xf32>
    %cst_3 = arith.constant 1.000000e+00 : f32
    %11 = vector.broadcast %cst_3 : f32 to vector<1x512xf32>
    %12 = arith.divf %11, %10 : vector<1x512xf32>
    %13 = arith.mulf %0, %12 : vector<1x512xf32>
    %14 = arith.mulf %1, %12 : vector<1x512xf32>
    %15 = arith.mulf %2, %12 : vector<1x512xf32>
    %cst_4 = arith.constant 0.000000e+00 : f32
    %16 = vector.broadcast %cst_4 : f32 to vector<1x512xf32>
    %17 = arith.cmpf oge, %15, %16 : vector<1x512xf32>
    %cst_5 = arith.constant 1.000000e+00 : f32
    %cst_6 = arith.constant -1.000000e+00 : f32
    %18 = vector.broadcast %cst_5 : f32 to vector<1x512xf32>
    %19 = vector.broadcast %cst_6 : f32 to vector<1x512xf32>
    %20 = arith.select %17, %18, %19 : vector<1x512xi1>, vector<1x512xf32>
    %21 = arith.addf %20, %15 : vector<1x512xf32>
    %22 = math.absf %21 : vector<1x512xf32>
    %cst_7 = arith.constant 9.99999997E-7 : f32
    %23 = vector.broadcast %cst_7 : f32 to vector<1x512xf32>
    %24 = arith.cmpf olt, %22, %23 : vector<1x512xf32>
    %cst_8 = arith.constant 0.000000e+00 : f32
    %25 = vector.broadcast %cst_8 : f32 to vector<1x512xf32>
    %26 = arith.cmpf oge, %21, %25 : vector<1x512xf32>
    %cst_9 = arith.constant 9.99999997E-7 : f32
    %cst_10 = arith.constant -9.99999997E-7 : f32
    %27 = vector.broadcast %cst_9 : f32 to vector<1x512xf32>
    %28 = vector.broadcast %cst_10 : f32 to vector<1x512xf32>
    %29 = arith.select %26, %27, %28 : vector<1x512xi1>, vector<1x512xf32>
    %30 = arith.select %24, %29, %21 : vector<1x512xi1>, vector<1x512xf32>
    %cst_11 = arith.constant -1.000000e+00 : f32
    %31 = vector.broadcast %cst_11 : f32 to vector<1x512xf32>
    %32 = arith.divf %31, %30 : vector<1x512xf32>
    %33 = arith.mulf %13, %14 : vector<1x512xf32>
    %34 = arith.mulf %33, %32 : vector<1x512xf32>
    %35 = arith.mulf %13, %13 : vector<1x512xf32>
    %36 = arith.mulf %35, %32 : vector<1x512xf32>
    %37 = arith.mulf %36, %20 : vector<1x512xf32>
    %cst_12 = arith.constant 1.000000e+00 : f32
    %38 = vector.broadcast %cst_12 : f32 to vector<1x512xf32>
    %39 = arith.addf %37, %38 : vector<1x512xf32>
    %40 = arith.mulf %34, %20 : vector<1x512xf32>
    %cst_13 = arith.constant 0.000000e+00 : f32
    %41 = vector.broadcast %cst_13 : f32 to vector<1x512xf32>
    %42 = arith.subf %41, %20 : vector<1x512xf32>
    %43 = arith.mulf %13, %42 : vector<1x512xf32>
    %44 = arith.mulf %39, %39 : vector<1x512xf32>
    %45 = arith.mulf %40, %40 : vector<1x512xf32>
    %46 = arith.addf %44, %45 : vector<1x512xf32>
    %47 = arith.mulf %43, %43 : vector<1x512xf32>
    %48 = arith.addf %46, %47 : vector<1x512xf32>
    %49 = math.sqrt %48 : vector<1x512xf32>
    %cst_14 = arith.constant 9.99999997E-7 : f32
    %50 = vector.broadcast %cst_14 : f32 to vector<1x512xf32>
    %51 = arith.maximumf %49, %50 : vector<1x512xf32>
    %cst_15 = arith.constant 1.000000e+00 : f32
    %52 = vector.broadcast %cst_15 : f32 to vector<1x512xf32>
    %53 = arith.divf %52, %51 : vector<1x512xf32>
    %54 = arith.mulf %39, %53 : vector<1x512xf32>
    %55 = arith.mulf %40, %53 : vector<1x512xf32>
    %56 = arith.mulf %43, %53 : vector<1x512xf32>
    %57 = arith.mulf %55, %15 : vector<1x512xf32>
    %58 = arith.mulf %56, %14 : vector<1x512xf32>
    %59 = arith.subf %57, %58 : vector<1x512xf32>
    %60 = arith.mulf %56, %13 : vector<1x512xf32>
    %61 = arith.mulf %54, %15 : vector<1x512xf32>
    %62 = arith.subf %60, %61 : vector<1x512xf32>
    %63 = arith.mulf %54, %14 : vector<1x512xf32>
    %64 = arith.mulf %55, %13 : vector<1x512xf32>
    %65 = arith.subf %63, %64 : vector<1x512xf32>
    %66 = arith.mulf %59, %59 : vector<1x512xf32>
    %67 = arith.mulf %62, %62 : vector<1x512xf32>
    %68 = arith.addf %66, %67 : vector<1x512xf32>
    %69 = arith.mulf %65, %65 : vector<1x512xf32>
    %70 = arith.addf %68, %69 : vector<1x512xf32>
    %71 = math.sqrt %70 : vector<1x512xf32>
    %cst_16 = arith.constant 9.99999997E-7 : f32
    %72 = vector.broadcast %cst_16 : f32 to vector<1x512xf32>
    %73 = arith.maximumf %71, %72 : vector<1x512xf32>
    %cst_17 = arith.constant 1.000000e+00 : f32
    %74 = vector.broadcast %cst_17 : f32 to vector<1x512xf32>
    %75 = arith.divf %74, %73 : vector<1x512xf32>
    %76 = arith.mulf %59, %75 : vector<1x512xf32>
    %77 = arith.mulf %62, %75 : vector<1x512xf32>
    %78 = arith.mulf %65, %75 : vector<1x512xf32>
    %79 = arith.mulf %14, %78 : vector<1x512xf32>
    %80 = arith.mulf %15, %77 : vector<1x512xf32>
    %81 = arith.subf %79, %80 : vector<1x512xf32>
    %82 = arith.mulf %15, %76 : vector<1x512xf32>
    %83 = arith.mulf %13, %78 : vector<1x512xf32>
    %84 = arith.subf %82, %83 : vector<1x512xf32>
    %85 = arith.mulf %13, %77 : vector<1x512xf32>
    %86 = arith.mulf %14, %76 : vector<1x512xf32>
    %87 = arith.subf %85, %86 : vector<1x512xf32>
    %88 = arith.mulf %81, %81 : vector<1x512xf32>
    %89 = arith.mulf %84, %84 : vector<1x512xf32>
    %90 = arith.addf %88, %89 : vector<1x512xf32>
    %91 = arith.mulf %87, %87 : vector<1x512xf32>
    %92 = arith.addf %90, %91 : vector<1x512xf32>
    %93 = math.sqrt %92 : vector<1x512xf32>
    %cst_18 = arith.constant 9.99999997E-7 : f32
    %94 = vector.broadcast %cst_18 : f32 to vector<1x512xf32>
    %95 = arith.maximumf %93, %94 : vector<1x512xf32>
    %cst_19 = arith.constant 1.000000e+00 : f32
    %96 = vector.broadcast %cst_19 : f32 to vector<1x512xf32>
    %97 = arith.divf %96, %95 : vector<1x512xf32>
    %98 = arith.mulf %81, %97 : vector<1x512xf32>
    %99 = arith.mulf %84, %97 : vector<1x512xf32>
    %100 = arith.mulf %87, %97 : vector<1x512xf32>
    %c0_20 = arith.constant 0 : index
    %c0_21 = arith.constant 0 : index
    %101 = vector.load %arg2[%c0_20, %c0_21] : memref<3x512xf32, #tpu.memory_space<vmem>>, vector<1x512xf32>
    %c1_22 = arith.constant 1 : index
    %c0_23 = arith.constant 0 : index
    %102 = vector.load %arg2[%c1_22, %c0_23] : memref<3x512xf32, #tpu.memory_space<vmem>>, vector<1x512xf32>
    %c2_24 = arith.constant 2 : index
    %c0_25 = arith.constant 0 : index
    %103 = vector.load %arg2[%c2_24, %c0_25] : memref<3x512xf32, #tpu.memory_space<vmem>>, vector<1x512xf32>
    %104 = arith.mulf %101, %101 : vector<1x512xf32>
    %105 = arith.mulf %102, %102 : vector<1x512xf32>
    %106 = arith.addf %104, %105 : vector<1x512xf32>
    %107 = arith.mulf %103, %103 : vector<1x512xf32>
    %108 = arith.addf %106, %107 : vector<1x512xf32>
    %109 = math.sqrt %108 : vector<1x512xf32>
    %cst_26 = arith.constant 9.99999996E-13 : f32
    %110 = vector.broadcast %cst_26 : f32 to vector<1x512xf32>
    %111 = arith.maximumf %109, %110 : vector<1x512xf32>
    %cst_27 = arith.constant 1.000000e+00 : f32
    %112 = vector.broadcast %cst_27 : f32 to vector<1x512xf32>
    %113 = arith.divf %112, %111 : vector<1x512xf32>
    %114 = arith.mulf %101, %113 : vector<1x512xf32>
    %115 = arith.mulf %102, %113 : vector<1x512xf32>
    %116 = arith.mulf %103, %113 : vector<1x512xf32>
    %117 = arith.mulf %98, %114 : vector<1x512xf32>
    %118 = arith.mulf %99, %115 : vector<1x512xf32>
    %119 = arith.addf %117, %118 : vector<1x512xf32>
    %120 = arith.mulf %100, %116 : vector<1x512xf32>
    %121 = arith.addf %119, %120 : vector<1x512xf32>
    %122 = arith.mulf %76, %114 : vector<1x512xf32>
    %123 = arith.mulf %77, %115 : vector<1x512xf32>
    %124 = arith.addf %122, %123 : vector<1x512xf32>
    %125 = arith.mulf %78, %116 : vector<1x512xf32>
    %126 = arith.addf %124, %125 : vector<1x512xf32>
    %127 = arith.mulf %13, %114 : vector<1x512xf32>
    %128 = arith.mulf %14, %115 : vector<1x512xf32>
    %129 = arith.addf %127, %128 : vector<1x512xf32>
    %130 = arith.mulf %15, %116 : vector<1x512xf32>
    %131 = arith.addf %129, %130 : vector<1x512xf32>
    %132 = arith.mulf %121, %121 : vector<1x512xf32>
    %133 = arith.mulf %126, %126 : vector<1x512xf32>
    %134 = arith.addf %132, %133 : vector<1x512xf32>
    %135 = arith.mulf %131, %131 : vector<1x512xf32>
    %136 = arith.addf %134, %135 : vector<1x512xf32>
    %137 = math.sqrt %136 : vector<1x512xf32>
    %cst_28 = arith.constant 1.000000e-07 : f32
    %138 = vector.broadcast %cst_28 : f32 to vector<1x512xf32>
    %139 = arith.maximumf %137, %138 : vector<1x512xf32>
    %cst_29 = arith.constant 1.000000e+00 : f32
    %140 = vector.broadcast %cst_29 : f32 to vector<1x512xf32>
    %141 = arith.divf %140, %139 : vector<1x512xf32>
    %142 = arith.mulf %121, %141 : vector<1x512xf32>
    %143 = arith.mulf %126, %141 : vector<1x512xf32>
    %c0_30 = arith.constant 0 : index
    %c0_31 = arith.constant 0 : index
    %144 = vector.load %arg4[%c0_30, %c0_31] : memref<3x512xf32, #tpu.memory_space<vmem>>, vector<1x512xf32>
    %c1_32 = arith.constant 1 : index
    %c0_33 = arith.constant 0 : index
    %145 = vector.load %arg4[%c1_32, %c0_33] : memref<3x512xf32, #tpu.memory_space<vmem>>, vector<1x512xf32>
    %c2_34 = arith.constant 2 : index
    %c0_35 = arith.constant 0 : index
    %146 = vector.load %arg4[%c2_34, %c0_35] : memref<3x512xf32, #tpu.memory_space<vmem>>, vector<1x512xf32>
    %147 = arith.mulf %98, %144 : vector<1x512xf32>
    %148 = arith.mulf %99, %145 : vector<1x512xf32>
    %149 = arith.addf %147, %148 : vector<1x512xf32>
    %150 = arith.mulf %100, %146 : vector<1x512xf32>
    %151 = arith.addf %149, %150 : vector<1x512xf32>
    %152 = arith.mulf %76, %144 : vector<1x512xf32>
    %153 = arith.mulf %77, %145 : vector<1x512xf32>
    %154 = arith.addf %152, %153 : vector<1x512xf32>
    %155 = arith.mulf %78, %146 : vector<1x512xf32>
    %156 = arith.addf %154, %155 : vector<1x512xf32>
    %157 = arith.mulf %13, %144 : vector<1x512xf32>
    %158 = arith.mulf %14, %145 : vector<1x512xf32>
    %159 = arith.addf %157, %158 : vector<1x512xf32>
    %160 = arith.mulf %15, %146 : vector<1x512xf32>
    %161 = arith.addf %159, %160 : vector<1x512xf32>
    %162 = arith.mulf %151, %151 : vector<1x512xf32>
    %163 = arith.mulf %156, %156 : vector<1x512xf32>
    %164 = arith.addf %162, %163 : vector<1x512xf32>
    %165 = arith.mulf %161, %161 : vector<1x512xf32>
    %166 = arith.addf %164, %165 : vector<1x512xf32>
    %167 = math.sqrt %166 : vector<1x512xf32>
    %cst_36 = arith.constant 1.000000e-07 : f32
    %168 = vector.broadcast %cst_36 : f32 to vector<1x512xf32>
    %169 = arith.maximumf %167, %168 : vector<1x512xf32>
    %cst_37 = arith.constant 1.000000e+00 : f32
    %170 = vector.broadcast %cst_37 : f32 to vector<1x512xf32>
    %171 = arith.divf %170, %169 : vector<1x512xf32>
    %172 = arith.mulf %151, %171 : vector<1x512xf32>
    %173 = arith.mulf %156, %171 : vector<1x512xf32>
    %cst_38 = arith.constant 0.000000e+00 : f32
    %174 = vector.broadcast %cst_38 : f32 to vector<1x512xf32>
    %175 = arith.subf %174, %172 : vector<1x512xf32>
    %cst_39 = arith.constant 0.000000e+00 : f32
    %176 = vector.broadcast %cst_39 : f32 to vector<1x512xf32>
    %177 = arith.subf %176, %173 : vector<1x512xf32>
    %178 = arith.mulf %175, %175 : vector<1x512xf32>
    %179 = arith.mulf %177, %177 : vector<1x512xf32>
    %180 = arith.addf %178, %179 : vector<1x512xf32>
    %181 = arith.mulf %142, %142 : vector<1x512xf32>
    %182 = arith.mulf %143, %143 : vector<1x512xf32>
    %183 = arith.addf %181, %182 : vector<1x512xf32>
    %184 = arith.mulf %180, %183 : vector<1x512xf32>
    %185 = arith.mulf %175, %142 : vector<1x512xf32>
    %186 = arith.mulf %177, %143 : vector<1x512xf32>
    %187 = arith.addf %185, %186 : vector<1x512xf32>
    %cst_40 = arith.constant 1.000000e-24 : f32
    %188 = vector.broadcast %cst_40 : f32 to vector<1x512xf32>
    %189 = arith.maximumf %184, %188 : vector<1x512xf32>
    %190 = math.sqrt %189 : vector<1x512xf32>
    %191 = arith.divf %187, %190 : vector<1x512xf32>
    %cst_41 = arith.constant -1.000000e+00 : f32
    %cst_42 = arith.constant 1.000000e+00 : f32
    %192 = vector.broadcast %cst_41 : f32 to vector<1x512xf32>
    %193 = arith.maximumf %192, %191 : vector<1x512xf32>
    %194 = vector.broadcast %cst_42 : f32 to vector<1x512xf32>
    %195 = arith.minimumf %194, %193 : vector<1x512xf32>
    %c0_43 = arith.constant 0 : index
    %c0_44 = arith.constant 0 : index
    %196 = vector.load %arg7[%c0_43, %c0_44] : memref<48x16xf32, #tpu.memory_space<vmem>>, vector<48x16xf32>
    %cst_45 = arith.constant 1.000000e+00 : f32
    %197 = vector.broadcast %cst_45 : f32 to vector<1x512xf32>
    %198 = vector.extract_strided_slice %196 {offsets = [0, 0], sizes = [48, 1], strides = [1, 1]} : vector<48x16xf32> to vector<48x1xf32>
    %199 = vector.broadcast %198 : vector<48x1xf32> to vector<48x512xf32>
    %200 = vector.broadcast %197 : vector<1x512xf32> to vector<48x512xf32>
    %201 = arith.mulf %199, %200 : vector<48x512xf32>
    %202 = vector.extract_strided_slice %196 {offsets = [0, 1], sizes = [48, 1], strides = [1, 1]} : vector<48x16xf32> to vector<48x1xf32>
    %203 = vector.broadcast %202 : vector<48x1xf32> to vector<48x512xf32>
    %204 = vector.broadcast %195 : vector<1x512xf32> to vector<48x512xf32>
    %205 = arith.mulf %203, %204 : vector<48x512xf32>
    %206 = arith.addf %201, %205 : vector<48x512xf32>
    %cst_46 = arith.constant 2.000000e+00 : f32
    %207 = vector.broadcast %cst_46 : f32 to vector<1x512xf32>
    %208 = arith.mulf %207, %195 : vector<1x512xf32>
    %209 = arith.mulf %208, %195 : vector<1x512xf32>
    %210 = arith.subf %209, %197 : vector<1x512xf32>
    %211 = vector.extract_strided_slice %196 {offsets = [0, 2], sizes = [48, 1], strides = [1, 1]} : vector<48x16xf32> to vector<48x1xf32>
    %212 = vector.broadcast %211 : vector<48x1xf32> to vector<48x512xf32>
    %213 = vector.broadcast %210 : vector<1x512xf32> to vector<48x512xf32>
    %214 = arith.mulf %212, %213 : vector<48x512xf32>
    %215 = arith.addf %206, %214 : vector<48x512xf32>
    %cst_47 = arith.constant 2.000000e+00 : f32
    %216 = vector.broadcast %cst_47 : f32 to vector<1x512xf32>
    %217 = arith.mulf %216, %195 : vector<1x512xf32>
    %218 = arith.mulf %217, %210 : vector<1x512xf32>
    %219 = arith.subf %218, %195 : vector<1x512xf32>
    %220 = vector.extract_strided_slice %196 {offsets = [0, 3], sizes = [48, 1], strides = [1, 1]} : vector<48x16xf32> to vector<48x1xf32>
    %221 = vector.broadcast %220 : vector<48x1xf32> to vector<48x512xf32>
    %222 = vector.broadcast %219 : vector<1x512xf32> to vector<48x512xf32>
    %223 = arith.mulf %221, %222 : vector<48x512xf32>
    %224 = arith.addf %215, %223 : vector<48x512xf32>
    %cst_48 = arith.constant 2.000000e+00 : f32
    %225 = vector.broadcast %cst_48 : f32 to vector<1x512xf32>
    %226 = arith.mulf %225, %195 : vector<1x512xf32>
    %227 = arith.mulf %226, %219 : vector<1x512xf32>
    %228 = arith.subf %227, %210 : vector<1x512xf32>
    %229 = vector.extract_strided_slice %196 {offsets = [0, 4], sizes = [48, 1], strides = [1, 1]} : vector<48x16xf32> to vector<48x1xf32>
    %230 = vector.broadcast %229 : vector<48x1xf32> to vector<48x512xf32>
    %231 = vector.broadcast %228 : vector<1x512xf32> to vector<48x512xf32>
    %232 = arith.mulf %230, %231 : vector<48x512xf32>
    %233 = arith.addf %224, %232 : vector<48x512xf32>
    %cst_49 = arith.constant 2.000000e+00 : f32
    %234 = vector.broadcast %cst_49 : f32 to vector<1x512xf32>
    %235 = arith.mulf %234, %195 : vector<1x512xf32>
    %236 = arith.mulf %235, %228 : vector<1x512xf32>
    %237 = arith.subf %236, %219 : vector<1x512xf32>
    %238 = vector.extract_strided_slice %196 {offsets = [0, 5], sizes = [48, 1], strides = [1, 1]} : vector<48x16xf32> to vector<48x1xf32>
    %239 = vector.broadcast %238 : vector<48x1xf32> to vector<48x512xf32>
    %240 = vector.broadcast %237 : vector<1x512xf32> to vector<48x512xf32>
    %241 = arith.mulf %239, %240 : vector<48x512xf32>
    %242 = arith.addf %233, %241 : vector<48x512xf32>
    %cst_50 = arith.constant 2.000000e+00 : f32
    %243 = vector.broadcast %cst_50 : f32 to vector<1x512xf32>
    %244 = arith.mulf %243, %195 : vector<1x512xf32>
    %245 = arith.mulf %244, %237 : vector<1x512xf32>
    %246 = arith.subf %245, %228 : vector<1x512xf32>
    %247 = vector.extract_strided_slice %196 {offsets = [0, 6], sizes = [48, 1], strides = [1, 1]} : vector<48x16xf32> to vector<48x1xf32>
    %248 = vector.broadcast %247 : vector<48x1xf32> to vector<48x512xf32>
    %249 = vector.broadcast %246 : vector<1x512xf32> to vector<48x512xf32>
    %250 = arith.mulf %248, %249 : vector<48x512xf32>
    %251 = arith.addf %242, %250 : vector<48x512xf32>
    %cst_51 = arith.constant 2.000000e+00 : f32
    %252 = vector.broadcast %cst_51 : f32 to vector<1x512xf32>
    %253 = arith.mulf %252, %195 : vector<1x512xf32>
    %254 = arith.mulf %253, %246 : vector<1x512xf32>
    %255 = arith.subf %254, %237 : vector<1x512xf32>
    %256 = vector.extract_strided_slice %196 {offsets = [0, 7], sizes = [48, 1], strides = [1, 1]} : vector<48x16xf32> to vector<48x1xf32>
    %257 = vector.broadcast %256 : vector<48x1xf32> to vector<48x512xf32>
    %258 = vector.broadcast %255 : vector<1x512xf32> to vector<48x512xf32>
    %259 = arith.mulf %257, %258 : vector<48x512xf32>
    %260 = arith.addf %251, %259 : vector<48x512xf32>
    %cst_52 = arith.constant 2.000000e+00 : f32
    %261 = vector.broadcast %cst_52 : f32 to vector<1x512xf32>
    %262 = arith.mulf %261, %195 : vector<1x512xf32>
    %263 = arith.mulf %262, %255 : vector<1x512xf32>
    %264 = arith.subf %263, %246 : vector<1x512xf32>
    %265 = vector.extract_strided_slice %196 {offsets = [0, 8], sizes = [48, 1], strides = [1, 1]} : vector<48x16xf32> to vector<48x1xf32>
    %266 = vector.broadcast %265 : vector<48x1xf32> to vector<48x512xf32>
    %267 = vector.broadcast %264 : vector<1x512xf32> to vector<48x512xf32>
    %268 = arith.mulf %266, %267 : vector<48x512xf32>
    %269 = arith.addf %260, %268 : vector<48x512xf32>
    %cst_53 = arith.constant 2.000000e+00 : f32
    %270 = vector.broadcast %cst_53 : f32 to vector<1x512xf32>
    %271 = arith.mulf %270, %195 : vector<1x512xf32>
    %272 = arith.mulf %271, %264 : vector<1x512xf32>
    %273 = arith.subf %272, %255 : vector<1x512xf32>
    %274 = vector.extract_strided_slice %196 {offsets = [0, 9], sizes = [48, 1], strides = [1, 1]} : vector<48x16xf32> to vector<48x1xf32>
    %275 = vector.broadcast %274 : vector<48x1xf32> to vector<48x512xf32>
    %276 = vector.broadcast %273 : vector<1x512xf32> to vector<48x512xf32>
    %277 = arith.mulf %275, %276 : vector<48x512xf32>
    %278 = arith.addf %269, %277 : vector<48x512xf32>
    %cst_54 = arith.constant 2.000000e+00 : f32
    %279 = vector.broadcast %cst_54 : f32 to vector<1x512xf32>
    %280 = arith.mulf %279, %195 : vector<1x512xf32>
    %281 = arith.mulf %280, %273 : vector<1x512xf32>
    %282 = arith.subf %281, %264 : vector<1x512xf32>
    %283 = vector.extract_strided_slice %196 {offsets = [0, 10], sizes = [48, 1], strides = [1, 1]} : vector<48x16xf32> to vector<48x1xf32>
    %284 = vector.broadcast %283 : vector<48x1xf32> to vector<48x512xf32>
    %285 = vector.broadcast %282 : vector<1x512xf32> to vector<48x512xf32>
    %286 = arith.mulf %284, %285 : vector<48x512xf32>
    %287 = arith.addf %278, %286 : vector<48x512xf32>
    %cst_55 = arith.constant 2.000000e+00 : f32
    %288 = vector.broadcast %cst_55 : f32 to vector<1x512xf32>
    %289 = arith.mulf %288, %195 : vector<1x512xf32>
    %290 = arith.mulf %289, %282 : vector<1x512xf32>
    %291 = arith.subf %290, %273 : vector<1x512xf32>
    %292 = vector.extract_strided_slice %196 {offsets = [0, 11], sizes = [48, 1], strides = [1, 1]} : vector<48x16xf32> to vector<48x1xf32>
    %293 = vector.broadcast %292 : vector<48x1xf32> to vector<48x512xf32>
    %294 = vector.broadcast %291 : vector<1x512xf32> to vector<48x512xf32>
    %295 = arith.mulf %293, %294 : vector<48x512xf32>
    %296 = arith.addf %287, %295 : vector<48x512xf32>
    %cst_56 = arith.constant 2.000000e+00 : f32
    %297 = vector.broadcast %cst_56 : f32 to vector<1x512xf32>
    %298 = arith.mulf %297, %195 : vector<1x512xf32>
    %299 = arith.mulf %298, %291 : vector<1x512xf32>
    %300 = arith.subf %299, %282 : vector<1x512xf32>
    %301 = vector.extract_strided_slice %196 {offsets = [0, 12], sizes = [48, 1], strides = [1, 1]} : vector<48x16xf32> to vector<48x1xf32>
    %302 = vector.broadcast %301 : vector<48x1xf32> to vector<48x512xf32>
    %303 = vector.broadcast %300 : vector<1x512xf32> to vector<48x512xf32>
    %304 = arith.mulf %302, %303 : vector<48x512xf32>
    %305 = arith.addf %296, %304 : vector<48x512xf32>
    %cst_57 = arith.constant 2.000000e+00 : f32
    %306 = vector.broadcast %cst_57 : f32 to vector<1x512xf32>
    %307 = arith.mulf %306, %195 : vector<1x512xf32>
    %308 = arith.mulf %307, %300 : vector<1x512xf32>
    %309 = arith.subf %308, %291 : vector<1x512xf32>
    %310 = vector.extract_strided_slice %196 {offsets = [0, 13], sizes = [48, 1], strides = [1, 1]} : vector<48x16xf32> to vector<48x1xf32>
    %311 = vector.broadcast %310 : vector<48x1xf32> to vector<48x512xf32>
    %312 = vector.broadcast %309 : vector<1x512xf32> to vector<48x512xf32>
    %313 = arith.mulf %311, %312 : vector<48x512xf32>
    %314 = arith.addf %305, %313 : vector<48x512xf32>
    %cst_58 = arith.constant 2.000000e+00 : f32
    %315 = vector.broadcast %cst_58 : f32 to vector<1x512xf32>
    %316 = arith.mulf %315, %195 : vector<1x512xf32>
    %317 = arith.mulf %316, %309 : vector<1x512xf32>
    %318 = arith.subf %317, %300 : vector<1x512xf32>
    %319 = vector.extract_strided_slice %196 {offsets = [0, 14], sizes = [48, 1], strides = [1, 1]} : vector<48x16xf32> to vector<48x1xf32>
    %320 = vector.broadcast %319 : vector<48x1xf32> to vector<48x512xf32>
    %321 = vector.broadcast %318 : vector<1x512xf32> to vector<48x512xf32>
    %322 = arith.mulf %320, %321 : vector<48x512xf32>
    %323 = arith.addf %314, %322 : vector<48x512xf32>
    %cst_59 = arith.constant 2.000000e+00 : f32
    %324 = vector.broadcast %cst_59 : f32 to vector<1x512xf32>
    %325 = arith.mulf %324, %195 : vector<1x512xf32>
    %326 = arith.mulf %325, %318 : vector<1x512xf32>
    %327 = arith.subf %326, %309 : vector<1x512xf32>
    %328 = vector.extract_strided_slice %196 {offsets = [0, 15], sizes = [48, 1], strides = [1, 1]} : vector<48x16xf32> to vector<48x1xf32>
    %329 = vector.broadcast %328 : vector<48x1xf32> to vector<48x512xf32>
    %330 = vector.broadcast %327 : vector<1x512xf32> to vector<48x512xf32>
    %331 = arith.mulf %329, %330 : vector<48x512xf32>
    %332 = arith.addf %323, %331 : vector<48x512xf32>
    %c0_60 = arith.constant 0 : index
    %c0_61 = arith.constant 0 : index
    %333 = vector.load %arg5[%c0_60, %c0_61] : memref<40x3xf32, #tpu.memory_space<vmem>>, vector<40x3xf32>
    %c0_62 = arith.constant 0 : index
    %c0_63 = arith.constant 0 : index
    %334 = vector.load %arg6[%c0_62, %c0_63] : memref<40x3xf32, #tpu.memory_space<vmem>>, vector<40x3xf32>
    %335 = vector.extract_strided_slice %333 {offsets = [0, 0], sizes = [40, 1], strides = [1, 1]} : vector<40x3xf32> to vector<40x1xf32>
    %c0_64 = arith.constant 0 : index
    %c0_65 = arith.constant 0 : index
    %336 = vector.load %arg1[%c0_64, %c0_65] : memref<3x512xf32, #tpu.memory_space<vmem>>, vector<1x512xf32>
    %337 = vector.broadcast %335 : vector<40x1xf32> to vector<40x512xf32>
    %338 = vector.broadcast %336 : vector<1x512xf32> to vector<40x512xf32>
    %339 = arith.mulf %337, %338 : vector<40x512xf32>
    %340 = vector.extract_strided_slice %333 {offsets = [0, 1], sizes = [40, 1], strides = [1, 1]} : vector<40x3xf32> to vector<40x1xf32>
    %c1_66 = arith.constant 1 : index
    %c0_67 = arith.constant 0 : index
    %341 = vector.load %arg1[%c1_66, %c0_67] : memref<3x512xf32, #tpu.memory_space<vmem>>, vector<1x512xf32>
    %342 = vector.broadcast %340 : vector<40x1xf32> to vector<40x512xf32>
    %343 = vector.broadcast %341 : vector<1x512xf32> to vector<40x512xf32>
    %344 = arith.mulf %342, %343 : vector<40x512xf32>
    %345 = arith.addf %339, %344 : vector<40x512xf32>
    %346 = vector.extract_strided_slice %333 {offsets = [0, 2], sizes = [40, 1], strides = [1, 1]} : vector<40x3xf32> to vector<40x1xf32>
    %c2_68 = arith.constant 2 : index
    %c0_69 = arith.constant 0 : index
    %347 = vector.load %arg1[%c2_68, %c0_69] : memref<3x512xf32, #tpu.memory_space<vmem>>, vector<1x512xf32>
    %348 = vector.broadcast %346 : vector<40x1xf32> to vector<40x512xf32>
    %349 = vector.broadcast %347 : vector<1x512xf32> to vector<40x512xf32>
    %350 = arith.mulf %348, %349 : vector<40x512xf32>
    %351 = arith.addf %345, %350 : vector<40x512xf32>
    %352 = vector.extract_strided_slice %334 {offsets = [0, 0], sizes = [40, 1], strides = [1, 1]} : vector<40x3xf32> to vector<40x1xf32>
    %353 = vector.broadcast %352 : vector<40x1xf32> to vector<40x512xf32>
    %354 = arith.mulf %353, %351 : vector<40x512xf32>
    %355 = vector.extract_strided_slice %334 {offsets = [0, 1], sizes = [40, 1], strides = [1, 1]} : vector<40x3xf32> to vector<40x1xf32>
    %356 = math.sin %351 : vector<40x512xf32>
    %357 = vector.broadcast %355 : vector<40x1xf32> to vector<40x512xf32>
    %358 = arith.mulf %357, %356 : vector<40x512xf32>
    %359 = arith.addf %354, %358 : vector<40x512xf32>
    %360 = vector.extract_strided_slice %334 {offsets = [0, 2], sizes = [40, 1], strides = [1, 1]} : vector<40x3xf32> to vector<40x1xf32>
    %361 = math.cos %351 : vector<40x512xf32>
    %362 = vector.broadcast %360 : vector<40x1xf32> to vector<40x512xf32>
    %363 = arith.mulf %362, %361 : vector<40x512xf32>
    %364 = arith.addf %359, %363 : vector<40x512xf32>
    %c0_70 = arith.constant 0 : index
    %c0_71 = arith.constant 0 : index
    %365 = vector.load %arg9[%c0_70, %c0_71] : memref<128x40xbf16, #tpu.memory_space<vmem>>, vector<128x40xbf16>
    %366 = arith.truncf %364 : vector<40x512xf32> to vector<40x512xbf16>
    %cst_72 = arith.constant dense<0.000000e+00> : vector<128x512xf32>
    %367 = tpu.matmul %365, %366, %cst_72 {dimension_numbers = #tpu.dot_dimension_numbers<[1], [0], [0], [1], [0, 0, 1, 1], [], []>} : vector<128x40xbf16>, vector<40x512xbf16>, vector<128x512xf32> -> vector<128x512xf32>
    %c0_73 = arith.constant 0 : index
    %c0_74 = arith.constant 0 : index
    %368 = vector.load %arg10[%c0_73, %c0_74] : memref<128x1xf32, #tpu.memory_space<vmem>>, vector<128x1xf32>
    %369 = vector.broadcast %368 : vector<128x1xf32> to vector<128x512xf32>
    %370 = arith.addf %367, %369 : vector<128x512xf32>
    %cst_75 = arith.constant 0.000000e+00 : f32
    %371 = vector.broadcast %cst_75 : f32 to vector<128x512xf32>
    %372 = arith.cmpf oge, %370, %371 : vector<128x512xf32>
    %cst_76 = arith.constant 0.00999999977 : f32
    %373 = vector.broadcast %cst_76 : f32 to vector<128x512xf32>
    %374 = arith.mulf %373, %370 : vector<128x512xf32>
    %375 = arith.select %372, %370, %374 : vector<128x512xi1>, vector<128x512xf32>
    %c0_77 = arith.constant 0 : index
    %c0_78 = arith.constant 0 : index
    %c0_79 = arith.constant 0 : index
    %376 = vector.load %arg11[%c0_77, %c0_78, %c0_79] : memref<4x128x128xbf16, #tpu.memory_space<vmem>>, vector<1x128x128xbf16>
    %377 = vector.shape_cast %376 : vector<1x128x128xbf16> to vector<128x128xbf16>
    %378 = arith.truncf %375 : vector<128x512xf32> to vector<128x512xbf16>
    %cst_80 = arith.constant dense<0.000000e+00> : vector<128x512xf32>
    %379 = tpu.matmul %377, %378, %cst_80 {dimension_numbers = #tpu.dot_dimension_numbers<[1], [0], [0], [1], [0, 0, 1, 1], [], []>} : vector<128x128xbf16>, vector<128x512xbf16>, vector<128x512xf32> -> vector<128x512xf32>
    %c0_81 = arith.constant 0 : index
    %c0_82 = arith.constant 0 : index
    %c0_83 = arith.constant 0 : index
    %380 = vector.load %arg12[%c0_81, %c0_82, %c0_83] : memref<4x128x1xf32, #tpu.memory_space<vmem>>, vector<1x128x1xf32>
    %381 = vector.shape_cast %380 : vector<1x128x1xf32> to vector<128x1xf32>
    %382 = vector.broadcast %381 : vector<128x1xf32> to vector<128x512xf32>
    %383 = arith.addf %379, %382 : vector<128x512xf32>
    %cst_84 = arith.constant 0.000000e+00 : f32
    %384 = vector.broadcast %cst_84 : f32 to vector<128x512xf32>
    %385 = arith.cmpf oge, %383, %384 : vector<128x512xf32>
    %cst_85 = arith.constant 0.00999999977 : f32
    %386 = vector.broadcast %cst_85 : f32 to vector<128x512xf32>
    %387 = arith.mulf %386, %383 : vector<128x512xf32>
    %388 = arith.select %385, %383, %387 : vector<128x512xi1>, vector<128x512xf32>
    %389 = arith.addf %388, %375 : vector<128x512xf32>
    %c1_86 = arith.constant 1 : index
    %c0_87 = arith.constant 0 : index
    %c0_88 = arith.constant 0 : index
    %390 = vector.load %arg11[%c1_86, %c0_87, %c0_88] : memref<4x128x128xbf16, #tpu.memory_space<vmem>>, vector<1x128x128xbf16>
    %391 = vector.shape_cast %390 : vector<1x128x128xbf16> to vector<128x128xbf16>
    %392 = arith.truncf %389 : vector<128x512xf32> to vector<128x512xbf16>
    %cst_89 = arith.constant dense<0.000000e+00> : vector<128x512xf32>
    %393 = tpu.matmul %391, %392, %cst_89 {dimension_numbers = #tpu.dot_dimension_numbers<[1], [0], [0], [1], [0, 0, 1, 1], [], []>} : vector<128x128xbf16>, vector<128x512xbf16>, vector<128x512xf32> -> vector<128x512xf32>
    %c1_90 = arith.constant 1 : index
    %c0_91 = arith.constant 0 : index
    %c0_92 = arith.constant 0 : index
    %394 = vector.load %arg12[%c1_90, %c0_91, %c0_92] : memref<4x128x1xf32, #tpu.memory_space<vmem>>, vector<1x128x1xf32>
    %395 = vector.shape_cast %394 : vector<1x128x1xf32> to vector<128x1xf32>
    %396 = vector.broadcast %395 : vector<128x1xf32> to vector<128x512xf32>
    %397 = arith.addf %393, %396 : vector<128x512xf32>
    %cst_93 = arith.constant 0.000000e+00 : f32
    %398 = vector.broadcast %cst_93 : f32 to vector<128x512xf32>
    %399 = arith.cmpf oge, %397, %398 : vector<128x512xf32>
    %cst_94 = arith.constant 0.00999999977 : f32
    %400 = vector.broadcast %cst_94 : f32 to vector<128x512xf32>
    %401 = arith.mulf %400, %397 : vector<128x512xf32>
    %402 = arith.select %399, %397, %401 : vector<128x512xi1>, vector<128x512xf32>
    %403 = arith.addf %402, %389 : vector<128x512xf32>
    %c2_95 = arith.constant 2 : index
    %c0_96 = arith.constant 0 : index
    %c0_97 = arith.constant 0 : index
    %404 = vector.load %arg11[%c2_95, %c0_96, %c0_97] : memref<4x128x128xbf16, #tpu.memory_space<vmem>>, vector<1x128x128xbf16>
    %405 = vector.shape_cast %404 : vector<1x128x128xbf16> to vector<128x128xbf16>
    %406 = arith.truncf %403 : vector<128x512xf32> to vector<128x512xbf16>
    %cst_98 = arith.constant dense<0.000000e+00> : vector<128x512xf32>
    %407 = tpu.matmul %405, %406, %cst_98 {dimension_numbers = #tpu.dot_dimension_numbers<[1], [0], [0], [1], [0, 0, 1, 1], [], []>} : vector<128x128xbf16>, vector<128x512xbf16>, vector<128x512xf32> -> vector<128x512xf32>
    %c2_99 = arith.constant 2 : index
    %c0_100 = arith.constant 0 : index
    %c0_101 = arith.constant 0 : index
    %408 = vector.load %arg12[%c2_99, %c0_100, %c0_101] : memref<4x128x1xf32, #tpu.memory_space<vmem>>, vector<1x128x1xf32>
    %409 = vector.shape_cast %408 : vector<1x128x1xf32> to vector<128x1xf32>
    %410 = vector.broadcast %409 : vector<128x1xf32> to vector<128x512xf32>
    %411 = arith.addf %407, %410 : vector<128x512xf32>
    %cst_102 = arith.constant 0.000000e+00 : f32
    %412 = vector.broadcast %cst_102 : f32 to vector<128x512xf32>
    %413 = arith.cmpf oge, %411, %412 : vector<128x512xf32>
    %cst_103 = arith.constant 0.00999999977 : f32
    %414 = vector.broadcast %cst_103 : f32 to vector<128x512xf32>
    %415 = arith.mulf %414, %411 : vector<128x512xf32>
    %416 = arith.select %413, %411, %415 : vector<128x512xi1>, vector<128x512xf32>
    %417 = arith.addf %416, %403 : vector<128x512xf32>
    %c3 = arith.constant 3 : index
    %c0_104 = arith.constant 0 : index
    %c0_105 = arith.constant 0 : index
    %418 = vector.load %arg11[%c3, %c0_104, %c0_105] : memref<4x128x128xbf16, #tpu.memory_space<vmem>>, vector<1x128x128xbf16>
    %419 = vector.shape_cast %418 : vector<1x128x128xbf16> to vector<128x128xbf16>
    %420 = arith.truncf %417 : vector<128x512xf32> to vector<128x512xbf16>
    %cst_106 = arith.constant dense<0.000000e+00> : vector<128x512xf32>
    %421 = tpu.matmul %419, %420, %cst_106 {dimension_numbers = #tpu.dot_dimension_numbers<[1], [0], [0], [1], [0, 0, 1, 1], [], []>} : vector<128x128xbf16>, vector<128x512xbf16>, vector<128x512xf32> -> vector<128x512xf32>
    %c3_107 = arith.constant 3 : index
    %c0_108 = arith.constant 0 : index
    %c0_109 = arith.constant 0 : index
    %422 = vector.load %arg12[%c3_107, %c0_108, %c0_109] : memref<4x128x1xf32, #tpu.memory_space<vmem>>, vector<1x128x1xf32>
    %423 = vector.shape_cast %422 : vector<1x128x1xf32> to vector<128x1xf32>
    %424 = vector.broadcast %423 : vector<128x1xf32> to vector<128x512xf32>
    %425 = arith.addf %421, %424 : vector<128x512xf32>
    %cst_110 = arith.constant 0.000000e+00 : f32
    %426 = vector.broadcast %cst_110 : f32 to vector<128x512xf32>
    %427 = arith.cmpf oge, %425, %426 : vector<128x512xf32>
    %cst_111 = arith.constant 0.00999999977 : f32
    %428 = vector.broadcast %cst_111 : f32 to vector<128x512xf32>
    %429 = arith.mulf %428, %425 : vector<128x512xf32>
    %430 = arith.select %427, %425, %429 : vector<128x512xi1>, vector<128x512xf32>
    %431 = arith.addf %430, %417 : vector<128x512xf32>
    %c0_112 = arith.constant 0 : index
    %c0_113 = arith.constant 0 : index
    %432 = vector.load %arg13[%c0_112, %c0_113] : memref<48x128xbf16, #tpu.memory_space<vmem>>, vector<48x128xbf16>
    %433 = arith.truncf %431 : vector<128x512xf32> to vector<128x512xbf16>
    %cst_114 = arith.constant dense<0.000000e+00> : vector<48x512xf32>
    %434 = tpu.matmul %432, %433, %cst_114 {dimension_numbers = #tpu.dot_dimension_numbers<[1], [0], [0], [1], [0, 0, 1, 1], [], []>} : vector<48x128xbf16>, vector<128x512xbf16>, vector<48x512xf32> -> vector<48x512xf32>
    %c0_115 = arith.constant 0 : index
    %c0_116 = arith.constant 0 : index
    %435 = vector.load %arg14[%c0_115, %c0_116] : memref<48x1xf32, #tpu.memory_space<vmem>>, vector<48x1xf32>
    %436 = vector.broadcast %435 : vector<48x1xf32> to vector<48x512xf32>
    %437 = arith.addf %434, %436 : vector<48x512xf32>
    %438 = arith.mulf %437, %332 : vector<48x512xf32>
    %c0_117 = arith.constant 0 : index
    %c0_118 = arith.constant 0 : index
    %439 = vector.load %arg8[%c0_117, %c0_118] : memref<3x48xf32, #tpu.memory_space<vmem>>, vector<3x48xf32>
    %cst_119 = arith.constant dense<0.000000e+00> : vector<3x512xf32>
    %440 = tpu.matmul %439, %438, %cst_119 {dimension_numbers = #tpu.dot_dimension_numbers<[1], [0], [0], [1], [0, 0, 1, 1], [], []>} : vector<3x48xf32>, vector<48x512xf32>, vector<3x512xf32> -> vector<3x512xf32>
    %c0_120 = arith.constant 0 : index
    %c0_121 = arith.constant 0 : index
    %441 = vector.load %arg15[%c0_120, %c0_121] : memref<3x512xf32, #tpu.memory_space<vmem>>, vector<3x512xf32>
    tpu.vector_store %arg15[%c0_120, %c0_121], %440 {strides = array<i32>} : memref<3x512xf32, #tpu.memory_space<vmem>>, vector<3x512xf32>,
    return
  }
  func.func @transform_0(%arg0: i32) -> (i32, i32) {
    %c0_i32 = arith.constant 0 : i32
    %c0_i32_0 = arith.constant 0 : i32
    return %c0_i32, %arg0 : i32, i32
  }
  func.func @transform_1(%arg0: i32) -> (i32, i32) {
    %c0_i32 = arith.constant 0 : i32
    %c0_i32_0 = arith.constant 0 : i32
    return %c0_i32, %arg0 : i32, i32
  }
  func.func @transform_2(%arg0: i32) -> (i32, i32) {
    %c0_i32 = arith.constant 0 : i32
    %c0_i32_0 = arith.constant 0 : i32
    return %c0_i32, %arg0 : i32, i32
  }
  func.func @transform_3(%arg0: i32) -> (i32, i32) {
    %c0_i32 = arith.constant 0 : i32
    %c0_i32_0 = arith.constant 0 : i32
    return %c0_i32, %arg0 : i32, i32
  }
  func.func @transform_4(%arg0: i32) -> (i32, i32) {
    %c0_i32 = arith.constant 0 : i32
    %c0_i32_0 = arith.constant 0 : i32
    %c0_i32_1 = arith.constant 0 : i32
    return %c0_i32, %c0_i32_0 : i32, i32
  }
  func.func @transform_5(%arg0: i32) -> (i32, i32) {
    %c0_i32 = arith.constant 0 : i32
    %c0_i32_0 = arith.constant 0 : i32
    %c0_i32_1 = arith.constant 0 : i32
    return %c0_i32, %c0_i32_0 : i32, i32
  }
  func.func @transform_6(%arg0: i32) -> (i32, i32) {
    %c0_i32 = arith.constant 0 : i32
    %c0_i32_0 = arith.constant 0 : i32
    %c0_i32_1 = arith.constant 0 : i32
    return %c0_i32, %c0_i32_0 : i32, i32
  }
  func.func @transform_7(%arg0: i32) -> (i32, i32) {
    %c0_i32 = arith.constant 0 : i32
    %c0_i32_0 = arith.constant 0 : i32
    %c0_i32_1 = arith.constant 0 : i32
    return %c0_i32, %c0_i32_0 : i32, i32
  }
  func.func @transform_8(%arg0: i32) -> (i32, i32) {
    %c0_i32 = arith.constant 0 : i32
    %c0_i32_0 = arith.constant 0 : i32
    %c0_i32_1 = arith.constant 0 : i32
    return %c0_i32, %c0_i32_0 : i32, i32
  }
  func.func @transform_9(%arg0: i32) -> (i32, i32) {
    %c0_i32 = arith.constant 0 : i32
    %c0_i32_0 = arith.constant 0 : i32
    %c0_i32_1 = arith.constant 0 : i32
    return %c0_i32, %c0_i32_0 : i32, i32
  }
  func.func @transform_10(%arg0: i32) -> (i32, i32, i32) {
    %c0_i32 = arith.constant 0 : i32
    %c0_i32_0 = arith.constant 0 : i32
    %c0_i32_1 = arith.constant 0 : i32
    %c0_i32_2 = arith.constant 0 : i32
    return %c0_i32, %c0_i32_0, %c0_i32_1 : i32, i32, i32
  }
  func.func @transform_11(%arg0: i32) -> (i32, i32, i32) {
    %c0_i32 = arith.constant 0 : i32
    %c0_i32_0 = arith.constant 0 : i32
    %c0_i32_1 = arith.constant 0 : i32
    %c0_i32_2 = arith.constant 0 : i32
    return %c0_i32, %c0_i32_0, %c0_i32_1 : i32, i32, i32
  }
  func.func @transform_12(%arg0: i32) -> (i32, i32) {
    %c0_i32 = arith.constant 0 : i32
    %c0_i32_0 = arith.constant 0 : i32
    %c0_i32_1 = arith.constant 0 : i32
    return %c0_i32, %c0_i32_0 : i32, i32
  }
  func.func @transform_13(%arg0: i32) -> (i32, i32) {
    %c0_i32 = arith.constant 0 : i32
    %c0_i32_0 = arith.constant 0 : i32
    %c0_i32_1 = arith.constant 0 : i32
    return %c0_i32, %c0_i32_0 : i32, i32
  }
  func.func @transform_14(%arg0: i32) -> (i32, i32) {
    %c0_i32 = arith.constant 0 : i32
    %c0_i32_0 = arith.constant 0 : i32
    return %c0_i32, %arg0 : i32, i32
  }
}

</mosaic_0001>

<llo_original>
// kernel: tpu_custom_call.1
$region0: #{tpu_custom_call.1}
  #allocation0 [shape = 'u32[]', space=smem, size = 0x4, offset = 0x4, fixed_abs, tag = 'smem constant byte address 0x4 - core index']
  #allocation1 [shape = 'u32[144,128]{1,0:T(1,128)}', space=vmem, size = 0x12000, scoped, tag = 'internal scratch']
  %s0 = inlined_call_operand.vmem [shape: f32[3,1536], index: 0, kind: input, shape index: {}]
  %s1 = inlined_call_operand.vmem [shape: f32[3,1536], index: 1, kind: input, shape index: {}]
  %s2 = inlined_call_operand.vmem [shape: f32[3,1536], index: 2, kind: input, shape index: {}]
  %s3 = inlined_call_operand.vmem [shape: f32[3,1536], index: 3, kind: input, shape index: {}]
  %s4 = inlined_call_operand.vmem [shape: f32[40,3], index: 4, kind: input, shape index: {}]
  %s5 = inlined_call_operand.vmem [shape: f32[40,3], index: 5, kind: input, shape index: {}]
  %s6 = inlined_call_operand.vmem [shape: f32[48,16], index: 6, kind: input, shape index: {}]
  %s7 = inlined_call_operand.vmem [shape: f32[3,48], index: 7, kind: input, shape index: {}]
  %s8 = inlined_call_operand.vmem [shape: bf16[128,40], index: 8, kind: input, shape index: {}]
  %s9 = inlined_call_operand.vmem [shape: f32[128,1], index: 9, kind: input, shape index: {}]
  %s10 = inlined_call_operand.vmem [shape: bf16[4,128,128], index: 10, kind: input, shape index: {}]
  %s11 = inlined_call_operand.vmem [shape: f32[4,128,1], index: 11, kind: input, shape index: {}]
  %s12 = inlined_call_operand.vmem [shape: bf16[48,128], index: 12, kind: input, shape index: {}]
  %s13 = inlined_call_operand.vmem [shape: f32[48,1], index: 13, kind: input, shape index: {}]
  %s14 = inlined_call_operand.hbm [shape: f32[3,1536], index: 14, kind: output, shape index: {}]
  %s15 = sld [smem:[#allocation0]]
  $region89: #{tpu_custom_call.1} parent=0
    _
  %s17 = ssub.s32 1, %s15
  %s18 = scalar_select 0, %s17, %s15
  $region1: #{tpu_custom_call.1} parent=0
    #allocation2 [shape = 'u8[16384]{0}', space=vmem, size = 0x4000, scoped, tag = 'output window, operand 0']
    #allocation3 [shape = 's32[2]{0}', space=sflag, size = 0x8, scoped, tag = 'scoped memory for tpu_custom_call.1']
    %19 = vsyncpa [#allocation3], 0
    %s20 = scalar_lea.sflag [#allocation3], 1
    %21 = vsyncpa %s20, 0
    loop: start=0, step=1, limit=5
    $region2: #{tpu_custom_call.1} parent=1 // loop_pre_header
      _
    $region3: #{tpu_custom_call.1} parent=1 // loop_header
      %s23 = sphi 0, %s27
      %p24 = scmp.ge.s32.totalorder %s23, 5
      %s33 = sphi 0, %s35
      %s36 = sphi 0, %s33
      %s37 = sphi 0, %s36
      %s53 = sphi 0, %s37
      %s59 = sphi 0, %s61
      %s62 = sphi 0, %s59
      %s63 = sphi 0, %s62
      %s79 = sphi 0, %s63
      %s85 = sphi 0, %s87
      %s88 = sphi 0, %s85
      %s89 = sphi 0, %s88
      %s105 = sphi 0, %s89
      %s111 = sphi 0, %s113
      %s114 = sphi 0, %s111
      %s115 = sphi 0, %s114
      %s131 = sphi 0, %s115
      %s135 = sphi 0, %s135
      %s137 = sphi 0, %s135
      %s138 = sphi 0, %s137
      %s152 = sphi 0, %s138
      %s156 = sphi 0, %s156
      %s158 = sphi 0, %s156
      %s159 = sphi 0, %s158
      %s173 = sphi 0, %s159
      %s177 = sphi 0, %s177
      %s179 = sphi 0, %s177
      %s180 = sphi 0, %s179
      %s194 = sphi 0, %s180
      %s198 = sphi 0, %s198
      %s200 = sphi 0, %s198
      %s201 = sphi 0, %s200
      %s215 = sphi 0, %s201
      %s219 = sphi 0, %s219
      %s221 = sphi 0, %s219
      %s222 = sphi 0, %s221
      %s236 = sphi 0, %s222
      %s240 = sphi 0, %s240
      %s242 = sphi 0, %s240
      %s243 = sphi 0, %s242
      %s257 = sphi 0, %s243
      %s261 = sphi 0, %s261
      %s263 = sphi 0, %s261
      %s264 = sphi 0, %s263
      %s278 = sphi 0, %s264
      %s282 = sphi 0, %s282
      %s284 = sphi 0, %s282
      %s285 = sphi 0, %s284
      %s299 = sphi 0, %s285
      %s303 = sphi 0, %s303
      %s305 = sphi 0, %s303
      %s306 = sphi 0, %s305
      %s320 = sphi 0, %s306
      %s324 = sphi 0, %s324
      %s326 = sphi 0, %s324
      %s327 = sphi 0, %s326
      %s341 = sphi 0, %s327
      %s347 = sphi 0, %s349
      %s350 = sphi 0, %s347
      %s351 = sphi 0, %s350
      %s367 = sphi 0, %s351
    $region4: #{tpu_custom_call.1} parent=1 // loop_header_branch
      %26 = sbr.rel (%p24) target = $region8
    $region5: #{tpu_custom_call.1} parent=1 // loop_body
      %s28 = ssub.s32 %s23, 1
      %s29 = ssub.s32 %s23, 2
      %s30 = sadd.s32 %s23, 1
      %s31 = ssub.s32 %s23, %s30
      %p32 = scmp.eq.s32.totalorder %s31, 0
      %s34 = sadd.s32 %s33, 1
      %s35 = scalar_select %p32, %s33, %s34
      %p38 = pneg %p32
      %p39 = scmp.eq.s32.totalorder %s23, 2
      %p40 = por %p38, %p39
      %p41 = scmp.ne.s32.totalorder %s33, %s36
      %p42 = scmp.eq.s32.totalorder %s23, 0
      %p43 = por %p41, %p42
      %p44 = scmp.ne.s32.totalorder %s33, %s36
      %p45 = scmp.eq.s32.totalorder %s28, 2
      %p46 = por %p44, %p45
      %p47 = scmp.ne.s32.totalorder %s36, %s37
      %p48 = scmp.eq.s32.totalorder %s28, 0
      %p49 = por %p47, %p48
      %p50 = scmp.ne.s32.totalorder %s36, %s37
      %p51 = scmp.eq.s32.totalorder %s29, 2
      %p52 = por %p50, %p51
      %p54 = scmp.ne.s32.totalorder %s37, %s53
      %p55 = scmp.eq.s32.totalorder %s29, 0
      %p56 = por %p54, %p55
      %s57 = ssub.s32 %s23, %s30
      %p58 = scmp.eq.s32.totalorder %s57, 0
      %s60 = sadd.s32 %s59, 1
      %s61 = scalar_select %p58, %s59, %s60
      %p64 = pneg %p58
      %p65 = scmp.eq.s32.totalorder %s23, 2
      %p66 = por %p64, %p65
      %p67 = scmp.ne.s32.totalorder %s59, %s62
      %p68 = scmp.eq.s32.totalorder %s23, 0
      %p69 = por %p67, %p68
      %p70 = scmp.ne.s32.totalorder %s59, %s62
      %p71 = scmp.eq.s32.totalorder %s28, 2
      %p72 = por %p70, %p71
      %p73 = scmp.ne.s32.totalorder %s62, %s63
      %p74 = scmp.eq.s32.totalorder %s28, 0
      %p75 = por %p73, %p74
      %p76 = scmp.ne.s32.totalorder %s62, %s63
      %p77 = scmp.eq.s32.totalorder %s29, 2
      %p78 = por %p76, %p77
      %p80 = scmp.ne.s32.totalorder %s63, %s79
      %p81 = scmp.eq.s32.totalorder %s29, 0
      %p82 = por %p80, %p81
      %s83 = ssub.s32 %s23, %s30
      %p84 = scmp.eq.s32.totalorder %s83, 0
      %s86 = sadd.s32 %s85, 1
      %s87 = scalar_select %p84, %s85, %s86
      %p90 = pneg %p84
      %p91 = scmp.eq.s32.totalorder %s23, 2
      %p92 = por %p90, %p91
      %p93 = scmp.ne.s32.totalorder %s85, %s88
      %p94 = scmp.eq.s32.totalorder %s23, 0
      %p95 = por %p93, %p94
      %p96 = scmp.ne.s32.totalorder %s85, %s88
      %p97 = scmp.eq.s32.totalorder %s28, 2
      %p98 = por %p96, %p97
      %p99 = scmp.ne.s32.totalorder %s88, %s89
      %p100 = scmp.eq.s32.totalorder %s28, 0
      %p101 = por %p99, %p100
      %p102 = scmp.ne.s32.totalorder %s88, %s89
      %p103 = scmp.eq.s32.totalorder %s29, 2
      %p104 = por %p102, %p103
      %p106 = scmp.ne.s32.totalorder %s89, %s105
      %p107 = scmp.eq.s32.totalorder %s29, 0
      %p108 = por %p106, %p107
      %s109 = ssub.s32 %s23, %s30
      %p110 = scmp.eq.s32.totalorder %s109, 0
      %s112 = sadd.s32 %s111, 1
      %s113 = scalar_select %p110, %s111, %s112
      %p116 = pneg %p110
      %p117 = scmp.eq.s32.totalorder %s23, 2
      %p118 = por %p116, %p117
      %p119 = scmp.ne.s32.totalorder %s111, %s114
      %p120 = scmp.eq.s32.totalorder %s23, 0
      %p121 = por %p119, %p120
      %p122 = scmp.ne.s32.totalorder %s111, %s114
      %p123 = scmp.eq.s32.totalorder %s28, 2
      %p124 = por %p122, %p123
      %p125 = scmp.ne.s32.totalorder %s114, %s115
      %p126 = scmp.eq.s32.totalorder %s28, 0
      %p127 = por %p125, %p126
      %p128 = scmp.ne.s32.totalorder %s114, %s115
      %p129 = scmp.eq.s32.totalorder %s29, 2
      %p130 = por %p128, %p129
      %p132 = scmp.ne.s32.totalorder %s115, %s131
      %p133 = scmp.eq.s32.totalorder %s29, 0
      %p134 = por %p132, %p133
      %s136 = sadd.s32 %s135, 1
      %p139 = scmp.eq.s32.totalorder %s23, 2
      %p140 = scmp.ne.s32.totalorder %s135, %s137
      %p141 = scmp.eq.s32.totalorder %s23, 0
      %p142 = por %p140, %p141
      %p143 = scmp.ne.s32.totalorder %s135, %s137
      %p144 = scmp.eq.s32.totalorder %s28, 2
      %p145 = por %p143, %p144
      %p146 = scmp.ne.s32.totalorder %s137, %s138
      %p147 = scmp.eq.s32.totalorder %s28, 0
      %p148 = por %p146, %p147
      %p149 = scmp.ne.s32.totalorder %s137, %s138
      %p150 = scmp.eq.s32.totalorder %s29, 2
      %p151 = por %p149, %p150
      %p153 = scmp.ne.s32.totalorder %s138, %s152
      %p154 = scmp.eq.s32.totalorder %s29, 0
      %p155 = por %p153, %p154
      %s157 = sadd.s32 %s156, 1
      %p160 = scmp.eq.s32.totalorder %s23, 2
      %p161 = scmp.ne.s32.totalorder %s156, %s158
      %p162 = scmp.eq.s32.totalorder %s23, 0
      %p163 = por %p161, %p162
      %p164 = scmp.ne.s32.totalorder %s156, %s158
      %p165 = scmp.eq.s32.totalorder %s28, 2
      %p166 = por %p164, %p165
      %p167 = scmp.ne.s32.totalorder %s158, %s159
      %p168 = scmp.eq.s32.totalorder %s28, 0
      %p169 = por %p167, %p168
      %p170 = scmp.ne.s32.totalorder %s158, %s159
      %p171 = scmp.eq.s32.totalorder %s29, 2
      %p172 = por %p170, %p171
      %p174 = scmp.ne.s32.totalorder %s159, %s173
      %p175 = scmp.eq.s32.totalorder %s29, 0
      %p176 = por %p174, %p175
      %s178 = sadd.s32 %s177, 1
      %p181 = scmp.eq.s32.totalorder %s23, 2
      %p182 = scmp.ne.s32.totalorder %s177, %s179
      %p183 = scmp.eq.s32.totalorder %s23, 0
      %p184 = por %p182, %p183
      %p185 = scmp.ne.s32.totalorder %s177, %s179
      %p186 = scmp.eq.s32.totalorder %s28, 2
      %p187 = por %p185, %p186
      %p188 = scmp.ne.s32.totalorder %s179, %s180
      %p189 = scmp.eq.s32.totalorder %s28, 0
      %p190 = por %p188, %p189
      %p191 = scmp.ne.s32.totalorder %s179, %s180
      %p192 = scmp.eq.s32.totalorder %s29, 2
      %p193 = por %p191, %p192
      %p195 = scmp.ne.s32.totalorder %s180, %s194
      %p196 = scmp.eq.s32.totalorder %s29, 0
      %p197 = por %p195, %p196
      %s199 = sadd.s32 %s198, 1
      %p202 = scmp.eq.s32.totalorder %s23, 2
      %p203 = scmp.ne.s32.totalorder %s198, %s200
      %p204 = scmp.eq.s32.totalorder %s23, 0
      %p205 = por %p203, %p204
      %p206 = scmp.ne.s32.totalorder %s198, %s200
      %p207 = scmp.eq.s32.totalorder %s28, 2
      %p208 = por %p206, %p207
      %p209 = scmp.ne.s32.totalorder %s200, %s201
      %p210 = scmp.eq.s32.totalorder %s28, 0
      %p211 = por %p209, %p210
      %p212 = scmp.ne.s32.totalorder %s200, %s201
      %p213 = scmp.eq.s32.totalorder %s29, 2
      %p214 = por %p212, %p213
      %p216 = scmp.ne.s32.totalorder %s201, %s215
      %p217 = scmp.eq.s32.totalorder %s29, 0
      %p218 = por %p216, %p217
      %s220 = sadd.s32 %s219, 1
      %p223 = scmp.eq.s32.totalorder %s23, 2
      %p224 = scmp.ne.s32.totalorder %s219, %s221
      %p225 = scmp.eq.s32.totalorder %s23, 0
      %p226 = por %p224, %p225
      %p227 = scmp.ne.s32.totalorder %s219, %s221
      %p228 = scmp.eq.s32.totalorder %s28, 2
      %p229 = por %p227, %p228
      %p230 = scmp.ne.s32.totalorder %s221, %s222
      %p231 = scmp.eq.s32.totalorder %s28, 0
      %p232 = por %p230, %p231
      %p233 = scmp.ne.s32.totalorder %s221, %s222
      %p234 = scmp.eq.s32.totalorder %s29, 2
      %p235 = por %p233, %p234
      %p237 = scmp.ne.s32.totalorder %s222, %s236
      %p238 = scmp.eq.s32.totalorder %s29, 0
      %p239 = por %p237, %p238
      %s241 = sadd.s32 %s240, 1
      %p244 = scmp.eq.s32.totalorder %s23, 2
      %p245 = scmp.ne.s32.totalorder %s240, %s242
      %p246 = scmp.eq.s32.totalorder %s23, 0
      %p247 = por %p245, %p246
      %p248 = scmp.ne.s32.totalorder %s240, %s242
      %p249 = scmp.eq.s32.totalorder %s28, 2
      %p250 = por %p248, %p249
      %p251 = scmp.ne.s32.totalorder %s242, %s243
      %p252 = scmp.eq.s32.totalorder %s28, 0
      %p253 = por %p251, %p252
      %p254 = scmp.ne.s32.totalorder %s242, %s243
      %p255 = scmp.eq.s32.totalorder %s29, 2
      %p256 = por %p254, %p255
      %p258 = scmp.ne.s32.totalorder %s243, %s257
      %p259 = scmp.eq.s32.totalorder %s29, 0
      %p260 = por %p258, %p259
      %s262 = sadd.s32 %s261, 1
      %p265 = scmp.eq.s32.totalorder %s23, 2
      %p266 = scmp.ne.s32.totalorder %s261, %s263
      %p267 = scmp.eq.s32.totalorder %s23, 0
      %p268 = por %p266, %p267
      %p269 = scmp.ne.s32.totalorder %s261, %s263
      %p270 = scmp.eq.s32.totalorder %s28, 2
      %p271 = por %p269, %p270
      %p272 = scmp.ne.s32.totalorder %s263, %s264
      %p273 = scmp.eq.s32.totalorder %s28, 0
      %p274 = por %p272, %p273
      %p275 = scmp.ne.s32.totalorder %s263, %s264
      %p276 = scmp.eq.s32.totalorder %s29, 2
      %p277 = por %p275, %p276
      %p279 = scmp.ne.s32.totalorder %s264, %s278
      %p280 = scmp.eq.s32.totalorder %s29, 0
      %p281 = por %p279, %p280
      %s283 = sadd.s32 %s282, 1
      %p286 = scmp.eq.s32.totalorder %s23, 2
      %p287 = scmp.ne.s32.totalorder %s282, %s284
      %p288 = scmp.eq.s32.totalorder %s23, 0
      %p289 = por %p287, %p288
      %p290 = scmp.ne.s32.totalorder %s282, %s284
      %p291 = scmp.eq.s32.totalorder %s28, 2
      %p292 = por %p290, %p291
      %p293 = scmp.ne.s32.totalorder %s284, %s285
      %p294 = scmp.eq.s32.totalorder %s28, 0
      %p295 = por %p293, %p294
      %p296 = scmp.ne.s32.totalorder %s284, %s285
      %p297 = scmp.eq.s32.totalorder %s29, 2
      %p298 = por %p296, %p297
      %p300 = scmp.ne.s32.totalorder %s285, %s299
      %p301 = scmp.eq.s32.totalorder %s29, 0
      %p302 = por %p300, %p301
      %s304 = sadd.s32 %s303, 1
      %p307 = scmp.eq.s32.totalorder %s23, 2
      %p308 = scmp.ne.s32.totalorder %s303, %s305
      %p309 = scmp.eq.s32.totalorder %s23, 0
      %p310 = por %p308, %p309
      %p311 = scmp.ne.s32.totalorder %s303, %s305
      %p312 = scmp.eq.s32.totalorder %s28, 2
      %p313 = por %p311, %p312
      %p314 = scmp.ne.s32.totalorder %s305, %s306
      %p315 = scmp.eq.s32.totalorder %s28, 0
      %p316 = por %p314, %p315
      %p317 = scmp.ne.s32.totalorder %s305, %s306
      %p318 = scmp.eq.s32.totalorder %s29, 2
      %p319 = por %p317, %p318
      %p321 = scmp.ne.s32.totalorder %s306, %s320
      %p322 = scmp.eq.s32.totalorder %s29, 0
      %p323 = por %p321, %p322
      %s325 = sadd.s32 %s324, 1
      %p328 = scmp.eq.s32.totalorder %s23, 2
      %p329 = scmp.ne.s32.totalorder %s324, %s326
      %p330 = scmp.eq.s32.totalorder %s23, 0
      %p331 = por %p329, %p330
      %p332 = scmp.ne.s32.totalorder %s324, %s326
      %p333 = scmp.eq.s32.totalorder %s28, 2
      %p334 = por %p332, %p333
      %p335 = scmp.ne.s32.totalorder %s326, %s327
      %p336 = scmp.eq.s32.totalorder %s28, 0
      %p337 = por %p335, %p336
      %p338 = scmp.ne.s32.totalorder %s326, %s327
      %p339 = scmp.eq.s32.totalorder %s29, 2
      %p340 = por %p338, %p339
      %p342 = scmp.ne.s32.totalorder %s327, %s341
      %p343 = scmp.eq.s32.totalorder %s29, 0
      %p344 = por %p342, %p343
      %s345 = ssub.s32 %s23, %s30
      %p346 = scmp.eq.s32.totalorder %s345, 0
      %s348 = sadd.s32 %s347, 1
      %s349 = scalar_select %p346, %s347, %s348
      %p352 = pneg %p346
      %p353 = scmp.eq.s32.totalorder %s23, 2
      %p354 = por %p352, %p353
      %p355 = scmp.ne.s32.totalorder %s347, %s350
      %p356 = scmp.eq.s32.totalorder %s23, 0
      %p357 = por %p355, %p356
      %p358 = scmp.ne.s32.totalorder %s347, %s350
      %p359 = scmp.eq.s32.totalorder %s28, 2
      %p360 = por %p358, %p359
      %p361 = scmp.ne.s32.totalorder %s350, %s351
      %p362 = scmp.eq.s32.totalorder %s28, 0
      %p363 = por %p361, %p362
      %p364 = scmp.ne.s32.totalorder %s350, %s351
      %p365 = scmp.eq.s32.totalorder %s29, 2
      %p366 = por %p364, %p365
      %p368 = scmp.ne.s32.totalorder %s351, %s367
      %p369 = scmp.eq.s32.totalorder %s29, 0
      %p370 = por %p368, %p369
      %p371 = scmp.le.s32.totalorder 1, %s23
      %p372 = scmp.lt.s32.totalorder %s23, 4
      %p373 = pnand %p371, %p372
      %p374 = pneg %p373
      // Predicated region
      $region9: #{tpu_custom_call.1} parent=5 // pred_check
        _
      $region10: #{tpu_custom_call.1} parent=5 // pred_check_branch
        %376 = sbr.rel (%p373) target = $region12
      $region11: #{tpu_custom_call.1} parent=5 // pred_region
        %s377 = ssub.s32 %s23, 1
        // Predicated region
        $region13: #{tpu_custom_call.1} parent=11 // pred_check
          %p378 = pneg %p148
        $region14: #{tpu_custom_call.1} parent=11 // pred_check_branch
          %380 = sbr.rel (%p378) target = $region16
        $region15: #{tpu_custom_call.1} parent=11 // pred_region
          _
        $region16: #{tpu_custom_call.1} parent=11 // pred_fallthru
          _
        // Predicated region
        $region17: #{tpu_custom_call.1} parent=11 // pred_check
          %p381 = pneg %p169
        $region18: #{tpu_custom_call.1} parent=11 // pred_check_branch
          %383 = sbr.rel (%p381) target = $region20
        $region19: #{tpu_custom_call.1} parent=11 // pred_region
          _
        $region20: #{tpu_custom_call.1} parent=11 // pred_fallthru
          _
        // Predicated region
        $region21: #{tpu_custom_call.1} parent=11 // pred_check
          %p384 = pneg %p190
        $region22: #{tpu_custom_call.1} parent=11 // pred_check_branch
          %386 = sbr.rel (%p384) target = $region24
        $region23: #{tpu_custom_call.1} parent=11 // pred_region
          _
        $region24: #{tpu_custom_call.1} parent=11 // pred_fallthru
          _
        // Predicated region
        $region25: #{tpu_custom_call.1} parent=11 // pred_check
          %p387 = pneg %p211
        $region26: #{tpu_custom_call.1} parent=11 // pred_check_branch
          %389 = sbr.rel (%p387) target = $region28
        $region27: #{tpu_custom_call.1} parent=11 // pred_region
          _
        $region28: #{tpu_custom_call.1} parent=11 // pred_fallthru
          _
        // Predicated region
        $region29: #{tpu_custom_call.1} parent=11 // pred_check
          %p390 = pneg %p232
        $region30: #{tpu_custom_call.1} parent=11 // pred_check_branch
          %392 = sbr.rel (%p390) target = $region32
        $region31: #{tpu_custom_call.1} parent=11 // pred_region
          _
        $region32: #{tpu_custom_call.1} parent=11 // pred_fallthru
          _
        // Predicated region
        $region33: #{tpu_custom_call.1} parent=11 // pred_check
          %p393 = pneg %p253
        $region34: #{tpu_custom_call.1} parent=11 // pred_check_branch
          %395 = sbr.rel (%p393) target = $region36
        $region35: #{tpu_custom_call.1} parent=11 // pred_region
          _
        $region36: #{tpu_custom_call.1} parent=11 // pred_fallthru
          _
        // Predicated region
        $region37: #{tpu_custom_call.1} parent=11 // pred_check
          %p396 = pneg %p274
        $region38: #{tpu_custom_call.1} parent=11 // pred_check_branch
          %398 = sbr.rel (%p396) target = $region40
        $region39: #{tpu_custom_call.1} parent=11 // pred_region
          _
        $region40: #{tpu_custom_call.1} parent=11 // pred_fallthru
          _
        // Predicated region
        $region41: #{tpu_custom_call.1} parent=11 // pred_check
          %p399 = pneg %p295
        $region42: #{tpu_custom_call.1} parent=11 // pred_check_branch
          %401 = sbr.rel (%p399) target = $region44
        $region43: #{tpu_custom_call.1} parent=11 // pred_region
          _
        $region44: #{tpu_custom_call.1} parent=11 // pred_fallthru
          _
        // Predicated region
        $region45: #{tpu_custom_call.1} parent=11 // pred_check
          %p402 = pneg %p316
        $region46: #{tpu_custom_call.1} parent=11 // pred_check_branch
          %404 = sbr.rel (%p402) target = $region48
        $region47: #{tpu_custom_call.1} parent=11 // pred_region
          _
        $region48: #{tpu_custom_call.1} parent=11 // pred_fallthru
          _
        // Predicated region
        $region49: #{tpu_custom_call.1} parent=11 // pred_check
          %p405 = pneg %p337
        $region50: #{tpu_custom_call.1} parent=11 // pred_check_branch
          %407 = sbr.rel (%p405) target = $region52
        $region51: #{tpu_custom_call.1} parent=11 // pred_region
          _
        $region52: #{tpu_custom_call.1} parent=11 // pred_fallthru
          _
      $region12: #{tpu_custom_call.1} parent=5 // pred_fallthru
        _
      %p408 = scmp.lt.s32.totalorder %s23, 3
      // Predicated region
      $region53: #{tpu_custom_call.1} parent=5 // pred_check
        %p409 = pneg %p408
      $region54: #{tpu_custom_call.1} parent=5 // pred_check_branch
        %411 = sbr.rel (%p409) target = $region56
      $region55: #{tpu_custom_call.1} parent=5 // pred_region
        // Predicated region
        $region57: #{tpu_custom_call.1} parent=55 // pred_check
          %p412 = pneg %p43
        $region58: #{tpu_custom_call.1} parent=55 // pred_check_branch
          %414 = sbr.rel (%p412) target = $region60
        $region59: #{tpu_custom_call.1} parent=55 // pred_region
          %s415 = smul.u32 4, %s23
          %p416 = scmp.lt.s32.totalorder %s415, 11
          %s417 = scalar_select %p416, %s415, 11
          %s418 = smul.addr %s417, 4
          %s419 = scalar_lea.vmem %s0, %s418
          %s420 = smul.u32 4, %s23
        $region60: #{tpu_custom_call.1} parent=55 // pred_fallthru
          _
        // Predicated region
        $region61: #{tpu_custom_call.1} parent=55 // pred_check
          %p421 = pneg %p69
        $region62: #{tpu_custom_call.1} parent=55 // pred_check_branch
          %423 = sbr.rel (%p421) target = $region64
        $region63: #{tpu_custom_call.1} parent=55 // pred_region
          %s424 = smul.u32 4, %s23
          %p425 = scmp.lt.s32.totalorder %s424, 11
          %s426 = scalar_select %p425, %s424, 11
          %s427 = smul.addr %s426, 4
          %s428 = scalar_lea.vmem %s1, %s427
          %s429 = smul.u32 4, %s23
        $region64: #{tpu_custom_call.1} parent=55 // pred_fallthru
          _
        // Predicated region
        $region65: #{tpu_custom_call.1} parent=55 // pred_check
          %p430 = pneg %p95
        $region66: #{tpu_custom_call.1} parent=55 // pred_check_branch
          %432 = sbr.rel (%p430) target = $region68
        $region67: #{tpu_custom_call.1} parent=55 // pred_region
          %s433 = smul.u32 4, %s23
          %p434 = scmp.lt.s32.totalorder %s433, 11
          %s435 = scalar_select %p434, %s433, 11
          %s436 = smul.addr %s435, 4
          %s437 = scalar_lea.vmem %s2, %s436
          %s438 = smul.u32 4, %s23
        $region68: #{tpu_custom_call.1} parent=55 // pred_fallthru
          _
        // Predicated region
        $region69: #{tpu_custom_call.1} parent=55 // pred_check
          %p439 = pneg %p121
        $region70: #{tpu_custom_call.1} parent=55 // pred_check_branch
          %441 = sbr.rel (%p439) target = $region72
        $region71: #{tpu_custom_call.1} parent=55 // pred_region
          %s442 = smul.u32 4, %s23
          %p443 = scmp.lt.s32.totalorder %s442, 11
          %s444 = scalar_select %p443, %s442, 11
          %s445 = smul.addr %s444, 4
          %s446 = scalar_lea.vmem %s3, %s445
          %s447 = smul.u32 4, %s23
        $region72: #{tpu_custom_call.1} parent=55 // pred_fallthru
          _
      $region56: #{tpu_custom_call.1} parent=5 // pred_fallthru
        _
      %p448 = scmp.le.s32.totalorder 1, %s23
      %p449 = scmp.lt.s32.totalorder %s23, 4
      %p450 = pnand %p448, %p449
      %p451 = pneg %p450
      // Predicated region
      $region73: #{tpu_custom_call.1} parent=5 // pred_check
        _
      $region74: #{tpu_custom_call.1} parent=5 // pred_check_branch
        %453 = sbr.rel (%p450) target = $region76
      $region75: #{tpu_custom_call.1} parent=5 // pred_region
        %s454 = ssub.s32 %s23, 1
        %s455 = smul.u32 4, %s28
        %p456 = scmp.lt.s32.totalorder %s455, 11
        %s457 = scalar_select %p456, %s455, 11
        %s458 = smul.addr %s457, 4
        %s459 = scalar_lea.vmem %s0, %s458
        %p460 = pneg %p49
        %p461 = pneg %p46
        %s462 = smul.u32 4, %s28
        %p463 = scmp.lt.s32.totalorder %s462, 11
        %s464 = scalar_select %p463, %s462, 11
        %s465 = smul.addr %s464, 4
        %s466 = scalar_lea.vmem %s1, %s465
        %p467 = pneg %p75
        %p468 = pneg %p72
        %s469 = smul.u32 4, %s28
        %p470 = scmp.lt.s32.totalorder %s469, 11
        %s471 = scalar_select %p470, %s469, 11
        %s472 = smul.addr %s471, 4
        %s473 = scalar_lea.vmem %s2, %s472
        %p474 = pneg %p101
        %p475 = pneg %p98
        %s476 = smul.u32 4, %s28
        %p477 = scmp.lt.s32.totalorder %s476, 11
        %s478 = scalar_select %p477, %s476, 11
        %s479 = smul.addr %s478, 4
        %s480 = scalar_lea.vmem %s3, %s479
        %p481 = pneg %p127
        %p482 = pneg %p124
        %p483 = pneg %p148
        %p484 = pneg %p145
        %p485 = pneg %p169
        %p486 = pneg %p166
        %p487 = pneg %p190
        %p488 = pneg %p187
        %p489 = pneg %p211
        %p490 = pneg %p208
        %p491 = pneg %p232
        %p492 = pneg %p229
        %p493 = pneg %p253
        %p494 = pneg %p250
        %p495 = pneg %p274
        %p496 = pneg %p271
        %p497 = pneg %p295
        %p498 = pneg %p292
        %p499 = pneg %p316
        %p500 = pneg %p313
        %p501 = pneg %p337
        %p502 = pneg %p334
        %p503 = pneg %p363
        %p504 = pneg %p360
        %s505 = sand.u32 %s350, 1
        %s506 = scalar_lea.sflag [#allocation3], %s505
        %s507 = sand.u32 %s350, 1
        %s508 = smul.addr %s507, 16
        %s509 = scalar_lea.vmem [#allocation2], %s508
        %s510 = smul.u32 4, %s28
        %p511 = scmp.lt.s32.totalorder %s510, 11
        %s512 = scalar_select %p511, %s510, 11
        %s513 = smul.addr %s512, 4
        %s514 = scalar_lea.vmem %s0, %s513
        %s515 = smul.u32 4, %s28
        %s516 = smul.u32 4, %s28
        %p517 = scmp.lt.s32.totalorder %s516, 11
        %s518 = scalar_select %p517, %s516, 11
        %s519 = smul.addr %s518, 4
        %s520 = scalar_lea.vmem %s1, %s519
        %s521 = smul.u32 4, %s28
        %s522 = smul.u32 4, %s28
        %p523 = scmp.lt.s32.totalorder %s522, 11
        %s524 = scalar_select %p523, %s522, 11
        %s525 = smul.addr %s524, 4
        %s526 = scalar_lea.vmem %s2, %s525
        %s527 = smul.u32 4, %s28
        %s528 = smul.u32 4, %s28
        %p529 = scmp.lt.s32.totalorder %s528, 11
        %s530 = scalar_select %p529, %s528, 11
        %s531 = smul.addr %s530, 4
        %s532 = scalar_lea.vmem %s3, %s531
        %s533 = smul.u32 4, %s28
        %s534 = smul.u32 4, %s28
        %v536 = vld [vmem:[%s526] ss:$4 sm:$0xf]
        %s537 = scalar_lea.vmem %s526, 1
        %v538 = vld [vmem:[%s537] ss:$4 sm:$0xf]
        %s539 = scalar_lea.vmem %s526, 2
        %v540 = vld [vmem:[%s539] ss:$4 sm:$0xf]
        %v541 = vmul.f32 %v536, %v536
        %v542 = vmul.f32 %v538, %v538
        %v543 = vadd.f32 %v541, %v542
        %v544 = vmul.f32 %v540, %v540
        %v545 = vadd.f32 %v543, %v544
        %v546 = vrsqrt.pop %v545
        %v547 = vmul.f32 %v545, %v546
        %vm548 = vcmp.eq.f32.partialorder %v545, inf
        %v549 = vsel %vm548, %v545, %v547
        %vm550 = vcmp.eq.f32.partialorder %v545, 0.0
        %v551 = vand.u32 %v545, 2147483648
        %v552 = vsel %vm550, %v551, %v549
        %v553 = vmax.f32 %v552, 1e-06
        %v554 = vrcp.pop %v553
        %v555 = vmul.f32 1.0, %v554
        %v556 = vmul.f32 %v536, %v555
        %v557 = vmul.f32 %v538, %v555
        %v558 = vmul.f32 %v540, %v555
        %vm559 = vcmp.ge.f32.partialorder %v558, 0.0
        %v560 = vsel %vm559, 1.0, -1.0
        %v561 = vadd.f32 %v560, %v558
        %v562 = vand.u32 2147483647, %v561
        %vm563 = vcmp.lt.f32.partialorder %v562, 1e-06
        %vm564 = vcmp.ge.f32.partialorder %v561, 0.0
        %v565 = vsel %vm564, 1e-06, -1e-06
        %v566 = vsel %vm563, %v565, %v561
        %v567 = vrcp.pop %v566
        %v568 = vmul.f32 -1.0, %v567
        %v569 = vmul.f32 %v556, %v557
        %v570 = vmul.f32 %v569, %v568
        %v571 = vmul.f32 %v556, %v556
        %v572 = vmul.f32 %v571, %v568
        %v573 = vmul.f32 %v572, %v560
        %v574 = vadd.f32 %v573, 1.0
        %v575 = vmul.f32 %v570, %v560
        %v576 = vsub.f32 0.0, %v560
        %v577 = vmul.f32 %v556, %v576
        %v578 = vmul.f32 %v574, %v574
        %v579 = vmul.f32 %v575, %v575
        %v580 = vadd.f32 %v578, %v579
        %v581 = vmul.f32 %v577, %v577
        %v582 = vadd.f32 %v580, %v581
        %v583 = vrsqrt.pop %v582
        %v584 = vmul.f32 %v582, %v583
        %vm585 = vcmp.eq.f32.partialorder %v582, inf
        %v586 = vsel %vm585, %v582, %v584
        %vm587 = vcmp.eq.f32.partialorder %v582, 0.0
        %v588 = vand.u32 %v582, 2147483648
        %v589 = vsel %vm587, %v588, %v586
        %v590 = vmax.f32 %v589, 1e-06
        %v591 = vrcp.pop %v590
        %v592 = vmul.f32 1.0, %v591
        %v593 = vmul.f32 %v574, %v592
        %v594 = vmul.f32 %v575, %v592
        %v595 = vmul.f32 %v577, %v592
        %v596 = vmul.f32 %v594, %v558
        %v597 = vmul.f32 %v595, %v557
        %v598 = vsub.f32 %v596, %v597
        %v599 = vmul.f32 %v595, %v556
        %v600 = vmul.f32 %v593, %v558
        %v601 = vsub.f32 %v599, %v600
        %v602 = vmul.f32 %v593, %v557
        %v603 = vmul.f32 %v594, %v556
        %v604 = vsub.f32 %v602, %v603
        %v605 = vmul.f32 %v598, %v598
        %v606 = vmul.f32 %v601, %v601
        %v607 = vadd.f32 %v605, %v606
        %v608 = vmul.f32 %v604, %v604
        %v609 = vadd.f32 %v607, %v608
        %v610 = vrsqrt.pop %v609
        %v611 = vmul.f32 %v609, %v610
        %vm612 = vcmp.eq.f32.partialorder %v609, inf
        %v613 = vsel %vm612, %v609, %v611
        %vm614 = vcmp.eq.f32.partialorder %v609, 0.0
        %v615 = vand.u32 %v609, 2147483648
        %v616 = vsel %vm614, %v615, %v613
        %v617 = vmax.f32 %v616, 1e-06
        %v618 = vrcp.pop %v617
        %v619 = vmul.f32 1.0, %v618
        %v620 = vmul.f32 %v598, %v619
        %v621 = vmul.f32 %v601, %v619
        %v622 = vmul.f32 %v604, %v619
        %v623 = vmul.f32 %v557, %v622
        %v624 = vmul.f32 %v558, %v621
        %v625 = vsub.f32 %v623, %v624
        %v626 = vmul.f32 %v558, %v620
        %v627 = vmul.f32 %v556, %v622
        %v628 = vsub.f32 %v626, %v627
        %v629 = vmul.f32 %v556, %v621
        %v630 = vmul.f32 %v557, %v620
        %v631 = vsub.f32 %v629, %v630
        %v632 = vmul.f32 %v625, %v625
        %v633 = vmul.f32 %v628, %v628
        %v634 = vadd.f32 %v632, %v633
        %v635 = vmul.f32 %v631, %v631
        %v636 = vadd.f32 %v634, %v635
        %v637 = vrsqrt.pop %v636
        %v638 = vmul.f32 %v636, %v637
        %vm639 = vcmp.eq.f32.partialorder %v636, inf
        %v640 = vsel %vm639, %v636, %v638
        %vm641 = vcmp.eq.f32.partialorder %v636, 0.0
        %v642 = vand.u32 %v636, 2147483648
        %v643 = vsel %vm641, %v642, %v640
        %v644 = vmax.f32 %v643, 1e-06
        %v645 = vrcp.pop %v644
        %v646 = vmul.f32 1.0, %v645
        %v647 = vmul.f32 %v625, %v646
        %v648 = vmul.f32 %v628, %v646
        %v649 = vmul.f32 %v631, %v646
        %v650 = vld [vmem:[%s520] ss:$4 sm:$0xf]
        %s651 = scalar_lea.vmem %s520, 1
        %v652 = vld [vmem:[%s651] ss:$4 sm:$0xf]
        %s653 = scalar_lea.vmem %s520, 2
        %v654 = vld [vmem:[%s653] ss:$4 sm:$0xf]
        %v655 = vmul.f32 %v650, %v650
        %v656 = vmul.f32 %v652, %v652
        %v657 = vadd.f32 %v655, %v656
        %v658 = vmul.f32 %v654, %v654
        %v659 = vadd.f32 %v657, %v658
        %v660 = vrsqrt.pop %v659
        %v661 = vmul.f32 %v659, %v660
        %vm662 = vcmp.eq.f32.partialorder %v659, inf
        %v663 = vsel %vm662, %v659, %v661
        %vm664 = vcmp.eq.f32.partialorder %v659, 0.0
        %v665 = vand.u32 %v659, 2147483648
        %v666 = vsel %vm664, %v665, %v663
        %v667 = vmax.f32 %v666, 1e-12
        %v668 = vrcp.pop %v667
        %v669 = vmul.f32 1.0, %v668
        %v670 = vmul.f32 %v650, %v669
        %v671 = vmul.f32 %v652, %v669
        %v672 = vmul.f32 %v654, %v669
        %v673 = vmul.f32 %v647, %v670
        %v674 = vmul.f32 %v648, %v671
        %v675 = vadd.f32 %v673, %v674
        %v676 = vmul.f32 %v649, %v672
        %v677 = vadd.f32 %v675, %v676
        %v678 = vmul.f32 %v620, %v670
        %v679 = vmul.f32 %v621, %v671
        %v680 = vadd.f32 %v678, %v679
        %v681 = vmul.f32 %v622, %v672
        %v682 = vadd.f32 %v680, %v681
        %v683 = vmul.f32 %v556, %v670
        %v684 = vmul.f32 %v557, %v671
        %v685 = vadd.f32 %v683, %v684
        %v686 = vmul.f32 %v558, %v672
        %v687 = vadd.f32 %v685, %v686
        %v688 = vmul.f32 %v677, %v677
        %v689 = vmul.f32 %v682, %v682
        %v690 = vadd.f32 %v688, %v689
        %v691 = vmul.f32 %v687, %v687
        %v692 = vadd.f32 %v690, %v691
        %v693 = vrsqrt.pop %v692
        %v694 = vmul.f32 %v692, %v693
        %vm695 = vcmp.eq.f32.partialorder %v692, inf
        %v696 = vsel %vm695, %v692, %v694
        %vm697 = vcmp.eq.f32.partialorder %v692, 0.0
        %v698 = vand.u32 %v692, 2147483648
        %v699 = vsel %vm697, %v698, %v696
        %v700 = vmax.f32 %v699, 1e-07
        %v701 = vrcp.pop %v700
        %v702 = vmul.f32 1.0, %v701
        %v703 = vmul.f32 %v677, %v702
        %v704 = vmul.f32 %v682, %v702
        %v705 = vld [vmem:[%s532] ss:$4 sm:$0xf]
        %s706 = scalar_lea.vmem %s532, 1
        %v707 = vld [vmem:[%s706] ss:$4 sm:$0xf]
        %s708 = scalar_lea.vmem %s532, 2
        %v709 = vld [vmem:[%s708] ss:$4 sm:$0xf]
        %v710 = vmul.f32 %v647, %v705
        %v711 = vmul.f32 %v648, %v707
        %v712 = vadd.f32 %v710, %v711
        %v713 = vmul.f32 %v649, %v709
        %v714 = vadd.f32 %v712, %v713
        %v715 = vmul.f32 %v620, %v705
        %v716 = vmul.f32 %v621, %v707
        %v717 = vadd.f32 %v715, %v716
        %v718 = vmul.f32 %v622, %v709
        %v719 = vadd.f32 %v717, %v718
        %v720 = vmul.f32 %v556, %v705
        %v721 = vmul.f32 %v557, %v707
        %v722 = vadd.f32 %v720, %v721
        %v723 = vmul.f32 %v558, %v709
        %v724 = vadd.f32 %v722, %v723
        %v725 = vmul.f32 %v714, %v714
        %v726 = vmul.f32 %v719, %v719
        %v727 = vadd.f32 %v725, %v726
        %v728 = vmul.f32 %v724, %v724
        %v729 = vadd.f32 %v727, %v728
        %v730 = vrsqrt.pop %v729
        %v731 = vmul.f32 %v729, %v730
        %vm732 = vcmp.eq.f32.partialorder %v729, inf
        %v733 = vsel %vm732, %v729, %v731
        %vm734 = vcmp.eq.f32.partialorder %v729, 0.0
        %v735 = vand.u32 %v729, 2147483648
        %v736 = vsel %vm734, %v735, %v733
        %v737 = vmax.f32 %v736, 1e-07
        %v738 = vrcp.pop %v737
        %v739 = vmul.f32 1.0, %v738
        %v740 = vmul.f32 %v714, %v739
        %v741 = vmul.f32 %v719, %v739
        %v742 = vsub.f32 0.0, %v740
        %v743 = vsub.f32 0.0, %v741
        %v744 = vmul.f32 %v742, %v742
        %v745 = vmul.f32 %v743, %v743
        %v746 = vadd.f32 %v744, %v745
        %v747 = vmul.f32 %v703, %v703
        %v748 = vmul.f32 %v704, %v704
        %v749 = vadd.f32 %v747, %v748
        %v750 = vmul.f32 %v746, %v749
        %v751 = vmul.f32 %v742, %v703
        %v752 = vmul.f32 %v743, %v704
        %v753 = vadd.f32 %v751, %v752
        %v754 = vmax.f32 %v750, 1e-24
        %v755 = vrsqrt.pop %v754
        %v756 = vmul.f32 %v754, %v755
        %vm757 = vcmp.eq.f32.partialorder %v754, inf
        %v758 = vsel %vm757, %v754, %v756
        %vm759 = vcmp.eq.f32.partialorder %v754, 0.0
        %v760 = vand.u32 %v754, 2147483648
        %v761 = vsel %vm759, %v760, %v758
        %v762 = vrcp.pop %v761
        %v763 = vmul.f32 %v753, %v762
        %v764 = vmax.f32 %v763, -1.0
        %v765 = vmin.f32 %v764, 1.0
        %v766 = vld [vmem:[%s6] sm:$0xff]
        %v767 = vld [vmem:[%s6 + $0x8] sm:$0xff]
        %v768 = vld [vmem:[%s6 + $0x10] sm:$0xff]
        %v769 = vld [vmem:[%s6 + $0x18] sm:$0xff]
        %v770 = vld [vmem:[%s6 + $0x20] sm:$0xff]
        %v771 = vld [vmem:[%s6 + $0x28] sm:$0xff]
        %773 = vset.pattern.permute.xlu0 0
        %774 = vperm.xlu0 %773, %v766
        %v775 = vpop.permute.xlu0 %774
        %778 = vset.pattern.permute.xlu0 0
        %779 = vperm.xlu0 %778, %v767
        %v780 = vpop.permute.xlu0 %779
        %783 = vset.pattern.permute.xlu0 0
        %784 = vperm.xlu0 %783, %v768
        %v785 = vpop.permute.xlu0 %784
        %788 = vset.pattern.permute.xlu0 0
        %789 = vperm.xlu0 %788, %v769
        %v790 = vpop.permute.xlu0 %789
        %793 = vset.pattern.permute.xlu0 0
        %794 = vperm.xlu0 %793, %v770
        %v795 = vpop.permute.xlu0 %794
        %798 = vset.pattern.permute.xlu0 0
        %799 = vperm.xlu0 %798, %v771
        %v800 = vpop.permute.xlu0 %799
        %802 = vset.pattern.permute.xlu0 1
        %803 = vperm.xlu0 %802, %v766
        %v804 = vpop.permute.xlu0 %803
        %806 = vset.pattern.permute.xlu0 1
        %807 = vperm.xlu0 %806, %v767
        %v808 = vpop.permute.xlu0 %807
        %810 = vset.pattern.permute.xlu0 1
        %811 = vperm.xlu0 %810, %v768
        %v812 = vpop.permute.xlu0 %811
        %814 = vset.pattern.permute.xlu0 1
        %815 = vperm.xlu0 %814, %v769
        %v816 = vpop.permute.xlu0 %815
        %818 = vset.pattern.permute.xlu0 1
        %819 = vperm.xlu0 %818, %v770
        %v820 = vpop.permute.xlu0 %819
        %822 = vset.pattern.permute.xlu0 1
        %823 = vperm.xlu0 %822, %v771
        %v824 = vpop.permute.xlu0 %823
        %v827 = vlaneseq
        %v828 = vshrl.u32 %v827, 7
        %v829 = vsub.s32 0, %v828
        %v830 = vrot.slane %v765, %v829
        %v831 = vlaneseq
        %v832 = vshrl.u32 %v831, 7
        %v833 = vsub.s32 1, %v832
        %v834 = vrot.slane %v765, %v833
        %v835 = vlaneseq
        %v836 = vshrl.u32 %v835, 7
        %v837 = vsub.s32 2, %v836
        %v838 = vrot.slane %v765, %v837
        %v839 = vlaneseq
        %v840 = vshrl.u32 %v839, 7
        %v841 = vsub.s32 3, %v840
        %v842 = vrot.slane %v765, %v841
        %v847 = vmul.f32 %v804, %v830
        %v848 = vmul.f32 %v804, %v834
        %v849 = vmul.f32 %v804, %v838
        %v850 = vmul.f32 %v804, %v842
        %v851 = vmul.f32 %v808, %v830
        %v852 = vmul.f32 %v808, %v834
        %v853 = vmul.f32 %v808, %v838
        %v854 = vmul.f32 %v808, %v842
        %v855 = vmul.f32 %v812, %v830
        %v856 = vmul.f32 %v812, %v834
        %v857 = vmul.f32 %v812, %v838
        %v858 = vmul.f32 %v812, %v842
        %v859 = vmul.f32 %v816, %v830
        %v860 = vmul.f32 %v816, %v834
        %v861 = vmul.f32 %v816, %v838
        %v862 = vmul.f32 %v816, %v842
        %v863 = vmul.f32 %v820, %v830
        %v864 = vmul.f32 %v820, %v834
        %v865 = vmul.f32 %v820, %v838
        %v866 = vmul.f32 %v820, %v842
        %v867 = vmul.f32 %v824, %v830
        %v868 = vmul.f32 %v824, %v834
        %v869 = vmul.f32 %v824, %v838
        %v870 = vmul.f32 %v824, %v842
        %v871 = vadd.f32 %v775, %v847
        %v872 = vadd.f32 %v775, %v848
        %v873 = vadd.f32 %v775, %v849
        %v874 = vadd.f32 %v775, %v850
        %v875 = vadd.f32 %v780, %v851
        %v876 = vadd.f32 %v780, %v852
        %v877 = vadd.f32 %v780, %v853
        %v878 = vadd.f32 %v780, %v854
        %v879 = vadd.f32 %v785, %v855
        %v880 = vadd.f32 %v785, %v856
        %v881 = vadd.f32 %v785, %v857
        %v882 = vadd.f32 %v785, %v858
        %v883 = vadd.f32 %v790, %v859
        %v884 = vadd.f32 %v790, %v860
        %v885 = vadd.f32 %v790, %v861
        %v886 = vadd.f32 %v790, %v862
        %v887 = vadd.f32 %v795, %v863
        %v888 = vadd.f32 %v795, %v864
        %v889 = vadd.f32 %v795, %v865
        %v890 = vadd.f32 %v795, %v866
        %v891 = vadd.f32 %v800, %v867
        %v892 = vadd.f32 %v800, %v868
        %v893 = vadd.f32 %v800, %v869
        %v894 = vadd.f32 %v800, %v870
        %v895 = vmul.f32 %v765, 2.0
        %v896 = vmul.f32 %v895, %v765
        %v897 = vsub.f32 %v896, 1.0
        %898 = vset.pattern.permute.xlu0 2
        %899 = vperm.xlu0 %898, %v766
        %v900 = vpop.permute.xlu0 %899
        %902 = vset.pattern.permute.xlu0 2
        %903 = vperm.xlu0 %902, %v767
        %v904 = vpop.permute.xlu0 %903
        %906 = vset.pattern.permute.xlu0 2
        %907 = vperm.xlu0 %906, %v768
        %v908 = vpop.permute.xlu0 %907
        %910 = vset.pattern.permute.xlu0 2
        %911 = vperm.xlu0 %910, %v769
        %v912 = vpop.permute.xlu0 %911
        %914 = vset.pattern.permute.xlu0 2
        %915 = vperm.xlu0 %914, %v770
        %v916 = vpop.permute.xlu0 %915
        %918 = vset.pattern.permute.xlu0 2
        %919 = vperm.xlu0 %918, %v771
        %v920 = vpop.permute.xlu0 %919
        %v923 = vlaneseq
        %v924 = vshrl.u32 %v923, 7
        %v925 = vsub.s32 0, %v924
        %v926 = vrot.slane %v897, %v925
        %v927 = vlaneseq
        %v928 = vshrl.u32 %v927, 7
        %v929 = vsub.s32 1, %v928
        %v930 = vrot.slane %v897, %v929
        %v931 = vlaneseq
        %v932 = vshrl.u32 %v931, 7
        %v933 = vsub.s32 2, %v932
        %v934 = vrot.slane %v897, %v933
        %v935 = vlaneseq
        %v936 = vshrl.u32 %v935, 7
        %v937 = vsub.s32 3, %v936
        %v938 = vrot.slane %v897, %v937
        %v943 = vmul.f32 %v900, %v926
        %v944 = vmul.f32 %v900, %v930
        %v945 = vmul.f32 %v900, %v934
        %v946 = vmul.f32 %v900, %v938
        %v947 = vmul.f32 %v904, %v926
        %v948 = vmul.f32 %v904, %v930
        %v949 = vmul.f32 %v904, %v934
        %v950 = vmul.f32 %v904, %v938
        %v951 = vmul.f32 %v908, %v926
        %v952 = vmul.f32 %v908, %v930
        %v953 = vmul.f32 %v908, %v934
        %v954 = vmul.f32 %v908, %v938
        %v955 = vmul.f32 %v912, %v926
        %v956 = vmul.f32 %v912, %v930
        %v957 = vmul.f32 %v912, %v934
        %v958 = vmul.f32 %v912, %v938
        %v959 = vmul.f32 %v916, %v926
        %v960 = vmul.f32 %v916, %v930
        %v961 = vmul.f32 %v916, %v934
        %v962 = vmul.f32 %v916, %v938
        %v963 = vmul.f32 %v920, %v926
        %v964 = vmul.f32 %v920, %v930
        %v965 = vmul.f32 %v920, %v934
        %v966 = vmul.f32 %v920, %v938
        %v967 = vadd.f32 %v871, %v943
        %v968 = vadd.f32 %v872, %v944
        %v969 = vadd.f32 %v873, %v945
        %v970 = vadd.f32 %v874, %v946
        %v971 = vadd.f32 %v875, %v947
        %v972 = vadd.f32 %v876, %v948
        %v973 = vadd.f32 %v877, %v949
        %v974 = vadd.f32 %v878, %v950
        %v975 = vadd.f32 %v879, %v951
        %v976 = vadd.f32 %v880, %v952
        %v977 = vadd.f32 %v881, %v953
        %v978 = vadd.f32 %v882, %v954
        %v979 = vadd.f32 %v883, %v955
        %v980 = vadd.f32 %v884, %v956
        %v981 = vadd.f32 %v885, %v957
        %v982 = vadd.f32 %v886, %v958
        %v983 = vadd.f32 %v887, %v959
        %v984 = vadd.f32 %v888, %v960
        %v985 = vadd.f32 %v889, %v961
        %v986 = vadd.f32 %v890, %v962
        %v987 = vadd.f32 %v891, %v963
        %v988 = vadd.f32 %v892, %v964
        %v989 = vadd.f32 %v893, %v965
        %v990 = vadd.f32 %v894, %v966
        %v991 = vmul.f32 %v895, %v897
        %v992 = vsub.f32 %v991, %v765
        %993 = vset.pattern.permute.xlu0 3
        %994 = vperm.xlu0 %993, %v766
        %v995 = vpop.permute.xlu0 %994
        %997 = vset.pattern.permute.xlu0 3
        %998 = vperm.xlu0 %997, %v767
        %v999 = vpop.permute.xlu0 %998
        %1001 = vset.pattern.permute.xlu0 3
        %1002 = vperm.xlu0 %1001, %v768
        %v1003 = vpop.permute.xlu0 %1002
        %1005 = vset.pattern.permute.xlu0 3
        %1006 = vperm.xlu0 %1005, %v769
        %v1007 = vpop.permute.xlu0 %1006
        %1009 = vset.pattern.permute.xlu0 3
        %1010 = vperm.xlu0 %1009, %v770
        %v1011 = vpop.permute.xlu0 %1010
        %1013 = vset.pattern.permute.xlu0 3
        %1014 = vperm.xlu0 %1013, %v771
        %v1015 = vpop.permute.xlu0 %1014
        %v1018 = vlaneseq
        %v1019 = vshrl.u32 %v1018, 7
        %v1020 = vsub.s32 0, %v1019
        %v1021 = vrot.slane %v992, %v1020
        %v1022 = vlaneseq
        %v1023 = vshrl.u32 %v1022, 7
        %v1024 = vsub.s32 1, %v1023
        %v1025 = vrot.slane %v992, %v1024
        %v1026 = vlaneseq
        %v1027 = vshrl.u32 %v1026, 7
        %v1028 = vsub.s32 2, %v1027
        %v1029 = vrot.slane %v992, %v1028
        %v1030 = vlaneseq
        %v1031 = vshrl.u32 %v1030, 7
        %v1032 = vsub.s32 3, %v1031
        %v1033 = vrot.slane %v992, %v1032
        %v1038 = vmul.f32 %v995, %v1021
        %v1039 = vmul.f32 %v995, %v1025
        %v1040 = vmul.f32 %v995, %v1029
        %v1041 = vmul.f32 %v995, %v1033
        %v1042 = vmul.f32 %v999, %v1021
        %v1043 = vmul.f32 %v999, %v1025
        %v1044 = vmul.f32 %v999, %v1029
        %v1045 = vmul.f32 %v999, %v1033
        %v1046 = vmul.f32 %v1003, %v1021
        %v1047 = vmul.f32 %v1003, %v1025
        %v1048 = vmul.f32 %v1003, %v1029
        %v1049 = vmul.f32 %v1003, %v1033
        %v1050 = vmul.f32 %v1007, %v1021
        %v1051 = vmul.f32 %v1007, %v1025
        %v1052 = vmul.f32 %v1007, %v1029
        %v1053 = vmul.f32 %v1007, %v1033
        %v1054 = vmul.f32 %v1011, %v1021
        %v1055 = vmul.f32 %v1011, %v1025
        %v1056 = vmul.f32 %v1011, %v1029
        %v1057 = vmul.f32 %v1011, %v1033
        %v1058 = vmul.f32 %v1015, %v1021
        %v1059 = vmul.f32 %v1015, %v1025
        %v1060 = vmul.f32 %v1015, %v1029
        %v1061 = vmul.f32 %v1015, %v1033
        %v1062 = vadd.f32 %v967, %v1038
        %v1063 = vadd.f32 %v968, %v1039
        %v1064 = vadd.f32 %v969, %v1040
        %v1065 = vadd.f32 %v970, %v1041
        %v1066 = vadd.f32 %v971, %v1042
        %v1067 = vadd.f32 %v972, %v1043
        %v1068 = vadd.f32 %v973, %v1044
        %v1069 = vadd.f32 %v974, %v1045
        %v1070 = vadd.f32 %v975, %v1046
        %v1071 = vadd.f32 %v976, %v1047
        %v1072 = vadd.f32 %v977, %v1048
        %v1073 = vadd.f32 %v978, %v1049
        %v1074 = vadd.f32 %v979, %v1050
        %v1075 = vadd.f32 %v980, %v1051
        %v1076 = vadd.f32 %v981, %v1052
        %v1077 = vadd.f32 %v982, %v1053
        %v1078 = vadd.f32 %v983, %v1054
        %v1079 = vadd.f32 %v984, %v1055
        %v1080 = vadd.f32 %v985, %v1056
        %v1081 = vadd.f32 %v986, %v1057
        %v1082 = vadd.f32 %v987, %v1058
        %v1083 = vadd.f32 %v988, %v1059
        %v1084 = vadd.f32 %v989, %v1060
        %v1085 = vadd.f32 %v990, %v1061
        %v1086 = vmul.f32 %v895, %v992
        %v1087 = vsub.f32 %v1086, %v897
        %1088 = vset.pattern.permute.xlu0 4
        %1089 = vperm.xlu0 %1088, %v766
        %v1090 = vpop.permute.xlu0 %1089
        %1092 = vset.pattern.permute.xlu0 4
        %1093 = vperm.xlu0 %1092, %v767
        %v1094 = vpop.permute.xlu0 %1093
        %1096 = vset.pattern.permute.xlu0 4
        %1097 = vperm.xlu0 %1096, %v768
        %v1098 = vpop.permute.xlu0 %1097
        %1100 = vset.pattern.permute.xlu0 4
        %1101 = vperm.xlu0 %1100, %v769
        %v1102 = vpop.permute.xlu0 %1101
        %1104 = vset.pattern.permute.xlu0 4
        %1105 = vperm.xlu0 %1104, %v770
        %v1106 = vpop.permute.xlu0 %1105
        %1108 = vset.pattern.permute.xlu0 4
        %1109 = vperm.xlu0 %1108, %v771
        %v1110 = vpop.permute.xlu0 %1109
        %v1113 = vlaneseq
        %v1114 = vshrl.u32 %v1113, 7
        %v1115 = vsub.s32 0, %v1114
        %v1116 = vrot.slane %v1087, %v1115
        %v1117 = vlaneseq
        %v1118 = vshrl.u32 %v1117, 7
        %v1119 = vsub.s32 1, %v1118
        %v1120 = vrot.slane %v1087, %v1119
        %v1121 = vlaneseq
        %v1122 = vshrl.u32 %v1121, 7
        %v1123 = vsub.s32 2, %v1122
        %v1124 = vrot.slane %v1087, %v1123
        %v1125 = vlaneseq
        %v1126 = vshrl.u32 %v1125, 7
        %v1127 = vsub.s32 3, %v1126
        %v1128 = vrot.slane %v1087, %v1127
        %v1133 = vmul.f32 %v1090, %v1116
        %v1134 = vmul.f32 %v1090, %v1120
        %v1135 = vmul.f32 %v1090, %v1124
        %v1136 = vmul.f32 %v1090, %v1128
        %v1137 = vmul.f32 %v1094, %v1116
        %v1138 = vmul.f32 %v1094, %v1120
        %v1139 = vmul.f32 %v1094, %v1124
        %v1140 = vmul.f32 %v1094, %v1128
        %v1141 = vmul.f32 %v1098, %v1116
        %v1142 = vmul.f32 %v1098, %v1120
        %v1143 = vmul.f32 %v1098, %v1124
        %v1144 = vmul.f32 %v1098, %v1128
        %v1145 = vmul.f32 %v1102, %v1116
        %v1146 = vmul.f32 %v1102, %v1120
        %v1147 = vmul.f32 %v1102, %v1124
        %v1148 = vmul.f32 %v1102, %v1128
        %v1149 = vmul.f32 %v1106, %v1116
        %v1150 = vmul.f32 %v1106, %v1120
        %v1151 = vmul.f32 %v1106, %v1124
        %v1152 = vmul.f32 %v1106, %v1128
        %v1153 = vmul.f32 %v1110, %v1116
        %v1154 = vmul.f32 %v1110, %v1120
        %v1155 = vmul.f32 %v1110, %v1124
        %v1156 = vmul.f32 %v1110, %v1128
        %v1157 = vadd.f32 %v1062, %v1133
        %v1158 = vadd.f32 %v1063, %v1134
        %v1159 = vadd.f32 %v1064, %v1135
        %v1160 = vadd.f32 %v1065, %v1136
        %v1161 = vadd.f32 %v1066, %v1137
        %v1162 = vadd.f32 %v1067, %v1138
        %v1163 = vadd.f32 %v1068, %v1139
        %v1164 = vadd.f32 %v1069, %v1140
        %v1165 = vadd.f32 %v1070, %v1141
        %v1166 = vadd.f32 %v1071, %v1142
        %v1167 = vadd.f32 %v1072, %v1143
        %v1168 = vadd.f32 %v1073, %v1144
        %v1169 = vadd.f32 %v1074, %v1145
        %v1170 = vadd.f32 %v1075, %v1146
        %v1171 = vadd.f32 %v1076, %v1147
        %v1172 = vadd.f32 %v1077, %v1148
        %v1173 = vadd.f32 %v1078, %v1149
        %v1174 = vadd.f32 %v1079, %v1150
        %v1175 = vadd.f32 %v1080, %v1151
        %v1176 = vadd.f32 %v1081, %v1152
        %v1177 = vadd.f32 %v1082, %v1153
        %v1178 = vadd.f32 %v1083, %v1154
        %v1179 = vadd.f32 %v1084, %v1155
        %v1180 = vadd.f32 %v1085, %v1156
        %v1181 = vmul.f32 %v895, %v1087
        %v1182 = vsub.f32 %v1181, %v992
        %1183 = vset.pattern.permute.xlu0 5
        %1184 = vperm.xlu0 %1183, %v766
        %v1185 = vpop.permute.xlu0 %1184
        %1187 = vset.pattern.permute.xlu0 5
        %1188 = vperm.xlu0 %1187, %v767
        %v1189 = vpop.permute.xlu0 %1188
        %1191 = vset.pattern.permute.xlu0 5
        %1192 = vperm.xlu0 %1191, %v768
        %v1193 = vpop.permute.xlu0 %1192
        %1195 = vset.pattern.permute.xlu0 5
        %1196 = vperm.xlu0 %1195, %v769
        %v1197 = vpop.permute.xlu0 %1196
        %1199 = vset.pattern.permute.xlu0 5
        %1200 = vperm.xlu0 %1199, %v770
        %v1201 = vpop.permute.xlu0 %1200
        %1203 = vset.pattern.permute.xlu0 5
        %1204 = vperm.xlu0 %1203, %v771
        %v1205 = vpop.permute.xlu0 %1204
        %v1208 = vlaneseq
        %v1209 = vshrl.u32 %v1208, 7
        %v1210 = vsub.s32 0, %v1209
        %v1211 = vrot.slane %v1182, %v1210
        %v1212 = vlaneseq
        %v1213 = vshrl.u32 %v1212, 7
        %v1214 = vsub.s32 1, %v1213
        %v1215 = vrot.slane %v1182, %v1214
        %v1216 = vlaneseq
        %v1217 = vshrl.u32 %v1216, 7
        %v1218 = vsub.s32 2, %v1217
        %v1219 = vrot.slane %v1182, %v1218
        %v1220 = vlaneseq
        %v1221 = vshrl.u32 %v1220, 7
        %v1222 = vsub.s32 3, %v1221
        %v1223 = vrot.slane %v1182, %v1222
        %v1228 = vmul.f32 %v1185, %v1211
        %v1229 = vmul.f32 %v1185, %v1215
        %v1230 = vmul.f32 %v1185, %v1219
        %v1231 = vmul.f32 %v1185, %v1223
        %v1232 = vmul.f32 %v1189, %v1211
        %v1233 = vmul.f32 %v1189, %v1215
        %v1234 = vmul.f32 %v1189, %v1219
        %v1235 = vmul.f32 %v1189, %v1223
        %v1236 = vmul.f32 %v1193, %v1211
        %v1237 = vmul.f32 %v1193, %v1215
        %v1238 = vmul.f32 %v1193, %v1219
        %v1239 = vmul.f32 %v1193, %v1223
        %v1240 = vmul.f32 %v1197, %v1211
        %v1241 = vmul.f32 %v1197, %v1215
        %v1242 = vmul.f32 %v1197, %v1219
        %v1243 = vmul.f32 %v1197, %v1223
        %v1244 = vmul.f32 %v1201, %v1211
        %v1245 = vmul.f32 %v1201, %v1215
        %v1246 = vmul.f32 %v1201, %v1219
        %v1247 = vmul.f32 %v1201, %v1223
        %v1248 = vmul.f32 %v1205, %v1211
        %v1249 = vmul.f32 %v1205, %v1215
        %v1250 = vmul.f32 %v1205, %v1219
        %v1251 = vmul.f32 %v1205, %v1223
        %v1252 = vadd.f32 %v1157, %v1228
        %v1253 = vadd.f32 %v1158, %v1229
        %v1254 = vadd.f32 %v1159, %v1230
        %v1255 = vadd.f32 %v1160, %v1231
        %v1256 = vadd.f32 %v1161, %v1232
        %v1257 = vadd.f32 %v1162, %v1233
        %v1258 = vadd.f32 %v1163, %v1234
        %v1259 = vadd.f32 %v1164, %v1235
        %v1260 = vadd.f32 %v1165, %v1236
        %v1261 = vadd.f32 %v1166, %v1237
        %v1262 = vadd.f32 %v1167, %v1238
        %v1263 = vadd.f32 %v1168, %v1239
        %v1264 = vadd.f32 %v1169, %v1240
        %v1265 = vadd.f32 %v1170, %v1241
        %v1266 = vadd.f32 %v1171, %v1242
        %v1267 = vadd.f32 %v1172, %v1243
        %v1268 = vadd.f32 %v1173, %v1244
        %v1269 = vadd.f32 %v1174, %v1245
        %v1270 = vadd.f32 %v1175, %v1246
        %v1271 = vadd.f32 %v1176, %v1247
        %v1272 = vadd.f32 %v1177, %v1248
        %v1273 = vadd.f32 %v1178, %v1249
        %v1274 = vadd.f32 %v1179, %v1250
        %v1275 = vadd.f32 %v1180, %v1251
        %v1276 = vmul.f32 %v895, %v1182
        %v1277 = vsub.f32 %v1276, %v1087
        %1278 = vset.pattern.permute.xlu0 6
        %1279 = vperm.xlu0 %1278, %v766
        %v1280 = vpop.permute.xlu0 %1279
        %1282 = vset.pattern.permute.xlu0 6
        %1283 = vperm.xlu0 %1282, %v767
        %v1284 = vpop.permute.xlu0 %1283
        %1286 = vset.pattern.permute.xlu0 6
        %1287 = vperm.xlu0 %1286, %v768
        %v1288 = vpop.permute.xlu0 %1287
        %1290 = vset.pattern.permute.xlu0 6
        %1291 = vperm.xlu0 %1290, %v769
        %v1292 = vpop.permute.xlu0 %1291
        %1294 = vset.pattern.permute.xlu0 6
        %1295 = vperm.xlu0 %1294, %v770
        %v1296 = vpop.permute.xlu0 %1295
        %1298 = vset.pattern.permute.xlu0 6
        %1299 = vperm.xlu0 %1298, %v771
        %v1300 = vpop.permute.xlu0 %1299
        %v1303 = vlaneseq
        %v1304 = vshrl.u32 %v1303, 7
        %v1305 = vsub.s32 0, %v1304
        %v1306 = vrot.slane %v1277, %v1305
        %v1307 = vlaneseq
        %v1308 = vshrl.u32 %v1307, 7
        %v1309 = vsub.s32 1, %v1308
        %v1310 = vrot.slane %v1277, %v1309
        %v1311 = vlaneseq
        %v1312 = vshrl.u32 %v1311, 7
        %v1313 = vsub.s32 2, %v1312
        %v1314 = vrot.slane %v1277, %v1313
        %v1315 = vlaneseq
        %v1316 = vshrl.u32 %v1315, 7
        %v1317 = vsub.s32 3, %v1316
        %v1318 = vrot.slane %v1277, %v1317
        %v1323 = vmul.f32 %v1280, %v1306
        %v1324 = vmul.f32 %v1280, %v1310
        %v1325 = vmul.f32 %v1280, %v1314
        %v1326 = vmul.f32 %v1280, %v1318
        %v1327 = vmul.f32 %v1284, %v1306
        %v1328 = vmul.f32 %v1284, %v1310
        %v1329 = vmul.f32 %v1284, %v1314
        %v1330 = vmul.f32 %v1284, %v1318
        %v1331 = vmul.f32 %v1288, %v1306
        %v1332 = vmul.f32 %v1288, %v1310
        %v1333 = vmul.f32 %v1288, %v1314
        %v1334 = vmul.f32 %v1288, %v1318
        %v1335 = vmul.f32 %v1292, %v1306
        %v1336 = vmul.f32 %v1292, %v1310
        %v1337 = vmul.f32 %v1292, %v1314
        %v1338 = vmul.f32 %v1292, %v1318
        %v1339 = vmul.f32 %v1296, %v1306
        %v1340 = vmul.f32 %v1296, %v1310
        %v1341 = vmul.f32 %v1296, %v1314
        %v1342 = vmul.f32 %v1296, %v1318
        %v1343 = vmul.f32 %v1300, %v1306
        %v1344 = vmul.f32 %v1300, %v1310
        %v1345 = vmul.f32 %v1300, %v1314
        %v1346 = vmul.f32 %v1300, %v1318
        %v1347 = vadd.f32 %v1252, %v1323
        %v1348 = vadd.f32 %v1253, %v1324
        %v1349 = vadd.f32 %v1254, %v1325
        %v1350 = vadd.f32 %v1255, %v1326
        %v1351 = vadd.f32 %v1256, %v1327
        %v1352 = vadd.f32 %v1257, %v1328
        %v1353 = vadd.f32 %v1258, %v1329
        %v1354 = vadd.f32 %v1259, %v1330
        %v1355 = vadd.f32 %v1260, %v1331
        %v1356 = vadd.f32 %v1261, %v1332
        %v1357 = vadd.f32 %v1262, %v1333
        %v1358 = vadd.f32 %v1263, %v1334
        %v1359 = vadd.f32 %v1264, %v1335
        %v1360 = vadd.f32 %v1265, %v1336
        %v1361 = vadd.f32 %v1266, %v1337
        %v1362 = vadd.f32 %v1267, %v1338
        %v1363 = vadd.f32 %v1268, %v1339
        %v1364 = vadd.f32 %v1269, %v1340
        %v1365 = vadd.f32 %v1270, %v1341
        %v1366 = vadd.f32 %v1271, %v1342
        %v1367 = vadd.f32 %v1272, %v1343
        %v1368 = vadd.f32 %v1273, %v1344
        %v1369 = vadd.f32 %v1274, %v1345
        %v1370 = vadd.f32 %v1275, %v1346
        %v1371 = vmul.f32 %v895, %v1277
        %v1372 = vsub.f32 %v1371, %v1182
        %1373 = vset.pattern.permute.xlu0 7
        %1374 = vperm.xlu0 %1373, %v766
        %v1375 = vpop.permute.xlu0 %1374
        %1377 = vset.pattern.permute.xlu0 7
        %1378 = vperm.xlu0 %1377, %v767
        %v1379 = vpop.permute.xlu0 %1378
        %1381 = vset.pattern.permute.xlu0 7
        %1382 = vperm.xlu0 %1381, %v768
        %v1383 = vpop.permute.xlu0 %1382
        %1385 = vset.pattern.permute.xlu0 7
        %1386 = vperm.xlu0 %1385, %v769
        %v1387 = vpop.permute.xlu0 %1386
        %1389 = vset.pattern.permute.xlu0 7
        %1390 = vperm.xlu0 %1389, %v770
        %v1391 = vpop.permute.xlu0 %1390
        %1393 = vset.pattern.permute.xlu0 7
        %1394 = vperm.xlu0 %1393, %v771
        %v1395 = vpop.permute.xlu0 %1394
        %v1398 = vlaneseq
        %v1399 = vshrl.u32 %v1398, 7
        %v1400 = vsub.s32 0, %v1399
        %v1401 = vrot.slane %v1372, %v1400
        %v1402 = vlaneseq
        %v1403 = vshrl.u32 %v1402, 7
        %v1404 = vsub.s32 1, %v1403
        %v1405 = vrot.slane %v1372, %v1404
        %v1406 = vlaneseq
        %v1407 = vshrl.u32 %v1406, 7
        %v1408 = vsub.s32 2, %v1407
        %v1409 = vrot.slane %v1372, %v1408
        %v1410 = vlaneseq
        %v1411 = vshrl.u32 %v1410, 7
        %v1412 = vsub.s32 3, %v1411
        %v1413 = vrot.slane %v1372, %v1412
        %v1418 = vmul.f32 %v1375, %v1401
        %v1419 = vmul.f32 %v1375, %v1405
        %v1420 = vmul.f32 %v1375, %v1409
        %v1421 = vmul.f32 %v1375, %v1413
        %v1422 = vmul.f32 %v1379, %v1401
        %v1423 = vmul.f32 %v1379, %v1405
        %v1424 = vmul.f32 %v1379, %v1409
        %v1425 = vmul.f32 %v1379, %v1413
        %v1426 = vmul.f32 %v1383, %v1401
        %v1427 = vmul.f32 %v1383, %v1405
        %v1428 = vmul.f32 %v1383, %v1409
        %v1429 = vmul.f32 %v1383, %v1413
        %v1430 = vmul.f32 %v1387, %v1401
        %v1431 = vmul.f32 %v1387, %v1405
        %v1432 = vmul.f32 %v1387, %v1409
        %v1433 = vmul.f32 %v1387, %v1413
        %v1434 = vmul.f32 %v1391, %v1401
        %v1435 = vmul.f32 %v1391, %v1405
        %v1436 = vmul.f32 %v1391, %v1409
        %v1437 = vmul.f32 %v1391, %v1413
        %v1438 = vmul.f32 %v1395, %v1401
        %v1439 = vmul.f32 %v1395, %v1405
        %v1440 = vmul.f32 %v1395, %v1409
        %v1441 = vmul.f32 %v1395, %v1413
        %v1442 = vadd.f32 %v1347, %v1418
        %v1443 = vadd.f32 %v1348, %v1419
        %v1444 = vadd.f32 %v1349, %v1420
        %v1445 = vadd.f32 %v1350, %v1421
        %v1446 = vadd.f32 %v1351, %v1422
        %v1447 = vadd.f32 %v1352, %v1423
        %v1448 = vadd.f32 %v1353, %v1424
        %v1449 = vadd.f32 %v1354, %v1425
        %v1450 = vadd.f32 %v1355, %v1426
        %v1451 = vadd.f32 %v1356, %v1427
        %v1452 = vadd.f32 %v1357, %v1428
        %v1453 = vadd.f32 %v1358, %v1429
        %v1454 = vadd.f32 %v1359, %v1430
        %v1455 = vadd.f32 %v1360, %v1431
        %v1456 = vadd.f32 %v1361, %v1432
        %v1457 = vadd.f32 %v1362, %v1433
        %v1458 = vadd.f32 %v1363, %v1434
        %v1459 = vadd.f32 %v1364, %v1435
        %v1460 = vadd.f32 %v1365, %v1436
        %v1461 = vadd.f32 %v1366, %v1437
        %v1462 = vadd.f32 %v1367, %v1438
        %v1463 = vadd.f32 %v1368, %v1439
        %v1464 = vadd.f32 %v1369, %v1440
        %v1465 = vadd.f32 %v1370, %v1441
        %v1466 = vmul.f32 %v895, %v1372
        %v1467 = vsub.f32 %v1466, %v1277
        %1468 = vset.pattern.permute.xlu0 8
        %1469 = vperm.xlu0 %1468, %v766
        %v1470 = vpop.permute.xlu0 %1469
        %1472 = vset.pattern.permute.xlu0 8
        %1473 = vperm.xlu0 %1472, %v767
        %v1474 = vpop.permute.xlu0 %1473
        %1476 = vset.pattern.permute.xlu0 8
        %1477 = vperm.xlu0 %1476, %v768
        %v1478 = vpop.permute.xlu0 %1477
        %1480 = vset.pattern.permute.xlu0 8
        %1481 = vperm.xlu0 %1480, %v769
        %v1482 = vpop.permute.xlu0 %1481
        %1484 = vset.pattern.permute.xlu0 8
        %1485 = vperm.xlu0 %1484, %v770
        %v1486 = vpop.permute.xlu0 %1485
        %1488 = vset.pattern.permute.xlu0 8
        %1489 = vperm.xlu0 %1488, %v771
        %v1490 = vpop.permute.xlu0 %1489
        %v1493 = vlaneseq
        %v1494 = vshrl.u32 %v1493, 7
        %v1495 = vsub.s32 0, %v1494
        %v1496 = vrot.slane %v1467, %v1495
        %v1497 = vlaneseq
        %v1498 = vshrl.u32 %v1497, 7
        %v1499 = vsub.s32 1, %v1498
        %v1500 = vrot.slane %v1467, %v1499
        %v1501 = vlaneseq
        %v1502 = vshrl.u32 %v1501, 7
        %v1503 = vsub.s32 2, %v1502
        %v1504 = vrot.slane %v1467, %v1503
        %v1505 = vlaneseq
        %v1506 = vshrl.u32 %v1505, 7
        %v1507 = vsub.s32 3, %v1506
        %v1508 = vrot.slane %v1467, %v1507
        %v1513 = vmul.f32 %v1470, %v1496
        %v1514 = vmul.f32 %v1470, %v1500
        %v1515 = vmul.f32 %v1470, %v1504
        %v1516 = vmul.f32 %v1470, %v1508
        %v1517 = vmul.f32 %v1474, %v1496
        %v1518 = vmul.f32 %v1474, %v1500
        %v1519 = vmul.f32 %v1474, %v1504
        %v1520 = vmul.f32 %v1474, %v1508
        %v1521 = vmul.f32 %v1478, %v1496
        %v1522 = vmul.f32 %v1478, %v1500
        %v1523 = vmul.f32 %v1478, %v1504
        %v1524 = vmul.f32 %v1478, %v1508
        %v1525 = vmul.f32 %v1482, %v1496
        %v1526 = vmul.f32 %v1482, %v1500
        %v1527 = vmul.f32 %v1482, %v1504
        %v1528 = vmul.f32 %v1482, %v1508
        %v1529 = vmul.f32 %v1486, %v1496
        %v1530 = vmul.f32 %v1486, %v1500
        %v1531 = vmul.f32 %v1486, %v1504
        %v1532 = vmul.f32 %v1486, %v1508
        %v1533 = vmul.f32 %v1490, %v1496
        %v1534 = vmul.f32 %v1490, %v1500
        %v1535 = vmul.f32 %v1490, %v1504
        %v1536 = vmul.f32 %v1490, %v1508
        %v1537 = vadd.f32 %v1442, %v1513
        %v1538 = vadd.f32 %v1443, %v1514
        %v1539 = vadd.f32 %v1444, %v1515
        %v1540 = vadd.f32 %v1445, %v1516
        %v1541 = vadd.f32 %v1446, %v1517
        %v1542 = vadd.f32 %v1447, %v1518
        %v1543 = vadd.f32 %v1448, %v1519
        %v1544 = vadd.f32 %v1449, %v1520
        %v1545 = vadd.f32 %v1450, %v1521
        %v1546 = vadd.f32 %v1451, %v1522
        %v1547 = vadd.f32 %v1452, %v1523
        %v1548 = vadd.f32 %v1453, %v1524
        %v1549 = vadd.f32 %v1454, %v1525
        %v1550 = vadd.f32 %v1455, %v1526
        %v1551 = vadd.f32 %v1456, %v1527
        %v1552 = vadd.f32 %v1457, %v1528
        %v1553 = vadd.f32 %v1458, %v1529
        %v1554 = vadd.f32 %v1459, %v1530
        %v1555 = vadd.f32 %v1460, %v1531
        %v1556 = vadd.f32 %v1461, %v1532
        %v1557 = vadd.f32 %v1462, %v1533
        %v1558 = vadd.f32 %v1463, %v1534
        %v1559 = vadd.f32 %v1464, %v1535
        %v1560 = vadd.f32 %v1465, %v1536
        %v1561 = vmul.f32 %v895, %v1467
        %v1562 = vsub.f32 %v1561, %v1372
        %1563 = vset.pattern.permute.xlu0 9
        %1564 = vperm.xlu0 %1563, %v766
        %v1565 = vpop.permute.xlu0 %1564
        %1567 = vset.pattern.permute.xlu0 9
        %1568 = vperm.xlu0 %1567, %v767
        %v1569 = vpop.permute.xlu0 %1568
        %1571 = vset.pattern.permute.xlu0 9
        %1572 = vperm.xlu0 %1571, %v768
        %v1573 = vpop.permute.xlu0 %1572
        %1575 = vset.pattern.permute.xlu0 9
        %1576 = vperm.xlu0 %1575, %v769
        %v1577 = vpop.permute.xlu0 %1576
        %1579 = vset.pattern.permute.xlu0 9
        %1580 = vperm.xlu0 %1579, %v770
        %v1581 = vpop.permute.xlu0 %1580
        %1583 = vset.pattern.permute.xlu0 9
        %1584 = vperm.xlu0 %1583, %v771
        %v1585 = vpop.permute.xlu0 %1584
        %v1588 = vlaneseq
        %v1589 = vshrl.u32 %v1588, 7
        %v1590 = vsub.s32 0, %v1589
        %v1591 = vrot.slane %v1562, %v1590
        %v1592 = vlaneseq
        %v1593 = vshrl.u32 %v1592, 7
        %v1594 = vsub.s32 1, %v1593
        %v1595 = vrot.slane %v1562, %v1594
        %v1596 = vlaneseq
        %v1597 = vshrl.u32 %v1596, 7
        %v1598 = vsub.s32 2, %v1597
        %v1599 = vrot.slane %v1562, %v1598
        %v1600 = vlaneseq
        %v1601 = vshrl.u32 %v1600, 7
        %v1602 = vsub.s32 3, %v1601
        %v1603 = vrot.slane %v1562, %v1602
        %v1608 = vmul.f32 %v1565, %v1591
        %v1609 = vmul.f32 %v1565, %v1595
        %v1610 = vmul.f32 %v1565, %v1599
        %v1611 = vmul.f32 %v1565, %v1603
        %v1612 = vmul.f32 %v1569, %v1591
        %v1613 = vmul.f32 %v1569, %v1595
        %v1614 = vmul.f32 %v1569, %v1599
        %v1615 = vmul.f32 %v1569, %v1603
        %v1616 = vmul.f32 %v1573, %v1591
        %v1617 = vmul.f32 %v1573, %v1595
        %v1618 = vmul.f32 %v1573, %v1599
        %v1619 = vmul.f32 %v1573, %v1603
        %v1620 = vmul.f32 %v1577, %v1591
        %v1621 = vmul.f32 %v1577, %v1595
        %v1622 = vmul.f32 %v1577, %v1599
        %v1623 = vmul.f32 %v1577, %v1603
        %v1624 = vmul.f32 %v1581, %v1591
        %v1625 = vmul.f32 %v1581, %v1595
        %v1626 = vmul.f32 %v1581, %v1599
        %v1627 = vmul.f32 %v1581, %v1603
        %v1628 = vmul.f32 %v1585, %v1591
        %v1629 = vmul.f32 %v1585, %v1595
        %v1630 = vmul.f32 %v1585, %v1599
        %v1631 = vmul.f32 %v1585, %v1603
        %v1632 = vadd.f32 %v1537, %v1608
        %v1633 = vadd.f32 %v1538, %v1609
        %v1634 = vadd.f32 %v1539, %v1610
        %v1635 = vadd.f32 %v1540, %v1611
        %v1636 = vadd.f32 %v1541, %v1612
        %v1637 = vadd.f32 %v1542, %v1613
        %v1638 = vadd.f32 %v1543, %v1614
        %v1639 = vadd.f32 %v1544, %v1615
        %v1640 = vadd.f32 %v1545, %v1616
        %v1641 = vadd.f32 %v1546, %v1617
        %v1642 = vadd.f32 %v1547, %v1618
        %v1643 = vadd.f32 %v1548, %v1619
        %v1644 = vadd.f32 %v1549, %v1620
        %v1645 = vadd.f32 %v1550, %v1621
        %v1646 = vadd.f32 %v1551, %v1622
        %v1647 = vadd.f32 %v1552, %v1623
        %v1648 = vadd.f32 %v1553, %v1624
        %v1649 = vadd.f32 %v1554, %v1625
        %v1650 = vadd.f32 %v1555, %v1626
        %v1651 = vadd.f32 %v1556, %v1627
        %v1652 = vadd.f32 %v1557, %v1628
        %v1653 = vadd.f32 %v1558, %v1629
        %v1654 = vadd.f32 %v1559, %v1630
        %v1655 = vadd.f32 %v1560, %v1631
        %v1656 = vmul.f32 %v895, %v1562
        %v1657 = vsub.f32 %v1656, %v1467
        %1658 = vset.pattern.permute.xlu0 10
        %1659 = vperm.xlu0 %1658, %v766
        %v1660 = vpop.permute.xlu0 %1659
        %1662 = vset.pattern.permute.xlu0 10
        %1663 = vperm.xlu0 %1662, %v767
        %v1664 = vpop.permute.xlu0 %1663
        %1666 = vset.pattern.permute.xlu0 10
        %1667 = vperm.xlu0 %1666, %v768
        %v1668 = vpop.permute.xlu0 %1667
        %1670 = vset.pattern.permute.xlu0 10
        %1671 = vperm.xlu0 %1670, %v769
        %v1672 = vpop.permute.xlu0 %1671
        %1674 = vset.pattern.permute.xlu0 10
        %1675 = vperm.xlu0 %1674, %v770
        %v1676 = vpop.permute.xlu0 %1675
        %1678 = vset.pattern.permute.xlu0 10
        %1679 = vperm.xlu0 %1678, %v771
        %v1680 = vpop.permute.xlu0 %1679
        %v1683 = vlaneseq
        %v1684 = vshrl.u32 %v1683, 7
        %v1685 = vsub.s32 0, %v1684
        %v1686 = vrot.slane %v1657, %v1685
        %v1687 = vlaneseq
        %v1688 = vshrl.u32 %v1687, 7
        %v1689 = vsub.s32 1, %v1688
        %v1690 = vrot.slane %v1657, %v1689
        %v1691 = vlaneseq
        %v1692 = vshrl.u32 %v1691, 7
        %v1693 = vsub.s32 2, %v1692
        %v1694 = vrot.slane %v1657, %v1693
        %v1695 = vlaneseq
        %v1696 = vshrl.u32 %v1695, 7
        %v1697 = vsub.s32 3, %v1696
        %v1698 = vrot.slane %v1657, %v1697
        %v1703 = vmul.f32 %v1660, %v1686
        %v1704 = vmul.f32 %v1660, %v1690
        %v1705 = vmul.f32 %v1660, %v1694
        %v1706 = vmul.f32 %v1660, %v1698
        %v1707 = vmul.f32 %v1664, %v1686
        %v1708 = vmul.f32 %v1664, %v1690
        %v1709 = vmul.f32 %v1664, %v1694
        %v1710 = vmul.f32 %v1664, %v1698
        %v1711 = vmul.f32 %v1668, %v1686
        %v1712 = vmul.f32 %v1668, %v1690
        %v1713 = vmul.f32 %v1668, %v1694
        %v1714 = vmul.f32 %v1668, %v1698
        %v1715 = vmul.f32 %v1672, %v1686
        %v1716 = vmul.f32 %v1672, %v1690
        %v1717 = vmul.f32 %v1672, %v1694
        %v1718 = vmul.f32 %v1672, %v1698
        %v1719 = vmul.f32 %v1676, %v1686
        %v1720 = vmul.f32 %v1676, %v1690
        %v1721 = vmul.f32 %v1676, %v1694
        %v1722 = vmul.f32 %v1676, %v1698
        %v1723 = vmul.f32 %v1680, %v1686
        %v1724 = vmul.f32 %v1680, %v1690
        %v1725 = vmul.f32 %v1680, %v1694
        %v1726 = vmul.f32 %v1680, %v1698
        %v1727 = vadd.f32 %v1632, %v1703
        %v1728 = vadd.f32 %v1633, %v1704
        %v1729 = vadd.f32 %v1634, %v1705
        %v1730 = vadd.f32 %v1635, %v1706
        %v1731 = vadd.f32 %v1636, %v1707
        %v1732 = vadd.f32 %v1637, %v1708
        %v1733 = vadd.f32 %v1638, %v1709
        %v1734 = vadd.f32 %v1639, %v1710
        %v1735 = vadd.f32 %v1640, %v1711
        %v1736 = vadd.f32 %v1641, %v1712
        %v1737 = vadd.f32 %v1642, %v1713
        %v1738 = vadd.f32 %v1643, %v1714
        %v1739 = vadd.f32 %v1644, %v1715
        %v1740 = vadd.f32 %v1645, %v1716
        %v1741 = vadd.f32 %v1646, %v1717
        %v1742 = vadd.f32 %v1647, %v1718
        %v1743 = vadd.f32 %v1648, %v1719
        %v1744 = vadd.f32 %v1649, %v1720
        %v1745 = vadd.f32 %v1650, %v1721
        %v1746 = vadd.f32 %v1651, %v1722
        %v1747 = vadd.f32 %v1652, %v1723
        %v1748 = vadd.f32 %v1653, %v1724
        %v1749 = vadd.f32 %v1654, %v1725
        %v1750 = vadd.f32 %v1655, %v1726
        %v1751 = vmul.f32 %v895, %v1657
        %v1752 = vsub.f32 %v1751, %v1562
        %1753 = vset.pattern.permute.xlu0 11
        %1754 = vperm.xlu0 %1753, %v766
        %v1755 = vpop.permute.xlu0 %1754
        %1757 = vset.pattern.permute.xlu0 11
        %1758 = vperm.xlu0 %1757, %v767
        %v1759 = vpop.permute.xlu0 %1758
        %1761 = vset.pattern.permute.xlu0 11
        %1762 = vperm.xlu0 %1761, %v768
        %v1763 = vpop.permute.xlu0 %1762
        %1765 = vset.pattern.permute.xlu0 11
        %1766 = vperm.xlu0 %1765, %v769
        %v1767 = vpop.permute.xlu0 %1766
        %1769 = vset.pattern.permute.xlu0 11
        %1770 = vperm.xlu0 %1769, %v770
        %v1771 = vpop.permute.xlu0 %1770
        %1773 = vset.pattern.permute.xlu0 11
        %1774 = vperm.xlu0 %1773, %v771
        %v1775 = vpop.permute.xlu0 %1774
        %v1778 = vlaneseq
        %v1779 = vshrl.u32 %v1778, 7
        %v1780 = vsub.s32 0, %v1779
        %v1781 = vrot.slane %v1752, %v1780
        %v1782 = vlaneseq
        %v1783 = vshrl.u32 %v1782, 7
        %v1784 = vsub.s32 1, %v1783
        %v1785 = vrot.slane %v1752, %v1784
        %v1786 = vlaneseq
        %v1787 = vshrl.u32 %v1786, 7
        %v1788 = vsub.s32 2, %v1787
        %v1789 = vrot.slane %v1752, %v1788
        %v1790 = vlaneseq
        %v1791 = vshrl.u32 %v1790, 7
        %v1792 = vsub.s32 3, %v1791
        %v1793 = vrot.slane %v1752, %v1792
        %v1798 = vmul.f32 %v1755, %v1781
        %v1799 = vmul.f32 %v1755, %v1785
        %v1800 = vmul.f32 %v1755, %v1789
        %v1801 = vmul.f32 %v1755, %v1793
        %v1802 = vmul.f32 %v1759, %v1781
        %v1803 = vmul.f32 %v1759, %v1785
        %v1804 = vmul.f32 %v1759, %v1789
        %v1805 = vmul.f32 %v1759, %v1793
        %v1806 = vmul.f32 %v1763, %v1781
        %v1807 = vmul.f32 %v1763, %v1785
        %v1808 = vmul.f32 %v1763, %v1789
        %v1809 = vmul.f32 %v1763, %v1793
        %v1810 = vmul.f32 %v1767, %v1781
        %v1811 = vmul.f32 %v1767, %v1785
        %v1812 = vmul.f32 %v1767, %v1789
        %v1813 = vmul.f32 %v1767, %v1793
        %v1814 = vmul.f32 %v1771, %v1781
        %v1815 = vmul.f32 %v1771, %v1785
        %v1816 = vmul.f32 %v1771, %v1789
        %v1817 = vmul.f32 %v1771, %v1793
        %v1818 = vmul.f32 %v1775, %v1781
        %v1819 = vmul.f32 %v1775, %v1785
        %v1820 = vmul.f32 %v1775, %v1789
        %v1821 = vmul.f32 %v1775, %v1793
        %v1822 = vadd.f32 %v1727, %v1798
        %v1823 = vadd.f32 %v1728, %v1799
        %v1824 = vadd.f32 %v1729, %v1800
        %v1825 = vadd.f32 %v1730, %v1801
        %v1826 = vadd.f32 %v1731, %v1802
        %v1827 = vadd.f32 %v1732, %v1803
        %v1828 = vadd.f32 %v1733, %v1804
        %v1829 = vadd.f32 %v1734, %v1805
        %v1830 = vadd.f32 %v1735, %v1806
        %v1831 = vadd.f32 %v1736, %v1807
        %v1832 = vadd.f32 %v1737, %v1808
        %v1833 = vadd.f32 %v1738, %v1809
        %v1834 = vadd.f32 %v1739, %v1810
        %v1835 = vadd.f32 %v1740, %v1811
        %v1836 = vadd.f32 %v1741, %v1812
        %v1837 = vadd.f32 %v1742, %v1813
        %v1838 = vadd.f32 %v1743, %v1814
        %v1839 = vadd.f32 %v1744, %v1815
        %v1840 = vadd.f32 %v1745, %v1816
        %v1841 = vadd.f32 %v1746, %v1817
        %v1842 = vadd.f32 %v1747, %v1818
        %v1843 = vadd.f32 %v1748, %v1819
        %v1844 = vadd.f32 %v1749, %v1820
        %v1845 = vadd.f32 %v1750, %v1821
        %v1846 = vmul.f32 %v895, %v1752
        %v1847 = vsub.f32 %v1846, %v1657
        %1848 = vset.pattern.permute.xlu0 12
        %1849 = vperm.xlu0 %1848, %v766
        %v1850 = vpop.permute.xlu0 %1849
        %1852 = vset.pattern.permute.xlu0 12
        %1853 = vperm.xlu0 %1852, %v767
        %v1854 = vpop.permute.xlu0 %1853
        %1856 = vset.pattern.permute.xlu0 12
        %1857 = vperm.xlu0 %1856, %v768
        %v1858 = vpop.permute.xlu0 %1857
        %1860 = vset.pattern.permute.xlu0 12
        %1861 = vperm.xlu0 %1860, %v769
        %v1862 = vpop.permute.xlu0 %1861
        %1864 = vset.pattern.permute.xlu0 12
        %1865 = vperm.xlu0 %1864, %v770
        %v1866 = vpop.permute.xlu0 %1865
        %1868 = vset.pattern.permute.xlu0 12
        %1869 = vperm.xlu0 %1868, %v771
        %v1870 = vpop.permute.xlu0 %1869
        %v1873 = vlaneseq
        %v1874 = vshrl.u32 %v1873, 7
        %v1875 = vsub.s32 0, %v1874
        %v1876 = vrot.slane %v1847, %v1875
        %v1877 = vlaneseq
        %v1878 = vshrl.u32 %v1877, 7
        %v1879 = vsub.s32 1, %v1878
        %v1880 = vrot.slane %v1847, %v1879
        %v1881 = vlaneseq
        %v1882 = vshrl.u32 %v1881, 7
        %v1883 = vsub.s32 2, %v1882
        %v1884 = vrot.slane %v1847, %v1883
        %v1885 = vlaneseq
        %v1886 = vshrl.u32 %v1885, 7
        %v1887 = vsub.s32 3, %v1886
        %v1888 = vrot.slane %v1847, %v1887
        %v1893 = vmul.f32 %v1850, %v1876
        %v1894 = vmul.f32 %v1850, %v1880
        %v1895 = vmul.f32 %v1850, %v1884
        %v1896 = vmul.f32 %v1850, %v1888
        %v1897 = vmul.f32 %v1854, %v1876
        %v1898 = vmul.f32 %v1854, %v1880
        %v1899 = vmul.f32 %v1854, %v1884
        %v1900 = vmul.f32 %v1854, %v1888
        %v1901 = vmul.f32 %v1858, %v1876
        %v1902 = vmul.f32 %v1858, %v1880
        %v1903 = vmul.f32 %v1858, %v1884
        %v1904 = vmul.f32 %v1858, %v1888
        %v1905 = vmul.f32 %v1862, %v1876
        %v1906 = vmul.f32 %v1862, %v1880
        %v1907 = vmul.f32 %v1862, %v1884
        %v1908 = vmul.f32 %v1862, %v1888
        %v1909 = vmul.f32 %v1866, %v1876
        %v1910 = vmul.f32 %v1866, %v1880
        %v1911 = vmul.f32 %v1866, %v1884
        %v1912 = vmul.f32 %v1866, %v1888
        %v1913 = vmul.f32 %v1870, %v1876
        %v1914 = vmul.f32 %v1870, %v1880
        %v1915 = vmul.f32 %v1870, %v1884
        %v1916 = vmul.f32 %v1870, %v1888
        %v1917 = vadd.f32 %v1822, %v1893
        %v1918 = vadd.f32 %v1823, %v1894
        %v1919 = vadd.f32 %v1824, %v1895
        %v1920 = vadd.f32 %v1825, %v1896
        %v1921 = vadd.f32 %v1826, %v1897
        %v1922 = vadd.f32 %v1827, %v1898
        %v1923 = vadd.f32 %v1828, %v1899
        %v1924 = vadd.f32 %v1829, %v1900
        %v1925 = vadd.f32 %v1830, %v1901
        %v1926 = vadd.f32 %v1831, %v1902
        %v1927 = vadd.f32 %v1832, %v1903
        %v1928 = vadd.f32 %v1833, %v1904
        %v1929 = vadd.f32 %v1834, %v1905
        %v1930 = vadd.f32 %v1835, %v1906
        %v1931 = vadd.f32 %v1836, %v1907
        %v1932 = vadd.f32 %v1837, %v1908
        %v1933 = vadd.f32 %v1838, %v1909
        %v1934 = vadd.f32 %v1839, %v1910
        %v1935 = vadd.f32 %v1840, %v1911
        %v1936 = vadd.f32 %v1841, %v1912
        %v1937 = vadd.f32 %v1842, %v1913
        %v1938 = vadd.f32 %v1843, %v1914
        %v1939 = vadd.f32 %v1844, %v1915
        %v1940 = vadd.f32 %v1845, %v1916
        %v1941 = vmul.f32 %v895, %v1847
        %v1942 = vsub.f32 %v1941, %v1752
        %1943 = vset.pattern.permute.xlu0 13
        %1944 = vperm.xlu0 %1943, %v766
        %v1945 = vpop.permute.xlu0 %1944
        %1947 = vset.pattern.permute.xlu0 13
        %1948 = vperm.xlu0 %1947, %v767
        %v1949 = vpop.permute.xlu0 %1948
        %1951 = vset.pattern.permute.xlu0 13
        %1952 = vperm.xlu0 %1951, %v768
        %v1953 = vpop.permute.xlu0 %1952
        %1955 = vset.pattern.permute.xlu0 13
        %1956 = vperm.xlu0 %1955, %v769
        %v1957 = vpop.permute.xlu0 %1956
        %1959 = vset.pattern.permute.xlu0 13
        %1960 = vperm.xlu0 %1959, %v770
        %v1961 = vpop.permute.xlu0 %1960
        %1963 = vset.pattern.permute.xlu0 13
        %1964 = vperm.xlu0 %1963, %v771
        %v1965 = vpop.permute.xlu0 %1964
        %v1968 = vlaneseq
        %v1969 = vshrl.u32 %v1968, 7
        %v1970 = vsub.s32 0, %v1969
        %v1971 = vrot.slane %v1942, %v1970
        %v1972 = vlaneseq
        %v1973 = vshrl.u32 %v1972, 7
        %v1974 = vsub.s32 1, %v1973
        %v1975 = vrot.slane %v1942, %v1974
        %v1976 = vlaneseq
        %v1977 = vshrl.u32 %v1976, 7
        %v1978 = vsub.s32 2, %v1977
        %v1979 = vrot.slane %v1942, %v1978
        %v1980 = vlaneseq
        %v1981 = vshrl.u32 %v1980, 7
        %v1982 = vsub.s32 3, %v1981
        %v1983 = vrot.slane %v1942, %v1982
        %v1988 = vmul.f32 %v1945, %v1971
        %v1989 = vmul.f32 %v1945, %v1975
        %v1990 = vmul.f32 %v1945, %v1979
        %v1991 = vmul.f32 %v1945, %v1983
        %v1992 = vmul.f32 %v1949, %v1971
        %v1993 = vmul.f32 %v1949, %v1975
        %v1994 = vmul.f32 %v1949, %v1979
        %v1995 = vmul.f32 %v1949, %v1983
        %v1996 = vmul.f32 %v1953, %v1971
        %v1997 = vmul.f32 %v1953, %v1975
        %v1998 = vmul.f32 %v1953, %v1979
        %v1999 = vmul.f32 %v1953, %v1983
        %v2000 = vmul.f32 %v1957, %v1971
        %v2001 = vmul.f32 %v1957, %v1975
        %v2002 = vmul.f32 %v1957, %v1979
        %v2003 = vmul.f32 %v1957, %v1983
        %v2004 = vmul.f32 %v1961, %v1971
        %v2005 = vmul.f32 %v1961, %v1975
        %v2006 = vmul.f32 %v1961, %v1979
        %v2007 = vmul.f32 %v1961, %v1983
        %v2008 = vmul.f32 %v1965, %v1971
        %v2009 = vmul.f32 %v1965, %v1975
        %v2010 = vmul.f32 %v1965, %v1979
        %v2011 = vmul.f32 %v1965, %v1983
        %v2012 = vadd.f32 %v1917, %v1988
        %v2013 = vadd.f32 %v1918, %v1989
        %v2014 = vadd.f32 %v1919, %v1990
        %v2015 = vadd.f32 %v1920, %v1991
        %v2016 = vadd.f32 %v1921, %v1992
        %v2017 = vadd.f32 %v1922, %v1993
        %v2018 = vadd.f32 %v1923, %v1994
        %v2019 = vadd.f32 %v1924, %v1995
        %v2020 = vadd.f32 %v1925, %v1996
        %v2021 = vadd.f32 %v1926, %v1997
        %v2022 = vadd.f32 %v1927, %v1998
        %v2023 = vadd.f32 %v1928, %v1999
        %v2024 = vadd.f32 %v1929, %v2000
        %v2025 = vadd.f32 %v1930, %v2001
        %v2026 = vadd.f32 %v1931, %v2002
        %v2027 = vadd.f32 %v1932, %v2003
        %v2028 = vadd.f32 %v1933, %v2004
        %v2029 = vadd.f32 %v1934, %v2005
        %v2030 = vadd.f32 %v1935, %v2006
        %v2031 = vadd.f32 %v1936, %v2007
        %v2032 = vadd.f32 %v1937, %v2008
        %v2033 = vadd.f32 %v1938, %v2009
        %v2034 = vadd.f32 %v1939, %v2010
        %v2035 = vadd.f32 %v1940, %v2011
        %v2036 = vmul.f32 %v895, %v1942
        %v2037 = vsub.f32 %v2036, %v1847
        %2038 = vset.pattern.permute.xlu0 14
        %2039 = vperm.xlu0 %2038, %v766
        %v2040 = vpop.permute.xlu0 %2039
        %2042 = vset.pattern.permute.xlu0 14
        %2043 = vperm.xlu0 %2042, %v767
        %v2044 = vpop.permute.xlu0 %2043
        %2046 = vset.pattern.permute.xlu0 14
        %2047 = vperm.xlu0 %2046, %v768
        %v2048 = vpop.permute.xlu0 %2047
        %2050 = vset.pattern.permute.xlu0 14
        %2051 = vperm.xlu0 %2050, %v769
        %v2052 = vpop.permute.xlu0 %2051
        %2054 = vset.pattern.permute.xlu0 14
        %2055 = vperm.xlu0 %2054, %v770
        %v2056 = vpop.permute.xlu0 %2055
        %2058 = vset.pattern.permute.xlu0 14
        %2059 = vperm.xlu0 %2058, %v771
        %v2060 = vpop.permute.xlu0 %2059
        %v2063 = vlaneseq
        %v2064 = vshrl.u32 %v2063, 7
        %v2065 = vsub.s32 0, %v2064
        %v2066 = vrot.slane %v2037, %v2065
        %v2067 = vlaneseq
        %v2068 = vshrl.u32 %v2067, 7
        %v2069 = vsub.s32 1, %v2068
        %v2070 = vrot.slane %v2037, %v2069
        %v2071 = vlaneseq
        %v2072 = vshrl.u32 %v2071, 7
        %v2073 = vsub.s32 2, %v2072
        %v2074 = vrot.slane %v2037, %v2073
        %v2075 = vlaneseq
        %v2076 = vshrl.u32 %v2075, 7
        %v2077 = vsub.s32 3, %v2076
        %v2078 = vrot.slane %v2037, %v2077
        %v2083 = vmul.f32 %v2040, %v2066
        %v2084 = vmul.f32 %v2040, %v2070
        %v2085 = vmul.f32 %v2040, %v2074
        %v2086 = vmul.f32 %v2040, %v2078
        %v2087 = vmul.f32 %v2044, %v2066
        %v2088 = vmul.f32 %v2044, %v2070
        %v2089 = vmul.f32 %v2044, %v2074
        %v2090 = vmul.f32 %v2044, %v2078
        %v2091 = vmul.f32 %v2048, %v2066
        %v2092 = vmul.f32 %v2048, %v2070
        %v2093 = vmul.f32 %v2048, %v2074
        %v2094 = vmul.f32 %v2048, %v2078
        %v2095 = vmul.f32 %v2052, %v2066
        %v2096 = vmul.f32 %v2052, %v2070
        %v2097 = vmul.f32 %v2052, %v2074
        %v2098 = vmul.f32 %v2052, %v2078
        %v2099 = vmul.f32 %v2056, %v2066
        %v2100 = vmul.f32 %v2056, %v2070
        %v2101 = vmul.f32 %v2056, %v2074
        %v2102 = vmul.f32 %v2056, %v2078
        %v2103 = vmul.f32 %v2060, %v2066
        %v2104 = vmul.f32 %v2060, %v2070
        %v2105 = vmul.f32 %v2060, %v2074
        %v2106 = vmul.f32 %v2060, %v2078
        %v2107 = vadd.f32 %v2012, %v2083
        %v2108 = vadd.f32 %v2013, %v2084
        %v2109 = vadd.f32 %v2014, %v2085
        %v2110 = vadd.f32 %v2015, %v2086
        %v2111 = vadd.f32 %v2016, %v2087
        %v2112 = vadd.f32 %v2017, %v2088
        %v2113 = vadd.f32 %v2018, %v2089
        %v2114 = vadd.f32 %v2019, %v2090
        %v2115 = vadd.f32 %v2020, %v2091
        %v2116 = vadd.f32 %v2021, %v2092
        %v2117 = vadd.f32 %v2022, %v2093
        %v2118 = vadd.f32 %v2023, %v2094
        %v2119 = vadd.f32 %v2024, %v2095
        %v2120 = vadd.f32 %v2025, %v2096
        %v2121 = vadd.f32 %v2026, %v2097
        %v2122 = vadd.f32 %v2027, %v2098
        %v2123 = vadd.f32 %v2028, %v2099
        %v2124 = vadd.f32 %v2029, %v2100
        %v2125 = vadd.f32 %v2030, %v2101
        %v2126 = vadd.f32 %v2031, %v2102
        %v2127 = vadd.f32 %v2032, %v2103
        %v2128 = vadd.f32 %v2033, %v2104
        %v2129 = vadd.f32 %v2034, %v2105
        %v2130 = vadd.f32 %v2035, %v2106
        %v2131 = vmul.f32 %v895, %v2037
        %v2132 = vsub.f32 %v2131, %v1942
        %2133 = vset.pattern.permute.xlu0 15
        %2134 = vperm.xlu0 %2133, %v766
        %v2135 = vpop.permute.xlu0 %2134
        %2137 = vset.pattern.permute.xlu0 15
        %2138 = vperm.xlu0 %2137, %v767
        %v2139 = vpop.permute.xlu0 %2138
        %2141 = vset.pattern.permute.xlu0 15
        %2142 = vperm.xlu0 %2141, %v768
        %v2143 = vpop.permute.xlu0 %2142
        %2145 = vset.pattern.permute.xlu0 15
        %2146 = vperm.xlu0 %2145, %v769
        %v2147 = vpop.permute.xlu0 %2146
        %2149 = vset.pattern.permute.xlu0 15
        %2150 = vperm.xlu0 %2149, %v770
        %v2151 = vpop.permute.xlu0 %2150
        %2153 = vset.pattern.permute.xlu0 15
        %2154 = vperm.xlu0 %2153, %v771
        %v2155 = vpop.permute.xlu0 %2154
        %v2158 = vlaneseq
        %v2159 = vshrl.u32 %v2158, 7
        %v2160 = vsub.s32 0, %v2159
        %v2161 = vrot.slane %v2132, %v2160
        %v2162 = vlaneseq
        %v2163 = vshrl.u32 %v2162, 7
        %v2164 = vsub.s32 1, %v2163
        %v2165 = vrot.slane %v2132, %v2164
        %v2166 = vlaneseq
        %v2167 = vshrl.u32 %v2166, 7
        %v2168 = vsub.s32 2, %v2167
        %v2169 = vrot.slane %v2132, %v2168
        %v2170 = vlaneseq
        %v2171 = vshrl.u32 %v2170, 7
        %v2172 = vsub.s32 3, %v2171
        %v2173 = vrot.slane %v2132, %v2172
        %v2178 = vmul.f32 %v2135, %v2161
        %v2179 = vmul.f32 %v2135, %v2165
        %v2180 = vmul.f32 %v2135, %v2169
        %v2181 = vmul.f32 %v2135, %v2173
        %v2182 = vmul.f32 %v2139, %v2161
        %v2183 = vmul.f32 %v2139, %v2165
        %v2184 = vmul.f32 %v2139, %v2169
        %v2185 = vmul.f32 %v2139, %v2173
        %v2186 = vmul.f32 %v2143, %v2161
        %v2187 = vmul.f32 %v2143, %v2165
        %v2188 = vmul.f32 %v2143, %v2169
        %v2189 = vmul.f32 %v2143, %v2173
        %v2190 = vmul.f32 %v2147, %v2161
        %v2191 = vmul.f32 %v2147, %v2165
        %v2192 = vmul.f32 %v2147, %v2169
        %v2193 = vmul.f32 %v2147, %v2173
        %v2194 = vmul.f32 %v2151, %v2161
        %v2195 = vmul.f32 %v2151, %v2165
        %v2196 = vmul.f32 %v2151, %v2169
        %v2197 = vmul.f32 %v2151, %v2173
        %v2198 = vmul.f32 %v2155, %v2161
        %v2199 = vmul.f32 %v2155, %v2165
        %v2200 = vmul.f32 %v2155, %v2169
        %v2201 = vmul.f32 %v2155, %v2173
        %v2202 = vadd.f32 %v2107, %v2178
        %v2203 = vadd.f32 %v2108, %v2179
        %v2204 = vadd.f32 %v2109, %v2180
        %v2205 = vadd.f32 %v2110, %v2181
        %v2206 = vadd.f32 %v2111, %v2182
        %v2207 = vadd.f32 %v2112, %v2183
        %v2208 = vadd.f32 %v2113, %v2184
        %v2209 = vadd.f32 %v2114, %v2185
        %v2210 = vadd.f32 %v2115, %v2186
        %v2211 = vadd.f32 %v2116, %v2187
        %v2212 = vadd.f32 %v2117, %v2188
        %v2213 = vadd.f32 %v2118, %v2189
        %v2214 = vadd.f32 %v2119, %v2190
        %v2215 = vadd.f32 %v2120, %v2191
        %v2216 = vadd.f32 %v2121, %v2192
        %v2217 = vadd.f32 %v2122, %v2193
        %v2218 = vadd.f32 %v2123, %v2194
        %v2219 = vadd.f32 %v2124, %v2195
        %v2220 = vadd.f32 %v2125, %v2196
        %v2221 = vadd.f32 %v2126, %v2197
        %v2222 = vadd.f32 %v2127, %v2198
        %v2223 = vadd.f32 %v2128, %v2199
        %v2224 = vadd.f32 %v2129, %v2200
        %v2225 = vadd.f32 %v2130, %v2201
        %v2226 = vld [vmem:[%s4] sm:$0xff]
        %v2227 = vld [vmem:[%s4 + $0x8] sm:$0xff]
        %v2228 = vld [vmem:[%s4 + $0x10] sm:$0xff]
        %v2229 = vld [vmem:[%s4 + $0x18] sm:$0xff]
        %v2230 = vld [vmem:[%s4 + $0x20] sm:$0xff]
        %v2231 = vld [vmem:[%s5] sm:$0xff]
        %v2232 = vld [vmem:[%s5 + $0x8] sm:$0xff]
        %v2233 = vld [vmem:[%s5 + $0x10] sm:$0xff]
        %v2234 = vld [vmem:[%s5 + $0x18] sm:$0xff]
        %v2235 = vld [vmem:[%s5 + $0x20] sm:$0xff]
        %v2236 = vld [vmem:[%s514] ss:$4 sm:$0xf]
        %2238 = vset.pattern.permute.xlu0 0
        %2239 = vperm.xlu0 %2238, %v2226
        %v2240 = vpop.permute.xlu0 %2239
        %2243 = vset.pattern.permute.xlu0 0
        %2244 = vperm.xlu0 %2243, %v2227
        %v2245 = vpop.permute.xlu0 %2244
        %2248 = vset.pattern.permute.xlu0 0
        %2249 = vperm.xlu0 %2248, %v2228
        %v2250 = vpop.permute.xlu0 %2249
        %2253 = vset.pattern.permute.xlu0 0
        %2254 = vperm.xlu0 %2253, %v2229
        %v2255 = vpop.permute.xlu0 %2254
        %2258 = vset.pattern.permute.xlu0 0
        %2259 = vperm.xlu0 %2258, %v2230
        %v2260 = vpop.permute.xlu0 %2259
        %v2263 = vlaneseq
        %v2264 = vshrl.u32 %v2263, 7
        %v2265 = vsub.s32 0, %v2264
        %v2266 = vrot.slane %v2236, %v2265
        %v2267 = vlaneseq
        %v2268 = vshrl.u32 %v2267, 7
        %v2269 = vsub.s32 1, %v2268
        %v2270 = vrot.slane %v2236, %v2269
        %v2271 = vlaneseq
        %v2272 = vshrl.u32 %v2271, 7
        %v2273 = vsub.s32 2, %v2272
        %v2274 = vrot.slane %v2236, %v2273
        %v2275 = vlaneseq
        %v2276 = vshrl.u32 %v2275, 7
        %v2277 = vsub.s32 3, %v2276
        %v2278 = vrot.slane %v2236, %v2277
        %v2283 = vmul.f32 %v2240, %v2266
        %v2284 = vmul.f32 %v2240, %v2270
        %v2285 = vmul.f32 %v2240, %v2274
        %v2286 = vmul.f32 %v2240, %v2278
        %v2287 = vmul.f32 %v2245, %v2266
        %v2288 = vmul.f32 %v2245, %v2270
        %v2289 = vmul.f32 %v2245, %v2274
        %v2290 = vmul.f32 %v2245, %v2278
        %v2291 = vmul.f32 %v2250, %v2266
        %v2292 = vmul.f32 %v2250, %v2270
        %v2293 = vmul.f32 %v2250, %v2274
        %v2294 = vmul.f32 %v2250, %v2278
        %v2295 = vmul.f32 %v2255, %v2266
        %v2296 = vmul.f32 %v2255, %v2270
        %v2297 = vmul.f32 %v2255, %v2274
        %v2298 = vmul.f32 %v2255, %v2278
        %v2299 = vmul.f32 %v2260, %v2266
        %v2300 = vmul.f32 %v2260, %v2270
        %v2301 = vmul.f32 %v2260, %v2274
        %v2302 = vmul.f32 %v2260, %v2278
        %s2303 = scalar_lea.vmem %s514, 1
        %v2304 = vld [vmem:[%s2303] ss:$4 sm:$0xf]
        %2305 = vset.pattern.permute.xlu0 1
        %2306 = vperm.xlu0 %2305, %v2226
        %v2307 = vpop.permute.xlu0 %2306
        %2309 = vset.pattern.permute.xlu0 1
        %2310 = vperm.xlu0 %2309, %v2227
        %v2311 = vpop.permute.xlu0 %2310
        %2313 = vset.pattern.permute.xlu0 1
        %2314 = vperm.xlu0 %2313, %v2228
        %v2315 = vpop.permute.xlu0 %2314
        %2317 = vset.pattern.permute.xlu0 1
        %2318 = vperm.xlu0 %2317, %v2229
        %v2319 = vpop.permute.xlu0 %2318
        %2321 = vset.pattern.permute.xlu0 1
        %2322 = vperm.xlu0 %2321, %v2230
        %v2323 = vpop.permute.xlu0 %2322
        %v2326 = vlaneseq
        %v2327 = vshrl.u32 %v2326, 7
        %v2328 = vsub.s32 0, %v2327
        %v2329 = vrot.slane %v2304, %v2328
        %v2330 = vlaneseq
        %v2331 = vshrl.u32 %v2330, 7
        %v2332 = vsub.s32 1, %v2331
        %v2333 = vrot.slane %v2304, %v2332
        %v2334 = vlaneseq
        %v2335 = vshrl.u32 %v2334, 7
        %v2336 = vsub.s32 2, %v2335
        %v2337 = vrot.slane %v2304, %v2336
        %v2338 = vlaneseq
        %v2339 = vshrl.u32 %v2338, 7
        %v2340 = vsub.s32 3, %v2339
        %v2341 = vrot.slane %v2304, %v2340
        %v2346 = vmul.f32 %v2307, %v2329
        %v2347 = vmul.f32 %v2307, %v2333
        %v2348 = vmul.f32 %v2307, %v2337
        %v2349 = vmul.f32 %v2307, %v2341
        %v2350 = vmul.f32 %v2311, %v2329
        %v2351 = vmul.f32 %v2311, %v2333
        %v2352 = vmul.f32 %v2311, %v2337
        %v2353 = vmul.f32 %v2311, %v2341
        %v2354 = vmul.f32 %v2315, %v2329
        %v2355 = vmul.f32 %v2315, %v2333
        %v2356 = vmul.f32 %v2315, %v2337
        %v2357 = vmul.f32 %v2315, %v2341
        %v2358 = vmul.f32 %v2319, %v2329
        %v2359 = vmul.f32 %v2319, %v2333
        %v2360 = vmul.f32 %v2319, %v2337
        %v2361 = vmul.f32 %v2319, %v2341
        %v2362 = vmul.f32 %v2323, %v2329
        %v2363 = vmul.f32 %v2323, %v2333
        %v2364 = vmul.f32 %v2323, %v2337
        %v2365 = vmul.f32 %v2323, %v2341
        %v2366 = vadd.f32 %v2283, %v2346
        %v2367 = vadd.f32 %v2284, %v2347
        %v2368 = vadd.f32 %v2285, %v2348
        %v2369 = vadd.f32 %v2286, %v2349
        %v2370 = vadd.f32 %v2287, %v2350
        %v2371 = vadd.f32 %v2288, %v2351
        %v2372 = vadd.f32 %v2289, %v2352
        %v2373 = vadd.f32 %v2290, %v2353
        %v2374 = vadd.f32 %v2291, %v2354
        %v2375 = vadd.f32 %v2292, %v2355
        %v2376 = vadd.f32 %v2293, %v2356
        %v2377 = vadd.f32 %v2294, %v2357
        %v2378 = vadd.f32 %v2295, %v2358
        %v2379 = vadd.f32 %v2296, %v2359
        %v2380 = vadd.f32 %v2297, %v2360
        %v2381 = vadd.f32 %v2298, %v2361
        %v2382 = vadd.f32 %v2299, %v2362
        %v2383 = vadd.f32 %v2300, %v2363
        %v2384 = vadd.f32 %v2301, %v2364
        %v2385 = vadd.f32 %v2302, %v2365
        %s2386 = scalar_lea.vmem %s514, 2
        %v2387 = vld [vmem:[%s2386] ss:$4 sm:$0xf]
        %2388 = vset.pattern.permute.xlu0 2
        %2389 = vperm.xlu0 %2388, %v2226
        %v2390 = vpop.permute.xlu0 %2389
        %2392 = vset.pattern.permute.xlu0 2
        %2393 = vperm.xlu0 %2392, %v2227
        %v2394 = vpop.permute.xlu0 %2393
        %2396 = vset.pattern.permute.xlu0 2
        %2397 = vperm.xlu0 %2396, %v2228
        %v2398 = vpop.permute.xlu0 %2397
        %2400 = vset.pattern.permute.xlu0 2
        %2401 = vperm.xlu0 %2400, %v2229
        %v2402 = vpop.permute.xlu0 %2401
        %2404 = vset.pattern.permute.xlu0 2
        %2405 = vperm.xlu0 %2404, %v2230
        %v2406 = vpop.permute.xlu0 %2405
        %v2409 = vlaneseq
        %v2410 = vshrl.u32 %v2409, 7
        %v2411 = vsub.s32 0, %v2410
        %v2412 = vrot.slane %v2387, %v2411
        %v2413 = vlaneseq
        %v2414 = vshrl.u32 %v2413, 7
        %v2415 = vsub.s32 1, %v2414
        %v2416 = vrot.slane %v2387, %v2415
        %v2417 = vlaneseq
        %v2418 = vshrl.u32 %v2417, 7
        %v2419 = vsub.s32 2, %v2418
        %v2420 = vrot.slane %v2387, %v2419
        %v2421 = vlaneseq
        %v2422 = vshrl.u32 %v2421, 7
        %v2423 = vsub.s32 3, %v2422
        %v2424 = vrot.slane %v2387, %v2423
        %v2429 = vmul.f32 %v2390, %v2412
        %v2430 = vmul.f32 %v2390, %v2416
        %v2431 = vmul.f32 %v2390, %v2420
        %v2432 = vmul.f32 %v2390, %v2424
        %v2433 = vmul.f32 %v2394, %v2412
        %v2434 = vmul.f32 %v2394, %v2416
        %v2435 = vmul.f32 %v2394, %v2420
        %v2436 = vmul.f32 %v2394, %v2424
        %v2437 = vmul.f32 %v2398, %v2412
        %v2438 = vmul.f32 %v2398, %v2416
        %v2439 = vmul.f32 %v2398, %v2420
        %v2440 = vmul.f32 %v2398, %v2424
        %v2441 = vmul.f32 %v2402, %v2412
        %v2442 = vmul.f32 %v2402, %v2416
        %v2443 = vmul.f32 %v2402, %v2420
        %v2444 = vmul.f32 %v2402, %v2424
        %v2445 = vmul.f32 %v2406, %v2412
        %v2446 = vmul.f32 %v2406, %v2416
        %v2447 = vmul.f32 %v2406, %v2420
        %v2448 = vmul.f32 %v2406, %v2424
        %v2449 = vadd.f32 %v2366, %v2429
        %v2450 = vadd.f32 %v2367, %v2430
        %v2451 = vadd.f32 %v2368, %v2431
        %v2452 = vadd.f32 %v2369, %v2432
        %v2453 = vadd.f32 %v2370, %v2433
        %v2454 = vadd.f32 %v2371, %v2434
        %v2455 = vadd.f32 %v2372, %v2435
        %v2456 = vadd.f32 %v2373, %v2436
        %v2457 = vadd.f32 %v2374, %v2437
        %v2458 = vadd.f32 %v2375, %v2438
        %v2459 = vadd.f32 %v2376, %v2439
        %v2460 = vadd.f32 %v2377, %v2440
        %v2461 = vadd.f32 %v2378, %v2441
        %v2462 = vadd.f32 %v2379, %v2442
        %v2463 = vadd.f32 %v2380, %v2443
        %v2464 = vadd.f32 %v2381, %v2444
        %v2465 = vadd.f32 %v2382, %v2445
        %v2466 = vadd.f32 %v2383, %v2446
        %v2467 = vadd.f32 %v2384, %v2447
        %v2468 = vadd.f32 %v2385, %v2448
        %2470 = vset.pattern.permute.xlu0 0
        %2471 = vperm.xlu0 %2470, %v2231
        %v2472 = vpop.permute.xlu0 %2471
        %2475 = vset.pattern.permute.xlu0 0
        %2476 = vperm.xlu0 %2475, %v2232
        %v2477 = vpop.permute.xlu0 %2476
        %2480 = vset.pattern.permute.xlu0 0
        %2481 = vperm.xlu0 %2480, %v2233
        %v2482 = vpop.permute.xlu0 %2481
        %2485 = vset.pattern.permute.xlu0 0
        %2486 = vperm.xlu0 %2485, %v2234
        %v2487 = vpop.permute.xlu0 %2486
        %2490 = vset.pattern.permute.xlu0 0
        %2491 = vperm.xlu0 %2490, %v2235
        %v2492 = vpop.permute.xlu0 %2491
        %v2494 = vmul.f32 %v2472, %v2449
        %v2495 = vmul.f32 %v2472, %v2450
        %v2496 = vmul.f32 %v2472, %v2451
        %v2497 = vmul.f32 %v2472, %v2452
        %v2498 = vmul.f32 %v2477, %v2453
        %v2499 = vmul.f32 %v2477, %v2454
        %v2500 = vmul.f32 %v2477, %v2455
        %v2501 = vmul.f32 %v2477, %v2456
        %v2502 = vmul.f32 %v2482, %v2457
        %v2503 = vmul.f32 %v2482, %v2458
        %v2504 = vmul.f32 %v2482, %v2459
        %v2505 = vmul.f32 %v2482, %v2460
        %v2506 = vmul.f32 %v2487, %v2461
        %v2507 = vmul.f32 %v2487, %v2462
        %v2508 = vmul.f32 %v2487, %v2463
        %v2509 = vmul.f32 %v2487, %v2464
        %v2510 = vmul.f32 %v2492, %v2465
        %v2511 = vmul.f32 %v2492, %v2466
        %v2512 = vmul.f32 %v2492, %v2467
        %v2513 = vmul.f32 %v2492, %v2468
        %v2514 = vand.u32 2147483647, %v2449
        %vm2515 = vcmp.le.f32.partialorder %v2514, 0.7853982
        %vm2516 = vcmp.lt.s32.totalorder %v2449, 0
        %v2517 = vand.u32 %v2449, 2139095040
        %v2518 = vshrl.u32 %v2517, 23
        %v2519 = vsub.s32 %v2518, 127
        %v2520 = vand.u32 2147483647, %v2449
        %v2521 = vand.u32 %v2520, 8388607
        %v2522 = vor.u32 %v2521, 8388608
        %v2523 = vsub.s32 0, %v2522
        %v2524 = vadd.s32 %v2519, 1
        %vm2525 = vcmp.gt.s32.totalorder %v2524, 0
        %v2526 = vsel %vm2525, %v2524, 0
        %v2527 = vshrl.u32 %v2526, 5
        %v2528 = vand.u32 %v2526, 31
        %v2529 = vsub.s32 32, %v2528
        %v2530 = vshrl.u32 683565275, %v2529
        %v2531 = vshll.u32 683565275, %v2528
        %v2532 = vshrl.u32 2475754826, %v2529
        %v2533 = vor.u32 %v2531, %v2532
        %v2534 = vshll.u32 2475754826, %v2528
        %v2535 = vshrl.u32 2131351028, %v2529
        %v2536 = vor.u32 %v2534, %v2535
        %v2537 = vshll.u32 2131351028, %v2528
        %v2538 = vshrl.u32 2102212464, %v2529
        %v2539 = vor.u32 %v2537, %v2538
        %v2540 = vshll.u32 2102212464, %v2528
        %v2541 = vshrl.u32 920167782, %v2529
        %v2542 = vor.u32 %v2540, %v2541
        %v2543 = vshll.u32 920167782, %v2528
        %v2544 = vshrl.u32 1326507024, %v2529
        %v2545 = vor.u32 %v2543, %v2544
        %vm2546 = vcmp.lt.s32.totalorder %v2527, 1
        %vm2547 = vcmp.lt.s32.totalorder %v2527, 2
        %vm2548 = vcmp.lt.s32.totalorder %v2527, 3
        %vm2549 = vcmp.lt.s32.totalorder %v2527, 4
        %v2550 = vsel %vm2546, %v2530, %v2533
        %v2551 = vsel %vm2549, %v2539, 2102212464
        %v2552 = vsel %vm2548, %v2536, %v2551
        %v2553 = vsel %vm2547, %v2550, %v2552
        %v2554 = vsel %vm2546, %v2533, %v2536
        %v2555 = vsel %vm2549, %v2542, 920167782
        %v2556 = vsel %vm2548, %v2539, %v2555
        %v2557 = vsel %vm2547, %v2554, %v2556
        %v2558 = vsel %vm2546, %v2536, %v2539
        %v2559 = vsel %vm2549, %v2545, 1326507024
        %v2560 = vsel %vm2548, %v2542, %v2559
        %v2561 = vsel %vm2547, %v2558, %v2560
        %v2562 = vshll.u32 %v2522, 8
        %v2563 = vmul.u32.u64.compose %v2562, %v2561
        %v2564 = vextract.low.u32 %v2563
        %v2565 = vextract.high.u32 %v2563
        %v2566 = vmul.u32.u64.compose %v2562, %v2557
        %v2567 = vextract.low.u32 %v2566
        %v2568 = vextract.high.u32 %v2566
        %v2569 = vmul.u32 %v2562, %v2553
        %v2570 = vadd.s32 %v2565, %v2567
        %vm2571 = vc.u32 %v2565, %v2567
        %v2572 = vadd.s32 %v2568, 1
        %v2573 = vsel %vm2571, %v2572, %v2568
        %v2574 = vadd.s32 %v2569, %v2573
        %v2575 = vadd.s32 %v2574, 536870912
        %v2576 = vshrl.u32 %v2575, 30
        %v2577 = vshll.u32 %v2576, 30
        %v2578 = vsub.s32 %v2574, %v2577
        %vm2579 = vcmp.lt.s32.totalorder %v2578, 0
        %v2580 = vsub.s32 0, %v2578
        %v2581 = vsel %vm2579, %v2580, %v2578
        %v2582 = vclz %v2581
        %v2583 = vsub.s32 %v2582, 2
        %vm2584 = vcmp.gt.s32.totalorder 0, %v2583
        %v2585 = vsel %vm2584, 0, %v2583
        %v2586 = vsub.s32 32, %v2585
        %v2587 = vshll.u32 %v2578, %v2585
        %v2588 = vshrl.u32 %v2570, %v2586
        %v2589 = vor.u32 %v2587, %v2588
        %v2590 = vsub.s32 4294967266, %v2585
        %v2591 = vadd.s32 %v2590, 127
        %v2592 = vshll.u32 %v2591, 23
        %v2593 = vor.u32 4788187, %v2592
        %v2594 = vand.u32 2147483647, %v2593
        %v2596 = vcvt.s32.f32 %v2589
        %v2597 = vmul.f32 %v2596, %v2594
        %v2598 = vxor.u32 %v2597, 2147483648
        %v2599 = vsel %vm2516, %v2598, %v2597
        %v2600 = vsub.s32 4, %v2576
        %v2601 = vsel %vm2516, %v2600, %v2576
        %v2602 = vsel %vm2515, %v2449, %v2599
        %v2603 = vsel %vm2515, 0, %v2601
        %v2604 = vcosq.f32.pop %v2602
        %v2605 = vsinq.f32.pop %v2602
        %vm2606 = vweird.f32 %v2449
        %v2607 = vadd.s32 %v2603, 3
        %v2608 = vand.u32 %v2607, 3
        %vm2609 = vcmp.lt.s32.totalorder %v2608, 2
        %vm2610 = vcmp.eq.s32.totalorder %v2608, 0
        %v2611 = vxor.u32 %v2605, 2147483648
        %v2612 = vsel %vm2610, %v2604, %v2611
        %vm2613 = vcmp.eq.s32.totalorder %v2608, 2
        %v2614 = vxor.u32 %v2604, 2147483648
        %v2615 = vsel %vm2613, %v2614, %v2605
        %v2616 = vsel %vm2609, %v2612, %v2615
        %v2617 = vsel %vm2606, nan, %v2616
        %v2618 = vand.u32 2147483647, %v2450
        %vm2619 = vcmp.le.f32.partialorder %v2618, 0.7853982
        %vm2620 = vcmp.lt.s32.totalorder %v2450, 0
        %v2621 = vand.u32 %v2450, 2139095040
        %v2622 = vshrl.u32 %v2621, 23
        %v2623 = vsub.s32 %v2622, 127
        %v2624 = vand.u32 2147483647, %v2450
        %v2625 = vand.u32 %v2624, 8388607
        %v2626 = vor.u32 %v2625, 8388608
        %v2627 = vsub.s32 0, %v2626
        %v2628 = vadd.s32 %v2623, 1
        %vm2629 = vcmp.gt.s32.totalorder %v2628, 0
        %v2630 = vsel %vm2629, %v2628, 0
        %v2631 = vshrl.u32 %v2630, 5
        %v2632 = vand.u32 %v2630, 31
        %v2633 = vsub.s32 32, %v2632
        %v2634 = vshrl.u32 683565275, %v2633
        %v2635 = vshll.u32 683565275, %v2632
        %v2636 = vshrl.u32 2475754826, %v2633
        %v2637 = vor.u32 %v2635, %v2636
        %v2638 = vshll.u32 2475754826, %v2632
        %v2639 = vshrl.u32 2131351028, %v2633
        %v2640 = vor.u32 %v2638, %v2639
        %v2641 = vshll.u32 2131351028, %v2632
        %v2642 = vshrl.u32 2102212464, %v2633
        %v2643 = vor.u32 %v2641, %v2642
        %v2644 = vshll.u32 2102212464, %v2632
        %v2645 = vshrl.u32 920167782, %v2633
        %v2646 = vor.u32 %v2644, %v2645
        %v2647 = vshll.u32 920167782, %v2632
        %v2648 = vshrl.u32 1326507024, %v2633
        %v2649 = vor.u32 %v2647, %v2648
        %vm2650 = vcmp.lt.s32.totalorder %v2631, 1
        %vm2651 = vcmp.lt.s32.totalorder %v2631, 2
        %vm2652 = vcmp.lt.s32.totalorder %v2631, 3
        %vm2653 = vcmp.lt.s32.totalorder %v2631, 4
        %v2654 = vsel %vm2650, %v2634, %v2637
        %v2655 = vsel %vm2653, %v2643, 2102212464
        %v2656 = vsel %vm2652, %v2640, %v2655
        %v2657 = vsel %vm2651, %v2654, %v2656
        %v2658 = vsel %vm2650, %v2637, %v2640
        %v2659 = vsel %vm2653, %v2646, 920167782
        %v2660 = vsel %vm2652, %v2643, %v2659
        %v2661 = vsel %vm2651, %v2658, %v2660
        %v2662 = vsel %vm2650, %v2640, %v2643
        %v2663 = vsel %vm2653, %v2649, 1326507024
        %v2664 = vsel %vm2652, %v2646, %v2663
        %v2665 = vsel %vm2651, %v2662, %v2664
        %v2666 = vshll.u32 %v2626, 8
        %v2667 = vmul.u32.u64.compose %v2666, %v2665
        %v2668 = vextract.low.u32 %v2667
        %v2669 = vextract.high.u32 %v2667
        %v2670 = vmul.u32.u64.compose %v2666, %v2661
        %v2671 = vextract.low.u32 %v2670
        %v2672 = vextract.high.u32 %v2670
        %v2673 = vmul.u32 %v2666, %v2657
        %v2674 = vadd.s32 %v2669, %v2671
        %vm2675 = vc.u32 %v2669, %v2671
        %v2676 = vadd.s32 %v2672, 1
        %v2677 = vsel %vm2675, %v2676, %v2672
        %v2678 = vadd.s32 %v2673, %v2677
        %v2679 = vadd.s32 %v2678, 536870912
        %v2680 = vshrl.u32 %v2679, 30
        %v2681 = vshll.u32 %v2680, 30
        %v2682 = vsub.s32 %v2678, %v2681
        %vm2683 = vcmp.lt.s32.totalorder %v2682, 0
        %v2684 = vsub.s32 0, %v2682
        %v2685 = vsel %vm2683, %v2684, %v2682
        %v2686 = vclz %v2685
        %v2687 = vsub.s32 %v2686, 2
        %vm2688 = vcmp.gt.s32.totalorder 0, %v2687
        %v2689 = vsel %vm2688, 0, %v2687
        %v2690 = vsub.s32 32, %v2689
        %v2691 = vshll.u32 %v2682, %v2689
        %v2692 = vshrl.u32 %v2674, %v2690
        %v2693 = vor.u32 %v2691, %v2692
        %v2694 = vsub.s32 4294967266, %v2689
        %v2695 = vadd.s32 %v2694, 127
        %v2696 = vshll.u32 %v2695, 23
        %v2697 = vor.u32 4788187, %v2696
        %v2698 = vand.u32 2147483647, %v2697
        %v2700 = vcvt.s32.f32 %v2693
        %v2701 = vmul.f32 %v2700, %v2698
        %v2702 = vxor.u32 %v2701, 2147483648
        %v2703 = vsel %vm2620, %v2702, %v2701
        %v2704 = vsub.s32 4, %v2680
        %v2705 = vsel %vm2620, %v2704, %v2680
        %v2706 = vsel %vm2619, %v2450, %v2703
        %v2707 = vsel %vm2619, 0, %v2705
        %v2708 = vcosq.f32.pop %v2706
        %v2709 = vsinq.f32.pop %v2706
        %vm2710 = vweird.f32 %v2450
        %v2711 = vadd.s32 %v2707, 3
        %v2712 = vand.u32 %v2711, 3
        %vm2713 = vcmp.lt.s32.totalorder %v2712, 2
        %vm2714 = vcmp.eq.s32.totalorder %v2712, 0
        %v2715 = vxor.u32 %v2709, 2147483648
        %v2716 = vsel %vm2714, %v2708, %v2715
        %vm2717 = vcmp.eq.s32.totalorder %v2712, 2
        %v2718 = vxor.u32 %v2708, 2147483648
        %v2719 = vsel %vm2717, %v2718, %v2709
        %v2720 = vsel %vm2713, %v2716, %v2719
        %v2721 = vsel %vm2710, nan, %v2720
        %v2722 = vand.u32 2147483647, %v2451
        %vm2723 = vcmp.le.f32.partialorder %v2722, 0.7853982
        %vm2724 = vcmp.lt.s32.totalorder %v2451, 0
        %v2725 = vand.u32 %v2451, 2139095040
        %v2726 = vshrl.u32 %v2725, 23
        %v2727 = vsub.s32 %v2726, 127
        %v2728 = vand.u32 2147483647, %v2451
        %v2729 = vand.u32 %v2728, 8388607
        %v2730 = vor.u32 %v2729, 8388608
        %v2731 = vsub.s32 0, %v2730
        %v2732 = vadd.s32 %v2727, 1
        %vm2733 = vcmp.gt.s32.totalorder %v2732, 0
        %v2734 = vsel %vm2733, %v2732, 0
        %v2735 = vshrl.u32 %v2734, 5
        %v2736 = vand.u32 %v2734, 31
        %v2737 = vsub.s32 32, %v2736
        %v2738 = vshrl.u32 683565275, %v2737
        %v2739 = vshll.u32 683565275, %v2736
        %v2740 = vshrl.u32 2475754826, %v2737
        %v2741 = vor.u32 %v2739, %v2740
        %v2742 = vshll.u32 2475754826, %v2736
        %v2743 = vshrl.u32 2131351028, %v2737
        %v2744 = vor.u32 %v2742, %v2743
        %v2745 = vshll.u32 2131351028, %v2736
        %v2746 = vshrl.u32 2102212464, %v2737
        %v2747 = vor.u32 %v2745, %v2746
        %v2748 = vshll.u32 2102212464, %v2736
        %v2749 = vshrl.u32 920167782, %v2737
        %v2750 = vor.u32 %v2748, %v2749
        %v2751 = vshll.u32 920167782, %v2736
        %v2752 = vshrl.u32 1326507024, %v2737
        %v2753 = vor.u32 %v2751, %v2752
        %vm2754 = vcmp.lt.s32.totalorder %v2735, 1
        %vm2755 = vcmp.lt.s32.totalorder %v2735, 2
        %vm2756 = vcmp.lt.s32.totalorder %v2735, 3
        %vm2757 = vcmp.lt.s32.totalorder %v2735, 4
        %v2758 = vsel %vm2754, %v2738, %v2741
        %v2759 = vsel %vm2757, %v2747, 2102212464
        %v2760 = vsel %vm2756, %v2744, %v2759
        %v2761 = vsel %vm2755, %v2758, %v2760
        %v2762 = vsel %vm2754, %v2741, %v2744
        %v2763 = vsel %vm2757, %v2750, 920167782
        %v2764 = vsel %vm2756, %v2747, %v2763
        %v2765 = vsel %vm2755, %v2762, %v2764
        %v2766 = vsel %vm2754, %v2744, %v2747
        %v2767 = vsel %vm2757, %v2753, 1326507024
        %v2768 = vsel %vm2756, %v2750, %v2767
        %v2769 = vsel %vm2755, %v2766, %v2768
        %v2770 = vshll.u32 %v2730, 8
        %v2771 = vmul.u32.u64.compose %v2770, %v2769
        %v2772 = vextract.low.u32 %v2771
        %v2773 = vextract.high.u32 %v2771
        %v2774 = vmul.u32.u64.compose %v2770, %v2765
        %v2775 = vextract.low.u32 %v2774
        %v2776 = vextract.high.u32 %v2774
        %v2777 = vmul.u32 %v2770, %v2761
        %v2778 = vadd.s32 %v2773, %v2775
        %vm2779 = vc.u32 %v2773, %v2775
        %v2780 = vadd.s32 %v2776, 1
        %v2781 = vsel %vm2779, %v2780, %v2776
        %v2782 = vadd.s32 %v2777, %v2781
        %v2783 = vadd.s32 %v2782, 536870912
        %v2784 = vshrl.u32 %v2783, 30
        %v2785 = vshll.u32 %v2784, 30
        %v2786 = vsub.s32 %v2782, %v2785
        %vm2787 = vcmp.lt.s32.totalorder %v2786, 0
        %v2788 = vsub.s32 0, %v2786
        %v2789 = vsel %vm2787, %v2788, %v2786
        %v2790 = vclz %v2789
        %v2791 = vsub.s32 %v2790, 2
        %vm2792 = vcmp.gt.s32.totalorder 0, %v2791
        %v2793 = vsel %vm2792, 0, %v2791
        %v2794 = vsub.s32 32, %v2793
        %v2795 = vshll.u32 %v2786, %v2793
        %v2796 = vshrl.u32 %v2778, %v2794
        %v2797 = vor.u32 %v2795, %v2796
        %v2798 = vsub.s32 4294967266, %v2793
        %v2799 = vadd.s32 %v2798, 127
        %v2800 = vshll.u32 %v2799, 23
        %v2801 = vor.u32 4788187, %v2800
        %v2802 = vand.u32 2147483647, %v2801
        %v2804 = vcvt.s32.f32 %v2797
        %v2805 = vmul.f32 %v2804, %v2802
        %v2806 = vxor.u32 %v2805, 2147483648
        %v2807 = vsel %vm2724, %v2806, %v2805
        %v2808 = vsub.s32 4, %v2784
        %v2809 = vsel %vm2724, %v2808, %v2784
        %v2810 = vsel %vm2723, %v2451, %v2807
        %v2811 = vsel %vm2723, 0, %v2809
        %v2812 = vcosq.f32.pop %v2810
        %v2813 = vsinq.f32.pop %v2810
        %vm2814 = vweird.f32 %v2451
        %v2815 = vadd.s32 %v2811, 3
        %v2816 = vand.u32 %v2815, 3
        %vm2817 = vcmp.lt.s32.totalorder %v2816, 2
        %vm2818 = vcmp.eq.s32.totalorder %v2816, 0
        %v2819 = vxor.u32 %v2813, 2147483648
        %v2820 = vsel %vm2818, %v2812, %v2819
        %vm2821 = vcmp.eq.s32.totalorder %v2816, 2
        %v2822 = vxor.u32 %v2812, 2147483648
        %v2823 = vsel %vm2821, %v2822, %v2813
        %v2824 = vsel %vm2817, %v2820, %v2823
        %v2825 = vsel %vm2814, nan, %v2824
        %v2826 = vand.u32 2147483647, %v2452
        %vm2827 = vcmp.le.f32.partialorder %v2826, 0.7853982
        %vm2828 = vcmp.lt.s32.totalorder %v2452, 0
        %v2829 = vand.u32 %v2452, 2139095040
        %v2830 = vshrl.u32 %v2829, 23
        %v2831 = vsub.s32 %v2830, 127
        %v2832 = vand.u32 2147483647, %v2452
        %v2833 = vand.u32 %v2832, 8388607
        %v2834 = vor.u32 %v2833, 8388608
        %v2835 = vsub.s32 0, %v2834
        %v2836 = vadd.s32 %v2831, 1
        %vm2837 = vcmp.gt.s32.totalorder %v2836, 0
        %v2838 = vsel %vm2837, %v2836, 0
        %v2839 = vshrl.u32 %v2838, 5
        %v2840 = vand.u32 %v2838, 31
        %v2841 = vsub.s32 32, %v2840
        %v2842 = vshrl.u32 683565275, %v2841
        %v2843 = vshll.u32 683565275, %v2840
        %v2844 = vshrl.u32 2475754826, %v2841
        %v2845 = vor.u32 %v2843, %v2844
        %v2846 = vshll.u32 2475754826, %v2840
        %v2847 = vshrl.u32 2131351028, %v2841
        %v2848 = vor.u32 %v2846, %v2847
        %v2849 = vshll.u32 2131351028, %v2840
        %v2850 = vshrl.u32 2102212464, %v2841
        %v2851 = vor.u32 %v2849, %v2850
        %v2852 = vshll.u32 2102212464, %v2840
        %v2853 = vshrl.u32 920167782, %v2841
        %v2854 = vor.u32 %v2852, %v2853
        %v2855 = vshll.u32 920167782, %v2840
        %v2856 = vshrl.u32 1326507024, %v2841
        %v2857 = vor.u32 %v2855, %v2856
        %vm2858 = vcmp.lt.s32.totalorder %v2839, 1
        %vm2859 = vcmp.lt.s32.totalorder %v2839, 2
        %vm2860 = vcmp.lt.s32.totalorder %v2839, 3
        %vm2861 = vcmp.lt.s32.totalorder %v2839, 4
        %v2862 = vsel %vm2858, %v2842, %v2845
        %v2863 = vsel %vm2861, %v2851, 2102212464
        %v2864 = vsel %vm2860, %v2848, %v2863
        %v2865 = vsel %vm2859, %v2862, %v2864
        %v2866 = vsel %vm2858, %v2845, %v2848
        %v2867 = vsel %vm2861, %v2854, 920167782
        %v2868 = vsel %vm2860, %v2851, %v2867
        %v2869 = vsel %vm2859, %v2866, %v2868
        %v2870 = vsel %vm2858, %v2848, %v2851
        %v2871 = vsel %vm2861, %v2857, 1326507024
        %v2872 = vsel %vm2860, %v2854, %v2871
        %v2873 = vsel %vm2859, %v2870, %v2872
        %v2874 = vshll.u32 %v2834, 8
        %v2875 = vmul.u32.u64.compose %v2874, %v2873
        %v2876 = vextract.low.u32 %v2875
        %v2877 = vextract.high.u32 %v2875
        %v2878 = vmul.u32.u64.compose %v2874, %v2869
        %v2879 = vextract.low.u32 %v2878
        %v2880 = vextract.high.u32 %v2878
        %v2881 = vmul.u32 %v2874, %v2865
        %v2882 = vadd.s32 %v2877, %v2879
        %vm2883 = vc.u32 %v2877, %v2879
        %v2884 = vadd.s32 %v2880, 1
        %v2885 = vsel %vm2883, %v2884, %v2880
        %v2886 = vadd.s32 %v2881, %v2885
        %v2887 = vadd.s32 %v2886, 536870912
        %v2888 = vshrl.u32 %v2887, 30
        %v2889 = vshll.u32 %v2888, 30
        %v2890 = vsub.s32 %v2886, %v2889
        %vm2891 = vcmp.lt.s32.totalorder %v2890, 0
        %v2892 = vsub.s32 0, %v2890
        %v2893 = vsel %vm2891, %v2892, %v2890
        %v2894 = vclz %v2893
        %v2895 = vsub.s32 %v2894, 2
        %vm2896 = vcmp.gt.s32.totalorder 0, %v2895
        %v2897 = vsel %vm2896, 0, %v2895
        %v2898 = vsub.s32 32, %v2897
        %v2899 = vshll.u32 %v2890, %v2897
        %v2900 = vshrl.u32 %v2882, %v2898
        %v2901 = vor.u32 %v2899, %v2900
        %v2902 = vsub.s32 4294967266, %v2897
        %v2903 = vadd.s32 %v2902, 127
        %v2904 = vshll.u32 %v2903, 23
        %v2905 = vor.u32 4788187, %v2904
        %v2906 = vand.u32 2147483647, %v2905
        %v2908 = vcvt.s32.f32 %v2901
        %v2909 = vmul.f32 %v2908, %v2906
        %v2910 = vxor.u32 %v2909, 2147483648
        %v2911 = vsel %vm2828, %v2910, %v2909
        %v2912 = vsub.s32 4, %v2888
        %v2913 = vsel %vm2828, %v2912, %v2888
        %v2914 = vsel %vm2827, %v2452, %v2911
        %v2915 = vsel %vm2827, 0, %v2913
        %v2916 = vcosq.f32.pop %v2914
        %v2917 = vsinq.f32.pop %v2914
        %vm2918 = vweird.f32 %v2452
        %v2919 = vadd.s32 %v2915, 3
        %v2920 = vand.u32 %v2919, 3
        %vm2921 = vcmp.lt.s32.totalorder %v2920, 2
        %vm2922 = vcmp.eq.s32.totalorder %v2920, 0
        %v2923 = vxor.u32 %v2917, 2147483648
        %v2924 = vsel %vm2922, %v2916, %v2923
        %vm2925 = vcmp.eq.s32.totalorder %v2920, 2
        %v2926 = vxor.u32 %v2916, 2147483648
        %v2927 = vsel %vm2925, %v2926, %v2917
        %v2928 = vsel %vm2921, %v2924, %v2927
        %v2929 = vsel %vm2918, nan, %v2928
        %v2930 = vand.u32 2147483647, %v2453
        %vm2931 = vcmp.le.f32.partialorder %v2930, 0.7853982
        %vm2932 = vcmp.lt.s32.totalorder %v2453, 0
        %v2933 = vand.u32 %v2453, 2139095040
        %v2934 = vshrl.u32 %v2933, 23
        %v2935 = vsub.s32 %v2934, 127
        %v2936 = vand.u32 2147483647, %v2453
        %v2937 = vand.u32 %v2936, 8388607
        %v2938 = vor.u32 %v2937, 8388608
        %v2939 = vsub.s32 0, %v2938
        %v2940 = vadd.s32 %v2935, 1
        %vm2941 = vcmp.gt.s32.totalorder %v2940, 0
        %v2942 = vsel %vm2941, %v2940, 0
        %v2943 = vshrl.u32 %v2942, 5
        %v2944 = vand.u32 %v2942, 31
        %v2945 = vsub.s32 32, %v2944
        %v2946 = vshrl.u32 683565275, %v2945
        %v2947 = vshll.u32 683565275, %v2944
        %v2948 = vshrl.u32 2475754826, %v2945
        %v2949 = vor.u32 %v2947, %v2948
        %v2950 = vshll.u32 2475754826, %v2944
        %v2951 = vshrl.u32 2131351028, %v2945
        %v2952 = vor.u32 %v2950, %v2951
        %v2953 = vshll.u32 2131351028, %v2944
        %v2954 = vshrl.u32 2102212464, %v2945
        %v2955 = vor.u32 %v2953, %v2954
        %v2956 = vshll.u32 2102212464, %v2944
        %v2957 = vshrl.u32 920167782, %v2945
        %v2958 = vor.u32 %v2956, %v2957
        %v2959 = vshll.u32 920167782, %v2944
        %v2960 = vshrl.u32 1326507024, %v2945
        %v2961 = vor.u32 %v2959, %v2960
        %vm2962 = vcmp.lt.s32.totalorder %v2943, 1
        %vm2963 = vcmp.lt.s32.totalorder %v2943, 2
        %vm2964 = vcmp.lt.s32.totalorder %v2943, 3
        %vm2965 = vcmp.lt.s32.totalorder %v2943, 4
        %v2966 = vsel %vm2962, %v2946, %v2949
        %v2967 = vsel %vm2965, %v2955, 2102212464
        %v2968 = vsel %vm2964, %v2952, %v2967
        %v2969 = vsel %vm2963, %v2966, %v2968
        %v2970 = vsel %vm2962, %v2949, %v2952
        %v2971 = vsel %vm2965, %v2958, 920167782
        %v2972 = vsel %vm2964, %v2955, %v2971
        %v2973 = vsel %vm2963, %v2970, %v2972
        %v2974 = vsel %vm2962, %v2952, %v2955
        %v2975 = vsel %vm2965, %v2961, 1326507024
        %v2976 = vsel %vm2964, %v2958, %v2975
        %v2977 = vsel %vm2963, %v2974, %v2976
        %v2978 = vshll.u32 %v2938, 8
        %v2979 = vmul.u32.u64.compose %v2978, %v2977
        %v2980 = vextract.low.u32 %v2979
        %v2981 = vextract.high.u32 %v2979
        %v2982 = vmul.u32.u64.compose %v2978, %v2973
        %v2983 = vextract.low.u32 %v2982
        %v2984 = vextract.high.u32 %v2982
        %v2985 = vmul.u32 %v2978, %v2969
        %v2986 = vadd.s32 %v2981, %v2983
        %vm2987 = vc.u32 %v2981, %v2983
        %v2988 = vadd.s32 %v2984, 1
        %v2989 = vsel %vm2987, %v2988, %v2984
        %v2990 = vadd.s32 %v2985, %v2989
        %v2991 = vadd.s32 %v2990, 536870912
        %v2992 = vshrl.u32 %v2991, 30
        %v2993 = vshll.u32 %v2992, 30
        %v2994 = vsub.s32 %v2990, %v2993
        %vm2995 = vcmp.lt.s32.totalorder %v2994, 0
        %v2996 = vsub.s32 0, %v2994
        %v2997 = vsel %vm2995, %v2996, %v2994
        %v2998 = vclz %v2997
        %v2999 = vsub.s32 %v2998, 2
        %vm3000 = vcmp.gt.s32.totalorder 0, %v2999
        %v3001 = vsel %vm3000, 0, %v2999
        %v3002 = vsub.s32 32, %v3001
        %v3003 = vshll.u32 %v2994, %v3001
        %v3004 = vshrl.u32 %v2986, %v3002
        %v3005 = vor.u32 %v3003, %v3004
        %v3006 = vsub.s32 4294967266, %v3001
        %v3007 = vadd.s32 %v3006, 127
        %v3008 = vshll.u32 %v3007, 23
        %v3009 = vor.u32 4788187, %v3008
        %v3010 = vand.u32 2147483647, %v3009
        %v3012 = vcvt.s32.f32 %v3005
        %v3013 = vmul.f32 %v3012, %v3010
        %v3014 = vxor.u32 %v3013, 2147483648
        %v3015 = vsel %vm2932, %v3014, %v3013
        %v3016 = vsub.s32 4, %v2992
        %v3017 = vsel %vm2932, %v3016, %v2992
        %v3018 = vsel %vm2931, %v2453, %v3015
        %v3019 = vsel %vm2931, 0, %v3017
        %v3020 = vcosq.f32.pop %v3018
        %v3021 = vsinq.f32.pop %v3018
        %vm3022 = vweird.f32 %v2453
        %v3023 = vadd.s32 %v3019, 3
        %v3024 = vand.u32 %v3023, 3
        %vm3025 = vcmp.lt.s32.totalorder %v3024, 2
        %vm3026 = vcmp.eq.s32.totalorder %v3024, 0
        %v3027 = vxor.u32 %v3021, 2147483648
        %v3028 = vsel %vm3026, %v3020, %v3027
        %vm3029 = vcmp.eq.s32.totalorder %v3024, 2
        %v3030 = vxor.u32 %v3020, 2147483648
        %v3031 = vsel %vm3029, %v3030, %v3021
        %v3032 = vsel %vm3025, %v3028, %v3031
        %v3033 = vsel %vm3022, nan, %v3032
        %v3034 = vand.u32 2147483647, %v2454
        %vm3035 = vcmp.le.f32.partialorder %v3034, 0.7853982
        %vm3036 = vcmp.lt.s32.totalorder %v2454, 0
        %v3037 = vand.u32 %v2454, 2139095040
        %v3038 = vshrl.u32 %v3037, 23
        %v3039 = vsub.s32 %v3038, 127
        %v3040 = vand.u32 2147483647, %v2454
        %v3041 = vand.u32 %v3040, 8388607
        %v3042 = vor.u32 %v3041, 8388608
        %v3043 = vsub.s32 0, %v3042
        %v3044 = vadd.s32 %v3039, 1
        %vm3045 = vcmp.gt.s32.totalorder %v3044, 0
        %v3046 = vsel %vm3045, %v3044, 0
        %v3047 = vshrl.u32 %v3046, 5
        %v3048 = vand.u32 %v3046, 31
        %v3049 = vsub.s32 32, %v3048
        %v3050 = vshrl.u32 683565275, %v3049
        %v3051 = vshll.u32 683565275, %v3048
        %v3052 = vshrl.u32 2475754826, %v3049
        %v3053 = vor.u32 %v3051, %v3052
        %v3054 = vshll.u32 2475754826, %v3048
        %v3055 = vshrl.u32 2131351028, %v3049
        %v3056 = vor.u32 %v3054, %v3055
        %v3057 = vshll.u32 2131351028, %v3048
        %v3058 = vshrl.u32 2102212464, %v3049
        %v3059 = vor.u32 %v3057, %v3058
        %v3060 = vshll.u32 2102212464, %v3048
        %v3061 = vshrl.u32 920167782, %v3049
        %v3062 = vor.u32 %v3060, %v3061
        %v3063 = vshll.u32 920167782, %v3048
        %v3064 = vshrl.u32 1326507024, %v3049
        %v3065 = vor.u32 %v3063, %v3064
        %vm3066 = vcmp.lt.s32.totalorder %v3047, 1
        %vm3067 = vcmp.lt.s32.totalorder %v3047, 2
        %vm3068 = vcmp.lt.s32.totalorder %v3047, 3
        %vm3069 = vcmp.lt.s32.totalorder %v3047, 4
        %v3070 = vsel %vm3066, %v3050, %v3053
        %v3071 = vsel %vm3069, %v3059, 2102212464
        %v3072 = vsel %vm3068, %v3056, %v3071
        %v3073 = vsel %vm3067, %v3070, %v3072
        %v3074 = vsel %vm3066, %v3053, %v3056
        %v3075 = vsel %vm3069, %v3062, 920167782
        %v3076 = vsel %vm3068, %v3059, %v3075
        %v3077 = vsel %vm3067, %v3074, %v3076
        %v3078 = vsel %vm3066, %v3056, %v3059
        %v3079 = vsel %vm3069, %v3065, 1326507024
        %v3080 = vsel %vm3068, %v3062, %v3079
        %v3081 = vsel %vm3067, %v3078, %v3080
        %v3082 = vshll.u32 %v3042, 8
        %v3083 = vmul.u32.u64.compose %v3082, %v3081
        %v3084 = vextract.low.u32 %v3083
        %v3085 = vextract.high.u32 %v3083
        %v3086 = vmul.u32.u64.compose %v3082, %v3077
        %v3087 = vextract.low.u32 %v3086
        %v3088 = vextract.high.u32 %v3086
        %v3089 = vmul.u32 %v3082, %v3073
        %v3090 = vadd.s32 %v3085, %v3087
        %vm3091 = vc.u32 %v3085, %v3087
        %v3092 = vadd.s32 %v3088, 1
        %v3093 = vsel %vm3091, %v3092, %v3088
        %v3094 = vadd.s32 %v3089, %v3093
        %v3095 = vadd.s32 %v3094, 536870912
        %v3096 = vshrl.u32 %v3095, 30
        %v3097 = vshll.u32 %v3096, 30
        %v3098 = vsub.s32 %v3094, %v3097
        %vm3099 = vcmp.lt.s32.totalorder %v3098, 0
        %v3100 = vsub.s32 0, %v3098
        %v3101 = vsel %vm3099, %v3100, %v3098
        %v3102 = vclz %v3101
        %v3103 = vsub.s32 %v3102, 2
        %vm3104 = vcmp.gt.s32.totalorder 0, %v3103
        %v3105 = vsel %vm3104, 0, %v3103
        %v3106 = vsub.s32 32, %v3105
        %v3107 = vshll.u32 %v3098, %v3105
        %v3108 = vshrl.u32 %v3090, %v3106
        %v3109 = vor.u32 %v3107, %v3108
        %v3110 = vsub.s32 4294967266, %v3105
        %v3111 = vadd.s32 %v3110, 127
        %v3112 = vshll.u32 %v3111, 23
        %v3113 = vor.u32 4788187, %v3112
        %v3114 = vand.u32 2147483647, %v3113
        %v3116 = vcvt.s32.f32 %v3109
        %v3117 = vmul.f32 %v3116, %v3114
        %v3118 = vxor.u32 %v3117, 2147483648
        %v3119 = vsel %vm3036, %v3118, %v3117
        %v3120 = vsub.s32 4, %v3096
        %v3121 = vsel %vm3036, %v3120, %v3096
        %v3122 = vsel %vm3035, %v2454, %v3119
        %v3123 = vsel %vm3035, 0, %v3121
        %v3124 = vcosq.f32.pop %v3122
        %v3125 = vsinq.f32.pop %v3122
        %vm3126 = vweird.f32 %v2454
        %v3127 = vadd.s32 %v3123, 3
        %v3128 = vand.u32 %v3127, 3
        %vm3129 = vcmp.lt.s32.totalorder %v3128, 2
        %vm3130 = vcmp.eq.s32.totalorder %v3128, 0
        %v3131 = vxor.u32 %v3125, 2147483648
        %v3132 = vsel %vm3130, %v3124, %v3131
        %vm3133 = vcmp.eq.s32.totalorder %v3128, 2
        %v3134 = vxor.u32 %v3124, 2147483648
        %v3135 = vsel %vm3133, %v3134, %v3125
        %v3136 = vsel %vm3129, %v3132, %v3135
        %v3137 = vsel %vm3126, nan, %v3136
        %v3138 = vand.u32 2147483647, %v2455
        %vm3139 = vcmp.le.f32.partialorder %v3138, 0.7853982
        %vm3140 = vcmp.lt.s32.totalorder %v2455, 0
        %v3141 = vand.u32 %v2455, 2139095040
        %v3142 = vshrl.u32 %v3141, 23
        %v3143 = vsub.s32 %v3142, 127
        %v3144 = vand.u32 2147483647, %v2455
        %v3145 = vand.u32 %v3144, 8388607
        %v3146 = vor.u32 %v3145, 8388608
        %v3147 = vsub.s32 0, %v3146
        %v3148 = vadd.s32 %v3143, 1
        %vm3149 = vcmp.gt.s32.totalorder %v3148, 0
        %v3150 = vsel %vm3149, %v3148, 0
        %v3151 = vshrl.u32 %v3150, 5
        %v3152 = vand.u32 %v3150, 31
        %v3153 = vsub.s32 32, %v3152
        %v3154 = vshrl.u32 683565275, %v3153
        %v3155 = vshll.u32 683565275, %v3152
        %v3156 = vshrl.u32 2475754826, %v3153
        %v3157 = vor.u32 %v3155, %v3156
        %v3158 = vshll.u32 2475754826, %v3152
        %v3159 = vshrl.u32 2131351028, %v3153
        %v3160 = vor.u32 %v3158, %v3159
        %v3161 = vshll.u32 2131351028, %v3152
        %v3162 = vshrl.u32 2102212464, %v3153
        %v3163 = vor.u32 %v3161, %v3162
        %v3164 = vshll.u32 2102212464, %v3152
        %v3165 = vshrl.u32 920167782, %v3153
        %v3166 = vor.u32 %v3164, %v3165
        %v3167 = vshll.u32 920167782, %v3152
        %v3168 = vshrl.u32 1326507024, %v3153
        %v3169 = vor.u32 %v3167, %v3168
        %vm3170 = vcmp.lt.s32.totalorder %v3151, 1
        %vm3171 = vcmp.lt.s32.totalorder %v3151, 2
        %vm3172 = vcmp.lt.s32.totalorder %v3151, 3
        %vm3173 = vcmp.lt.s32.totalorder %v3151, 4
        %v3174 = vsel %vm3170, %v3154, %v3157
        %v3175 = vsel %vm3173, %v3163, 2102212464
        %v3176 = vsel %vm3172, %v3160, %v3175
        %v3177 = vsel %vm3171, %v3174, %v3176
        %v3178 = vsel %vm3170, %v3157, %v3160
        %v3179 = vsel %vm3173, %v3166, 920167782
        %v3180 = vsel %vm3172, %v3163, %v3179
        %v3181 = vsel %vm3171, %v3178, %v3180
        %v3182 = vsel %vm3170, %v3160, %v3163
        %v3183 = vsel %vm3173, %v3169, 1326507024
        %v3184 = vsel %vm3172, %v3166, %v3183
        %v3185 = vsel %vm3171, %v3182, %v3184
        %v3186 = vshll.u32 %v3146, 8
        %v3187 = vmul.u32.u64.compose %v3186, %v3185
        %v3188 = vextract.low.u32 %v3187
        %v3189 = vextract.high.u32 %v3187
        %v3190 = vmul.u32.u64.compose %v3186, %v3181
        %v3191 = vextract.low.u32 %v3190
        %v3192 = vextract.high.u32 %v3190
        %v3193 = vmul.u32 %v3186, %v3177
        %v3194 = vadd.s32 %v3189, %v3191
        %vm3195 = vc.u32 %v3189, %v3191
        %v3196 = vadd.s32 %v3192, 1
        %v3197 = vsel %vm3195, %v3196, %v3192
        %v3198 = vadd.s32 %v3193, %v3197
        %v3199 = vadd.s32 %v3198, 536870912
        %v3200 = vshrl.u32 %v3199, 30
        %v3201 = vshll.u32 %v3200, 30
        %v3202 = vsub.s32 %v3198, %v3201
        %vm3203 = vcmp.lt.s32.totalorder %v3202, 0
        %v3204 = vsub.s32 0, %v3202
        %v3205 = vsel %vm3203, %v3204, %v3202
        %v3206 = vclz %v3205
        %v3207 = vsub.s32 %v3206, 2
        %vm3208 = vcmp.gt.s32.totalorder 0, %v3207
        %v3209 = vsel %vm3208, 0, %v3207
        %v3210 = vsub.s32 32, %v3209
        %v3211 = vshll.u32 %v3202, %v3209
        %v3212 = vshrl.u32 %v3194, %v3210
        %v3213 = vor.u32 %v3211, %v3212
        %v3214 = vsub.s32 4294967266, %v3209
        %v3215 = vadd.s32 %v3214, 127
        %v3216 = vshll.u32 %v3215, 23
        %v3217 = vor.u32 4788187, %v3216
        %v3218 = vand.u32 2147483647, %v3217
        %v3220 = vcvt.s32.f32 %v3213
        %v3221 = vmul.f32 %v3220, %v3218
        %v3222 = vxor.u32 %v3221, 2147483648
        %v3223 = vsel %vm3140, %v3222, %v3221
        %v3224 = vsub.s32 4, %v3200
        %v3225 = vsel %vm3140, %v3224, %v3200
        %v3226 = vsel %vm3139, %v2455, %v3223
        %v3227 = vsel %vm3139, 0, %v3225
        %v3228 = vcosq.f32.pop %v3226
        %v3229 = vsinq.f32.pop %v3226
        %vm3230 = vweird.f32 %v2455
        %v3231 = vadd.s32 %v3227, 3
        %v3232 = vand.u32 %v3231, 3
        %vm3233 = vcmp.lt.s32.totalorder %v3232, 2
        %vm3234 = vcmp.eq.s32.totalorder %v3232, 0
        %v3235 = vxor.u32 %v3229, 2147483648
        %v3236 = vsel %vm3234, %v3228, %v3235
        %vm3237 = vcmp.eq.s32.totalorder %v3232, 2
        %v3238 = vxor.u32 %v3228, 2147483648
        %v3239 = vsel %vm3237, %v3238, %v3229
        %v3240 = vsel %vm3233, %v3236, %v3239
        %v3241 = vsel %vm3230, nan, %v3240
        %v3242 = vand.u32 2147483647, %v2456
        %vm3243 = vcmp.le.f32.partialorder %v3242, 0.7853982
        %vm3244 = vcmp.lt.s32.totalorder %v2456, 0
        %v3245 = vand.u32 %v2456, 2139095040
        %v3246 = vshrl.u32 %v3245, 23
        %v3247 = vsub.s32 %v3246, 127
        %v3248 = vand.u32 2147483647, %v2456
        %v3249 = vand.u32 %v3248, 8388607
        %v3250 = vor.u32 %v3249, 8388608
        %v3251 = vsub.s32 0, %v3250
        %v3252 = vadd.s32 %v3247, 1
        %vm3253 = vcmp.gt.s32.totalorder %v3252, 0
        %v3254 = vsel %vm3253, %v3252, 0
        %v3255 = vshrl.u32 %v3254, 5
        %v3256 = vand.u32 %v3254, 31
        %v3257 = vsub.s32 32, %v3256
        %v3258 = vshrl.u32 683565275, %v3257
        %v3259 = vshll.u32 683565275, %v3256
        %v3260 = vshrl.u32 2475754826, %v3257
        %v3261 = vor.u32 %v3259, %v3260
        %v3262 = vshll.u32 2475754826, %v3256
        %v3263 = vshrl.u32 2131351028, %v3257
        %v3264 = vor.u32 %v3262, %v3263
        %v3265 = vshll.u32 2131351028, %v3256
        %v3266 = vshrl.u32 2102212464, %v3257
        %v3267 = vor.u32 %v3265, %v3266
        %v3268 = vshll.u32 2102212464, %v3256
        %v3269 = vshrl.u32 920167782, %v3257
        %v3270 = vor.u32 %v3268, %v3269
        %v3271 = vshll.u32 920167782, %v3256
        %v3272 = vshrl.u32 1326507024, %v3257
        %v3273 = vor.u32 %v3271, %v3272
        %vm3274 = vcmp.lt.s32.totalorder %v3255, 1
        %vm3275 = vcmp.lt.s32.totalorder %v3255, 2
        %vm3276 = vcmp.lt.s32.totalorder %v3255, 3
        %vm3277 = vcmp.lt.s32.totalorder %v3255, 4
        %v3278 = vsel %vm3274, %v3258, %v3261
        %v3279 = vsel %vm3277, %v3267, 2102212464
        %v3280 = vsel %vm3276, %v3264, %v3279
        %v3281 = vsel %vm3275, %v3278, %v3280
        %v3282 = vsel %vm3274, %v3261, %v3264
        %v3283 = vsel %vm3277, %v3270, 920167782
        %v3284 = vsel %vm3276, %v3267, %v3283
        %v3285 = vsel %vm3275, %v3282, %v3284
        %v3286 = vsel %vm3274, %v3264, %v3267
        %v3287 = vsel %vm3277, %v3273, 1326507024
        %v3288 = vsel %vm3276, %v3270, %v3287
        %v3289 = vsel %vm3275, %v3286, %v3288
        %v3290 = vshll.u32 %v3250, 8
        %v3291 = vmul.u32.u64.compose %v3290, %v3289
        %v3292 = vextract.low.u32 %v3291
        %v3293 = vextract.high.u32 %v3291
        %v3294 = vmul.u32.u64.compose %v3290, %v3285
        %v3295 = vextract.low.u32 %v3294
        %v3296 = vextract.high.u32 %v3294
        %v3297 = vmul.u32 %v3290, %v3281
        %v3298 = vadd.s32 %v3293, %v3295
        %vm3299 = vc.u32 %v3293, %v3295
        %v3300 = vadd.s32 %v3296, 1
        %v3301 = vsel %vm3299, %v3300, %v3296
        %v3302 = vadd.s32 %v3297, %v3301
        %v3303 = vadd.s32 %v3302, 536870912
        %v3304 = vshrl.u32 %v3303, 30
        %v3305 = vshll.u32 %v3304, 30
        %v3306 = vsub.s32 %v3302, %v3305
        %vm3307 = vcmp.lt.s32.totalorder %v3306, 0
        %v3308 = vsub.s32 0, %v3306
        %v3309 = vsel %vm3307, %v3308, %v3306
        %v3310 = vclz %v3309
        %v3311 = vsub.s32 %v3310, 2
        %vm3312 = vcmp.gt.s32.totalorder 0, %v3311
        %v3313 = vsel %vm3312, 0, %v3311
        %v3314 = vsub.s32 32, %v3313
        %v3315 = vshll.u32 %v3306, %v3313
        %v3316 = vshrl.u32 %v3298, %v3314
        %v3317 = vor.u32 %v3315, %v3316
        %v3318 = vsub.s32 4294967266, %v3313
        %v3319 = vadd.s32 %v3318, 127
        %v3320 = vshll.u32 %v3319, 23
        %v3321 = vor.u32 4788187, %v3320
        %v3322 = vand.u32 2147483647, %v3321
        %v3324 = vcvt.s32.f32 %v3317
        %v3325 = vmul.f32 %v3324, %v3322
        %v3326 = vxor.u32 %v3325, 2147483648
        %v3327 = vsel %vm3244, %v3326, %v3325
        %v3328 = vsub.s32 4, %v3304
        %v3329 = vsel %vm3244, %v3328, %v3304
        %v3330 = vsel %vm3243, %v2456, %v3327
        %v3331 = vsel %vm3243, 0, %v3329
        %v3332 = vcosq.f32.pop %v3330
        %v3333 = vsinq.f32.pop %v3330
        %vm3334 = vweird.f32 %v2456
        %v3335 = vadd.s32 %v3331, 3
        %v3336 = vand.u32 %v3335, 3
        %vm3337 = vcmp.lt.s32.totalorder %v3336, 2
        %vm3338 = vcmp.eq.s32.totalorder %v3336, 0
        %v3339 = vxor.u32 %v3333, 2147483648
        %v3340 = vsel %vm3338, %v3332, %v3339
        %vm3341 = vcmp.eq.s32.totalorder %v3336, 2
        %v3342 = vxor.u32 %v3332, 2147483648
        %v3343 = vsel %vm3341, %v3342, %v3333
        %v3344 = vsel %vm3337, %v3340, %v3343
        %v3345 = vsel %vm3334, nan, %v3344
        %v3346 = vand.u32 2147483647, %v2457
        %vm3347 = vcmp.le.f32.partialorder %v3346, 0.7853982
        %vm3348 = vcmp.lt.s32.totalorder %v2457, 0
        %v3349 = vand.u32 %v2457, 2139095040
        %v3350 = vshrl.u32 %v3349, 23
        %v3351 = vsub.s32 %v3350, 127
        %v3352 = vand.u32 2147483647, %v2457
        %v3353 = vand.u32 %v3352, 8388607
        %v3354 = vor.u32 %v3353, 8388608
        %v3355 = vsub.s32 0, %v3354
        %v3356 = vadd.s32 %v3351, 1
        %vm3357 = vcmp.gt.s32.totalorder %v3356, 0
        %v3358 = vsel %vm3357, %v3356, 0
        %v3359 = vshrl.u32 %v3358, 5
        %v3360 = vand.u32 %v3358, 31
        %v3361 = vsub.s32 32, %v3360
        %v3362 = vshrl.u32 683565275, %v3361
        %v3363 = vshll.u32 683565275, %v3360
        %v3364 = vshrl.u32 2475754826, %v3361
        %v3365 = vor.u32 %v3363, %v3364
        %v3366 = vshll.u32 2475754826, %v3360
        %v3367 = vshrl.u32 2131351028, %v3361
        %v3368 = vor.u32 %v3366, %v3367
        %v3369 = vshll.u32 2131351028, %v3360
        %v3370 = vshrl.u32 2102212464, %v3361
        %v3371 = vor.u32 %v3369, %v3370
        %v3372 = vshll.u32 2102212464, %v3360
        %v3373 = vshrl.u32 920167782, %v3361
        %v3374 = vor.u32 %v3372, %v3373
        %v3375 = vshll.u32 920167782, %v3360
        %v3376 = vshrl.u32 1326507024, %v3361
        %v3377 = vor.u32 %v3375, %v3376
        %vm3378 = vcmp.lt.s32.totalorder %v3359, 1
        %vm3379 = vcmp.lt.s32.totalorder %v3359, 2
        %vm3380 = vcmp.lt.s32.totalorder %v3359, 3
        %vm3381 = vcmp.lt.s32.totalorder %v3359, 4
        %v3382 = vsel %vm3378, %v3362, %v3365
        %v3383 = vsel %vm3381, %v3371, 2102212464
        %v3384 = vsel %vm3380, %v3368, %v3383
        %v3385 = vsel %vm3379, %v3382, %v3384
        %v3386 = vsel %vm3378, %v3365, %v3368
        %v3387 = vsel %vm3381, %v3374, 920167782
        %v3388 = vsel %vm3380, %v3371, %v3387
        %v3389 = vsel %vm3379, %v3386, %v3388
        %v3390 = vsel %vm3378, %v3368, %v3371
        %v3391 = vsel %vm3381, %v3377, 1326507024
        %v3392 = vsel %vm3380, %v3374, %v3391
        %v3393 = vsel %vm3379, %v3390, %v3392
        %v3394 = vshll.u32 %v3354, 8
        %v3395 = vmul.u32.u64.compose %v3394, %v3393
        %v3396 = vextract.low.u32 %v3395
        %v3397 = vextract.high.u32 %v3395
        %v3398 = vmul.u32.u64.compose %v3394, %v3389
        %v3399 = vextract.low.u32 %v3398
        %v3400 = vextract.high.u32 %v3398
        %v3401 = vmul.u32 %v3394, %v3385
        %v3402 = vadd.s32 %v3397, %v3399
        %vm3403 = vc.u32 %v3397, %v3399
        %v3404 = vadd.s32 %v3400, 1
        %v3405 = vsel %vm3403, %v3404, %v3400
        %v3406 = vadd.s32 %v3401, %v3405
        %v3407 = vadd.s32 %v3406, 536870912
        %v3408 = vshrl.u32 %v3407, 30
        %v3409 = vshll.u32 %v3408, 30
        %v3410 = vsub.s32 %v3406, %v3409
        %vm3411 = vcmp.lt.s32.totalorder %v3410, 0
        %v3412 = vsub.s32 0, %v3410
        %v3413 = vsel %vm3411, %v3412, %v3410
        %v3414 = vclz %v3413
        %v3415 = vsub.s32 %v3414, 2
        %vm3416 = vcmp.gt.s32.totalorder 0, %v3415
        %v3417 = vsel %vm3416, 0, %v3415
        %v3418 = vsub.s32 32, %v3417
        %v3419 = vshll.u32 %v3410, %v3417
        %v3420 = vshrl.u32 %v3402, %v3418
        %v3421 = vor.u32 %v3419, %v3420
        %v3422 = vsub.s32 4294967266, %v3417
        %v3423 = vadd.s32 %v3422, 127
        %v3424 = vshll.u32 %v3423, 23
        %v3425 = vor.u32 4788187, %v3424
        %v3426 = vand.u32 2147483647, %v3425
        %v3428 = vcvt.s32.f32 %v3421
        %v3429 = vmul.f32 %v3428, %v3426
        %v3430 = vxor.u32 %v3429, 2147483648
        %v3431 = vsel %vm3348, %v3430, %v3429
        %v3432 = vsub.s32 4, %v3408
        %v3433 = vsel %vm3348, %v3432, %v3408
        %v3434 = vsel %vm3347, %v2457, %v3431
        %v3435 = vsel %vm3347, 0, %v3433
        %v3436 = vcosq.f32.pop %v3434
        %v3437 = vsinq.f32.pop %v3434
        %vm3438 = vweird.f32 %v2457
        %v3439 = vadd.s32 %v3435, 3
        %v3440 = vand.u32 %v3439, 3
        %vm3441 = vcmp.lt.s32.totalorder %v3440, 2
        %vm3442 = vcmp.eq.s32.totalorder %v3440, 0
        %v3443 = vxor.u32 %v3437, 2147483648
        %v3444 = vsel %vm3442, %v3436, %v3443
        %vm3445 = vcmp.eq.s32.totalorder %v3440, 2
        %v3446 = vxor.u32 %v3436, 2147483648
        %v3447 = vsel %vm3445, %v3446, %v3437
        %v3448 = vsel %vm3441, %v3444, %v3447
        %v3449 = vsel %vm3438, nan, %v3448
        %v3450 = vand.u32 2147483647, %v2458
        %vm3451 = vcmp.le.f32.partialorder %v3450, 0.7853982
        %vm3452 = vcmp.lt.s32.totalorder %v2458, 0
        %v3453 = vand.u32 %v2458, 2139095040
        %v3454 = vshrl.u32 %v3453, 23
        %v3455 = vsub.s32 %v3454, 127
        %v3456 = vand.u32 2147483647, %v2458
        %v3457 = vand.u32 %v3456, 8388607
        %v3458 = vor.u32 %v3457, 8388608
        %v3459 = vsub.s32 0, %v3458
        %v3460 = vadd.s32 %v3455, 1
        %vm3461 = vcmp.gt.s32.totalorder %v3460, 0
        %v3462 = vsel %vm3461, %v3460, 0
        %v3463 = vshrl.u32 %v3462, 5
        %v3464 = vand.u32 %v3462, 31
        %v3465 = vsub.s32 32, %v3464
        %v3466 = vshrl.u32 683565275, %v3465
        %v3467 = vshll.u32 683565275, %v3464
        %v3468 = vshrl.u32 2475754826, %v3465
        %v3469 = vor.u32 %v3467, %v3468
        %v3470 = vshll.u32 2475754826, %v3464
        %v3471 = vshrl.u32 2131351028, %v3465
        %v3472 = vor.u32 %v3470, %v3471
        %v3473 = vshll.u32 2131351028, %v3464
        %v3474 = vshrl.u32 2102212464, %v3465
        %v3475 = vor.u32 %v3473, %v3474
        %v3476 = vshll.u32 2102212464, %v3464
        %v3477 = vshrl.u32 920167782, %v3465
        %v3478 = vor.u32 %v3476, %v3477
        %v3479 = vshll.u32 920167782, %v3464
        %v3480 = vshrl.u32 1326507024, %v3465
        %v3481 = vor.u32 %v3479, %v3480
        %vm3482 = vcmp.lt.s32.totalorder %v3463, 1
        %vm3483 = vcmp.lt.s32.totalorder %v3463, 2
        %vm3484 = vcmp.lt.s32.totalorder %v3463, 3
        %vm3485 = vcmp.lt.s32.totalorder %v3463, 4
        %v3486 = vsel %vm3482, %v3466, %v3469
        %v3487 = vsel %vm3485, %v3475, 2102212464
        %v3488 = vsel %vm3484, %v3472, %v3487
        %v3489 = vsel %vm3483, %v3486, %v3488
        %v3490 = vsel %vm3482, %v3469, %v3472
        %v3491 = vsel %vm3485, %v3478, 920167782
        %v3492 = vsel %vm3484, %v3475, %v3491
        %v3493 = vsel %vm3483, %v3490, %v3492
        %v3494 = vsel %vm3482, %v3472, %v3475
        %v3495 = vsel %vm3485, %v3481, 1326507024
        %v3496 = vsel %vm3484, %v3478, %v3495
        %v3497 = vsel %vm3483, %v3494, %v3496
        %v3498 = vshll.u32 %v3458, 8
        %v3499 = vmul.u32.u64.compose %v3498, %v3497
        %v3500 = vextract.low.u32 %v3499
        %v3501 = vextract.high.u32 %v3499
        %v3502 = vmul.u32.u64.compose %v3498, %v3493
        %v3503 = vextract.low.u32 %v3502
        %v3504 = vextract.high.u32 %v3502
        %v3505 = vmul.u32 %v3498, %v3489
        %v3506 = vadd.s32 %v3501, %v3503
        %vm3507 = vc.u32 %v3501, %v3503
        %v3508 = vadd.s32 %v3504, 1
        %v3509 = vsel %vm3507, %v3508, %v3504
        %v3510 = vadd.s32 %v3505, %v3509
        %v3511 = vadd.s32 %v3510, 536870912
        %v3512 = vshrl.u32 %v3511, 30
        %v3513 = vshll.u32 %v3512, 30
        %v3514 = vsub.s32 %v3510, %v3513
        %vm3515 = vcmp.lt.s32.totalorder %v3514, 0
        %v3516 = vsub.s32 0, %v3514
        %v3517 = vsel %vm3515, %v3516, %v3514
        %v3518 = vclz %v3517
        %v3519 = vsub.s32 %v3518, 2
        %vm3520 = vcmp.gt.s32.totalorder 0, %v3519
        %v3521 = vsel %vm3520, 0, %v3519
        %v3522 = vsub.s32 32, %v3521
        %v3523 = vshll.u32 %v3514, %v3521
        %v3524 = vshrl.u32 %v3506, %v3522
        %v3525 = vor.u32 %v3523, %v3524
        %v3526 = vsub.s32 4294967266, %v3521
        %v3527 = vadd.s32 %v3526, 127
        %v3528 = vshll.u32 %v3527, 23
        %v3529 = vor.u32 4788187, %v3528
        %v3530 = vand.u32 2147483647, %v3529
        %v3532 = vcvt.s32.f32 %v3525
        %v3533 = vmul.f32 %v3532, %v3530
        %v3534 = vxor.u32 %v3533, 2147483648
        %v3535 = vsel %vm3452, %v3534, %v3533
        %v3536 = vsub.s32 4, %v3512
        %v3537 = vsel %vm3452, %v3536, %v3512
        %v3538 = vsel %vm3451, %v2458, %v3535
        %v3539 = vsel %vm3451, 0, %v3537
        %v3540 = vcosq.f32.pop %v3538
        %v3541 = vsinq.f32.pop %v3538
        %vm3542 = vweird.f32 %v2458
        %v3543 = vadd.s32 %v3539, 3
        %v3544 = vand.u32 %v3543, 3
        %vm3545 = vcmp.lt.s32.totalorder %v3544, 2
        %vm3546 = vcmp.eq.s32.totalorder %v3544, 0
        %v3547 = vxor.u32 %v3541, 2147483648
        %v3548 = vsel %vm3546, %v3540, %v3547
        %vm3549 = vcmp.eq.s32.totalorder %v3544, 2
        %v3550 = vxor.u32 %v3540, 2147483648
        %v3551 = vsel %vm3549, %v3550, %v3541
        %v3552 = vsel %vm3545, %v3548, %v3551
        %v3553 = vsel %vm3542, nan, %v3552
        %v3554 = vand.u32 2147483647, %v2459
        %vm3555 = vcmp.le.f32.partialorder %v3554, 0.7853982
        %vm3556 = vcmp.lt.s32.totalorder %v2459, 0
        %v3557 = vand.u32 %v2459, 2139095040
        %v3558 = vshrl.u32 %v3557, 23
        %v3559 = vsub.s32 %v3558, 127
        %v3560 = vand.u32 2147483647, %v2459
        %v3561 = vand.u32 %v3560, 8388607
        %v3562 = vor.u32 %v3561, 8388608
        %v3563 = vsub.s32 0, %v3562
        %v3564 = vadd.s32 %v3559, 1
        %vm3565 = vcmp.gt.s32.totalorder %v3564, 0
        %v3566 = vsel %vm3565, %v3564, 0
        %v3567 = vshrl.u32 %v3566, 5
        %v3568 = vand.u32 %v3566, 31
        %v3569 = vsub.s32 32, %v3568
        %v3570 = vshrl.u32 683565275, %v3569
        %v3571 = vshll.u32 683565275, %v3568
        %v3572 = vshrl.u32 2475754826, %v3569
        %v3573 = vor.u32 %v3571, %v3572
        %v3574 = vshll.u32 2475754826, %v3568
        %v3575 = vshrl.u32 2131351028, %v3569
        %v3576 = vor.u32 %v3574, %v3575
        %v3577 = vshll.u32 2131351028, %v3568
        %v3578 = vshrl.u32 2102212464, %v3569
        %v3579 = vor.u32 %v3577, %v3578
        %v3580 = vshll.u32 2102212464, %v3568
        %v3581 = vshrl.u32 920167782, %v3569
        %v3582 = vor.u32 %v3580, %v3581
        %v3583 = vshll.u32 920167782, %v3568
        %v3584 = vshrl.u32 1326507024, %v3569
        %v3585 = vor.u32 %v3583, %v3584
        %vm3586 = vcmp.lt.s32.totalorder %v3567, 1
        %vm3587 = vcmp.lt.s32.totalorder %v3567, 2
        %vm3588 = vcmp.lt.s32.totalorder %v3567, 3
        %vm3589 = vcmp.lt.s32.totalorder %v3567, 4
        %v3590 = vsel %vm3586, %v3570, %v3573
        %v3591 = vsel %vm3589, %v3579, 2102212464
        %v3592 = vsel %vm3588, %v3576, %v3591
        %v3593 = vsel %vm3587, %v3590, %v3592
        %v3594 = vsel %vm3586, %v3573, %v3576
        %v3595 = vsel %vm3589, %v3582, 920167782
        %v3596 = vsel %vm3588, %v3579, %v3595
        %v3597 = vsel %vm3587, %v3594, %v3596
        %v3598 = vsel %vm3586, %v3576, %v3579
        %v3599 = vsel %vm3589, %v3585, 1326507024
        %v3600 = vsel %vm3588, %v3582, %v3599
        %v3601 = vsel %vm3587, %v3598, %v3600
        %v3602 = vshll.u32 %v3562, 8
        %v3603 = vmul.u32.u64.compose %v3602, %v3601
        %v3604 = vextract.low.u32 %v3603
        %v3605 = vextract.high.u32 %v3603
        %v3606 = vmul.u32.u64.compose %v3602, %v3597
        %v3607 = vextract.low.u32 %v3606
        %v3608 = vextract.high.u32 %v3606
        %v3609 = vmul.u32 %v3602, %v3593
        %v3610 = vadd.s32 %v3605, %v3607
        %vm3611 = vc.u32 %v3605, %v3607
        %v3612 = vadd.s32 %v3608, 1
        %v3613 = vsel %vm3611, %v3612, %v3608
        %v3614 = vadd.s32 %v3609, %v3613
        %v3615 = vadd.s32 %v3614, 536870912
        %v3616 = vshrl.u32 %v3615, 30
        %v3617 = vshll.u32 %v3616, 30
        %v3618 = vsub.s32 %v3614, %v3617
        %vm3619 = vcmp.lt.s32.totalorder %v3618, 0
        %v3620 = vsub.s32 0, %v3618
        %v3621 = vsel %vm3619, %v3620, %v3618
        %v3622 = vclz %v3621
        %v3623 = vsub.s32 %v3622, 2
        %vm3624 = vcmp.gt.s32.totalorder 0, %v3623
        %v3625 = vsel %vm3624, 0, %v3623
        %v3626 = vsub.s32 32, %v3625
        %v3627 = vshll.u32 %v3618, %v3625
        %v3628 = vshrl.u32 %v3610, %v3626
        %v3629 = vor.u32 %v3627, %v3628
        %v3630 = vsub.s32 4294967266, %v3625
        %v3631 = vadd.s32 %v3630, 127
        %v3632 = vshll.u32 %v3631, 23
        %v3633 = vor.u32 4788187, %v3632
        %v3634 = vand.u32 2147483647, %v3633
        %v3636 = vcvt.s32.f32 %v3629
        %v3637 = vmul.f32 %v3636, %v3634
        %v3638 = vxor.u32 %v3637, 2147483648
        %v3639 = vsel %vm3556, %v3638, %v3637
        %v3640 = vsub.s32 4, %v3616
        %v3641 = vsel %vm3556, %v3640, %v3616
        %v3642 = vsel %vm3555, %v2459, %v3639
        %v3643 = vsel %vm3555, 0, %v3641
        %v3644 = vcosq.f32.pop %v3642
        %v3645 = vsinq.f32.pop %v3642
        %vm3646 = vweird.f32 %v2459
        %v3647 = vadd.s32 %v3643, 3
        %v3648 = vand.u32 %v3647, 3
        %vm3649 = vcmp.lt.s32.totalorder %v3648, 2
        %vm3650 = vcmp.eq.s32.totalorder %v3648, 0
        %v3651 = vxor.u32 %v3645, 2147483648
        %v3652 = vsel %vm3650, %v3644, %v3651
        %vm3653 = vcmp.eq.s32.totalorder %v3648, 2
        %v3654 = vxor.u32 %v3644, 2147483648
        %v3655 = vsel %vm3653, %v3654, %v3645
        %v3656 = vsel %vm3649, %v3652, %v3655
        %v3657 = vsel %vm3646, nan, %v3656
        %v3658 = vand.u32 2147483647, %v2460
        %vm3659 = vcmp.le.f32.partialorder %v3658, 0.7853982
        %vm3660 = vcmp.lt.s32.totalorder %v2460, 0
        %v3661 = vand.u32 %v2460, 2139095040
        %v3662 = vshrl.u32 %v3661, 23
        %v3663 = vsub.s32 %v3662, 127
        %v3664 = vand.u32 2147483647, %v2460
        %v3665 = vand.u32 %v3664, 8388607
        %v3666 = vor.u32 %v3665, 8388608
        %v3667 = vsub.s32 0, %v3666
        %v3668 = vadd.s32 %v3663, 1
        %vm3669 = vcmp.gt.s32.totalorder %v3668, 0
        %v3670 = vsel %vm3669, %v3668, 0
        %v3671 = vshrl.u32 %v3670, 5
        %v3672 = vand.u32 %v3670, 31
        %v3673 = vsub.s32 32, %v3672
        %v3674 = vshrl.u32 683565275, %v3673
        %v3675 = vshll.u32 683565275, %v3672
        %v3676 = vshrl.u32 2475754826, %v3673
        %v3677 = vor.u32 %v3675, %v3676
        %v3678 = vshll.u32 2475754826, %v3672
        %v3679 = vshrl.u32 2131351028, %v3673
        %v3680 = vor.u32 %v3678, %v3679
        %v3681 = vshll.u32 2131351028, %v3672
        %v3682 = vshrl.u32 2102212464, %v3673
        %v3683 = vor.u32 %v3681, %v3682
        %v3684 = vshll.u32 2102212464, %v3672
        %v3685 = vshrl.u32 920167782, %v3673
        %v3686 = vor.u32 %v3684, %v3685
        %v3687 = vshll.u32 920167782, %v3672
        %v3688 = vshrl.u32 1326507024, %v3673
        %v3689 = vor.u32 %v3687, %v3688
        %vm3690 = vcmp.lt.s32.totalorder %v3671, 1
        %vm3691 = vcmp.lt.s32.totalorder %v3671, 2
        %vm3692 = vcmp.lt.s32.totalorder %v3671, 3
        %vm3693 = vcmp.lt.s32.totalorder %v3671, 4
        %v3694 = vsel %vm3690, %v3674, %v3677
        %v3695 = vsel %vm3693, %v3683, 2102212464
        %v3696 = vsel %vm3692, %v3680, %v3695
        %v3697 = vsel %vm3691, %v3694, %v3696
        %v3698 = vsel %vm3690, %v3677, %v3680
        %v3699 = vsel %vm3693, %v3686, 920167782
        %v3700 = vsel %vm3692, %v3683, %v3699
        %v3701 = vsel %vm3691, %v3698, %v3700
        %v3702 = vsel %vm3690, %v3680, %v3683
        %v3703 = vsel %vm3693, %v3689, 1326507024
        %v3704 = vsel %vm3692, %v3686, %v3703
        %v3705 = vsel %vm3691, %v3702, %v3704
        %v3706 = vshll.u32 %v3666, 8
        %v3707 = vmul.u32.u64.compose %v3706, %v3705
        %v3708 = vextract.low.u32 %v3707
        %v3709 = vextract.high.u32 %v3707
        %v3710 = vmul.u32.u64.compose %v3706, %v3701
        %v3711 = vextract.low.u32 %v3710
        %v3712 = vextract.high.u32 %v3710
        %v3713 = vmul.u32 %v3706, %v3697
        %v3714 = vadd.s32 %v3709, %v3711
        %vm3715 = vc.u32 %v3709, %v3711
        %v3716 = vadd.s32 %v3712, 1
        %v3717 = vsel %vm3715, %v3716, %v3712
        %v3718 = vadd.s32 %v3713, %v3717
        %v3719 = vadd.s32 %v3718, 536870912
        %v3720 = vshrl.u32 %v3719, 30
        %v3721 = vshll.u32 %v3720, 30
        %v3722 = vsub.s32 %v3718, %v3721
        %vm3723 = vcmp.lt.s32.totalorder %v3722, 0
        %v3724 = vsub.s32 0, %v3722
        %v3725 = vsel %vm3723, %v3724, %v3722
        %v3726 = vclz %v3725
        %v3727 = vsub.s32 %v3726, 2
        %vm3728 = vcmp.gt.s32.totalorder 0, %v3727
        %v3729 = vsel %vm3728, 0, %v3727
        %v3730 = vsub.s32 32, %v3729
        %v3731 = vshll.u32 %v3722, %v3729
        %v3732 = vshrl.u32 %v3714, %v3730
        %v3733 = vor.u32 %v3731, %v3732
        %v3734 = vsub.s32 4294967266, %v3729
        %v3735 = vadd.s32 %v3734, 127
        %v3736 = vshll.u32 %v3735, 23
        %v3737 = vor.u32 4788187, %v3736
        %v3738 = vand.u32 2147483647, %v3737
        %v3740 = vcvt.s32.f32 %v3733
        %v3741 = vmul.f32 %v3740, %v3738
        %v3742 = vxor.u32 %v3741, 2147483648
        %v3743 = vsel %vm3660, %v3742, %v3741
        %v3744 = vsub.s32 4, %v3720
        %v3745 = vsel %vm3660, %v3744, %v3720
        %v3746 = vsel %vm3659, %v2460, %v3743
        %v3747 = vsel %vm3659, 0, %v3745
        %v3748 = vcosq.f32.pop %v3746
        %v3749 = vsinq.f32.pop %v3746
        %vm3750 = vweird.f32 %v2460
        %v3751 = vadd.s32 %v3747, 3
        %v3752 = vand.u32 %v3751, 3
        %vm3753 = vcmp.lt.s32.totalorder %v3752, 2
        %vm3754 = vcmp.eq.s32.totalorder %v3752, 0
        %v3755 = vxor.u32 %v3749, 2147483648
        %v3756 = vsel %vm3754, %v3748, %v3755
        %vm3757 = vcmp.eq.s32.totalorder %v3752, 2
        %v3758 = vxor.u32 %v3748, 2147483648
        %v3759 = vsel %vm3757, %v3758, %v3749
        %v3760 = vsel %vm3753, %v3756, %v3759
        %v3761 = vsel %vm3750, nan, %v3760
        %v3762 = vand.u32 2147483647, %v2461
        %vm3763 = vcmp.le.f32.partialorder %v3762, 0.7853982
        %vm3764 = vcmp.lt.s32.totalorder %v2461, 0
        %v3765 = vand.u32 %v2461, 2139095040
        %v3766 = vshrl.u32 %v3765, 23
        %v3767 = vsub.s32 %v3766, 127
        %v3768 = vand.u32 2147483647, %v2461
        %v3769 = vand.u32 %v3768, 8388607
        %v3770 = vor.u32 %v3769, 8388608
        %v3771 = vsub.s32 0, %v3770
        %v3772 = vadd.s32 %v3767, 1
        %vm3773 = vcmp.gt.s32.totalorder %v3772, 0
        %v3774 = vsel %vm3773, %v3772, 0
        %v3775 = vshrl.u32 %v3774, 5
        %v3776 = vand.u32 %v3774, 31
        %v3777 = vsub.s32 32, %v3776
        %v3778 = vshrl.u32 683565275, %v3777
        %v3779 = vshll.u32 683565275, %v3776
        %v3780 = vshrl.u32 2475754826, %v3777
        %v3781 = vor.u32 %v3779, %v3780
        %v3782 = vshll.u32 2475754826, %v3776
        %v3783 = vshrl.u32 2131351028, %v3777
        %v3784 = vor.u32 %v3782, %v3783
        %v3785 = vshll.u32 2131351028, %v3776
        %v3786 = vshrl.u32 2102212464, %v3777
        %v3787 = vor.u32 %v3785, %v3786
        %v3788 = vshll.u32 2102212464, %v3776
        %v3789 = vshrl.u32 920167782, %v3777
        %v3790 = vor.u32 %v3788, %v3789
        %v3791 = vshll.u32 920167782, %v3776
        %v3792 = vshrl.u32 1326507024, %v3777
        %v3793 = vor.u32 %v3791, %v3792
        %vm3794 = vcmp.lt.s32.totalorder %v3775, 1
        %vm3795 = vcmp.lt.s32.totalorder %v3775, 2
        %vm3796 = vcmp.lt.s32.totalorder %v3775, 3
        %vm3797 = vcmp.lt.s32.totalorder %v3775, 4
        %v3798 = vsel %vm3794, %v3778, %v3781
        %v3799 = vsel %vm3797, %v3787, 2102212464
        %v3800 = vsel %vm3796, %v3784, %v3799
        %v3801 = vsel %vm3795, %v3798, %v3800
        %v3802 = vsel %vm3794, %v3781, %v3784
        %v3803 = vsel %vm3797, %v3790, 920167782
        %v3804 = vsel %vm3796, %v3787, %v3803
        %v3805 = vsel %vm3795, %v3802, %v3804
        %v3806 = vsel %vm3794, %v3784, %v3787
        %v3807 = vsel %vm3797, %v3793, 1326507024
        %v3808 = vsel %vm3796, %v3790, %v3807
        %v3809 = vsel %vm3795, %v3806, %v3808
        %v3810 = vshll.u32 %v3770, 8
        %v3811 = vmul.u32.u64.compose %v3810, %v3809
        %v3812 = vextract.low.u32 %v3811
        %v3813 = vextract.high.u32 %v3811
        %v3814 = vmul.u32.u64.compose %v3810, %v3805
        %v3815 = vextract.low.u32 %v3814
        %v3816 = vextract.high.u32 %v3814
        %v3817 = vmul.u32 %v3810, %v3801
        %v3818 = vadd.s32 %v3813, %v3815
        %vm3819 = vc.u32 %v3813, %v3815
        %v3820 = vadd.s32 %v3816, 1
        %v3821 = vsel %vm3819, %v3820, %v3816
        %v3822 = vadd.s32 %v3817, %v3821
        %v3823 = vadd.s32 %v3822, 536870912
        %v3824 = vshrl.u32 %v3823, 30
        %v3825 = vshll.u32 %v3824, 30
        %v3826 = vsub.s32 %v3822, %v3825
        %vm3827 = vcmp.lt.s32.totalorder %v3826, 0
        %v3828 = vsub.s32 0, %v3826
        %v3829 = vsel %vm3827, %v3828, %v3826
        %v3830 = vclz %v3829
        %v3831 = vsub.s32 %v3830, 2
        %vm3832 = vcmp.gt.s32.totalorder 0, %v3831
        %v3833 = vsel %vm3832, 0, %v3831
        %v3834 = vsub.s32 32, %v3833
        %v3835 = vshll.u32 %v3826, %v3833
        %v3836 = vshrl.u32 %v3818, %v3834
        %v3837 = vor.u32 %v3835, %v3836
        %v3838 = vsub.s32 4294967266, %v3833
        %v3839 = vadd.s32 %v3838, 127
        %v3840 = vshll.u32 %v3839, 23
        %v3841 = vor.u32 4788187, %v3840
        %v3842 = vand.u32 2147483647, %v3841
        %v3844 = vcvt.s32.f32 %v3837
        %v3845 = vmul.f32 %v3844, %v3842
        %v3846 = vxor.u32 %v3845, 2147483648
        %v3847 = vsel %vm3764, %v3846, %v3845
        %v3848 = vsub.s32 4, %v3824
        %v3849 = vsel %vm3764, %v3848, %v3824
        %v3850 = vsel %vm3763, %v2461, %v3847
        %v3851 = vsel %vm3763, 0, %v3849
        %v3852 = vcosq.f32.pop %v3850
        %v3853 = vsinq.f32.pop %v3850
        %vm3854 = vweird.f32 %v2461
        %v3855 = vadd.s32 %v3851, 3
        %v3856 = vand.u32 %v3855, 3
        %vm3857 = vcmp.lt.s32.totalorder %v3856, 2
        %vm3858 = vcmp.eq.s32.totalorder %v3856, 0
        %v3859 = vxor.u32 %v3853, 2147483648
        %v3860 = vsel %vm3858, %v3852, %v3859
        %vm3861 = vcmp.eq.s32.totalorder %v3856, 2
        %v3862 = vxor.u32 %v3852, 2147483648
        %v3863 = vsel %vm3861, %v3862, %v3853
        %v3864 = vsel %vm3857, %v3860, %v3863
        %v3865 = vsel %vm3854, nan, %v3864
        %v3866 = vand.u32 2147483647, %v2462
        %vm3867 = vcmp.le.f32.partialorder %v3866, 0.7853982
        %vm3868 = vcmp.lt.s32.totalorder %v2462, 0
        %v3869 = vand.u32 %v2462, 2139095040
        %v3870 = vshrl.u32 %v3869, 23
        %v3871 = vsub.s32 %v3870, 127
        %v3872 = vand.u32 2147483647, %v2462
        %v3873 = vand.u32 %v3872, 8388607
        %v3874 = vor.u32 %v3873, 8388608
        %v3875 = vsub.s32 0, %v3874
        %v3876 = vadd.s32 %v3871, 1
        %vm3877 = vcmp.gt.s32.totalorder %v3876, 0
        %v3878 = vsel %vm3877, %v3876, 0
        %v3879 = vshrl.u32 %v3878, 5
        %v3880 = vand.u32 %v3878, 31
        %v3881 = vsub.s32 32, %v3880
        %v3882 = vshrl.u32 683565275, %v3881
        %v3883 = vshll.u32 683565275, %v3880
        %v3884 = vshrl.u32 2475754826, %v3881
        %v3885 = vor.u32 %v3883, %v3884
        %v3886 = vshll.u32 2475754826, %v3880
        %v3887 = vshrl.u32 2131351028, %v3881
        %v3888 = vor.u32 %v3886, %v3887
        %v3889 = vshll.u32 2131351028, %v3880
        %v3890 = vshrl.u32 2102212464, %v3881
        %v3891 = vor.u32 %v3889, %v3890
        %v3892 = vshll.u32 2102212464, %v3880
        %v3893 = vshrl.u32 920167782, %v3881
        %v3894 = vor.u32 %v3892, %v3893
        %v3895 = vshll.u32 920167782, %v3880
        %v3896 = vshrl.u32 1326507024, %v3881
        %v3897 = vor.u32 %v3895, %v3896
        %vm3898 = vcmp.lt.s32.totalorder %v3879, 1
        %vm3899 = vcmp.lt.s32.totalorder %v3879, 2
        %vm3900 = vcmp.lt.s32.totalorder %v3879, 3
        %vm3901 = vcmp.lt.s32.totalorder %v3879, 4
        %v3902 = vsel %vm3898, %v3882, %v3885
        %v3903 = vsel %vm3901, %v3891, 2102212464
        %v3904 = vsel %vm3900, %v3888, %v3903
        %v3905 = vsel %vm3899, %v3902, %v3904
        %v3906 = vsel %vm3898, %v3885, %v3888
        %v3907 = vsel %vm3901, %v3894, 920167782
        %v3908 = vsel %vm3900, %v3891, %v3907
        %v3909 = vsel %vm3899, %v3906, %v3908
        %v3910 = vsel %vm3898, %v3888, %v3891
        %v3911 = vsel %vm3901, %v3897, 1326507024
        %v3912 = vsel %vm3900, %v3894, %v3911
        %v3913 = vsel %vm3899, %v3910, %v3912
        %v3914 = vshll.u32 %v3874, 8
        %v3915 = vmul.u32.u64.compose %v3914, %v3913
        %v3916 = vextract.low.u32 %v3915
        %v3917 = vextract.high.u32 %v3915
        %v3918 = vmul.u32.u64.compose %v3914, %v3909
        %v3919 = vextract.low.u32 %v3918
        %v3920 = vextract.high.u32 %v3918
        %v3921 = vmul.u32 %v3914, %v3905
        %v3922 = vadd.s32 %v3917, %v3919
        %vm3923 = vc.u32 %v3917, %v3919
        %v3924 = vadd.s32 %v3920, 1
        %v3925 = vsel %vm3923, %v3924, %v3920
        %v3926 = vadd.s32 %v3921, %v3925
        %v3927 = vadd.s32 %v3926, 536870912
        %v3928 = vshrl.u32 %v3927, 30
        %v3929 = vshll.u32 %v3928, 30
        %v3930 = vsub.s32 %v3926, %v3929
        %vm3931 = vcmp.lt.s32.totalorder %v3930, 0
        %v3932 = vsub.s32 0, %v3930
        %v3933 = vsel %vm3931, %v3932, %v3930
        %v3934 = vclz %v3933
        %v3935 = vsub.s32 %v3934, 2
        %vm3936 = vcmp.gt.s32.totalorder 0, %v3935
        %v3937 = vsel %vm3936, 0, %v3935
        %v3938 = vsub.s32 32, %v3937
        %v3939 = vshll.u32 %v3930, %v3937
        %v3940 = vshrl.u32 %v3922, %v3938
        %v3941 = vor.u32 %v3939, %v3940
        %v3942 = vsub.s32 4294967266, %v3937
        %v3943 = vadd.s32 %v3942, 127
        %v3944 = vshll.u32 %v3943, 23
        %v3945 = vor.u32 4788187, %v3944
        %v3946 = vand.u32 2147483647, %v3945
        %v3948 = vcvt.s32.f32 %v3941
        %v3949 = vmul.f32 %v3948, %v3946
        %v3950 = vxor.u32 %v3949, 2147483648
        %v3951 = vsel %vm3868, %v3950, %v3949
        %v3952 = vsub.s32 4, %v3928
        %v3953 = vsel %vm3868, %v3952, %v3928
        %v3954 = vsel %vm3867, %v2462, %v3951
        %v3955 = vsel %vm3867, 0, %v3953
        %v3956 = vcosq.f32.pop %v3954
        %v3957 = vsinq.f32.pop %v3954
        %vm3958 = vweird.f32 %v2462
        %v3959 = vadd.s32 %v3955, 3
        %v3960 = vand.u32 %v3959, 3
        %vm3961 = vcmp.lt.s32.totalorder %v3960, 2
        %vm3962 = vcmp.eq.s32.totalorder %v3960, 0
        %v3963 = vxor.u32 %v3957, 2147483648
        %v3964 = vsel %vm3962, %v3956, %v3963
        %vm3965 = vcmp.eq.s32.totalorder %v3960, 2
        %v3966 = vxor.u32 %v3956, 2147483648
        %v3967 = vsel %vm3965, %v3966, %v3957
        %v3968 = vsel %vm3961, %v3964, %v3967
        %v3969 = vsel %vm3958, nan, %v3968
        %v3970 = vand.u32 2147483647, %v2463
        %vm3971 = vcmp.le.f32.partialorder %v3970, 0.7853982
        %vm3972 = vcmp.lt.s32.totalorder %v2463, 0
        %v3973 = vand.u32 %v2463, 2139095040
        %v3974 = vshrl.u32 %v3973, 23
        %v3975 = vsub.s32 %v3974, 127
        %v3976 = vand.u32 2147483647, %v2463
        %v3977 = vand.u32 %v3976, 8388607
        %v3978 = vor.u32 %v3977, 8388608
        %v3979 = vsub.s32 0, %v3978
        %v3980 = vadd.s32 %v3975, 1
        %vm3981 = vcmp.gt.s32.totalorder %v3980, 0
        %v3982 = vsel %vm3981, %v3980, 0
        %v3983 = vshrl.u32 %v3982, 5
        %v3984 = vand.u32 %v3982, 31
        %v3985 = vsub.s32 32, %v3984
        %v3986 = vshrl.u32 683565275, %v3985
        %v3987 = vshll.u32 683565275, %v3984
        %v3988 = vshrl.u32 2475754826, %v3985
        %v3989 = vor.u32 %v3987, %v3988
        %v3990 = vshll.u32 2475754826, %v3984
        %v3991 = vshrl.u32 2131351028, %v3985
        %v3992 = vor.u32 %v3990, %v3991
        %v3993 = vshll.u32 2131351028, %v3984
        %v3994 = vshrl.u32 2102212464, %v3985
        %v3995 = vor.u32 %v3993, %v3994
        %v3996 = vshll.u32 2102212464, %v3984
        %v3997 = vshrl.u32 920167782, %v3985
        %v3998 = vor.u32 %v3996, %v3997
        %v3999 = vshll.u32 920167782, %v3984
        %v4000 = vshrl.u32 1326507024, %v3985
        %v4001 = vor.u32 %v3999, %v4000
        %vm4002 = vcmp.lt.s32.totalorder %v3983, 1
        %vm4003 = vcmp.lt.s32.totalorder %v3983, 2
        %vm4004 = vcmp.lt.s32.totalorder %v3983, 3
        %vm4005 = vcmp.lt.s32.totalorder %v3983, 4
        %v4006 = vsel %vm4002, %v3986, %v3989
        %v4007 = vsel %vm4005, %v3995, 2102212464
        %v4008 = vsel %vm4004, %v3992, %v4007
        %v4009 = vsel %vm4003, %v4006, %v4008
        %v4010 = vsel %vm4002, %v3989, %v3992
        %v4011 = vsel %vm4005, %v3998, 920167782
        %v4012 = vsel %vm4004, %v3995, %v4011
        %v4013 = vsel %vm4003, %v4010, %v4012
        %v4014 = vsel %vm4002, %v3992, %v3995
        %v4015 = vsel %vm4005, %v4001, 1326507024
        %v4016 = vsel %vm4004, %v3998, %v4015
        %v4017 = vsel %vm4003, %v4014, %v4016
        %v4018 = vshll.u32 %v3978, 8
        %v4019 = vmul.u32.u64.compose %v4018, %v4017
        %v4020 = vextract.low.u32 %v4019
        %v4021 = vextract.high.u32 %v4019
        %v4022 = vmul.u32.u64.compose %v4018, %v4013
        %v4023 = vextract.low.u32 %v4022
        %v4024 = vextract.high.u32 %v4022
        %v4025 = vmul.u32 %v4018, %v4009
        %v4026 = vadd.s32 %v4021, %v4023
        %vm4027 = vc.u32 %v4021, %v4023
        %v4028 = vadd.s32 %v4024, 1
        %v4029 = vsel %vm4027, %v4028, %v4024
        %v4030 = vadd.s32 %v4025, %v4029
        %v4031 = vadd.s32 %v4030, 536870912
        %v4032 = vshrl.u32 %v4031, 30
        %v4033 = vshll.u32 %v4032, 30
        %v4034 = vsub.s32 %v4030, %v4033
        %vm4035 = vcmp.lt.s32.totalorder %v4034, 0
        %v4036 = vsub.s32 0, %v4034
        %v4037 = vsel %vm4035, %v4036, %v4034
        %v4038 = vclz %v4037
        %v4039 = vsub.s32 %v4038, 2
        %vm4040 = vcmp.gt.s32.totalorder 0, %v4039
        %v4041 = vsel %vm4040, 0, %v4039
        %v4042 = vsub.s32 32, %v4041
        %v4043 = vshll.u32 %v4034, %v4041
        %v4044 = vshrl.u32 %v4026, %v4042
        %v4045 = vor.u32 %v4043, %v4044
        %v4046 = vsub.s32 4294967266, %v4041
        %v4047 = vadd.s32 %v4046, 127
        %v4048 = vshll.u32 %v4047, 23
        %v4049 = vor.u32 4788187, %v4048
        %v4050 = vand.u32 2147483647, %v4049
        %v4052 = vcvt.s32.f32 %v4045
        %v4053 = vmul.f32 %v4052, %v4050
        %v4054 = vxor.u32 %v4053, 2147483648
        %v4055 = vsel %vm3972, %v4054, %v4053
        %v4056 = vsub.s32 4, %v4032
        %v4057 = vsel %vm3972, %v4056, %v4032
        %v4058 = vsel %vm3971, %v2463, %v4055
        %v4059 = vsel %vm3971, 0, %v4057
        %v4060 = vcosq.f32.pop %v4058
        %v4061 = vsinq.f32.pop %v4058
        %vm4062 = vweird.f32 %v2463
        %v4063 = vadd.s32 %v4059, 3
        %v4064 = vand.u32 %v4063, 3
        %vm4065 = vcmp.lt.s32.totalorder %v4064, 2
        %vm4066 = vcmp.eq.s32.totalorder %v4064, 0
        %v4067 = vxor.u32 %v4061, 2147483648
        %v4068 = vsel %vm4066, %v4060, %v4067
        %vm4069 = vcmp.eq.s32.totalorder %v4064, 2
        %v4070 = vxor.u32 %v4060, 2147483648
        %v4071 = vsel %vm4069, %v4070, %v4061
        %v4072 = vsel %vm4065, %v4068, %v4071
        %v4073 = vsel %vm4062, nan, %v4072
        %v4074 = vand.u32 2147483647, %v2464
        %vm4075 = vcmp.le.f32.partialorder %v4074, 0.7853982
        %vm4076 = vcmp.lt.s32.totalorder %v2464, 0
        %v4077 = vand.u32 %v2464, 2139095040
        %v4078 = vshrl.u32 %v4077, 23
        %v4079 = vsub.s32 %v4078, 127
        %v4080 = vand.u32 2147483647, %v2464
        %v4081 = vand.u32 %v4080, 8388607
        %v4082 = vor.u32 %v4081, 8388608
        %v4083 = vsub.s32 0, %v4082
        %v4084 = vadd.s32 %v4079, 1
        %vm4085 = vcmp.gt.s32.totalorder %v4084, 0
        %v4086 = vsel %vm4085, %v4084, 0
        %v4087 = vshrl.u32 %v4086, 5
        %v4088 = vand.u32 %v4086, 31
        %v4089 = vsub.s32 32, %v4088
        %v4090 = vshrl.u32 683565275, %v4089
        %v4091 = vshll.u32 683565275, %v4088
        %v4092 = vshrl.u32 2475754826, %v4089
        %v4093 = vor.u32 %v4091, %v4092
        %v4094 = vshll.u32 2475754826, %v4088
        %v4095 = vshrl.u32 2131351028, %v4089
        %v4096 = vor.u32 %v4094, %v4095
        %v4097 = vshll.u32 2131351028, %v4088
        %v4098 = vshrl.u32 2102212464, %v4089
        %v4099 = vor.u32 %v4097, %v4098
        %v4100 = vshll.u32 2102212464, %v4088
        %v4101 = vshrl.u32 920167782, %v4089
        %v4102 = vor.u32 %v4100, %v4101
        %v4103 = vshll.u32 920167782, %v4088
        %v4104 = vshrl.u32 1326507024, %v4089
        %v4105 = vor.u32 %v4103, %v4104
        %vm4106 = vcmp.lt.s32.totalorder %v4087, 1
        %vm4107 = vcmp.lt.s32.totalorder %v4087, 2
        %vm4108 = vcmp.lt.s32.totalorder %v4087, 3
        %vm4109 = vcmp.lt.s32.totalorder %v4087, 4
        %v4110 = vsel %vm4106, %v4090, %v4093
        %v4111 = vsel %vm4109, %v4099, 2102212464
        %v4112 = vsel %vm4108, %v4096, %v4111
        %v4113 = vsel %vm4107, %v4110, %v4112
        %v4114 = vsel %vm4106, %v4093, %v4096
        %v4115 = vsel %vm4109, %v4102, 920167782
        %v4116 = vsel %vm4108, %v4099, %v4115
        %v4117 = vsel %vm4107, %v4114, %v4116
        %v4118 = vsel %vm4106, %v4096, %v4099
        %v4119 = vsel %vm4109, %v4105, 1326507024
        %v4120 = vsel %vm4108, %v4102, %v4119
        %v4121 = vsel %vm4107, %v4118, %v4120
        %v4122 = vshll.u32 %v4082, 8
        %v4123 = vmul.u32.u64.compose %v4122, %v4121
        %v4124 = vextract.low.u32 %v4123
        %v4125 = vextract.high.u32 %v4123
        %v4126 = vmul.u32.u64.compose %v4122, %v4117
        %v4127 = vextract.low.u32 %v4126
        %v4128 = vextract.high.u32 %v4126
        %v4129 = vmul.u32 %v4122, %v4113
        %v4130 = vadd.s32 %v4125, %v4127
        %vm4131 = vc.u32 %v4125, %v4127
        %v4132 = vadd.s32 %v4128, 1
        %v4133 = vsel %vm4131, %v4132, %v4128
        %v4134 = vadd.s32 %v4129, %v4133
        %v4135 = vadd.s32 %v4134, 536870912
        %v4136 = vshrl.u32 %v4135, 30
        %v4137 = vshll.u32 %v4136, 30
        %v4138 = vsub.s32 %v4134, %v4137
        %vm4139 = vcmp.lt.s32.totalorder %v4138, 0
        %v4140 = vsub.s32 0, %v4138
        %v4141 = vsel %vm4139, %v4140, %v4138
        %v4142 = vclz %v4141
        %v4143 = vsub.s32 %v4142, 2
        %vm4144 = vcmp.gt.s32.totalorder 0, %v4143
        %v4145 = vsel %vm4144, 0, %v4143
        %v4146 = vsub.s32 32, %v4145
        %v4147 = vshll.u32 %v4138, %v4145
        %v4148 = vshrl.u32 %v4130, %v4146
        %v4149 = vor.u32 %v4147, %v4148
        %v4150 = vsub.s32 4294967266, %v4145
        %v4151 = vadd.s32 %v4150, 127
        %v4152 = vshll.u32 %v4151, 23
        %v4153 = vor.u32 4788187, %v4152
        %v4154 = vand.u32 2147483647, %v4153
        %v4156 = vcvt.s32.f32 %v4149
        %v4157 = vmul.f32 %v4156, %v4154
        %v4158 = vxor.u32 %v4157, 2147483648
        %v4159 = vsel %vm4076, %v4158, %v4157
        %v4160 = vsub.s32 4, %v4136
        %v4161 = vsel %vm4076, %v4160, %v4136
        %v4162 = vsel %vm4075, %v2464, %v4159
        %v4163 = vsel %vm4075, 0, %v4161
        %v4164 = vcosq.f32.pop %v4162
        %v4165 = vsinq.f32.pop %v4162
        %vm4166 = vweird.f32 %v2464
        %v4167 = vadd.s32 %v4163, 3
        %v4168 = vand.u32 %v4167, 3
        %vm4169 = vcmp.lt.s32.totalorder %v4168, 2
        %vm4170 = vcmp.eq.s32.totalorder %v4168, 0
        %v4171 = vxor.u32 %v4165, 2147483648
        %v4172 = vsel %vm4170, %v4164, %v4171
        %vm4173 = vcmp.eq.s32.totalorder %v4168, 2
        %v4174 = vxor.u32 %v4164, 2147483648
        %v4175 = vsel %vm4173, %v4174, %v4165
        %v4176 = vsel %vm4169, %v4172, %v4175
        %v4177 = vsel %vm4166, nan, %v4176
        %v4178 = vand.u32 2147483647, %v2465
        %vm4179 = vcmp.le.f32.partialorder %v4178, 0.7853982
        %vm4180 = vcmp.lt.s32.totalorder %v2465, 0
        %v4181 = vand.u32 %v2465, 2139095040
        %v4182 = vshrl.u32 %v4181, 23
        %v4183 = vsub.s32 %v4182, 127
        %v4184 = vand.u32 2147483647, %v2465
        %v4185 = vand.u32 %v4184, 8388607
        %v4186 = vor.u32 %v4185, 8388608
        %v4187 = vsub.s32 0, %v4186
        %v4188 = vadd.s32 %v4183, 1
        %vm4189 = vcmp.gt.s32.totalorder %v4188, 0
        %v4190 = vsel %vm4189, %v4188, 0
        %v4191 = vshrl.u32 %v4190, 5
        %v4192 = vand.u32 %v4190, 31
        %v4193 = vsub.s32 32, %v4192
        %v4194 = vshrl.u32 683565275, %v4193
        %v4195 = vshll.u32 683565275, %v4192
        %v4196 = vshrl.u32 2475754826, %v4193
        %v4197 = vor.u32 %v4195, %v4196
        %v4198 = vshll.u32 2475754826, %v4192
        %v4199 = vshrl.u32 2131351028, %v4193
        %v4200 = vor.u32 %v4198, %v4199
        %v4201 = vshll.u32 2131351028, %v4192
        %v4202 = vshrl.u32 2102212464, %v4193
        %v4203 = vor.u32 %v4201, %v4202
        %v4204 = vshll.u32 2102212464, %v4192
        %v4205 = vshrl.u32 920167782, %v4193
        %v4206 = vor.u32 %v4204, %v4205
        %v4207 = vshll.u32 920167782, %v4192
        %v4208 = vshrl.u32 1326507024, %v4193
        %v4209 = vor.u32 %v4207, %v4208
        %vm4210 = vcmp.lt.s32.totalorder %v4191, 1
        %vm4211 = vcmp.lt.s32.totalorder %v4191, 2
        %vm4212 = vcmp.lt.s32.totalorder %v4191, 3
        %vm4213 = vcmp.lt.s32.totalorder %v4191, 4
        %v4214 = vsel %vm4210, %v4194, %v4197
        %v4215 = vsel %vm4213, %v4203, 2102212464
        %v4216 = vsel %vm4212, %v4200, %v4215
        %v4217 = vsel %vm4211, %v4214, %v4216
        %v4218 = vsel %vm4210, %v4197, %v4200
        %v4219 = vsel %vm4213, %v4206, 920167782
        %v4220 = vsel %vm4212, %v4203, %v4219
        %v4221 = vsel %vm4211, %v4218, %v4220
        %v4222 = vsel %vm4210, %v4200, %v4203
        %v4223 = vsel %vm4213, %v4209, 1326507024
        %v4224 = vsel %vm4212, %v4206, %v4223
        %v4225 = vsel %vm4211, %v4222, %v4224
        %v4226 = vshll.u32 %v4186, 8
        %v4227 = vmul.u32.u64.compose %v4226, %v4225
        %v4228 = vextract.low.u32 %v4227
        %v4229 = vextract.high.u32 %v4227
        %v4230 = vmul.u32.u64.compose %v4226, %v4221
        %v4231 = vextract.low.u32 %v4230
        %v4232 = vextract.high.u32 %v4230
        %v4233 = vmul.u32 %v4226, %v4217
        %v4234 = vadd.s32 %v4229, %v4231
        %vm4235 = vc.u32 %v4229, %v4231
        %v4236 = vadd.s32 %v4232, 1
        %v4237 = vsel %vm4235, %v4236, %v4232
        %v4238 = vadd.s32 %v4233, %v4237
        %v4239 = vadd.s32 %v4238, 536870912
        %v4240 = vshrl.u32 %v4239, 30
        %v4241 = vshll.u32 %v4240, 30
        %v4242 = vsub.s32 %v4238, %v4241
        %vm4243 = vcmp.lt.s32.totalorder %v4242, 0
        %v4244 = vsub.s32 0, %v4242
        %v4245 = vsel %vm4243, %v4244, %v4242
        %v4246 = vclz %v4245
        %v4247 = vsub.s32 %v4246, 2
        %vm4248 = vcmp.gt.s32.totalorder 0, %v4247
        %v4249 = vsel %vm4248, 0, %v4247
        %v4250 = vsub.s32 32, %v4249
        %v4251 = vshll.u32 %v4242, %v4249
        %v4252 = vshrl.u32 %v4234, %v4250
        %v4253 = vor.u32 %v4251, %v4252
        %v4254 = vsub.s32 4294967266, %v4249
        %v4255 = vadd.s32 %v4254, 127
        %v4256 = vshll.u32 %v4255, 23
        %v4257 = vor.u32 4788187, %v4256
        %v4258 = vand.u32 2147483647, %v4257
        %v4260 = vcvt.s32.f32 %v4253
        %v4261 = vmul.f32 %v4260, %v4258
        %v4262 = vxor.u32 %v4261, 2147483648
        %v4263 = vsel %vm4180, %v4262, %v4261
        %v4264 = vsub.s32 4, %v4240
        %v4265 = vsel %vm4180, %v4264, %v4240
        %v4266 = vsel %vm4179, %v2465, %v4263
        %v4267 = vsel %vm4179, 0, %v4265
        %v4268 = vcosq.f32.pop %v4266
        %v4269 = vsinq.f32.pop %v4266
        %vm4270 = vweird.f32 %v2465
        %v4271 = vadd.s32 %v4267, 3
        %v4272 = vand.u32 %v4271, 3
        %vm4273 = vcmp.lt.s32.totalorder %v4272, 2
        %vm4274 = vcmp.eq.s32.totalorder %v4272, 0
        %v4275 = vxor.u32 %v4269, 2147483648
        %v4276 = vsel %vm4274, %v4268, %v4275
        %vm4277 = vcmp.eq.s32.totalorder %v4272, 2
        %v4278 = vxor.u32 %v4268, 2147483648
        %v4279 = vsel %vm4277, %v4278, %v4269
        %v4280 = vsel %vm4273, %v4276, %v4279
        %v4281 = vsel %vm4270, nan, %v4280
        %v4282 = vand.u32 2147483647, %v2466
        %vm4283 = vcmp.le.f32.partialorder %v4282, 0.7853982
        %vm4284 = vcmp.lt.s32.totalorder %v2466, 0
        %v4285 = vand.u32 %v2466, 2139095040
        %v4286 = vshrl.u32 %v4285, 23
        %v4287 = vsub.s32 %v4286, 127
        %v4288 = vand.u32 2147483647, %v2466
        %v4289 = vand.u32 %v4288, 8388607
        %v4290 = vor.u32 %v4289, 8388608
        %v4291 = vsub.s32 0, %v4290
        %v4292 = vadd.s32 %v4287, 1
        %vm4293 = vcmp.gt.s32.totalorder %v4292, 0
        %v4294 = vsel %vm4293, %v4292, 0
        %v4295 = vshrl.u32 %v4294, 5
        %v4296 = vand.u32 %v4294, 31
        %v4297 = vsub.s32 32, %v4296
        %v4298 = vshrl.u32 683565275, %v4297
        %v4299 = vshll.u32 683565275, %v4296
        %v4300 = vshrl.u32 2475754826, %v4297
        %v4301 = vor.u32 %v4299, %v4300
        %v4302 = vshll.u32 2475754826, %v4296
        %v4303 = vshrl.u32 2131351028, %v4297
        %v4304 = vor.u32 %v4302, %v4303
        %v4305 = vshll.u32 2131351028, %v4296
        %v4306 = vshrl.u32 2102212464, %v4297
        %v4307 = vor.u32 %v4305, %v4306
        %v4308 = vshll.u32 2102212464, %v4296
        %v4309 = vshrl.u32 920167782, %v4297
        %v4310 = vor.u32 %v4308, %v4309
        %v4311 = vshll.u32 920167782, %v4296
        %v4312 = vshrl.u32 1326507024, %v4297
        %v4313 = vor.u32 %v4311, %v4312
        %vm4314 = vcmp.lt.s32.totalorder %v4295, 1
        %vm4315 = vcmp.lt.s32.totalorder %v4295, 2
        %vm4316 = vcmp.lt.s32.totalorder %v4295, 3
        %vm4317 = vcmp.lt.s32.totalorder %v4295, 4
        %v4318 = vsel %vm4314, %v4298, %v4301
        %v4319 = vsel %vm4317, %v4307, 2102212464
        %v4320 = vsel %vm4316, %v4304, %v4319
        %v4321 = vsel %vm4315, %v4318, %v4320
        %v4322 = vsel %vm4314, %v4301, %v4304
        %v4323 = vsel %vm4317, %v4310, 920167782
        %v4324 = vsel %vm4316, %v4307, %v4323
        %v4325 = vsel %vm4315, %v4322, %v4324
        %v4326 = vsel %vm4314, %v4304, %v4307
        %v4327 = vsel %vm4317, %v4313, 1326507024
        %v4328 = vsel %vm4316, %v4310, %v4327
        %v4329 = vsel %vm4315, %v4326, %v4328
        %v4330 = vshll.u32 %v4290, 8
        %v4331 = vmul.u32.u64.compose %v4330, %v4329
        %v4332 = vextract.low.u32 %v4331
        %v4333 = vextract.high.u32 %v4331
        %v4334 = vmul.u32.u64.compose %v4330, %v4325
        %v4335 = vextract.low.u32 %v4334
        %v4336 = vextract.high.u32 %v4334
        %v4337 = vmul.u32 %v4330, %v4321
        %v4338 = vadd.s32 %v4333, %v4335
        %vm4339 = vc.u32 %v4333, %v4335
        %v4340 = vadd.s32 %v4336, 1
        %v4341 = vsel %vm4339, %v4340, %v4336
        %v4342 = vadd.s32 %v4337, %v4341
        %v4343 = vadd.s32 %v4342, 536870912
        %v4344 = vshrl.u32 %v4343, 30
        %v4345 = vshll.u32 %v4344, 30
        %v4346 = vsub.s32 %v4342, %v4345
        %vm4347 = vcmp.lt.s32.totalorder %v4346, 0
        %v4348 = vsub.s32 0, %v4346
        %v4349 = vsel %vm4347, %v4348, %v4346
        %v4350 = vclz %v4349
        %v4351 = vsub.s32 %v4350, 2
        %vm4352 = vcmp.gt.s32.totalorder 0, %v4351
        %v4353 = vsel %vm4352, 0, %v4351
        %v4354 = vsub.s32 32, %v4353
        %v4355 = vshll.u32 %v4346, %v4353
        %v4356 = vshrl.u32 %v4338, %v4354
        %v4357 = vor.u32 %v4355, %v4356
        %v4358 = vsub.s32 4294967266, %v4353
        %v4359 = vadd.s32 %v4358, 127
        %v4360 = vshll.u32 %v4359, 23
        %v4361 = vor.u32 4788187, %v4360
        %v4362 = vand.u32 2147483647, %v4361
        %v4364 = vcvt.s32.f32 %v4357
        %v4365 = vmul.f32 %v4364, %v4362
        %v4366 = vxor.u32 %v4365, 2147483648
        %v4367 = vsel %vm4284, %v4366, %v4365
        %v4368 = vsub.s32 4, %v4344
        %v4369 = vsel %vm4284, %v4368, %v4344
        %v4370 = vsel %vm4283, %v2466, %v4367
        %v4371 = vsel %vm4283, 0, %v4369
        %v4372 = vcosq.f32.pop %v4370
        %v4373 = vsinq.f32.pop %v4370
        %vm4374 = vweird.f32 %v2466
        %v4375 = vadd.s32 %v4371, 3
        %v4376 = vand.u32 %v4375, 3
        %vm4377 = vcmp.lt.s32.totalorder %v4376, 2
        %vm4378 = vcmp.eq.s32.totalorder %v4376, 0
        %v4379 = vxor.u32 %v4373, 2147483648
        %v4380 = vsel %vm4378, %v4372, %v4379
        %vm4381 = vcmp.eq.s32.totalorder %v4376, 2
        %v4382 = vxor.u32 %v4372, 2147483648
        %v4383 = vsel %vm4381, %v4382, %v4373
        %v4384 = vsel %vm4377, %v4380, %v4383
        %v4385 = vsel %vm4374, nan, %v4384
        %v4386 = vand.u32 2147483647, %v2467
        %vm4387 = vcmp.le.f32.partialorder %v4386, 0.7853982
        %vm4388 = vcmp.lt.s32.totalorder %v2467, 0
        %v4389 = vand.u32 %v2467, 2139095040
        %v4390 = vshrl.u32 %v4389, 23
        %v4391 = vsub.s32 %v4390, 127
        %v4392 = vand.u32 2147483647, %v2467
        %v4393 = vand.u32 %v4392, 8388607
        %v4394 = vor.u32 %v4393, 8388608
        %v4395 = vsub.s32 0, %v4394
        %v4396 = vadd.s32 %v4391, 1
        %vm4397 = vcmp.gt.s32.totalorder %v4396, 0
        %v4398 = vsel %vm4397, %v4396, 0
        %v4399 = vshrl.u32 %v4398, 5
        %v4400 = vand.u32 %v4398, 31
        %v4401 = vsub.s32 32, %v4400
        %v4402 = vshrl.u32 683565275, %v4401
        %v4403 = vshll.u32 683565275, %v4400
        %v4404 = vshrl.u32 2475754826, %v4401
        %v4405 = vor.u32 %v4403, %v4404
        %v4406 = vshll.u32 2475754826, %v4400
        %v4407 = vshrl.u32 2131351028, %v4401
        %v4408 = vor.u32 %v4406, %v4407
        %v4409 = vshll.u32 2131351028, %v4400
        %v4410 = vshrl.u32 2102212464, %v4401
        %v4411 = vor.u32 %v4409, %v4410
        %v4412 = vshll.u32 2102212464, %v4400
        %v4413 = vshrl.u32 920167782, %v4401
        %v4414 = vor.u32 %v4412, %v4413
        %v4415 = vshll.u32 920167782, %v4400
        %v4416 = vshrl.u32 1326507024, %v4401
        %v4417 = vor.u32 %v4415, %v4416
        %vm4418 = vcmp.lt.s32.totalorder %v4399, 1
        %vm4419 = vcmp.lt.s32.totalorder %v4399, 2
        %vm4420 = vcmp.lt.s32.totalorder %v4399, 3
        %vm4421 = vcmp.lt.s32.totalorder %v4399, 4
        %v4422 = vsel %vm4418, %v4402, %v4405
        %v4423 = vsel %vm4421, %v4411, 2102212464
        %v4424 = vsel %vm4420, %v4408, %v4423
        %v4425 = vsel %vm4419, %v4422, %v4424
        %v4426 = vsel %vm4418, %v4405, %v4408
        %v4427 = vsel %vm4421, %v4414, 920167782
        %v4428 = vsel %vm4420, %v4411, %v4427
        %v4429 = vsel %vm4419, %v4426, %v4428
        %v4430 = vsel %vm4418, %v4408, %v4411
        %v4431 = vsel %vm4421, %v4417, 1326507024
        %v4432 = vsel %vm4420, %v4414, %v4431
        %v4433 = vsel %vm4419, %v4430, %v4432
        %v4434 = vshll.u32 %v4394, 8
        %v4435 = vmul.u32.u64.compose %v4434, %v4433
        %v4436 = vextract.low.u32 %v4435
        %v4437 = vextract.high.u32 %v4435
        %v4438 = vmul.u32.u64.compose %v4434, %v4429
        %v4439 = vextract.low.u32 %v4438
        %v4440 = vextract.high.u32 %v4438
        %v4441 = vmul.u32 %v4434, %v4425
        %v4442 = vadd.s32 %v4437, %v4439
        %vm4443 = vc.u32 %v4437, %v4439
        %v4444 = vadd.s32 %v4440, 1
        %v4445 = vsel %vm4443, %v4444, %v4440
        %v4446 = vadd.s32 %v4441, %v4445
        %v4447 = vadd.s32 %v4446, 536870912
        %v4448 = vshrl.u32 %v4447, 30
        %v4449 = vshll.u32 %v4448, 30
        %v4450 = vsub.s32 %v4446, %v4449
        %vm4451 = vcmp.lt.s32.totalorder %v4450, 0
        %v4452 = vsub.s32 0, %v4450
        %v4453 = vsel %vm4451, %v4452, %v4450
        %v4454 = vclz %v4453
        %v4455 = vsub.s32 %v4454, 2
        %vm4456 = vcmp.gt.s32.totalorder 0, %v4455
        %v4457 = vsel %vm4456, 0, %v4455
        %v4458 = vsub.s32 32, %v4457
        %v4459 = vshll.u32 %v4450, %v4457
        %v4460 = vshrl.u32 %v4442, %v4458
        %v4461 = vor.u32 %v4459, %v4460
        %v4462 = vsub.s32 4294967266, %v4457
        %v4463 = vadd.s32 %v4462, 127
        %v4464 = vshll.u32 %v4463, 23
        %v4465 = vor.u32 4788187, %v4464
        %v4466 = vand.u32 2147483647, %v4465
        %v4468 = vcvt.s32.f32 %v4461
        %v4469 = vmul.f32 %v4468, %v4466
        %v4470 = vxor.u32 %v4469, 2147483648
        %v4471 = vsel %vm4388, %v4470, %v4469
        %v4472 = vsub.s32 4, %v4448
        %v4473 = vsel %vm4388, %v4472, %v4448
        %v4474 = vsel %vm4387, %v2467, %v4471
        %v4475 = vsel %vm4387, 0, %v4473
        %v4476 = vcosq.f32.pop %v4474
        %v4477 = vsinq.f32.pop %v4474
        %vm4478 = vweird.f32 %v2467
        %v4479 = vadd.s32 %v4475, 3
        %v4480 = vand.u32 %v4479, 3
        %vm4481 = vcmp.lt.s32.totalorder %v4480, 2
        %vm4482 = vcmp.eq.s32.totalorder %v4480, 0
        %v4483 = vxor.u32 %v4477, 2147483648
        %v4484 = vsel %vm4482, %v4476, %v4483
        %vm4485 = vcmp.eq.s32.totalorder %v4480, 2
        %v4486 = vxor.u32 %v4476, 2147483648
        %v4487 = vsel %vm4485, %v4486, %v4477
        %v4488 = vsel %vm4481, %v4484, %v4487
        %v4489 = vsel %vm4478, nan, %v4488
        %v4490 = vand.u32 2147483647, %v2468
        %vm4491 = vcmp.le.f32.partialorder %v4490, 0.7853982
        %vm4492 = vcmp.lt.s32.totalorder %v2468, 0
        %v4493 = vand.u32 %v2468, 2139095040
        %v4494 = vshrl.u32 %v4493, 23
        %v4495 = vsub.s32 %v4494, 127
        %v4496 = vand.u32 2147483647, %v2468
        %v4497 = vand.u32 %v4496, 8388607
        %v4498 = vor.u32 %v4497, 8388608
        %v4499 = vsub.s32 0, %v4498
        %v4500 = vadd.s32 %v4495, 1
        %vm4501 = vcmp.gt.s32.totalorder %v4500, 0
        %v4502 = vsel %vm4501, %v4500, 0
        %v4503 = vshrl.u32 %v4502, 5
        %v4504 = vand.u32 %v4502, 31
        %v4505 = vsub.s32 32, %v4504
        %v4506 = vshrl.u32 683565275, %v4505
        %v4507 = vshll.u32 683565275, %v4504
        %v4508 = vshrl.u32 2475754826, %v4505
        %v4509 = vor.u32 %v4507, %v4508
        %v4510 = vshll.u32 2475754826, %v4504
        %v4511 = vshrl.u32 2131351028, %v4505
        %v4512 = vor.u32 %v4510, %v4511
        %v4513 = vshll.u32 2131351028, %v4504
        %v4514 = vshrl.u32 2102212464, %v4505
        %v4515 = vor.u32 %v4513, %v4514
        %v4516 = vshll.u32 2102212464, %v4504
        %v4517 = vshrl.u32 920167782, %v4505
        %v4518 = vor.u32 %v4516, %v4517
        %v4519 = vshll.u32 920167782, %v4504
        %v4520 = vshrl.u32 1326507024, %v4505
        %v4521 = vor.u32 %v4519, %v4520
        %vm4522 = vcmp.lt.s32.totalorder %v4503, 1
        %vm4523 = vcmp.lt.s32.totalorder %v4503, 2
        %vm4524 = vcmp.lt.s32.totalorder %v4503, 3
        %vm4525 = vcmp.lt.s32.totalorder %v4503, 4
        %v4526 = vsel %vm4522, %v4506, %v4509
        %v4527 = vsel %vm4525, %v4515, 2102212464
        %v4528 = vsel %vm4524, %v4512, %v4527
        %v4529 = vsel %vm4523, %v4526, %v4528
        %v4530 = vsel %vm4522, %v4509, %v4512
        %v4531 = vsel %vm4525, %v4518, 920167782
        %v4532 = vsel %vm4524, %v4515, %v4531
        %v4533 = vsel %vm4523, %v4530, %v4532
        %v4534 = vsel %vm4522, %v4512, %v4515
        %v4535 = vsel %vm4525, %v4521, 1326507024
        %v4536 = vsel %vm4524, %v4518, %v4535
        %v4537 = vsel %vm4523, %v4534, %v4536
        %v4538 = vshll.u32 %v4498, 8
        %v4539 = vmul.u32.u64.compose %v4538, %v4537
        %v4540 = vextract.low.u32 %v4539
        %v4541 = vextract.high.u32 %v4539
        %v4542 = vmul.u32.u64.compose %v4538, %v4533
        %v4543 = vextract.low.u32 %v4542
        %v4544 = vextract.high.u32 %v4542
        %v4545 = vmul.u32 %v4538, %v4529
        %v4546 = vadd.s32 %v4541, %v4543
        %vm4547 = vc.u32 %v4541, %v4543
        %v4548 = vadd.s32 %v4544, 1
        %v4549 = vsel %vm4547, %v4548, %v4544
        %v4550 = vadd.s32 %v4545, %v4549
        %v4551 = vadd.s32 %v4550, 536870912
        %v4552 = vshrl.u32 %v4551, 30
        %v4553 = vshll.u32 %v4552, 30
        %v4554 = vsub.s32 %v4550, %v4553
        %vm4555 = vcmp.lt.s32.totalorder %v4554, 0
        %v4556 = vsub.s32 0, %v4554
        %v4557 = vsel %vm4555, %v4556, %v4554
        %v4558 = vclz %v4557
        %v4559 = vsub.s32 %v4558, 2
        %vm4560 = vcmp.gt.s32.totalorder 0, %v4559
        %v4561 = vsel %vm4560, 0, %v4559
        %v4562 = vsub.s32 32, %v4561
        %v4563 = vshll.u32 %v4554, %v4561
        %v4564 = vshrl.u32 %v4546, %v4562
        %v4565 = vor.u32 %v4563, %v4564
        %v4566 = vsub.s32 4294967266, %v4561
        %v4567 = vadd.s32 %v4566, 127
        %v4568 = vshll.u32 %v4567, 23
        %v4569 = vor.u32 4788187, %v4568
        %v4570 = vand.u32 2147483647, %v4569
        %v4572 = vcvt.s32.f32 %v4565
        %v4573 = vmul.f32 %v4572, %v4570
        %v4574 = vxor.u32 %v4573, 2147483648
        %v4575 = vsel %vm4492, %v4574, %v4573
        %v4576 = vsub.s32 4, %v4552
        %v4577 = vsel %vm4492, %v4576, %v4552
        %v4578 = vsel %vm4491, %v2468, %v4575
        %v4579 = vsel %vm4491, 0, %v4577
        %v4580 = vcosq.f32.pop %v4578
        %v4581 = vsinq.f32.pop %v4578
        %vm4582 = vweird.f32 %v2468
        %v4583 = vadd.s32 %v4579, 3
        %v4584 = vand.u32 %v4583, 3
        %vm4585 = vcmp.lt.s32.totalorder %v4584, 2
        %vm4586 = vcmp.eq.s32.totalorder %v4584, 0
        %v4587 = vxor.u32 %v4581, 2147483648
        %v4588 = vsel %vm4586, %v4580, %v4587
        %vm4589 = vcmp.eq.s32.totalorder %v4584, 2
        %v4590 = vxor.u32 %v4580, 2147483648
        %v4591 = vsel %vm4589, %v4590, %v4581
        %v4592 = vsel %vm4585, %v4588, %v4591
        %v4593 = vsel %vm4582, nan, %v4592
        %4594 = vset.pattern.permute.xlu0 1
        %4595 = vperm.xlu0 %4594, %v2231
        %v4596 = vpop.permute.xlu0 %4595
        %4598 = vset.pattern.permute.xlu0 1
        %4599 = vperm.xlu0 %4598, %v2232
        %v4600 = vpop.permute.xlu0 %4599
        %4602 = vset.pattern.permute.xlu0 1
        %4603 = vperm.xlu0 %4602, %v2233
        %v4604 = vpop.permute.xlu0 %4603
        %4606 = vset.pattern.permute.xlu0 1
        %4607 = vperm.xlu0 %4606, %v2234
        %v4608 = vpop.permute.xlu0 %4607
        %4610 = vset.pattern.permute.xlu0 1
        %4611 = vperm.xlu0 %4610, %v2235
        %v4612 = vpop.permute.xlu0 %4611
        %v4614 = vmul.f32 %v4596, %v2617
        %v4615 = vmul.f32 %v4596, %v2721
        %v4616 = vmul.f32 %v4596, %v2825
        %v4617 = vmul.f32 %v4596, %v2929
        %v4618 = vmul.f32 %v4600, %v3033
        %v4619 = vmul.f32 %v4600, %v3137
        %v4620 = vmul.f32 %v4600, %v3241
        %v4621 = vmul.f32 %v4600, %v3345
        %v4622 = vmul.f32 %v4604, %v3449
        %v4623 = vmul.f32 %v4604, %v3553
        %v4624 = vmul.f32 %v4604, %v3657
        %v4625 = vmul.f32 %v4604, %v3761
        %v4626 = vmul.f32 %v4608, %v3865
        %v4627 = vmul.f32 %v4608, %v3969
        %v4628 = vmul.f32 %v4608, %v4073
        %v4629 = vmul.f32 %v4608, %v4177
        %v4630 = vmul.f32 %v4612, %v4281
        %v4631 = vmul.f32 %v4612, %v4385
        %v4632 = vmul.f32 %v4612, %v4489
        %v4633 = vmul.f32 %v4612, %v4593
        %v4634 = vadd.f32 %v2494, %v4614
        %v4635 = vadd.f32 %v2495, %v4615
        %v4636 = vadd.f32 %v2496, %v4616
        %v4637 = vadd.f32 %v2497, %v4617
        %v4638 = vadd.f32 %v2498, %v4618
        %v4639 = vadd.f32 %v2499, %v4619
        %v4640 = vadd.f32 %v2500, %v4620
        %v4641 = vadd.f32 %v2501, %v4621
        %v4642 = vadd.f32 %v2502, %v4622
        %v4643 = vadd.f32 %v2503, %v4623
        %v4644 = vadd.f32 %v2504, %v4624
        %v4645 = vadd.f32 %v2505, %v4625
        %v4646 = vadd.f32 %v2506, %v4626
        %v4647 = vadd.f32 %v2507, %v4627
        %v4648 = vadd.f32 %v2508, %v4628
        %v4649 = vadd.f32 %v2509, %v4629
        %v4650 = vadd.f32 %v2510, %v4630
        %v4651 = vadd.f32 %v2511, %v4631
        %v4652 = vadd.f32 %v2512, %v4632
        %v4653 = vadd.f32 %v2513, %v4633
        %v4654 = vand.u32 2147483647, %v2449
        %vm4655 = vcmp.le.f32.partialorder %v4654, 0.7853982
        %vm4656 = vcmp.lt.s32.totalorder %v2449, 0
        %v4657 = vand.u32 %v2449, 2139095040
        %v4658 = vshrl.u32 %v4657, 23
        %v4659 = vsub.s32 %v4658, 127
        %v4660 = vand.u32 2147483647, %v2449
        %v4661 = vand.u32 %v4660, 8388607
        %v4662 = vor.u32 %v4661, 8388608
        %v4663 = vsub.s32 0, %v4662
        %v4664 = vadd.s32 %v4659, 1
        %vm4665 = vcmp.gt.s32.totalorder %v4664, 0
        %v4666 = vsel %vm4665, %v4664, 0
        %v4667 = vshrl.u32 %v4666, 5
        %v4668 = vand.u32 %v4666, 31
        %v4669 = vsub.s32 32, %v4668
        %v4670 = vshrl.u32 683565275, %v4669
        %v4671 = vshll.u32 683565275, %v4668
        %v4672 = vshrl.u32 2475754826, %v4669
        %v4673 = vor.u32 %v4671, %v4672
        %v4674 = vshll.u32 2475754826, %v4668
        %v4675 = vshrl.u32 2131351028, %v4669
        %v4676 = vor.u32 %v4674, %v4675
        %v4677 = vshll.u32 2131351028, %v4668
        %v4678 = vshrl.u32 2102212464, %v4669
        %v4679 = vor.u32 %v4677, %v4678
        %v4680 = vshll.u32 2102212464, %v4668
        %v4681 = vshrl.u32 920167782, %v4669
        %v4682 = vor.u32 %v4680, %v4681
        %v4683 = vshll.u32 920167782, %v4668
        %v4684 = vshrl.u32 1326507024, %v4669
        %v4685 = vor.u32 %v4683, %v4684
        %vm4686 = vcmp.lt.s32.totalorder %v4667, 1
        %vm4687 = vcmp.lt.s32.totalorder %v4667, 2
        %vm4688 = vcmp.lt.s32.totalorder %v4667, 3
        %vm4689 = vcmp.lt.s32.totalorder %v4667, 4
        %v4690 = vsel %vm4686, %v4670, %v4673
        %v4691 = vsel %vm4689, %v4679, 2102212464
        %v4692 = vsel %vm4688, %v4676, %v4691
        %v4693 = vsel %vm4687, %v4690, %v4692
        %v4694 = vsel %vm4686, %v4673, %v4676
        %v4695 = vsel %vm4689, %v4682, 920167782
        %v4696 = vsel %vm4688, %v4679, %v4695
        %v4697 = vsel %vm4687, %v4694, %v4696
        %v4698 = vsel %vm4686, %v4676, %v4679
        %v4699 = vsel %vm4689, %v4685, 1326507024
        %v4700 = vsel %vm4688, %v4682, %v4699
        %v4701 = vsel %vm4687, %v4698, %v4700
        %v4702 = vshll.u32 %v4662, 8
        %v4703 = vmul.u32.u64.compose %v4702, %v4701
        %v4704 = vextract.low.u32 %v4703
        %v4705 = vextract.high.u32 %v4703
        %v4706 = vmul.u32.u64.compose %v4702, %v4697
        %v4707 = vextract.low.u32 %v4706
        %v4708 = vextract.high.u32 %v4706
        %v4709 = vmul.u32 %v4702, %v4693
        %v4710 = vadd.s32 %v4705, %v4707
        %vm4711 = vc.u32 %v4705, %v4707
        %v4712 = vadd.s32 %v4708, 1
        %v4713 = vsel %vm4711, %v4712, %v4708
        %v4714 = vadd.s32 %v4709, %v4713
        %v4715 = vadd.s32 %v4714, 536870912
        %v4716 = vshrl.u32 %v4715, 30
        %v4717 = vshll.u32 %v4716, 30
        %v4718 = vsub.s32 %v4714, %v4717
        %vm4719 = vcmp.lt.s32.totalorder %v4718, 0
        %v4720 = vsub.s32 0, %v4718
        %v4721 = vsel %vm4719, %v4720, %v4718
        %v4722 = vclz %v4721
        %v4723 = vsub.s32 %v4722, 2
        %vm4724 = vcmp.gt.s32.totalorder 0, %v4723
        %v4725 = vsel %vm4724, 0, %v4723
        %v4726 = vsub.s32 32, %v4725
        %v4727 = vshll.u32 %v4718, %v4725
        %v4728 = vshrl.u32 %v4710, %v4726
        %v4729 = vor.u32 %v4727, %v4728
        %v4730 = vsub.s32 4294967266, %v4725
        %v4731 = vadd.s32 %v4730, 127
        %v4732 = vshll.u32 %v4731, 23
        %v4733 = vor.u32 4788187, %v4732
        %v4734 = vand.u32 2147483647, %v4733
        %v4736 = vcvt.s32.f32 %v4729
        %v4737 = vmul.f32 %v4736, %v4734
        %v4738 = vxor.u32 %v4737, 2147483648
        %v4739 = vsel %vm4656, %v4738, %v4737
        %v4740 = vsub.s32 4, %v4716
        %v4741 = vsel %vm4656, %v4740, %v4716
        %v4742 = vsel %vm4655, %v2449, %v4739
        %v4743 = vsel %vm4655, 0, %v4741
        %v4744 = vcosq.f32.pop %v4742
        %v4745 = vsinq.f32.pop %v4742
        %vm4746 = vweird.f32 %v2449
        %v4747 = vand.u32 %v4743, 3
        %vm4748 = vcmp.lt.s32.totalorder %v4747, 2
        %vm4749 = vcmp.eq.s32.totalorder %v4747, 0
        %v4750 = vxor.u32 %v4745, 2147483648
        %v4751 = vsel %vm4749, %v4744, %v4750
        %vm4752 = vcmp.eq.s32.totalorder %v4747, 2
        %v4753 = vxor.u32 %v4744, 2147483648
        %v4754 = vsel %vm4752, %v4753, %v4745
        %v4755 = vsel %vm4748, %v4751, %v4754
        %v4756 = vsel %vm4746, nan, %v4755
        %v4757 = vand.u32 2147483647, %v2450
        %vm4758 = vcmp.le.f32.partialorder %v4757, 0.7853982
        %vm4759 = vcmp.lt.s32.totalorder %v2450, 0
        %v4760 = vand.u32 %v2450, 2139095040
        %v4761 = vshrl.u32 %v4760, 23
        %v4762 = vsub.s32 %v4761, 127
        %v4763 = vand.u32 2147483647, %v2450
        %v4764 = vand.u32 %v4763, 8388607
        %v4765 = vor.u32 %v4764, 8388608
        %v4766 = vsub.s32 0, %v4765
        %v4767 = vadd.s32 %v4762, 1
        %vm4768 = vcmp.gt.s32.totalorder %v4767, 0
        %v4769 = vsel %vm4768, %v4767, 0
        %v4770 = vshrl.u32 %v4769, 5
        %v4771 = vand.u32 %v4769, 31
        %v4772 = vsub.s32 32, %v4771
        %v4773 = vshrl.u32 683565275, %v4772
        %v4774 = vshll.u32 683565275, %v4771
        %v4775 = vshrl.u32 2475754826, %v4772
        %v4776 = vor.u32 %v4774, %v4775
        %v4777 = vshll.u32 2475754826, %v4771
        %v4778 = vshrl.u32 2131351028, %v4772
        %v4779 = vor.u32 %v4777, %v4778
        %v4780 = vshll.u32 2131351028, %v4771
        %v4781 = vshrl.u32 2102212464, %v4772
        %v4782 = vor.u32 %v4780, %v4781
        %v4783 = vshll.u32 2102212464, %v4771
        %v4784 = vshrl.u32 920167782, %v4772
        %v4785 = vor.u32 %v4783, %v4784
        %v4786 = vshll.u32 920167782, %v4771
        %v4787 = vshrl.u32 1326507024, %v4772
        %v4788 = vor.u32 %v4786, %v4787
        %vm4789 = vcmp.lt.s32.totalorder %v4770, 1
        %vm4790 = vcmp.lt.s32.totalorder %v4770, 2
        %vm4791 = vcmp.lt.s32.totalorder %v4770, 3
        %vm4792 = vcmp.lt.s32.totalorder %v4770, 4
        %v4793 = vsel %vm4789, %v4773, %v4776
        %v4794 = vsel %vm4792, %v4782, 2102212464
        %v4795 = vsel %vm4791, %v4779, %v4794
        %v4796 = vsel %vm4790, %v4793, %v4795
        %v4797 = vsel %vm4789, %v4776, %v4779
        %v4798 = vsel %vm4792, %v4785, 920167782
        %v4799 = vsel %vm4791, %v4782, %v4798
        %v4800 = vsel %vm4790, %v4797, %v4799
        %v4801 = vsel %vm4789, %v4779, %v4782
        %v4802 = vsel %vm4792, %v4788, 1326507024
        %v4803 = vsel %vm4791, %v4785, %v4802
        %v4804 = vsel %vm4790, %v4801, %v4803
        %v4805 = vshll.u32 %v4765, 8
        %v4806 = vmul.u32.u64.compose %v4805, %v4804
        %v4807 = vextract.low.u32 %v4806
        %v4808 = vextract.high.u32 %v4806
        %v4809 = vmul.u32.u64.compose %v4805, %v4800
        %v4810 = vextract.low.u32 %v4809
        %v4811 = vextract.high.u32 %v4809
        %v4812 = vmul.u32 %v4805, %v4796
        %v4813 = vadd.s32 %v4808, %v4810
        %vm4814 = vc.u32 %v4808, %v4810
        %v4815 = vadd.s32 %v4811, 1
        %v4816 = vsel %vm4814, %v4815, %v4811
        %v4817 = vadd.s32 %v4812, %v4816
        %v4818 = vadd.s32 %v4817, 536870912
        %v4819 = vshrl.u32 %v4818, 30
        %v4820 = vshll.u32 %v4819, 30
        %v4821 = vsub.s32 %v4817, %v4820
        %vm4822 = vcmp.lt.s32.totalorder %v4821, 0
        %v4823 = vsub.s32 0, %v4821
        %v4824 = vsel %vm4822, %v4823, %v4821
        %v4825 = vclz %v4824
        %v4826 = vsub.s32 %v4825, 2
        %vm4827 = vcmp.gt.s32.totalorder 0, %v4826
        %v4828 = vsel %vm4827, 0, %v4826
        %v4829 = vsub.s32 32, %v4828
        %v4830 = vshll.u32 %v4821, %v4828
        %v4831 = vshrl.u32 %v4813, %v4829
        %v4832 = vor.u32 %v4830, %v4831
        %v4833 = vsub.s32 4294967266, %v4828
        %v4834 = vadd.s32 %v4833, 127
        %v4835 = vshll.u32 %v4834, 23
        %v4836 = vor.u32 4788187, %v4835
        %v4837 = vand.u32 2147483647, %v4836
        %v4839 = vcvt.s32.f32 %v4832
        %v4840 = vmul.f32 %v4839, %v4837
        %v4841 = vxor.u32 %v4840, 2147483648
        %v4842 = vsel %vm4759, %v4841, %v4840
        %v4843 = vsub.s32 4, %v4819
        %v4844 = vsel %vm4759, %v4843, %v4819
        %v4845 = vsel %vm4758, %v2450, %v4842
        %v4846 = vsel %vm4758, 0, %v4844
        %v4847 = vcosq.f32.pop %v4845
        %v4848 = vsinq.f32.pop %v4845
        %vm4849 = vweird.f32 %v2450
        %v4850 = vand.u32 %v4846, 3
        %vm4851 = vcmp.lt.s32.totalorder %v4850, 2
        %vm4852 = vcmp.eq.s32.totalorder %v4850, 0
        %v4853 = vxor.u32 %v4848, 2147483648
        %v4854 = vsel %vm4852, %v4847, %v4853
        %vm4855 = vcmp.eq.s32.totalorder %v4850, 2
        %v4856 = vxor.u32 %v4847, 2147483648
        %v4857 = vsel %vm4855, %v4856, %v4848
        %v4858 = vsel %vm4851, %v4854, %v4857
        %v4859 = vsel %vm4849, nan, %v4858
        %v4860 = vand.u32 2147483647, %v2451
        %vm4861 = vcmp.le.f32.partialorder %v4860, 0.7853982
        %vm4862 = vcmp.lt.s32.totalorder %v2451, 0
        %v4863 = vand.u32 %v2451, 2139095040
        %v4864 = vshrl.u32 %v4863, 23
        %v4865 = vsub.s32 %v4864, 127
        %v4866 = vand.u32 2147483647, %v2451
        %v4867 = vand.u32 %v4866, 8388607
        %v4868 = vor.u32 %v4867, 8388608
        %v4869 = vsub.s32 0, %v4868
        %v4870 = vadd.s32 %v4865, 1
        %vm4871 = vcmp.gt.s32.totalorder %v4870, 0
        %v4872 = vsel %vm4871, %v4870, 0
        %v4873 = vshrl.u32 %v4872, 5
        %v4874 = vand.u32 %v4872, 31
        %v4875 = vsub.s32 32, %v4874
        %v4876 = vshrl.u32 683565275, %v4875
        %v4877 = vshll.u32 683565275, %v4874
        %v4878 = vshrl.u32 2475754826, %v4875
        %v4879 = vor.u32 %v4877, %v4878
        %v4880 = vshll.u32 2475754826, %v4874
        %v4881 = vshrl.u32 2131351028, %v4875
        %v4882 = vor.u32 %v4880, %v4881
        %v4883 = vshll.u32 2131351028, %v4874
        %v4884 = vshrl.u32 2102212464, %v4875
        %v4885 = vor.u32 %v4883, %v4884
        %v4886 = vshll.u32 2102212464, %v4874
        %v4887 = vshrl.u32 920167782, %v4875
        %v4888 = vor.u32 %v4886, %v4887
        %v4889 = vshll.u32 920167782, %v4874
        %v4890 = vshrl.u32 1326507024, %v4875
        %v4891 = vor.u32 %v4889, %v4890
        %vm4892 = vcmp.lt.s32.totalorder %v4873, 1
        %vm4893 = vcmp.lt.s32.totalorder %v4873, 2
        %vm4894 = vcmp.lt.s32.totalorder %v4873, 3
        %vm4895 = vcmp.lt.s32.totalorder %v4873, 4
        %v4896 = vsel %vm4892, %v4876, %v4879
        %v4897 = vsel %vm4895, %v4885, 2102212464
        %v4898 = vsel %vm4894, %v4882, %v4897
        %v4899 = vsel %vm4893, %v4896, %v4898
        %v4900 = vsel %vm4892, %v4879, %v4882
        %v4901 = vsel %vm4895, %v4888, 920167782
        %v4902 = vsel %vm4894, %v4885, %v4901
        %v4903 = vsel %vm4893, %v4900, %v4902
        %v4904 = vsel %vm4892, %v4882, %v4885
        %v4905 = vsel %vm4895, %v4891, 1326507024
        %v4906 = vsel %vm4894, %v4888, %v4905
        %v4907 = vsel %vm4893, %v4904, %v4906
        %v4908 = vshll.u32 %v4868, 8
        %v4909 = vmul.u32.u64.compose %v4908, %v4907
        %v4910 = vextract.low.u32 %v4909
        %v4911 = vextract.high.u32 %v4909
        %v4912 = vmul.u32.u64.compose %v4908, %v4903
        %v4913 = vextract.low.u32 %v4912
        %v4914 = vextract.high.u32 %v4912
        %v4915 = vmul.u32 %v4908, %v4899
        %v4916 = vadd.s32 %v4911, %v4913
        %vm4917 = vc.u32 %v4911, %v4913
        %v4918 = vadd.s32 %v4914, 1
        %v4919 = vsel %vm4917, %v4918, %v4914
        %v4920 = vadd.s32 %v4915, %v4919
        %v4921 = vadd.s32 %v4920, 536870912
        %v4922 = vshrl.u32 %v4921, 30
        %v4923 = vshll.u32 %v4922, 30
        %v4924 = vsub.s32 %v4920, %v4923
        %vm4925 = vcmp.lt.s32.totalorder %v4924, 0
        %v4926 = vsub.s32 0, %v4924
        %v4927 = vsel %vm4925, %v4926, %v4924
        %v4928 = vclz %v4927
        %v4929 = vsub.s32 %v4928, 2
        %vm4930 = vcmp.gt.s32.totalorder 0, %v4929
        %v4931 = vsel %vm4930, 0, %v4929
        %v4932 = vsub.s32 32, %v4931
        %v4933 = vshll.u32 %v4924, %v4931
        %v4934 = vshrl.u32 %v4916, %v4932
        %v4935 = vor.u32 %v4933, %v4934
        %v4936 = vsub.s32 4294967266, %v4931
        %v4937 = vadd.s32 %v4936, 127
        %v4938 = vshll.u32 %v4937, 23
        %v4939 = vor.u32 4788187, %v4938
        %v4940 = vand.u32 2147483647, %v4939
        %v4942 = vcvt.s32.f32 %v4935
        %v4943 = vmul.f32 %v4942, %v4940
        %v4944 = vxor.u32 %v4943, 2147483648
        %v4945 = vsel %vm4862, %v4944, %v4943
        %v4946 = vsub.s32 4, %v4922
        %v4947 = vsel %vm4862, %v4946, %v4922
        %v4948 = vsel %vm4861, %v2451, %v4945
        %v4949 = vsel %vm4861, 0, %v4947
        %v4950 = vcosq.f32.pop %v4948
        %v4951 = vsinq.f32.pop %v4948
        %vm4952 = vweird.f32 %v2451
        %v4953 = vand.u32 %v4949, 3
        %vm4954 = vcmp.lt.s32.totalorder %v4953, 2
        %vm4955 = vcmp.eq.s32.totalorder %v4953, 0
        %v4956 = vxor.u32 %v4951, 2147483648
        %v4957 = vsel %vm4955, %v4950, %v4956
        %vm4958 = vcmp.eq.s32.totalorder %v4953, 2
        %v4959 = vxor.u32 %v4950, 2147483648
        %v4960 = vsel %vm4958, %v4959, %v4951
        %v4961 = vsel %vm4954, %v4957, %v4960
        %v4962 = vsel %vm4952, nan, %v4961
        %v4963 = vand.u32 2147483647, %v2452
        %vm4964 = vcmp.le.f32.partialorder %v4963, 0.7853982
        %vm4965 = vcmp.lt.s32.totalorder %v2452, 0
        %v4966 = vand.u32 %v2452, 2139095040
        %v4967 = vshrl.u32 %v4966, 23
        %v4968 = vsub.s32 %v4967, 127
        %v4969 = vand.u32 2147483647, %v2452
        %v4970 = vand.u32 %v4969, 8388607
        %v4971 = vor.u32 %v4970, 8388608
        %v4972 = vsub.s32 0, %v4971
        %v4973 = vadd.s32 %v4968, 1
        %vm4974 = vcmp.gt.s32.totalorder %v4973, 0
        %v4975 = vsel %vm4974, %v4973, 0
        %v4976 = vshrl.u32 %v4975, 5
        %v4977 = vand.u32 %v4975, 31
        %v4978 = vsub.s32 32, %v4977
        %v4979 = vshrl.u32 683565275, %v4978
        %v4980 = vshll.u32 683565275, %v4977
        %v4981 = vshrl.u32 2475754826, %v4978
        %v4982 = vor.u32 %v4980, %v4981
        %v4983 = vshll.u32 2475754826, %v4977
        %v4984 = vshrl.u32 2131351028, %v4978
        %v4985 = vor.u32 %v4983, %v4984
        %v4986 = vshll.u32 2131351028, %v4977
        %v4987 = vshrl.u32 2102212464, %v4978
        %v4988 = vor.u32 %v4986, %v4987
        %v4989 = vshll.u32 2102212464, %v4977
        %v4990 = vshrl.u32 920167782, %v4978
        %v4991 = vor.u32 %v4989, %v4990
        %v4992 = vshll.u32 920167782, %v4977
        %v4993 = vshrl.u32 1326507024, %v4978
        %v4994 = vor.u32 %v4992, %v4993
        %vm4995 = vcmp.lt.s32.totalorder %v4976, 1
        %vm4996 = vcmp.lt.s32.totalorder %v4976, 2
        %vm4997 = vcmp.lt.s32.totalorder %v4976, 3
        %vm4998 = vcmp.lt.s32.totalorder %v4976, 4
        %v4999 = vsel %vm4995, %v4979, %v4982
        %v5000 = vsel %vm4998, %v4988, 2102212464
        %v5001 = vsel %vm4997, %v4985, %v5000
        %v5002 = vsel %vm4996, %v4999, %v5001
        %v5003 = vsel %vm4995, %v4982, %v4985
        %v5004 = vsel %vm4998, %v4991, 920167782
        %v5005 = vsel %vm4997, %v4988, %v5004
        %v5006 = vsel %vm4996, %v5003, %v5005
        %v5007 = vsel %vm4995, %v4985, %v4988
        %v5008 = vsel %vm4998, %v4994, 1326507024
        %v5009 = vsel %vm4997, %v4991, %v5008
        %v5010 = vsel %vm4996, %v5007, %v5009
        %v5011 = vshll.u32 %v4971, 8
        %v5012 = vmul.u32.u64.compose %v5011, %v5010
        %v5013 = vextract.low.u32 %v5012
        %v5014 = vextract.high.u32 %v5012
        %v5015 = vmul.u32.u64.compose %v5011, %v5006
        %v5016 = vextract.low.u32 %v5015
        %v5017 = vextract.high.u32 %v5015
        %v5018 = vmul.u32 %v5011, %v5002
        %v5019 = vadd.s32 %v5014, %v5016
        %vm5020 = vc.u32 %v5014, %v5016
        %v5021 = vadd.s32 %v5017, 1
        %v5022 = vsel %vm5020, %v5021, %v5017
        %v5023 = vadd.s32 %v5018, %v5022
        %v5024 = vadd.s32 %v5023, 536870912
        %v5025 = vshrl.u32 %v5024, 30
        %v5026 = vshll.u32 %v5025, 30
        %v5027 = vsub.s32 %v5023, %v5026
        %vm5028 = vcmp.lt.s32.totalorder %v5027, 0
        %v5029 = vsub.s32 0, %v5027
        %v5030 = vsel %vm5028, %v5029, %v5027
        %v5031 = vclz %v5030
        %v5032 = vsub.s32 %v5031, 2
        %vm5033 = vcmp.gt.s32.totalorder 0, %v5032
        %v5034 = vsel %vm5033, 0, %v5032
        %v5035 = vsub.s32 32, %v5034
        %v5036 = vshll.u32 %v5027, %v5034
        %v5037 = vshrl.u32 %v5019, %v5035
        %v5038 = vor.u32 %v5036, %v5037
        %v5039 = vsub.s32 4294967266, %v5034
        %v5040 = vadd.s32 %v5039, 127
        %v5041 = vshll.u32 %v5040, 23
        %v5042 = vor.u32 4788187, %v5041
        %v5043 = vand.u32 2147483647, %v5042
        %v5045 = vcvt.s32.f32 %v5038
        %v5046 = vmul.f32 %v5045, %v5043
        %v5047 = vxor.u32 %v5046, 2147483648
        %v5048 = vsel %vm4965, %v5047, %v5046
        %v5049 = vsub.s32 4, %v5025
        %v5050 = vsel %vm4965, %v5049, %v5025
        %v5051 = vsel %vm4964, %v2452, %v5048
        %v5052 = vsel %vm4964, 0, %v5050
        %v5053 = vcosq.f32.pop %v5051
        %v5054 = vsinq.f32.pop %v5051
        %vm5055 = vweird.f32 %v2452
        %v5056 = vand.u32 %v5052, 3
        %vm5057 = vcmp.lt.s32.totalorder %v5056, 2
        %vm5058 = vcmp.eq.s32.totalorder %v5056, 0
        %v5059 = vxor.u32 %v5054, 2147483648
        %v5060 = vsel %vm5058, %v5053, %v5059
        %vm5061 = vcmp.eq.s32.totalorder %v5056, 2
        %v5062 = vxor.u32 %v5053, 2147483648
        %v5063 = vsel %vm5061, %v5062, %v5054
        %v5064 = vsel %vm5057, %v5060, %v5063
        %v5065 = vsel %vm5055, nan, %v5064
        %v5066 = vand.u32 2147483647, %v2453
        %vm5067 = vcmp.le.f32.partialorder %v5066, 0.7853982
        %vm5068 = vcmp.lt.s32.totalorder %v2453, 0
        %v5069 = vand.u32 %v2453, 2139095040
        %v5070 = vshrl.u32 %v5069, 23
        %v5071 = vsub.s32 %v5070, 127
        %v5072 = vand.u32 2147483647, %v2453
        %v5073 = vand.u32 %v5072, 8388607
        %v5074 = vor.u32 %v5073, 8388608
        %v5075 = vsub.s32 0, %v5074
        %v5076 = vadd.s32 %v5071, 1
        %vm5077 = vcmp.gt.s32.totalorder %v5076, 0
        %v5078 = vsel %vm5077, %v5076, 0
        %v5079 = vshrl.u32 %v5078, 5
        %v5080 = vand.u32 %v5078, 31
        %v5081 = vsub.s32 32, %v5080
        %v5082 = vshrl.u32 683565275, %v5081
        %v5083 = vshll.u32 683565275, %v5080
        %v5084 = vshrl.u32 2475754826, %v5081
        %v5085 = vor.u32 %v5083, %v5084
        %v5086 = vshll.u32 2475754826, %v5080
        %v5087 = vshrl.u32 2131351028, %v5081
        %v5088 = vor.u32 %v5086, %v5087
        %v5089 = vshll.u32 2131351028, %v5080
        %v5090 = vshrl.u32 2102212464, %v5081
        %v5091 = vor.u32 %v5089, %v5090
        %v5092 = vshll.u32 2102212464, %v5080
        %v5093 = vshrl.u32 920167782, %v5081
        %v5094 = vor.u32 %v5092, %v5093
        %v5095 = vshll.u32 920167782, %v5080
        %v5096 = vshrl.u32 1326507024, %v5081
        %v5097 = vor.u32 %v5095, %v5096
        %vm5098 = vcmp.lt.s32.totalorder %v5079, 1
        %vm5099 = vcmp.lt.s32.totalorder %v5079, 2
        %vm5100 = vcmp.lt.s32.totalorder %v5079, 3
        %vm5101 = vcmp.lt.s32.totalorder %v5079, 4
        %v5102 = vsel %vm5098, %v5082, %v5085
        %v5103 = vsel %vm5101, %v5091, 2102212464
        %v5104 = vsel %vm5100, %v5088, %v5103
        %v5105 = vsel %vm5099, %v5102, %v5104
        %v5106 = vsel %vm5098, %v5085, %v5088
        %v5107 = vsel %vm5101, %v5094, 920167782
        %v5108 = vsel %vm5100, %v5091, %v5107
        %v5109 = vsel %vm5099, %v5106, %v5108
        %v5110 = vsel %vm5098, %v5088, %v5091
        %v5111 = vsel %vm5101, %v5097, 1326507024
        %v5112 = vsel %vm5100, %v5094, %v5111
        %v5113 = vsel %vm5099, %v5110, %v5112
        %v5114 = vshll.u32 %v5074, 8
        %v5115 = vmul.u32.u64.compose %v5114, %v5113
        %v5116 = vextract.low.u32 %v5115
        %v5117 = vextract.high.u32 %v5115
        %v5118 = vmul.u32.u64.compose %v5114, %v5109
        %v5119 = vextract.low.u32 %v5118
        %v5120 = vextract.high.u32 %v5118
        %v5121 = vmul.u32 %v5114, %v5105
        %v5122 = vadd.s32 %v5117, %v5119
        %vm5123 = vc.u32 %v5117, %v5119
        %v5124 = vadd.s32 %v5120, 1
        %v5125 = vsel %vm5123, %v5124, %v5120
        %v5126 = vadd.s32 %v5121, %v5125
        %v5127 = vadd.s32 %v5126, 536870912
        %v5128 = vshrl.u32 %v5127, 30
        %v5129 = vshll.u32 %v5128, 30
        %v5130 = vsub.s32 %v5126, %v5129
        %vm5131 = vcmp.lt.s32.totalorder %v5130, 0
        %v5132 = vsub.s32 0, %v5130
        %v5133 = vsel %vm5131, %v5132, %v5130
        %v5134 = vclz %v5133
        %v5135 = vsub.s32 %v5134, 2
        %vm5136 = vcmp.gt.s32.totalorder 0, %v5135
        %v5137 = vsel %vm5136, 0, %v5135
        %v5138 = vsub.s32 32, %v5137
        %v5139 = vshll.u32 %v5130, %v5137
        %v5140 = vshrl.u32 %v5122, %v5138
        %v5141 = vor.u32 %v5139, %v5140
        %v5142 = vsub.s32 4294967266, %v5137
        %v5143 = vadd.s32 %v5142, 127
        %v5144 = vshll.u32 %v5143, 23
        %v5145 = vor.u32 4788187, %v5144
        %v5146 = vand.u32 2147483647, %v5145
        %v5148 = vcvt.s32.f32 %v5141
        %v5149 = vmul.f32 %v5148, %v5146
        %v5150 = vxor.u32 %v5149, 2147483648
        %v5151 = vsel %vm5068, %v5150, %v5149
        %v5152 = vsub.s32 4, %v5128
        %v5153 = vsel %vm5068, %v5152, %v5128
        %v5154 = vsel %vm5067, %v2453, %v5151
        %v5155 = vsel %vm5067, 0, %v5153
        %v5156 = vcosq.f32.pop %v5154
        %v5157 = vsinq.f32.pop %v5154
        %vm5158 = vweird.f32 %v2453
        %v5159 = vand.u32 %v5155, 3
        %vm5160 = vcmp.lt.s32.totalorder %v5159, 2
        %vm5161 = vcmp.eq.s32.totalorder %v5159, 0
        %v5162 = vxor.u32 %v5157, 2147483648
        %v5163 = vsel %vm5161, %v5156, %v5162
        %vm5164 = vcmp.eq.s32.totalorder %v5159, 2
        %v5165 = vxor.u32 %v5156, 2147483648
        %v5166 = vsel %vm5164, %v5165, %v5157
        %v5167 = vsel %vm5160, %v5163, %v5166
        %v5168 = vsel %vm5158, nan, %v5167
        %v5169 = vand.u32 2147483647, %v2454
        %vm5170 = vcmp.le.f32.partialorder %v5169, 0.7853982
        %vm5171 = vcmp.lt.s32.totalorder %v2454, 0
        %v5172 = vand.u32 %v2454, 2139095040
        %v5173 = vshrl.u32 %v5172, 23
        %v5174 = vsub.s32 %v5173, 127
        %v5175 = vand.u32 2147483647, %v2454
        %v5176 = vand.u32 %v5175, 8388607
        %v5177 = vor.u32 %v5176, 8388608
        %v5178 = vsub.s32 0, %v5177
        %v5179 = vadd.s32 %v5174, 1
        %vm5180 = vcmp.gt.s32.totalorder %v5179, 0
        %v5181 = vsel %vm5180, %v5179, 0
        %v5182 = vshrl.u32 %v5181, 5
        %v5183 = vand.u32 %v5181, 31
        %v5184 = vsub.s32 32, %v5183
        %v5185 = vshrl.u32 683565275, %v5184
        %v5186 = vshll.u32 683565275, %v5183
        %v5187 = vshrl.u32 2475754826, %v5184
        %v5188 = vor.u32 %v5186, %v5187
        %v5189 = vshll.u32 2475754826, %v5183
        %v5190 = vshrl.u32 2131351028, %v5184
        %v5191 = vor.u32 %v5189, %v5190
        %v5192 = vshll.u32 2131351028, %v5183
        %v5193 = vshrl.u32 2102212464, %v5184
        %v5194 = vor.u32 %v5192, %v5193
        %v5195 = vshll.u32 2102212464, %v5183
        %v5196 = vshrl.u32 920167782, %v5184
        %v5197 = vor.u32 %v5195, %v5196
        %v5198 = vshll.u32 920167782, %v5183
        %v5199 = vshrl.u32 1326507024, %v5184
        %v5200 = vor.u32 %v5198, %v5199
        %vm5201 = vcmp.lt.s32.totalorder %v5182, 1
        %vm5202 = vcmp.lt.s32.totalorder %v5182, 2
        %vm5203 = vcmp.lt.s32.totalorder %v5182, 3
        %vm5204 = vcmp.lt.s32.totalorder %v5182, 4
        %v5205 = vsel %vm5201, %v5185, %v5188
        %v5206 = vsel %vm5204, %v5194, 2102212464
        %v5207 = vsel %vm5203, %v5191, %v5206
        %v5208 = vsel %vm5202, %v5205, %v5207
        %v5209 = vsel %vm5201, %v5188, %v5191
        %v5210 = vsel %vm5204, %v5197, 920167782
        %v5211 = vsel %vm5203, %v5194, %v5210
        %v5212 = vsel %vm5202, %v5209, %v5211
        %v5213 = vsel %vm5201, %v5191, %v5194
        %v5214 = vsel %vm5204, %v5200, 1326507024
        %v5215 = vsel %vm5203, %v5197, %v5214
        %v5216 = vsel %vm5202, %v5213, %v5215
        %v5217 = vshll.u32 %v5177, 8
        %v5218 = vmul.u32.u64.compose %v5217, %v5216
        %v5219 = vextract.low.u32 %v5218
        %v5220 = vextract.high.u32 %v5218
        %v5221 = vmul.u32.u64.compose %v5217, %v5212
        %v5222 = vextract.low.u32 %v5221
        %v5223 = vextract.high.u32 %v5221
        %v5224 = vmul.u32 %v5217, %v5208
        %v5225 = vadd.s32 %v5220, %v5222
        %vm5226 = vc.u32 %v5220, %v5222
        %v5227 = vadd.s32 %v5223, 1
        %v5228 = vsel %vm5226, %v5227, %v5223
        %v5229 = vadd.s32 %v5224, %v5228
        %v5230 = vadd.s32 %v5229, 536870912
        %v5231 = vshrl.u32 %v5230, 30
        %v5232 = vshll.u32 %v5231, 30
        %v5233 = vsub.s32 %v5229, %v5232
        %vm5234 = vcmp.lt.s32.totalorder %v5233, 0
        %v5235 = vsub.s32 0, %v5233
        %v5236 = vsel %vm5234, %v5235, %v5233
        %v5237 = vclz %v5236
        %v5238 = vsub.s32 %v5237, 2
        %vm5239 = vcmp.gt.s32.totalorder 0, %v5238
        %v5240 = vsel %vm5239, 0, %v5238
        %v5241 = vsub.s32 32, %v5240
        %v5242 = vshll.u32 %v5233, %v5240
        %v5243 = vshrl.u32 %v5225, %v5241
        %v5244 = vor.u32 %v5242, %v5243
        %v5245 = vsub.s32 4294967266, %v5240
        %v5246 = vadd.s32 %v5245, 127
        %v5247 = vshll.u32 %v5246, 23
        %v5248 = vor.u32 4788187, %v5247
        %v5249 = vand.u32 2147483647, %v5248
        %v5251 = vcvt.s32.f32 %v5244
        %v5252 = vmul.f32 %v5251, %v5249
        %v5253 = vxor.u32 %v5252, 2147483648
        %v5254 = vsel %vm5171, %v5253, %v5252
        %v5255 = vsub.s32 4, %v5231
        %v5256 = vsel %vm5171, %v5255, %v5231
        %v5257 = vsel %vm5170, %v2454, %v5254
        %v5258 = vsel %vm5170, 0, %v5256
        %v5259 = vcosq.f32.pop %v5257
        %v5260 = vsinq.f32.pop %v5257
        %vm5261 = vweird.f32 %v2454
        %v5262 = vand.u32 %v5258, 3
        %vm5263 = vcmp.lt.s32.totalorder %v5262, 2
        %vm5264 = vcmp.eq.s32.totalorder %v5262, 0
        %v5265 = vxor.u32 %v5260, 2147483648
        %v5266 = vsel %vm5264, %v5259, %v5265
        %vm5267 = vcmp.eq.s32.totalorder %v5262, 2
        %v5268 = vxor.u32 %v5259, 2147483648
        %v5269 = vsel %vm5267, %v5268, %v5260
        %v5270 = vsel %vm5263, %v5266, %v5269
        %v5271 = vsel %vm5261, nan, %v5270
        %v5272 = vand.u32 2147483647, %v2455
        %vm5273 = vcmp.le.f32.partialorder %v5272, 0.7853982
        %vm5274 = vcmp.lt.s32.totalorder %v2455, 0
        %v5275 = vand.u32 %v2455, 2139095040
        %v5276 = vshrl.u32 %v5275, 23
        %v5277 = vsub.s32 %v5276, 127
        %v5278 = vand.u32 2147483647, %v2455
        %v5279 = vand.u32 %v5278, 8388607
        %v5280 = vor.u32 %v5279, 8388608
        %v5281 = vsub.s32 0, %v5280
        %v5282 = vadd.s32 %v5277, 1
        %vm5283 = vcmp.gt.s32.totalorder %v5282, 0
        %v5284 = vsel %vm5283, %v5282, 0
        %v5285 = vshrl.u32 %v5284, 5
        %v5286 = vand.u32 %v5284, 31
        %v5287 = vsub.s32 32, %v5286
        %v5288 = vshrl.u32 683565275, %v5287
        %v5289 = vshll.u32 683565275, %v5286
        %v5290 = vshrl.u32 2475754826, %v5287
        %v5291 = vor.u32 %v5289, %v5290
        %v5292 = vshll.u32 2475754826, %v5286
        %v5293 = vshrl.u32 2131351028, %v5287
        %v5294 = vor.u32 %v5292, %v5293
        %v5295 = vshll.u32 2131351028, %v5286
        %v5296 = vshrl.u32 2102212464, %v5287
        %v5297 = vor.u32 %v5295, %v5296
        %v5298 = vshll.u32 2102212464, %v5286
        %v5299 = vshrl.u32 920167782, %v5287
        %v5300 = vor.u32 %v5298, %v5299
        %v5301 = vshll.u32 920167782, %v5286
        %v5302 = vshrl.u32 1326507024, %v5287
        %v5303 = vor.u32 %v5301, %v5302
        %vm5304 = vcmp.lt.s32.totalorder %v5285, 1
        %vm5305 = vcmp.lt.s32.totalorder %v5285, 2
        %vm5306 = vcmp.lt.s32.totalorder %v5285, 3
        %vm5307 = vcmp.lt.s32.totalorder %v5285, 4
        %v5308 = vsel %vm5304, %v5288, %v5291
        %v5309 = vsel %vm5307, %v5297, 2102212464
        %v5310 = vsel %vm5306, %v5294, %v5309
        %v5311 = vsel %vm5305, %v5308, %v5310
        %v5312 = vsel %vm5304, %v5291, %v5294
        %v5313 = vsel %vm5307, %v5300, 920167782
        %v5314 = vsel %vm5306, %v5297, %v5313
        %v5315 = vsel %vm5305, %v5312, %v5314
        %v5316 = vsel %vm5304, %v5294, %v5297
        %v5317 = vsel %vm5307, %v5303, 1326507024
        %v5318 = vsel %vm5306, %v5300, %v5317
        %v5319 = vsel %vm5305, %v5316, %v5318
        %v5320 = vshll.u32 %v5280, 8
        %v5321 = vmul.u32.u64.compose %v5320, %v5319
        %v5322 = vextract.low.u32 %v5321
        %v5323 = vextract.high.u32 %v5321
        %v5324 = vmul.u32.u64.compose %v5320, %v5315
        %v5325 = vextract.low.u32 %v5324
        %v5326 = vextract.high.u32 %v5324
        %v5327 = vmul.u32 %v5320, %v5311
        %v5328 = vadd.s32 %v5323, %v5325
        %vm5329 = vc.u32 %v5323, %v5325
        %v5330 = vadd.s32 %v5326, 1
        %v5331 = vsel %vm5329, %v5330, %v5326
        %v5332 = vadd.s32 %v5327, %v5331
        %v5333 = vadd.s32 %v5332, 536870912
        %v5334 = vshrl.u32 %v5333, 30
        %v5335 = vshll.u32 %v5334, 30
        %v5336 = vsub.s32 %v5332, %v5335
        %vm5337 = vcmp.lt.s32.totalorder %v5336, 0
        %v5338 = vsub.s32 0, %v5336
        %v5339 = vsel %vm5337, %v5338, %v5336
        %v5340 = vclz %v5339
        %v5341 = vsub.s32 %v5340, 2
        %vm5342 = vcmp.gt.s32.totalorder 0, %v5341
        %v5343 = vsel %vm5342, 0, %v5341
        %v5344 = vsub.s32 32, %v5343
        %v5345 = vshll.u32 %v5336, %v5343
        %v5346 = vshrl.u32 %v5328, %v5344
        %v5347 = vor.u32 %v5345, %v5346
        %v5348 = vsub.s32 4294967266, %v5343
        %v5349 = vadd.s32 %v5348, 127
        %v5350 = vshll.u32 %v5349, 23
        %v5351 = vor.u32 4788187, %v5350
        %v5352 = vand.u32 2147483647, %v5351
        %v5354 = vcvt.s32.f32 %v5347
        %v5355 = vmul.f32 %v5354, %v5352
        %v5356 = vxor.u32 %v5355, 2147483648
        %v5357 = vsel %vm5274, %v5356, %v5355
        %v5358 = vsub.s32 4, %v5334
        %v5359 = vsel %vm5274, %v5358, %v5334
        %v5360 = vsel %vm5273, %v2455, %v5357
        %v5361 = vsel %vm5273, 0, %v5359
        %v5362 = vcosq.f32.pop %v5360
        %v5363 = vsinq.f32.pop %v5360
        %vm5364 = vweird.f32 %v2455
        %v5365 = vand.u32 %v5361, 3
        %vm5366 = vcmp.lt.s32.totalorder %v5365, 2
        %vm5367 = vcmp.eq.s32.totalorder %v5365, 0
        %v5368 = vxor.u32 %v5363, 2147483648
        %v5369 = vsel %vm5367, %v5362, %v5368
        %vm5370 = vcmp.eq.s32.totalorder %v5365, 2
        %v5371 = vxor.u32 %v5362, 2147483648
        %v5372 = vsel %vm5370, %v5371, %v5363
        %v5373 = vsel %vm5366, %v5369, %v5372
        %v5374 = vsel %vm5364, nan, %v5373
        %v5375 = vand.u32 2147483647, %v2456
        %vm5376 = vcmp.le.f32.partialorder %v5375, 0.7853982
        %vm5377 = vcmp.lt.s32.totalorder %v2456, 0
        %v5378 = vand.u32 %v2456, 2139095040
        %v5379 = vshrl.u32 %v5378, 23
        %v5380 = vsub.s32 %v5379, 127
        %v5381 = vand.u32 2147483647, %v2456
        %v5382 = vand.u32 %v5381, 8388607
        %v5383 = vor.u32 %v5382, 8388608
        %v5384 = vsub.s32 0, %v5383
        %v5385 = vadd.s32 %v5380, 1
        %vm5386 = vcmp.gt.s32.totalorder %v5385, 0
        %v5387 = vsel %vm5386, %v5385, 0
        %v5388 = vshrl.u32 %v5387, 5
        %v5389 = vand.u32 %v5387, 31
        %v5390 = vsub.s32 32, %v5389
        %v5391 = vshrl.u32 683565275, %v5390
        %v5392 = vshll.u32 683565275, %v5389
        %v5393 = vshrl.u32 2475754826, %v5390
        %v5394 = vor.u32 %v5392, %v5393
        %v5395 = vshll.u32 2475754826, %v5389
        %v5396 = vshrl.u32 2131351028, %v5390
        %v5397 = vor.u32 %v5395, %v5396
        %v5398 = vshll.u32 2131351028, %v5389
        %v5399 = vshrl.u32 2102212464, %v5390
        %v5400 = vor.u32 %v5398, %v5399
        %v5401 = vshll.u32 2102212464, %v5389
        %v5402 = vshrl.u32 920167782, %v5390
        %v5403 = vor.u32 %v5401, %v5402
        %v5404 = vshll.u32 920167782, %v5389
        %v5405 = vshrl.u32 1326507024, %v5390
        %v5406 = vor.u32 %v5404, %v5405
        %vm5407 = vcmp.lt.s32.totalorder %v5388, 1
        %vm5408 = vcmp.lt.s32.totalorder %v5388, 2
        %vm5409 = vcmp.lt.s32.totalorder %v5388, 3
        %vm5410 = vcmp.lt.s32.totalorder %v5388, 4
        %v5411 = vsel %vm5407, %v5391, %v5394
        %v5412 = vsel %vm5410, %v5400, 2102212464
        %v5413 = vsel %vm5409, %v5397, %v5412
        %v5414 = vsel %vm5408, %v5411, %v5413
        %v5415 = vsel %vm5407, %v5394, %v5397
        %v5416 = vsel %vm5410, %v5403, 920167782
        %v5417 = vsel %vm5409, %v5400, %v5416
        %v5418 = vsel %vm5408, %v5415, %v5417
        %v5419 = vsel %vm5407, %v5397, %v5400
        %v5420 = vsel %vm5410, %v5406, 1326507024
        %v5421 = vsel %vm5409, %v5403, %v5420
        %v5422 = vsel %vm5408, %v5419, %v5421
        %v5423 = vshll.u32 %v5383, 8
        %v5424 = vmul.u32.u64.compose %v5423, %v5422
        %v5425 = vextract.low.u32 %v5424
        %v5426 = vextract.high.u32 %v5424
        %v5427 = vmul.u32.u64.compose %v5423, %v5418
        %v5428 = vextract.low.u32 %v5427
        %v5429 = vextract.high.u32 %v5427
        %v5430 = vmul.u32 %v5423, %v5414
        %v5431 = vadd.s32 %v5426, %v5428
        %vm5432 = vc.u32 %v5426, %v5428
        %v5433 = vadd.s32 %v5429, 1
        %v5434 = vsel %vm5432, %v5433, %v5429
        %v5435 = vadd.s32 %v5430, %v5434
        %v5436 = vadd.s32 %v5435, 536870912
        %v5437 = vshrl.u32 %v5436, 30
        %v5438 = vshll.u32 %v5437, 30
        %v5439 = vsub.s32 %v5435, %v5438
        %vm5440 = vcmp.lt.s32.totalorder %v5439, 0
        %v5441 = vsub.s32 0, %v5439
        %v5442 = vsel %vm5440, %v5441, %v5439
        %v5443 = vclz %v5442
        %v5444 = vsub.s32 %v5443, 2
        %vm5445 = vcmp.gt.s32.totalorder 0, %v5444
        %v5446 = vsel %vm5445, 0, %v5444
        %v5447 = vsub.s32 32, %v5446
        %v5448 = vshll.u32 %v5439, %v5446
        %v5449 = vshrl.u32 %v5431, %v5447
        %v5450 = vor.u32 %v5448, %v5449
        %v5451 = vsub.s32 4294967266, %v5446
        %v5452 = vadd.s32 %v5451, 127
        %v5453 = vshll.u32 %v5452, 23
        %v5454 = vor.u32 4788187, %v5453
        %v5455 = vand.u32 2147483647, %v5454
        %v5457 = vcvt.s32.f32 %v5450
        %v5458 = vmul.f32 %v5457, %v5455
        %v5459 = vxor.u32 %v5458, 2147483648
        %v5460 = vsel %vm5377, %v5459, %v5458
        %v5461 = vsub.s32 4, %v5437
        %v5462 = vsel %vm5377, %v5461, %v5437
        %v5463 = vsel %vm5376, %v2456, %v5460
        %v5464 = vsel %vm5376, 0, %v5462
        %v5465 = vcosq.f32.pop %v5463
        %v5466 = vsinq.f32.pop %v5463
        %vm5467 = vweird.f32 %v2456
        %v5468 = vand.u32 %v5464, 3
        %vm5469 = vcmp.lt.s32.totalorder %v5468, 2
        %vm5470 = vcmp.eq.s32.totalorder %v5468, 0
        %v5471 = vxor.u32 %v5466, 2147483648
        %v5472 = vsel %vm5470, %v5465, %v5471
        %vm5473 = vcmp.eq.s32.totalorder %v5468, 2
        %v5474 = vxor.u32 %v5465, 2147483648
        %v5475 = vsel %vm5473, %v5474, %v5466
        %v5476 = vsel %vm5469, %v5472, %v5475
        %v5477 = vsel %vm5467, nan, %v5476
        %v5478 = vand.u32 2147483647, %v2457
        %vm5479 = vcmp.le.f32.partialorder %v5478, 0.7853982
        %vm5480 = vcmp.lt.s32.totalorder %v2457, 0
        %v5481 = vand.u32 %v2457, 2139095040
        %v5482 = vshrl.u32 %v5481, 23
        %v5483 = vsub.s32 %v5482, 127
        %v5484 = vand.u32 2147483647, %v2457
        %v5485 = vand.u32 %v5484, 8388607
        %v5486 = vor.u32 %v5485, 8388608
        %v5487 = vsub.s32 0, %v5486
        %v5488 = vadd.s32 %v5483, 1
        %vm5489 = vcmp.gt.s32.totalorder %v5488, 0
        %v5490 = vsel %vm5489, %v5488, 0
        %v5491 = vshrl.u32 %v5490, 5
        %v5492 = vand.u32 %v5490, 31
        %v5493 = vsub.s32 32, %v5492
        %v5494 = vshrl.u32 683565275, %v5493
        %v5495 = vshll.u32 683565275, %v5492
        %v5496 = vshrl.u32 2475754826, %v5493
        %v5497 = vor.u32 %v5495, %v5496
        %v5498 = vshll.u32 2475754826, %v5492
        %v5499 = vshrl.u32 2131351028, %v5493
        %v5500 = vor.u32 %v5498, %v5499
        %v5501 = vshll.u32 2131351028, %v5492
        %v5502 = vshrl.u32 2102212464, %v5493
        %v5503 = vor.u32 %v5501, %v5502
        %v5504 = vshll.u32 2102212464, %v5492
        %v5505 = vshrl.u32 920167782, %v5493
        %v5506 = vor.u32 %v5504, %v5505
        %v5507 = vshll.u32 920167782, %v5492
        %v5508 = vshrl.u32 1326507024, %v5493
        %v5509 = vor.u32 %v5507, %v5508
        %vm5510 = vcmp.lt.s32.totalorder %v5491, 1
        %vm5511 = vcmp.lt.s32.totalorder %v5491, 2
        %vm5512 = vcmp.lt.s32.totalorder %v5491, 3
        %vm5513 = vcmp.lt.s32.totalorder %v5491, 4
        %v5514 = vsel %vm5510, %v5494, %v5497
        %v5515 = vsel %vm5513, %v5503, 2102212464
        %v5516 = vsel %vm5512, %v5500, %v5515
        %v5517 = vsel %vm5511, %v5514, %v5516
        %v5518 = vsel %vm5510, %v5497, %v5500
        %v5519 = vsel %vm5513, %v5506, 920167782
        %v5520 = vsel %vm5512, %v5503, %v5519
        %v5521 = vsel %vm5511, %v5518, %v5520
        %v5522 = vsel %vm5510, %v5500, %v5503
        %v5523 = vsel %vm5513, %v5509, 1326507024
        %v5524 = vsel %vm5512, %v5506, %v5523
        %v5525 = vsel %vm5511, %v5522, %v5524
        %v5526 = vshll.u32 %v5486, 8
        %v5527 = vmul.u32.u64.compose %v5526, %v5525
        %v5528 = vextract.low.u32 %v5527
        %v5529 = vextract.high.u32 %v5527
        %v5530 = vmul.u32.u64.compose %v5526, %v5521
        %v5531 = vextract.low.u32 %v5530
        %v5532 = vextract.high.u32 %v5530
        %v5533 = vmul.u32 %v5526, %v5517
        %v5534 = vadd.s32 %v5529, %v5531
        %vm5535 = vc.u32 %v5529, %v5531
        %v5536 = vadd.s32 %v5532, 1
        %v5537 = vsel %vm5535, %v5536, %v5532
        %v5538 = vadd.s32 %v5533, %v5537
        %v5539 = vadd.s32 %v5538, 536870912
        %v5540 = vshrl.u32 %v5539, 30
        %v5541 = vshll.u32 %v5540, 30
        %v5542 = vsub.s32 %v5538, %v5541
        %vm5543 = vcmp.lt.s32.totalorder %v5542, 0
        %v5544 = vsub.s32 0, %v5542
        %v5545 = vsel %vm5543, %v5544, %v5542
        %v5546 = vclz %v5545
        %v5547 = vsub.s32 %v5546, 2
        %vm5548 = vcmp.gt.s32.totalorder 0, %v5547
        %v5549 = vsel %vm5548, 0, %v5547
        %v5550 = vsub.s32 32, %v5549
        %v5551 = vshll.u32 %v5542, %v5549
        %v5552 = vshrl.u32 %v5534, %v5550
        %v5553 = vor.u32 %v5551, %v5552
        %v5554 = vsub.s32 4294967266, %v5549
        %v5555 = vadd.s32 %v5554, 127
        %v5556 = vshll.u32 %v5555, 23
        %v5557 = vor.u32 4788187, %v5556
        %v5558 = vand.u32 2147483647, %v5557
        %v5560 = vcvt.s32.f32 %v5553
        %v5561 = vmul.f32 %v5560, %v5558
        %v5562 = vxor.u32 %v5561, 2147483648
        %v5563 = vsel %vm5480, %v5562, %v5561
        %v5564 = vsub.s32 4, %v5540
        %v5565 = vsel %vm5480, %v5564, %v5540
        %v5566 = vsel %vm5479, %v2457, %v5563
        %v5567 = vsel %vm5479, 0, %v5565
        %v5568 = vcosq.f32.pop %v5566
        %v5569 = vsinq.f32.pop %v5566
        %vm5570 = vweird.f32 %v2457
        %v5571 = vand.u32 %v5567, 3
        %vm5572 = vcmp.lt.s32.totalorder %v5571, 2
        %vm5573 = vcmp.eq.s32.totalorder %v5571, 0
        %v5574 = vxor.u32 %v5569, 2147483648
        %v5575 = vsel %vm5573, %v5568, %v5574
        %vm5576 = vcmp.eq.s32.totalorder %v5571, 2
        %v5577 = vxor.u32 %v5568, 2147483648
        %v5578 = vsel %vm5576, %v5577, %v5569
        %v5579 = vsel %vm5572, %v5575, %v5578
        %v5580 = vsel %vm5570, nan, %v5579
        %v5581 = vand.u32 2147483647, %v2458
        %vm5582 = vcmp.le.f32.partialorder %v5581, 0.7853982
        %vm5583 = vcmp.lt.s32.totalorder %v2458, 0
        %v5584 = vand.u32 %v2458, 2139095040
        %v5585 = vshrl.u32 %v5584, 23
        %v5586 = vsub.s32 %v5585, 127
        %v5587 = vand.u32 2147483647, %v2458
        %v5588 = vand.u32 %v5587, 8388607
        %v5589 = vor.u32 %v5588, 8388608
        %v5590 = vsub.s32 0, %v5589
        %v5591 = vadd.s32 %v5586, 1
        %vm5592 = vcmp.gt.s32.totalorder %v5591, 0
        %v5593 = vsel %vm5592, %v5591, 0
        %v5594 = vshrl.u32 %v5593, 5
        %v5595 = vand.u32 %v5593, 31
        %v5596 = vsub.s32 32, %v5595
        %v5597 = vshrl.u32 683565275, %v5596
        %v5598 = vshll.u32 683565275, %v5595
        %v5599 = vshrl.u32 2475754826, %v5596
        %v5600 = vor.u32 %v5598, %v5599
        %v5601 = vshll.u32 2475754826, %v5595
        %v5602 = vshrl.u32 2131351028, %v5596
        %v5603 = vor.u32 %v5601, %v5602
        %v5604 = vshll.u32 2131351028, %v5595
        %v5605 = vshrl.u32 2102212464, %v5596
        %v5606 = vor.u32 %v5604, %v5605
        %v5607 = vshll.u32 2102212464, %v5595
        %v5608 = vshrl.u32 920167782, %v5596
        %v5609 = vor.u32 %v5607, %v5608
        %v5610 = vshll.u32 920167782, %v5595
        %v5611 = vshrl.u32 1326507024, %v5596
        %v5612 = vor.u32 %v5610, %v5611
        %vm5613 = vcmp.lt.s32.totalorder %v5594, 1
        %vm5614 = vcmp.lt.s32.totalorder %v5594, 2
        %vm5615 = vcmp.lt.s32.totalorder %v5594, 3
        %vm5616 = vcmp.lt.s32.totalorder %v5594, 4
        %v5617 = vsel %vm5613, %v5597, %v5600
        %v5618 = vsel %vm5616, %v5606, 2102212464
        %v5619 = vsel %vm5615, %v5603, %v5618
        %v5620 = vsel %vm5614, %v5617, %v5619
        %v5621 = vsel %vm5613, %v5600, %v5603
        %v5622 = vsel %vm5616, %v5609, 920167782
        %v5623 = vsel %vm5615, %v5606, %v5622
        %v5624 = vsel %vm5614, %v5621, %v5623
        %v5625 = vsel %vm5613, %v5603, %v5606
        %v5626 = vsel %vm5616, %v5612, 1326507024
        %v5627 = vsel %vm5615, %v5609, %v5626
        %v5628 = vsel %vm5614, %v5625, %v5627
        %v5629 = vshll.u32 %v5589, 8
        %v5630 = vmul.u32.u64.compose %v5629, %v5628
        %v5631 = vextract.low.u32 %v5630
        %v5632 = vextract.high.u32 %v5630
        %v5633 = vmul.u32.u64.compose %v5629, %v5624
        %v5634 = vextract.low.u32 %v5633
        %v5635 = vextract.high.u32 %v5633
        %v5636 = vmul.u32 %v5629, %v5620
        %v5637 = vadd.s32 %v5632, %v5634
        %vm5638 = vc.u32 %v5632, %v5634
        %v5639 = vadd.s32 %v5635, 1
        %v5640 = vsel %vm5638, %v5639, %v5635
        %v5641 = vadd.s32 %v5636, %v5640
        %v5642 = vadd.s32 %v5641, 536870912
        %v5643 = vshrl.u32 %v5642, 30
        %v5644 = vshll.u32 %v5643, 30
        %v5645 = vsub.s32 %v5641, %v5644
        %vm5646 = vcmp.lt.s32.totalorder %v5645, 0
        %v5647 = vsub.s32 0, %v5645
        %v5648 = vsel %vm5646, %v5647, %v5645
        %v5649 = vclz %v5648
        %v5650 = vsub.s32 %v5649, 2
        %vm5651 = vcmp.gt.s32.totalorder 0, %v5650
        %v5652 = vsel %vm5651, 0, %v5650
        %v5653 = vsub.s32 32, %v5652
        %v5654 = vshll.u32 %v5645, %v5652
        %v5655 = vshrl.u32 %v5637, %v5653
        %v5656 = vor.u32 %v5654, %v5655
        %v5657 = vsub.s32 4294967266, %v5652
        %v5658 = vadd.s32 %v5657, 127
        %v5659 = vshll.u32 %v5658, 23
        %v5660 = vor.u32 4788187, %v5659
        %v5661 = vand.u32 2147483647, %v5660
        %v5663 = vcvt.s32.f32 %v5656
        %v5664 = vmul.f32 %v5663, %v5661
        %v5665 = vxor.u32 %v5664, 2147483648
        %v5666 = vsel %vm5583, %v5665, %v5664
        %v5667 = vsub.s32 4, %v5643
        %v5668 = vsel %vm5583, %v5667, %v5643
        %v5669 = vsel %vm5582, %v2458, %v5666
        %v5670 = vsel %vm5582, 0, %v5668
        %v5671 = vcosq.f32.pop %v5669
        %v5672 = vsinq.f32.pop %v5669
        %vm5673 = vweird.f32 %v2458
        %v5674 = vand.u32 %v5670, 3
        %vm5675 = vcmp.lt.s32.totalorder %v5674, 2
        %vm5676 = vcmp.eq.s32.totalorder %v5674, 0
        %v5677 = vxor.u32 %v5672, 2147483648
        %v5678 = vsel %vm5676, %v5671, %v5677
        %vm5679 = vcmp.eq.s32.totalorder %v5674, 2
        %v5680 = vxor.u32 %v5671, 2147483648
        %v5681 = vsel %vm5679, %v5680, %v5672
        %v5682 = vsel %vm5675, %v5678, %v5681
        %v5683 = vsel %vm5673, nan, %v5682
        %v5684 = vand.u32 2147483647, %v2459
        %vm5685 = vcmp.le.f32.partialorder %v5684, 0.7853982
        %vm5686 = vcmp.lt.s32.totalorder %v2459, 0
        %v5687 = vand.u32 %v2459, 2139095040
        %v5688 = vshrl.u32 %v5687, 23
        %v5689 = vsub.s32 %v5688, 127
        %v5690 = vand.u32 2147483647, %v2459
        %v5691 = vand.u32 %v5690, 8388607
        %v5692 = vor.u32 %v5691, 8388608
        %v5693 = vsub.s32 0, %v5692
        %v5694 = vadd.s32 %v5689, 1
        %vm5695 = vcmp.gt.s32.totalorder %v5694, 0
        %v5696 = vsel %vm5695, %v5694, 0
        %v5697 = vshrl.u32 %v5696, 5
        %v5698 = vand.u32 %v5696, 31
        %v5699 = vsub.s32 32, %v5698
        %v5700 = vshrl.u32 683565275, %v5699
        %v5701 = vshll.u32 683565275, %v5698
        %v5702 = vshrl.u32 2475754826, %v5699
        %v5703 = vor.u32 %v5701, %v5702
        %v5704 = vshll.u32 2475754826, %v5698
        %v5705 = vshrl.u32 2131351028, %v5699
        %v5706 = vor.u32 %v5704, %v5705
        %v5707 = vshll.u32 2131351028, %v5698
        %v5708 = vshrl.u32 2102212464, %v5699
        %v5709 = vor.u32 %v5707, %v5708
        %v5710 = vshll.u32 2102212464, %v5698
        %v5711 = vshrl.u32 920167782, %v5699
        %v5712 = vor.u32 %v5710, %v5711
        %v5713 = vshll.u32 920167782, %v5698
        %v5714 = vshrl.u32 1326507024, %v5699
        %v5715 = vor.u32 %v5713, %v5714
        %vm5716 = vcmp.lt.s32.totalorder %v5697, 1
        %vm5717 = vcmp.lt.s32.totalorder %v5697, 2
        %vm5718 = vcmp.lt.s32.totalorder %v5697, 3
        %vm5719 = vcmp.lt.s32.totalorder %v5697, 4
        %v5720 = vsel %vm5716, %v5700, %v5703
        %v5721 = vsel %vm5719, %v5709, 2102212464
        %v5722 = vsel %vm5718, %v5706, %v5721
        %v5723 = vsel %vm5717, %v5720, %v5722
        %v5724 = vsel %vm5716, %v5703, %v5706
        %v5725 = vsel %vm5719, %v5712, 920167782
        %v5726 = vsel %vm5718, %v5709, %v5725
        %v5727 = vsel %vm5717, %v5724, %v5726
        %v5728 = vsel %vm5716, %v5706, %v5709
        %v5729 = vsel %vm5719, %v5715, 1326507024
        %v5730 = vsel %vm5718, %v5712, %v5729
        %v5731 = vsel %vm5717, %v5728, %v5730
        %v5732 = vshll.u32 %v5692, 8
        %v5733 = vmul.u32.u64.compose %v5732, %v5731
        %v5734 = vextract.low.u32 %v5733
        %v5735 = vextract.high.u32 %v5733
        %v5736 = vmul.u32.u64.compose %v5732, %v5727
        %v5737 = vextract.low.u32 %v5736
        %v5738 = vextract.high.u32 %v5736
        %v5739 = vmul.u32 %v5732, %v5723
        %v5740 = vadd.s32 %v5735, %v5737
        %vm5741 = vc.u32 %v5735, %v5737
        %v5742 = vadd.s32 %v5738, 1
        %v5743 = vsel %vm5741, %v5742, %v5738
        %v5744 = vadd.s32 %v5739, %v5743
        %v5745 = vadd.s32 %v5744, 536870912
        %v5746 = vshrl.u32 %v5745, 30
        %v5747 = vshll.u32 %v5746, 30
        %v5748 = vsub.s32 %v5744, %v5747
        %vm5749 = vcmp.lt.s32.totalorder %v5748, 0
        %v5750 = vsub.s32 0, %v5748
        %v5751 = vsel %vm5749, %v5750, %v5748
        %v5752 = vclz %v5751
        %v5753 = vsub.s32 %v5752, 2
        %vm5754 = vcmp.gt.s32.totalorder 0, %v5753
        %v5755 = vsel %vm5754, 0, %v5753
        %v5756 = vsub.s32 32, %v5755
        %v5757 = vshll.u32 %v5748, %v5755
        %v5758 = vshrl.u32 %v5740, %v5756
        %v5759 = vor.u32 %v5757, %v5758
        %v5760 = vsub.s32 4294967266, %v5755
        %v5761 = vadd.s32 %v5760, 127
        %v5762 = vshll.u32 %v5761, 23
        %v5763 = vor.u32 4788187, %v5762
        %v5764 = vand.u32 2147483647, %v5763
        %v5766 = vcvt.s32.f32 %v5759
        %v5767 = vmul.f32 %v5766, %v5764
        %v5768 = vxor.u32 %v5767, 2147483648
        %v5769 = vsel %vm5686, %v5768, %v5767
        %v5770 = vsub.s32 4, %v5746
        %v5771 = vsel %vm5686, %v5770, %v5746
        %v5772 = vsel %vm5685, %v2459, %v5769
        %v5773 = vsel %vm5685, 0, %v5771
        %v5774 = vcosq.f32.pop %v5772
        %v5775 = vsinq.f32.pop %v5772
        %vm5776 = vweird.f32 %v2459
        %v5777 = vand.u32 %v5773, 3
        %vm5778 = vcmp.lt.s32.totalorder %v5777, 2
        %vm5779 = vcmp.eq.s32.totalorder %v5777, 0
        %v5780 = vxor.u32 %v5775, 2147483648
        %v5781 = vsel %vm5779, %v5774, %v5780
        %vm5782 = vcmp.eq.s32.totalorder %v5777, 2
        %v5783 = vxor.u32 %v5774, 2147483648
        %v5784 = vsel %vm5782, %v5783, %v5775
        %v5785 = vsel %vm5778, %v5781, %v5784
        %v5786 = vsel %vm5776, nan, %v5785
        %v5787 = vand.u32 2147483647, %v2460
        %vm5788 = vcmp.le.f32.partialorder %v5787, 0.7853982
        %vm5789 = vcmp.lt.s32.totalorder %v2460, 0
        %v5790 = vand.u32 %v2460, 2139095040
        %v5791 = vshrl.u32 %v5790, 23
        %v5792 = vsub.s32 %v5791, 127
        %v5793 = vand.u32 2147483647, %v2460
        %v5794 = vand.u32 %v5793, 8388607
        %v5795 = vor.u32 %v5794, 8388608
        %v5796 = vsub.s32 0, %v5795
        %v5797 = vadd.s32 %v5792, 1
        %vm5798 = vcmp.gt.s32.totalorder %v5797, 0
        %v5799 = vsel %vm5798, %v5797, 0
        %v5800 = vshrl.u32 %v5799, 5
        %v5801 = vand.u32 %v5799, 31
        %v5802 = vsub.s32 32, %v5801
        %v5803 = vshrl.u32 683565275, %v5802
        %v5804 = vshll.u32 683565275, %v5801
        %v5805 = vshrl.u32 2475754826, %v5802
        %v5806 = vor.u32 %v5804, %v5805
        %v5807 = vshll.u32 2475754826, %v5801
        %v5808 = vshrl.u32 2131351028, %v5802
        %v5809 = vor.u32 %v5807, %v5808
        %v5810 = vshll.u32 2131351028, %v5801
        %v5811 = vshrl.u32 2102212464, %v5802
        %v5812 = vor.u32 %v5810, %v5811
        %v5813 = vshll.u32 2102212464, %v5801
        %v5814 = vshrl.u32 920167782, %v5802
        %v5815 = vor.u32 %v5813, %v5814
        %v5816 = vshll.u32 920167782, %v5801
        %v5817 = vshrl.u32 1326507024, %v5802
        %v5818 = vor.u32 %v5816, %v5817
        %vm5819 = vcmp.lt.s32.totalorder %v5800, 1
        %vm5820 = vcmp.lt.s32.totalorder %v5800, 2
        %vm5821 = vcmp.lt.s32.totalorder %v5800, 3
        %vm5822 = vcmp.lt.s32.totalorder %v5800, 4
        %v5823 = vsel %vm5819, %v5803, %v5806
        %v5824 = vsel %vm5822, %v5812, 2102212464
        %v5825 = vsel %vm5821, %v5809, %v5824
        %v5826 = vsel %vm5820, %v5823, %v5825
        %v5827 = vsel %vm5819, %v5806, %v5809
        %v5828 = vsel %vm5822, %v5815, 920167782
        %v5829 = vsel %vm5821, %v5812, %v5828
        %v5830 = vsel %vm5820, %v5827, %v5829
        %v5831 = vsel %vm5819, %v5809, %v5812
        %v5832 = vsel %vm5822, %v5818, 1326507024
        %v5833 = vsel %vm5821, %v5815, %v5832
        %v5834 = vsel %vm5820, %v5831, %v5833
        %v5835 = vshll.u32 %v5795, 8
        %v5836 = vmul.u32.u64.compose %v5835, %v5834
        %v5837 = vextract.low.u32 %v5836
        %v5838 = vextract.high.u32 %v5836
        %v5839 = vmul.u32.u64.compose %v5835, %v5830
        %v5840 = vextract.low.u32 %v5839
        %v5841 = vextract.high.u32 %v5839
        %v5842 = vmul.u32 %v5835, %v5826
        %v5843 = vadd.s32 %v5838, %v5840
        %vm5844 = vc.u32 %v5838, %v5840
        %v5845 = vadd.s32 %v5841, 1
        %v5846 = vsel %vm5844, %v5845, %v5841
        %v5847 = vadd.s32 %v5842, %v5846
        %v5848 = vadd.s32 %v5847, 536870912
        %v5849 = vshrl.u32 %v5848, 30
        %v5850 = vshll.u32 %v5849, 30
        %v5851 = vsub.s32 %v5847, %v5850
        %vm5852 = vcmp.lt.s32.totalorder %v5851, 0
        %v5853 = vsub.s32 0, %v5851
        %v5854 = vsel %vm5852, %v5853, %v5851
        %v5855 = vclz %v5854
        %v5856 = vsub.s32 %v5855, 2
        %vm5857 = vcmp.gt.s32.totalorder 0, %v5856
        %v5858 = vsel %vm5857, 0, %v5856
        %v5859 = vsub.s32 32, %v5858
        %v5860 = vshll.u32 %v5851, %v5858
        %v5861 = vshrl.u32 %v5843, %v5859
        %v5862 = vor.u32 %v5860, %v5861
        %v5863 = vsub.s32 4294967266, %v5858
        %v5864 = vadd.s32 %v5863, 127
        %v5865 = vshll.u32 %v5864, 23
        %v5866 = vor.u32 4788187, %v5865
        %v5867 = vand.u32 2147483647, %v5866
        %v5869 = vcvt.s32.f32 %v5862
        %v5870 = vmul.f32 %v5869, %v5867
        %v5871 = vxor.u32 %v5870, 2147483648
        %v5872 = vsel %vm5789, %v5871, %v5870
        %v5873 = vsub.s32 4, %v5849
        %v5874 = vsel %vm5789, %v5873, %v5849
        %v5875 = vsel %vm5788, %v2460, %v5872
        %v5876 = vsel %vm5788, 0, %v5874
        %v5877 = vcosq.f32.pop %v5875
        %v5878 = vsinq.f32.pop %v5875
        %vm5879 = vweird.f32 %v2460
        %v5880 = vand.u32 %v5876, 3
        %vm5881 = vcmp.lt.s32.totalorder %v5880, 2
        %vm5882 = vcmp.eq.s32.totalorder %v5880, 0
        %v5883 = vxor.u32 %v5878, 2147483648
        %v5884 = vsel %vm5882, %v5877, %v5883
        %vm5885 = vcmp.eq.s32.totalorder %v5880, 2
        %v5886 = vxor.u32 %v5877, 2147483648
        %v5887 = vsel %vm5885, %v5886, %v5878
        %v5888 = vsel %vm5881, %v5884, %v5887
        %v5889 = vsel %vm5879, nan, %v5888
        %v5890 = vand.u32 2147483647, %v2461
        %vm5891 = vcmp.le.f32.partialorder %v5890, 0.7853982
        %vm5892 = vcmp.lt.s32.totalorder %v2461, 0
        %v5893 = vand.u32 %v2461, 2139095040
        %v5894 = vshrl.u32 %v5893, 23
        %v5895 = vsub.s32 %v5894, 127
        %v5896 = vand.u32 2147483647, %v2461
        %v5897 = vand.u32 %v5896, 8388607
        %v5898 = vor.u32 %v5897, 8388608
        %v5899 = vsub.s32 0, %v5898
        %v5900 = vadd.s32 %v5895, 1
        %vm5901 = vcmp.gt.s32.totalorder %v5900, 0
        %v5902 = vsel %vm5901, %v5900, 0
        %v5903 = vshrl.u32 %v5902, 5
        %v5904 = vand.u32 %v5902, 31
        %v5905 = vsub.s32 32, %v5904
        %v5906 = vshrl.u32 683565275, %v5905
        %v5907 = vshll.u32 683565275, %v5904
        %v5908 = vshrl.u32 2475754826, %v5905
        %v5909 = vor.u32 %v5907, %v5908
        %v5910 = vshll.u32 2475754826, %v5904
        %v5911 = vshrl.u32 2131351028, %v5905
        %v5912 = vor.u32 %v5910, %v5911
        %v5913 = vshll.u32 2131351028, %v5904
        %v5914 = vshrl.u32 2102212464, %v5905
        %v5915 = vor.u32 %v5913, %v5914
        %v5916 = vshll.u32 2102212464, %v5904
        %v5917 = vshrl.u32 920167782, %v5905
        %v5918 = vor.u32 %v5916, %v5917
        %v5919 = vshll.u32 920167782, %v5904
        %v5920 = vshrl.u32 1326507024, %v5905
        %v5921 = vor.u32 %v5919, %v5920
        %vm5922 = vcmp.lt.s32.totalorder %v5903, 1
        %vm5923 = vcmp.lt.s32.totalorder %v5903, 2
        %vm5924 = vcmp.lt.s32.totalorder %v5903, 3
        %vm5925 = vcmp.lt.s32.totalorder %v5903, 4
        %v5926 = vsel %vm5922, %v5906, %v5909
        %v5927 = vsel %vm5925, %v5915, 2102212464
        %v5928 = vsel %vm5924, %v5912, %v5927
        %v5929 = vsel %vm5923, %v5926, %v5928
        %v5930 = vsel %vm5922, %v5909, %v5912
        %v5931 = vsel %vm5925, %v5918, 920167782
        %v5932 = vsel %vm5924, %v5915, %v5931
        %v5933 = vsel %vm5923, %v5930, %v5932
        %v5934 = vsel %vm5922, %v5912, %v5915
        %v5935 = vsel %vm5925, %v5921, 1326507024
        %v5936 = vsel %vm5924, %v5918, %v5935
        %v5937 = vsel %vm5923, %v5934, %v5936
        %v5938 = vshll.u32 %v5898, 8
        %v5939 = vmul.u32.u64.compose %v5938, %v5937
        %v5940 = vextract.low.u32 %v5939
        %v5941 = vextract.high.u32 %v5939
        %v5942 = vmul.u32.u64.compose %v5938, %v5933
        %v5943 = vextract.low.u32 %v5942
        %v5944 = vextract.high.u32 %v5942
        %v5945 = vmul.u32 %v5938, %v5929
        %v5946 = vadd.s32 %v5941, %v5943
        %vm5947 = vc.u32 %v5941, %v5943
        %v5948 = vadd.s32 %v5944, 1
        %v5949 = vsel %vm5947, %v5948, %v5944
        %v5950 = vadd.s32 %v5945, %v5949
        %v5951 = vadd.s32 %v5950, 536870912
        %v5952 = vshrl.u32 %v5951, 30
        %v5953 = vshll.u32 %v5952, 30
        %v5954 = vsub.s32 %v5950, %v5953
        %vm5955 = vcmp.lt.s32.totalorder %v5954, 0
        %v5956 = vsub.s32 0, %v5954
        %v5957 = vsel %vm5955, %v5956, %v5954
        %v5958 = vclz %v5957
        %v5959 = vsub.s32 %v5958, 2
        %vm5960 = vcmp.gt.s32.totalorder 0, %v5959
        %v5961 = vsel %vm5960, 0, %v5959
        %v5962 = vsub.s32 32, %v5961
        %v5963 = vshll.u32 %v5954, %v5961
        %v5964 = vshrl.u32 %v5946, %v5962
        %v5965 = vor.u32 %v5963, %v5964
        %v5966 = vsub.s32 4294967266, %v5961
        %v5967 = vadd.s32 %v5966, 127
        %v5968 = vshll.u32 %v5967, 23
        %v5969 = vor.u32 4788187, %v5968
        %v5970 = vand.u32 2147483647, %v5969
        %v5972 = vcvt.s32.f32 %v5965
        %v5973 = vmul.f32 %v5972, %v5970
        %v5974 = vxor.u32 %v5973, 2147483648
        %v5975 = vsel %vm5892, %v5974, %v5973
        %v5976 = vsub.s32 4, %v5952
        %v5977 = vsel %vm5892, %v5976, %v5952
        %v5978 = vsel %vm5891, %v2461, %v5975
        %v5979 = vsel %vm5891, 0, %v5977
        %v5980 = vcosq.f32.pop %v5978
        %v5981 = vsinq.f32.pop %v5978
        %vm5982 = vweird.f32 %v2461
        %v5983 = vand.u32 %v5979, 3
        %vm5984 = vcmp.lt.s32.totalorder %v5983, 2
        %vm5985 = vcmp.eq.s32.totalorder %v5983, 0
        %v5986 = vxor.u32 %v5981, 2147483648
        %v5987 = vsel %vm5985, %v5980, %v5986
        %vm5988 = vcmp.eq.s32.totalorder %v5983, 2
        %v5989 = vxor.u32 %v5980, 2147483648
        %v5990 = vsel %vm5988, %v5989, %v5981
        %v5991 = vsel %vm5984, %v5987, %v5990
        %v5992 = vsel %vm5982, nan, %v5991
        %v5993 = vand.u32 2147483647, %v2462
        %vm5994 = vcmp.le.f32.partialorder %v5993, 0.7853982
        %vm5995 = vcmp.lt.s32.totalorder %v2462, 0
        %v5996 = vand.u32 %v2462, 2139095040
        %v5997 = vshrl.u32 %v5996, 23
        %v5998 = vsub.s32 %v5997, 127
        %v5999 = vand.u32 2147483647, %v2462
        %v6000 = vand.u32 %v5999, 8388607
        %v6001 = vor.u32 %v6000, 8388608
        %v6002 = vsub.s32 0, %v6001
        %v6003 = vadd.s32 %v5998, 1
        %vm6004 = vcmp.gt.s32.totalorder %v6003, 0
        %v6005 = vsel %vm6004, %v6003, 0
        %v6006 = vshrl.u32 %v6005, 5
        %v6007 = vand.u32 %v6005, 31
        %v6008 = vsub.s32 32, %v6007
        %v6009 = vshrl.u32 683565275, %v6008
        %v6010 = vshll.u32 683565275, %v6007
        %v6011 = vshrl.u32 2475754826, %v6008
        %v6012 = vor.u32 %v6010, %v6011
        %v6013 = vshll.u32 2475754826, %v6007
        %v6014 = vshrl.u32 2131351028, %v6008
        %v6015 = vor.u32 %v6013, %v6014
        %v6016 = vshll.u32 2131351028, %v6007
        %v6017 = vshrl.u32 2102212464, %v6008
        %v6018 = vor.u32 %v6016, %v6017
        %v6019 = vshll.u32 2102212464, %v6007
        %v6020 = vshrl.u32 920167782, %v6008
        %v6021 = vor.u32 %v6019, %v6020
        %v6022 = vshll.u32 920167782, %v6007
        %v6023 = vshrl.u32 1326507024, %v6008
        %v6024 = vor.u32 %v6022, %v6023
        %vm6025 = vcmp.lt.s32.totalorder %v6006, 1
        %vm6026 = vcmp.lt.s32.totalorder %v6006, 2
        %vm6027 = vcmp.lt.s32.totalorder %v6006, 3
        %vm6028 = vcmp.lt.s32.totalorder %v6006, 4
        %v6029 = vsel %vm6025, %v6009, %v6012
        %v6030 = vsel %vm6028, %v6018, 2102212464
        %v6031 = vsel %vm6027, %v6015, %v6030
        %v6032 = vsel %vm6026, %v6029, %v6031
        %v6033 = vsel %vm6025, %v6012, %v6015
        %v6034 = vsel %vm6028, %v6021, 920167782
        %v6035 = vsel %vm6027, %v6018, %v6034
        %v6036 = vsel %vm6026, %v6033, %v6035
        %v6037 = vsel %vm6025, %v6015, %v6018
        %v6038 = vsel %vm6028, %v6024, 1326507024
        %v6039 = vsel %vm6027, %v6021, %v6038
        %v6040 = vsel %vm6026, %v6037, %v6039
        %v6041 = vshll.u32 %v6001, 8
        %v6042 = vmul.u32.u64.compose %v6041, %v6040
        %v6043 = vextract.low.u32 %v6042
        %v6044 = vextract.high.u32 %v6042
        %v6045 = vmul.u32.u64.compose %v6041, %v6036
        %v6046 = vextract.low.u32 %v6045
        %v6047 = vextract.high.u32 %v6045
        %v6048 = vmul.u32 %v6041, %v6032
        %v6049 = vadd.s32 %v6044, %v6046
        %vm6050 = vc.u32 %v6044, %v6046
        %v6051 = vadd.s32 %v6047, 1
        %v6052 = vsel %vm6050, %v6051, %v6047
        %v6053 = vadd.s32 %v6048, %v6052
        %v6054 = vadd.s32 %v6053, 536870912
        %v6055 = vshrl.u32 %v6054, 30
        %v6056 = vshll.u32 %v6055, 30
        %v6057 = vsub.s32 %v6053, %v6056
        %vm6058 = vcmp.lt.s32.totalorder %v6057, 0
        %v6059 = vsub.s32 0, %v6057
        %v6060 = vsel %vm6058, %v6059, %v6057
        %v6061 = vclz %v6060
        %v6062 = vsub.s32 %v6061, 2
        %vm6063 = vcmp.gt.s32.totalorder 0, %v6062
        %v6064 = vsel %vm6063, 0, %v6062
        %v6065 = vsub.s32 32, %v6064
        %v6066 = vshll.u32 %v6057, %v6064
        %v6067 = vshrl.u32 %v6049, %v6065
        %v6068 = vor.u32 %v6066, %v6067
        %v6069 = vsub.s32 4294967266, %v6064
        %v6070 = vadd.s32 %v6069, 127
        %v6071 = vshll.u32 %v6070, 23
        %v6072 = vor.u32 4788187, %v6071
        %v6073 = vand.u32 2147483647, %v6072
        %v6075 = vcvt.s32.f32 %v6068
        %v6076 = vmul.f32 %v6075, %v6073
        %v6077 = vxor.u32 %v6076, 2147483648
        %v6078 = vsel %vm5995, %v6077, %v6076
        %v6079 = vsub.s32 4, %v6055
        %v6080 = vsel %vm5995, %v6079, %v6055
        %v6081 = vsel %vm5994, %v2462, %v6078
        %v6082 = vsel %vm5994, 0, %v6080
        %v6083 = vcosq.f32.pop %v6081
        %v6084 = vsinq.f32.pop %v6081
        %vm6085 = vweird.f32 %v2462
        %v6086 = vand.u32 %v6082, 3
        %vm6087 = vcmp.lt.s32.totalorder %v6086, 2
        %vm6088 = vcmp.eq.s32.totalorder %v6086, 0
        %v6089 = vxor.u32 %v6084, 2147483648
        %v6090 = vsel %vm6088, %v6083, %v6089
        %vm6091 = vcmp.eq.s32.totalorder %v6086, 2
        %v6092 = vxor.u32 %v6083, 2147483648
        %v6093 = vsel %vm6091, %v6092, %v6084
        %v6094 = vsel %vm6087, %v6090, %v6093
        %v6095 = vsel %vm6085, nan, %v6094
        %v6096 = vand.u32 2147483647, %v2463
        %vm6097 = vcmp.le.f32.partialorder %v6096, 0.7853982
        %vm6098 = vcmp.lt.s32.totalorder %v2463, 0
        %v6099 = vand.u32 %v2463, 2139095040
        %v6100 = vshrl.u32 %v6099, 23
        %v6101 = vsub.s32 %v6100, 127
        %v6102 = vand.u32 2147483647, %v2463
        %v6103 = vand.u32 %v6102, 8388607
        %v6104 = vor.u32 %v6103, 8388608
        %v6105 = vsub.s32 0, %v6104
        %v6106 = vadd.s32 %v6101, 1
        %vm6107 = vcmp.gt.s32.totalorder %v6106, 0
        %v6108 = vsel %vm6107, %v6106, 0
        %v6109 = vshrl.u32 %v6108, 5
        %v6110 = vand.u32 %v6108, 31
        %v6111 = vsub.s32 32, %v6110
        %v6112 = vshrl.u32 683565275, %v6111
        %v6113 = vshll.u32 683565275, %v6110
        %v6114 = vshrl.u32 2475754826, %v6111
        %v6115 = vor.u32 %v6113, %v6114
        %v6116 = vshll.u32 2475754826, %v6110
        %v6117 = vshrl.u32 2131351028, %v6111
        %v6118 = vor.u32 %v6116, %v6117
        %v6119 = vshll.u32 2131351028, %v6110
        %v6120 = vshrl.u32 2102212464, %v6111
        %v6121 = vor.u32 %v6119, %v6120
        %v6122 = vshll.u32 2102212464, %v6110
        %v6123 = vshrl.u32 920167782, %v6111
        %v6124 = vor.u32 %v6122, %v6123
        %v6125 = vshll.u32 920167782, %v6110
        %v6126 = vshrl.u32 1326507024, %v6111
        %v6127 = vor.u32 %v6125, %v6126
        %vm6128 = vcmp.lt.s32.totalorder %v6109, 1
        %vm6129 = vcmp.lt.s32.totalorder %v6109, 2
        %vm6130 = vcmp.lt.s32.totalorder %v6109, 3
        %vm6131 = vcmp.lt.s32.totalorder %v6109, 4
        %v6132 = vsel %vm6128, %v6112, %v6115
        %v6133 = vsel %vm6131, %v6121, 2102212464
        %v6134 = vsel %vm6130, %v6118, %v6133
        %v6135 = vsel %vm6129, %v6132, %v6134
        %v6136 = vsel %vm6128, %v6115, %v6118
        %v6137 = vsel %vm6131, %v6124, 920167782
        %v6138 = vsel %vm6130, %v6121, %v6137
        %v6139 = vsel %vm6129, %v6136, %v6138
        %v6140 = vsel %vm6128, %v6118, %v6121
        %v6141 = vsel %vm6131, %v6127, 1326507024
        %v6142 = vsel %vm6130, %v6124, %v6141
        %v6143 = vsel %vm6129, %v6140, %v6142
        %v6144 = vshll.u32 %v6104, 8
        %v6145 = vmul.u32.u64.compose %v6144, %v6143
        %v6146 = vextract.low.u32 %v6145
        %v6147 = vextract.high.u32 %v6145
        %v6148 = vmul.u32.u64.compose %v6144, %v6139
        %v6149 = vextract.low.u32 %v6148
        %v6150 = vextract.high.u32 %v6148
        %v6151 = vmul.u32 %v6144, %v6135
        %v6152 = vadd.s32 %v6147, %v6149
        %vm6153 = vc.u32 %v6147, %v6149
        %v6154 = vadd.s32 %v6150, 1
        %v6155 = vsel %vm6153, %v6154, %v6150
        %v6156 = vadd.s32 %v6151, %v6155
        %v6157 = vadd.s32 %v6156, 536870912
        %v6158 = vshrl.u32 %v6157, 30
        %v6159 = vshll.u32 %v6158, 30
        %v6160 = vsub.s32 %v6156, %v6159
        %vm6161 = vcmp.lt.s32.totalorder %v6160, 0
        %v6162 = vsub.s32 0, %v6160
        %v6163 = vsel %vm6161, %v6162, %v6160
        %v6164 = vclz %v6163
        %v6165 = vsub.s32 %v6164, 2
        %vm6166 = vcmp.gt.s32.totalorder 0, %v6165
        %v6167 = vsel %vm6166, 0, %v6165
        %v6168 = vsub.s32 32, %v6167
        %v6169 = vshll.u32 %v6160, %v6167
        %v6170 = vshrl.u32 %v6152, %v6168
        %v6171 = vor.u32 %v6169, %v6170
        %v6172 = vsub.s32 4294967266, %v6167
        %v6173 = vadd.s32 %v6172, 127
        %v6174 = vshll.u32 %v6173, 23
        %v6175 = vor.u32 4788187, %v6174
        %v6176 = vand.u32 2147483647, %v6175
        %v6178 = vcvt.s32.f32 %v6171
        %v6179 = vmul.f32 %v6178, %v6176
        %v6180 = vxor.u32 %v6179, 2147483648
        %v6181 = vsel %vm6098, %v6180, %v6179
        %v6182 = vsub.s32 4, %v6158
        %v6183 = vsel %vm6098, %v6182, %v6158
        %v6184 = vsel %vm6097, %v2463, %v6181
        %v6185 = vsel %vm6097, 0, %v6183
        %v6186 = vcosq.f32.pop %v6184
        %v6187 = vsinq.f32.pop %v6184
        %vm6188 = vweird.f32 %v2463
        %v6189 = vand.u32 %v6185, 3
        %vm6190 = vcmp.lt.s32.totalorder %v6189, 2
        %vm6191 = vcmp.eq.s32.totalorder %v6189, 0
        %v6192 = vxor.u32 %v6187, 2147483648
        %v6193 = vsel %vm6191, %v6186, %v6192
        %vm6194 = vcmp.eq.s32.totalorder %v6189, 2
        %v6195 = vxor.u32 %v6186, 2147483648
        %v6196 = vsel %vm6194, %v6195, %v6187
        %v6197 = vsel %vm6190, %v6193, %v6196
        %v6198 = vsel %vm6188, nan, %v6197
        %v6199 = vand.u32 2147483647, %v2464
        %vm6200 = vcmp.le.f32.partialorder %v6199, 0.7853982
        %vm6201 = vcmp.lt.s32.totalorder %v2464, 0
        %v6202 = vand.u32 %v2464, 2139095040
        %v6203 = vshrl.u32 %v6202, 23
        %v6204 = vsub.s32 %v6203, 127
        %v6205 = vand.u32 2147483647, %v2464
        %v6206 = vand.u32 %v6205, 8388607
        %v6207 = vor.u32 %v6206, 8388608
        %v6208 = vsub.s32 0, %v6207
        %v6209 = vadd.s32 %v6204, 1
        %vm6210 = vcmp.gt.s32.totalorder %v6209, 0
        %v6211 = vsel %vm6210, %v6209, 0
        %v6212 = vshrl.u32 %v6211, 5
        %v6213 = vand.u32 %v6211, 31
        %v6214 = vsub.s32 32, %v6213
        %v6215 = vshrl.u32 683565275, %v6214
        %v6216 = vshll.u32 683565275, %v6213
        %v6217 = vshrl.u32 2475754826, %v6214
        %v6218 = vor.u32 %v6216, %v6217
        %v6219 = vshll.u32 2475754826, %v6213
        %v6220 = vshrl.u32 2131351028, %v6214
        %v6221 = vor.u32 %v6219, %v6220
        %v6222 = vshll.u32 2131351028, %v6213
        %v6223 = vshrl.u32 2102212464, %v6214
        %v6224 = vor.u32 %v6222, %v6223
        %v6225 = vshll.u32 2102212464, %v6213
        %v6226 = vshrl.u32 920167782, %v6214
        %v6227 = vor.u32 %v6225, %v6226
        %v6228 = vshll.u32 920167782, %v6213
        %v6229 = vshrl.u32 1326507024, %v6214
        %v6230 = vor.u32 %v6228, %v6229
        %vm6231 = vcmp.lt.s32.totalorder %v6212, 1
        %vm6232 = vcmp.lt.s32.totalorder %v6212, 2
        %vm6233 = vcmp.lt.s32.totalorder %v6212, 3
        %vm6234 = vcmp.lt.s32.totalorder %v6212, 4
        %v6235 = vsel %vm6231, %v6215, %v6218
        %v6236 = vsel %vm6234, %v6224, 2102212464
        %v6237 = vsel %vm6233, %v6221, %v6236
        %v6238 = vsel %vm6232, %v6235, %v6237
        %v6239 = vsel %vm6231, %v6218, %v6221
        %v6240 = vsel %vm6234, %v6227, 920167782
        %v6241 = vsel %vm6233, %v6224, %v6240
        %v6242 = vsel %vm6232, %v6239, %v6241
        %v6243 = vsel %vm6231, %v6221, %v6224
        %v6244 = vsel %vm6234, %v6230, 1326507024
        %v6245 = vsel %vm6233, %v6227, %v6244
        %v6246 = vsel %vm6232, %v6243, %v6245
        %v6247 = vshll.u32 %v6207, 8
        %v6248 = vmul.u32.u64.compose %v6247, %v6246
        %v6249 = vextract.low.u32 %v6248
        %v6250 = vextract.high.u32 %v6248
        %v6251 = vmul.u32.u64.compose %v6247, %v6242
        %v6252 = vextract.low.u32 %v6251
        %v6253 = vextract.high.u32 %v6251
        %v6254 = vmul.u32 %v6247, %v6238
        %v6255 = vadd.s32 %v6250, %v6252
        %vm6256 = vc.u32 %v6250, %v6252
        %v6257 = vadd.s32 %v6253, 1
        %v6258 = vsel %vm6256, %v6257, %v6253
        %v6259 = vadd.s32 %v6254, %v6258
        %v6260 = vadd.s32 %v6259, 536870912
        %v6261 = vshrl.u32 %v6260, 30
        %v6262 = vshll.u32 %v6261, 30
        %v6263 = vsub.s32 %v6259, %v6262
        %vm6264 = vcmp.lt.s32.totalorder %v6263, 0
        %v6265 = vsub.s32 0, %v6263
        %v6266 = vsel %vm6264, %v6265, %v6263
        %v6267 = vclz %v6266
        %v6268 = vsub.s32 %v6267, 2
        %vm6269 = vcmp.gt.s32.totalorder 0, %v6268
        %v6270 = vsel %vm6269, 0, %v6268
        %v6271 = vsub.s32 32, %v6270
        %v6272 = vshll.u32 %v6263, %v6270
        %v6273 = vshrl.u32 %v6255, %v6271
        %v6274 = vor.u32 %v6272, %v6273
        %v6275 = vsub.s32 4294967266, %v6270
        %v6276 = vadd.s32 %v6275, 127
        %v6277 = vshll.u32 %v6276, 23
        %v6278 = vor.u32 4788187, %v6277
        %v6279 = vand.u32 2147483647, %v6278
        %v6281 = vcvt.s32.f32 %v6274
        %v6282 = vmul.f32 %v6281, %v6279
        %v6283 = vxor.u32 %v6282, 2147483648
        %v6284 = vsel %vm6201, %v6283, %v6282
        %v6285 = vsub.s32 4, %v6261
        %v6286 = vsel %vm6201, %v6285, %v6261
        %v6287 = vsel %vm6200, %v2464, %v6284
        %v6288 = vsel %vm6200, 0, %v6286
        %v6289 = vcosq.f32.pop %v6287
        %v6290 = vsinq.f32.pop %v6287
        %vm6291 = vweird.f32 %v2464
        %v6292 = vand.u32 %v6288, 3
        %vm6293 = vcmp.lt.s32.totalorder %v6292, 2
        %vm6294 = vcmp.eq.s32.totalorder %v6292, 0
        %v6295 = vxor.u32 %v6290, 2147483648
        %v6296 = vsel %vm6294, %v6289, %v6295
        %vm6297 = vcmp.eq.s32.totalorder %v6292, 2
        %v6298 = vxor.u32 %v6289, 2147483648
        %v6299 = vsel %vm6297, %v6298, %v6290
        %v6300 = vsel %vm6293, %v6296, %v6299
        %v6301 = vsel %vm6291, nan, %v6300
        %v6302 = vand.u32 2147483647, %v2465
        %vm6303 = vcmp.le.f32.partialorder %v6302, 0.7853982
        %vm6304 = vcmp.lt.s32.totalorder %v2465, 0
        %v6305 = vand.u32 %v2465, 2139095040
        %v6306 = vshrl.u32 %v6305, 23
        %v6307 = vsub.s32 %v6306, 127
        %v6308 = vand.u32 2147483647, %v2465
        %v6309 = vand.u32 %v6308, 8388607
        %v6310 = vor.u32 %v6309, 8388608
        %v6311 = vsub.s32 0, %v6310
        %v6312 = vadd.s32 %v6307, 1
        %vm6313 = vcmp.gt.s32.totalorder %v6312, 0
        %v6314 = vsel %vm6313, %v6312, 0
        %v6315 = vshrl.u32 %v6314, 5
        %v6316 = vand.u32 %v6314, 31
        %v6317 = vsub.s32 32, %v6316
        %v6318 = vshrl.u32 683565275, %v6317
        %v6319 = vshll.u32 683565275, %v6316
        %v6320 = vshrl.u32 2475754826, %v6317
        %v6321 = vor.u32 %v6319, %v6320
        %v6322 = vshll.u32 2475754826, %v6316
        %v6323 = vshrl.u32 2131351028, %v6317
        %v6324 = vor.u32 %v6322, %v6323
        %v6325 = vshll.u32 2131351028, %v6316
        %v6326 = vshrl.u32 2102212464, %v6317
        %v6327 = vor.u32 %v6325, %v6326
        %v6328 = vshll.u32 2102212464, %v6316
        %v6329 = vshrl.u32 920167782, %v6317
        %v6330 = vor.u32 %v6328, %v6329
        %v6331 = vshll.u32 920167782, %v6316
        %v6332 = vshrl.u32 1326507024, %v6317
        %v6333 = vor.u32 %v6331, %v6332
        %vm6334 = vcmp.lt.s32.totalorder %v6315, 1
        %vm6335 = vcmp.lt.s32.totalorder %v6315, 2
        %vm6336 = vcmp.lt.s32.totalorder %v6315, 3
        %vm6337 = vcmp.lt.s32.totalorder %v6315, 4
        %v6338 = vsel %vm6334, %v6318, %v6321
        %v6339 = vsel %vm6337, %v6327, 2102212464
        %v6340 = vsel %vm6336, %v6324, %v6339
        %v6341 = vsel %vm6335, %v6338, %v6340
        %v6342 = vsel %vm6334, %v6321, %v6324
        %v6343 = vsel %vm6337, %v6330, 920167782
        %v6344 = vsel %vm6336, %v6327, %v6343
        %v6345 = vsel %vm6335, %v6342, %v6344
        %v6346 = vsel %vm6334, %v6324, %v6327
        %v6347 = vsel %vm6337, %v6333, 1326507024
        %v6348 = vsel %vm6336, %v6330, %v6347
        %v6349 = vsel %vm6335, %v6346, %v6348
        %v6350 = vshll.u32 %v6310, 8
        %v6351 = vmul.u32.u64.compose %v6350, %v6349
        %v6352 = vextract.low.u32 %v6351
        %v6353 = vextract.high.u32 %v6351
        %v6354 = vmul.u32.u64.compose %v6350, %v6345
        %v6355 = vextract.low.u32 %v6354
        %v6356 = vextract.high.u32 %v6354
        %v6357 = vmul.u32 %v6350, %v6341
        %v6358 = vadd.s32 %v6353, %v6355
        %vm6359 = vc.u32 %v6353, %v6355
        %v6360 = vadd.s32 %v6356, 1
        %v6361 = vsel %vm6359, %v6360, %v6356
        %v6362 = vadd.s32 %v6357, %v6361
        %v6363 = vadd.s32 %v6362, 536870912
        %v6364 = vshrl.u32 %v6363, 30
        %v6365 = vshll.u32 %v6364, 30
        %v6366 = vsub.s32 %v6362, %v6365
        %vm6367 = vcmp.lt.s32.totalorder %v6366, 0
        %v6368 = vsub.s32 0, %v6366
        %v6369 = vsel %vm6367, %v6368, %v6366
        %v6370 = vclz %v6369
        %v6371 = vsub.s32 %v6370, 2
        %vm6372 = vcmp.gt.s32.totalorder 0, %v6371
        %v6373 = vsel %vm6372, 0, %v6371
        %v6374 = vsub.s32 32, %v6373
        %v6375 = vshll.u32 %v6366, %v6373
        %v6376 = vshrl.u32 %v6358, %v6374
        %v6377 = vor.u32 %v6375, %v6376
        %v6378 = vsub.s32 4294967266, %v6373
        %v6379 = vadd.s32 %v6378, 127
        %v6380 = vshll.u32 %v6379, 23
        %v6381 = vor.u32 4788187, %v6380
        %v6382 = vand.u32 2147483647, %v6381
        %v6384 = vcvt.s32.f32 %v6377
        %v6385 = vmul.f32 %v6384, %v6382
        %v6386 = vxor.u32 %v6385, 2147483648
        %v6387 = vsel %vm6304, %v6386, %v6385
        %v6388 = vsub.s32 4, %v6364
        %v6389 = vsel %vm6304, %v6388, %v6364
        %v6390 = vsel %vm6303, %v2465, %v6387
        %v6391 = vsel %vm6303, 0, %v6389
        %v6392 = vcosq.f32.pop %v6390
        %v6393 = vsinq.f32.pop %v6390
        %vm6394 = vweird.f32 %v2465
        %v6395 = vand.u32 %v6391, 3
        %vm6396 = vcmp.lt.s32.totalorder %v6395, 2
        %vm6397 = vcmp.eq.s32.totalorder %v6395, 0
        %v6398 = vxor.u32 %v6393, 2147483648
        %v6399 = vsel %vm6397, %v6392, %v6398
        %vm6400 = vcmp.eq.s32.totalorder %v6395, 2
        %v6401 = vxor.u32 %v6392, 2147483648
        %v6402 = vsel %vm6400, %v6401, %v6393
        %v6403 = vsel %vm6396, %v6399, %v6402
        %v6404 = vsel %vm6394, nan, %v6403
        %v6405 = vand.u32 2147483647, %v2466
        %vm6406 = vcmp.le.f32.partialorder %v6405, 0.7853982
        %vm6407 = vcmp.lt.s32.totalorder %v2466, 0
        %v6408 = vand.u32 %v2466, 2139095040
        %v6409 = vshrl.u32 %v6408, 23
        %v6410 = vsub.s32 %v6409, 127
        %v6411 = vand.u32 2147483647, %v2466
        %v6412 = vand.u32 %v6411, 8388607
        %v6413 = vor.u32 %v6412, 8388608
        %v6414 = vsub.s32 0, %v6413
        %v6415 = vadd.s32 %v6410, 1
        %vm6416 = vcmp.gt.s32.totalorder %v6415, 0
        %v6417 = vsel %vm6416, %v6415, 0
        %v6418 = vshrl.u32 %v6417, 5
        %v6419 = vand.u32 %v6417, 31
        %v6420 = vsub.s32 32, %v6419
        %v6421 = vshrl.u32 683565275, %v6420
        %v6422 = vshll.u32 683565275, %v6419
        %v6423 = vshrl.u32 2475754826, %v6420
        %v6424 = vor.u32 %v6422, %v6423
        %v6425 = vshll.u32 2475754826, %v6419
        %v6426 = vshrl.u32 2131351028, %v6420
        %v6427 = vor.u32 %v6425, %v6426
        %v6428 = vshll.u32 2131351028, %v6419
        %v6429 = vshrl.u32 2102212464, %v6420
        %v6430 = vor.u32 %v6428, %v6429
        %v6431 = vshll.u32 2102212464, %v6419
        %v6432 = vshrl.u32 920167782, %v6420
        %v6433 = vor.u32 %v6431, %v6432
        %v6434 = vshll.u32 920167782, %v6419
        %v6435 = vshrl.u32 1326507024, %v6420
        %v6436 = vor.u32 %v6434, %v6435
        %vm6437 = vcmp.lt.s32.totalorder %v6418, 1
        %vm6438 = vcmp.lt.s32.totalorder %v6418, 2
        %vm6439 = vcmp.lt.s32.totalorder %v6418, 3
        %vm6440 = vcmp.lt.s32.totalorder %v6418, 4
        %v6441 = vsel %vm6437, %v6421, %v6424
        %v6442 = vsel %vm6440, %v6430, 2102212464
        %v6443 = vsel %vm6439, %v6427, %v6442
        %v6444 = vsel %vm6438, %v6441, %v6443
        %v6445 = vsel %vm6437, %v6424, %v6427
        %v6446 = vsel %vm6440, %v6433, 920167782
        %v6447 = vsel %vm6439, %v6430, %v6446
        %v6448 = vsel %vm6438, %v6445, %v6447
        %v6449 = vsel %vm6437, %v6427, %v6430
        %v6450 = vsel %vm6440, %v6436, 1326507024
        %v6451 = vsel %vm6439, %v6433, %v6450
        %v6452 = vsel %vm6438, %v6449, %v6451
        %v6453 = vshll.u32 %v6413, 8
        %v6454 = vmul.u32.u64.compose %v6453, %v6452
        %v6455 = vextract.low.u32 %v6454
        %v6456 = vextract.high.u32 %v6454
        %v6457 = vmul.u32.u64.compose %v6453, %v6448
        %v6458 = vextract.low.u32 %v6457
        %v6459 = vextract.high.u32 %v6457
        %v6460 = vmul.u32 %v6453, %v6444
        %v6461 = vadd.s32 %v6456, %v6458
        %vm6462 = vc.u32 %v6456, %v6458
        %v6463 = vadd.s32 %v6459, 1
        %v6464 = vsel %vm6462, %v6463, %v6459
        %v6465 = vadd.s32 %v6460, %v6464
        %v6466 = vadd.s32 %v6465, 536870912
        %v6467 = vshrl.u32 %v6466, 30
        %v6468 = vshll.u32 %v6467, 30
        %v6469 = vsub.s32 %v6465, %v6468
        %vm6470 = vcmp.lt.s32.totalorder %v6469, 0
        %v6471 = vsub.s32 0, %v6469
        %v6472 = vsel %vm6470, %v6471, %v6469
        %v6473 = vclz %v6472
        %v6474 = vsub.s32 %v6473, 2
        %vm6475 = vcmp.gt.s32.totalorder 0, %v6474
        %v6476 = vsel %vm6475, 0, %v6474
        %v6477 = vsub.s32 32, %v6476
        %v6478 = vshll.u32 %v6469, %v6476
        %v6479 = vshrl.u32 %v6461, %v6477
        %v6480 = vor.u32 %v6478, %v6479
        %v6481 = vsub.s32 4294967266, %v6476
        %v6482 = vadd.s32 %v6481, 127
        %v6483 = vshll.u32 %v6482, 23
        %v6484 = vor.u32 4788187, %v6483
        %v6485 = vand.u32 2147483647, %v6484
        %v6487 = vcvt.s32.f32 %v6480
        %v6488 = vmul.f32 %v6487, %v6485
        %v6489 = vxor.u32 %v6488, 2147483648
        %v6490 = vsel %vm6407, %v6489, %v6488
        %v6491 = vsub.s32 4, %v6467
        %v6492 = vsel %vm6407, %v6491, %v6467
        %v6493 = vsel %vm6406, %v2466, %v6490
        %v6494 = vsel %vm6406, 0, %v6492
        %v6495 = vcosq.f32.pop %v6493
        %v6496 = vsinq.f32.pop %v6493
        %vm6497 = vweird.f32 %v2466
        %v6498 = vand.u32 %v6494, 3
        %vm6499 = vcmp.lt.s32.totalorder %v6498, 2
        %vm6500 = vcmp.eq.s32.totalorder %v6498, 0
        %v6501 = vxor.u32 %v6496, 2147483648
        %v6502 = vsel %vm6500, %v6495, %v6501
        %vm6503 = vcmp.eq.s32.totalorder %v6498, 2
        %v6504 = vxor.u32 %v6495, 2147483648
        %v6505 = vsel %vm6503, %v6504, %v6496
        %v6506 = vsel %vm6499, %v6502, %v6505
        %v6507 = vsel %vm6497, nan, %v6506
        %v6508 = vand.u32 2147483647, %v2467
        %vm6509 = vcmp.le.f32.partialorder %v6508, 0.7853982
        %vm6510 = vcmp.lt.s32.totalorder %v2467, 0
        %v6511 = vand.u32 %v2467, 2139095040
        %v6512 = vshrl.u32 %v6511, 23
        %v6513 = vsub.s32 %v6512, 127
        %v6514 = vand.u32 2147483647, %v2467
        %v6515 = vand.u32 %v6514, 8388607
        %v6516 = vor.u32 %v6515, 8388608
        %v6517 = vsub.s32 0, %v6516
        %v6518 = vadd.s32 %v6513, 1
        %vm6519 = vcmp.gt.s32.totalorder %v6518, 0
        %v6520 = vsel %vm6519, %v6518, 0
        %v6521 = vshrl.u32 %v6520, 5
        %v6522 = vand.u32 %v6520, 31
        %v6523 = vsub.s32 32, %v6522
        %v6524 = vshrl.u32 683565275, %v6523
        %v6525 = vshll.u32 683565275, %v6522
        %v6526 = vshrl.u32 2475754826, %v6523
        %v6527 = vor.u32 %v6525, %v6526
        %v6528 = vshll.u32 2475754826, %v6522
        %v6529 = vshrl.u32 2131351028, %v6523
        %v6530 = vor.u32 %v6528, %v6529
        %v6531 = vshll.u32 2131351028, %v6522
        %v6532 = vshrl.u32 2102212464, %v6523
        %v6533 = vor.u32 %v6531, %v6532
        %v6534 = vshll.u32 2102212464, %v6522
        %v6535 = vshrl.u32 920167782, %v6523
        %v6536 = vor.u32 %v6534, %v6535
        %v6537 = vshll.u32 920167782, %v6522
        %v6538 = vshrl.u32 1326507024, %v6523
        %v6539 = vor.u32 %v6537, %v6538
        %vm6540 = vcmp.lt.s32.totalorder %v6521, 1
        %vm6541 = vcmp.lt.s32.totalorder %v6521, 2
        %vm6542 = vcmp.lt.s32.totalorder %v6521, 3
        %vm6543 = vcmp.lt.s32.totalorder %v6521, 4
        %v6544 = vsel %vm6540, %v6524, %v6527
        %v6545 = vsel %vm6543, %v6533, 2102212464
        %v6546 = vsel %vm6542, %v6530, %v6545
        %v6547 = vsel %vm6541, %v6544, %v6546
        %v6548 = vsel %vm6540, %v6527, %v6530
        %v6549 = vsel %vm6543, %v6536, 920167782
        %v6550 = vsel %vm6542, %v6533, %v6549
        %v6551 = vsel %vm6541, %v6548, %v6550
        %v6552 = vsel %vm6540, %v6530, %v6533
        %v6553 = vsel %vm6543, %v6539, 1326507024
        %v6554 = vsel %vm6542, %v6536, %v6553
        %v6555 = vsel %vm6541, %v6552, %v6554
        %v6556 = vshll.u32 %v6516, 8
        %v6557 = vmul.u32.u64.compose %v6556, %v6555
        %v6558 = vextract.low.u32 %v6557
        %v6559 = vextract.high.u32 %v6557
        %v6560 = vmul.u32.u64.compose %v6556, %v6551
        %v6561 = vextract.low.u32 %v6560
        %v6562 = vextract.high.u32 %v6560
        %v6563 = vmul.u32 %v6556, %v6547
        %v6564 = vadd.s32 %v6559, %v6561
        %vm6565 = vc.u32 %v6559, %v6561
        %v6566 = vadd.s32 %v6562, 1
        %v6567 = vsel %vm6565, %v6566, %v6562
        %v6568 = vadd.s32 %v6563, %v6567
        %v6569 = vadd.s32 %v6568, 536870912
        %v6570 = vshrl.u32 %v6569, 30
        %v6571 = vshll.u32 %v6570, 30
        %v6572 = vsub.s32 %v6568, %v6571
        %vm6573 = vcmp.lt.s32.totalorder %v6572, 0
        %v6574 = vsub.s32 0, %v6572
        %v6575 = vsel %vm6573, %v6574, %v6572
        %v6576 = vclz %v6575
        %v6577 = vsub.s32 %v6576, 2
        %vm6578 = vcmp.gt.s32.totalorder 0, %v6577
        %v6579 = vsel %vm6578, 0, %v6577
        %v6580 = vsub.s32 32, %v6579
        %v6581 = vshll.u32 %v6572, %v6579
        %v6582 = vshrl.u32 %v6564, %v6580
        %v6583 = vor.u32 %v6581, %v6582
        %v6584 = vsub.s32 4294967266, %v6579
        %v6585 = vadd.s32 %v6584, 127
        %v6586 = vshll.u32 %v6585, 23
        %v6587 = vor.u32 4788187, %v6586
        %v6588 = vand.u32 2147483647, %v6587
        %v6590 = vcvt.s32.f32 %v6583
        %v6591 = vmul.f32 %v6590, %v6588
        %v6592 = vxor.u32 %v6591, 2147483648
        %v6593 = vsel %vm6510, %v6592, %v6591
        %v6594 = vsub.s32 4, %v6570
        %v6595 = vsel %vm6510, %v6594, %v6570
        %v6596 = vsel %vm6509, %v2467, %v6593
        %v6597 = vsel %vm6509, 0, %v6595
        %v6598 = vcosq.f32.pop %v6596
        %v6599 = vsinq.f32.pop %v6596
        %vm6600 = vweird.f32 %v2467
        %v6601 = vand.u32 %v6597, 3
        %vm6602 = vcmp.lt.s32.totalorder %v6601, 2
        %vm6603 = vcmp.eq.s32.totalorder %v6601, 0
        %v6604 = vxor.u32 %v6599, 2147483648
        %v6605 = vsel %vm6603, %v6598, %v6604
        %vm6606 = vcmp.eq.s32.totalorder %v6601, 2
        %v6607 = vxor.u32 %v6598, 2147483648
        %v6608 = vsel %vm6606, %v6607, %v6599
        %v6609 = vsel %vm6602, %v6605, %v6608
        %v6610 = vsel %vm6600, nan, %v6609
        %v6611 = vand.u32 2147483647, %v2468
        %vm6612 = vcmp.le.f32.partialorder %v6611, 0.7853982
        %vm6613 = vcmp.lt.s32.totalorder %v2468, 0
        %v6614 = vand.u32 %v2468, 2139095040
        %v6615 = vshrl.u32 %v6614, 23
        %v6616 = vsub.s32 %v6615, 127
        %v6617 = vand.u32 2147483647, %v2468
        %v6618 = vand.u32 %v6617, 8388607
        %v6619 = vor.u32 %v6618, 8388608
        %v6620 = vsub.s32 0, %v6619
        %v6621 = vadd.s32 %v6616, 1
        %vm6622 = vcmp.gt.s32.totalorder %v6621, 0
        %v6623 = vsel %vm6622, %v6621, 0
        %v6624 = vshrl.u32 %v6623, 5
        %v6625 = vand.u32 %v6623, 31
        %v6626 = vsub.s32 32, %v6625
        %v6627 = vshrl.u32 683565275, %v6626
        %v6628 = vshll.u32 683565275, %v6625
        %v6629 = vshrl.u32 2475754826, %v6626
        %v6630 = vor.u32 %v6628, %v6629
        %v6631 = vshll.u32 2475754826, %v6625
        %v6632 = vshrl.u32 2131351028, %v6626
        %v6633 = vor.u32 %v6631, %v6632
        %v6634 = vshll.u32 2131351028, %v6625
        %v6635 = vshrl.u32 2102212464, %v6626
        %v6636 = vor.u32 %v6634, %v6635
        %v6637 = vshll.u32 2102212464, %v6625
        %v6638 = vshrl.u32 920167782, %v6626
        %v6639 = vor.u32 %v6637, %v6638
        %v6640 = vshll.u32 920167782, %v6625
        %v6641 = vshrl.u32 1326507024, %v6626
        %v6642 = vor.u32 %v6640, %v6641
        %vm6643 = vcmp.lt.s32.totalorder %v6624, 1
        %vm6644 = vcmp.lt.s32.totalorder %v6624, 2
        %vm6645 = vcmp.lt.s32.totalorder %v6624, 3
        %vm6646 = vcmp.lt.s32.totalorder %v6624, 4
        %v6647 = vsel %vm6643, %v6627, %v6630
        %v6648 = vsel %vm6646, %v6636, 2102212464
        %v6649 = vsel %vm6645, %v6633, %v6648
        %v6650 = vsel %vm6644, %v6647, %v6649
        %v6651 = vsel %vm6643, %v6630, %v6633
        %v6652 = vsel %vm6646, %v6639, 920167782
        %v6653 = vsel %vm6645, %v6636, %v6652
        %v6654 = vsel %vm6644, %v6651, %v6653
        %v6655 = vsel %vm6643, %v6633, %v6636
        %v6656 = vsel %vm6646, %v6642, 1326507024
        %v6657 = vsel %vm6645, %v6639, %v6656
        %v6658 = vsel %vm6644, %v6655, %v6657
        %v6659 = vshll.u32 %v6619, 8
        %v6660 = vmul.u32.u64.compose %v6659, %v6658
        %v6661 = vextract.low.u32 %v6660
        %v6662 = vextract.high.u32 %v6660
        %v6663 = vmul.u32.u64.compose %v6659, %v6654
        %v6664 = vextract.low.u32 %v6663
        %v6665 = vextract.high.u32 %v6663
        %v6666 = vmul.u32 %v6659, %v6650
        %v6667 = vadd.s32 %v6662, %v6664
        %vm6668 = vc.u32 %v6662, %v6664
        %v6669 = vadd.s32 %v6665, 1
        %v6670 = vsel %vm6668, %v6669, %v6665
        %v6671 = vadd.s32 %v6666, %v6670
        %v6672 = vadd.s32 %v6671, 536870912
        %v6673 = vshrl.u32 %v6672, 30
        %v6674 = vshll.u32 %v6673, 30
        %v6675 = vsub.s32 %v6671, %v6674
        %vm6676 = vcmp.lt.s32.totalorder %v6675, 0
        %v6677 = vsub.s32 0, %v6675
        %v6678 = vsel %vm6676, %v6677, %v6675
        %v6679 = vclz %v6678
        %v6680 = vsub.s32 %v6679, 2
        %vm6681 = vcmp.gt.s32.totalorder 0, %v6680
        %v6682 = vsel %vm6681, 0, %v6680
        %v6683 = vsub.s32 32, %v6682
        %v6684 = vshll.u32 %v6675, %v6682
        %v6685 = vshrl.u32 %v6667, %v6683
        %v6686 = vor.u32 %v6684, %v6685
        %v6687 = vsub.s32 4294967266, %v6682
        %v6688 = vadd.s32 %v6687, 127
        %v6689 = vshll.u32 %v6688, 23
        %v6690 = vor.u32 4788187, %v6689
        %v6691 = vand.u32 2147483647, %v6690
        %v6693 = vcvt.s32.f32 %v6686
        %v6694 = vmul.f32 %v6693, %v6691
        %v6695 = vxor.u32 %v6694, 2147483648
        %v6696 = vsel %vm6613, %v6695, %v6694
        %v6697 = vsub.s32 4, %v6673
        %v6698 = vsel %vm6613, %v6697, %v6673
        %v6699 = vsel %vm6612, %v2468, %v6696
        %v6700 = vsel %vm6612, 0, %v6698
        %v6701 = vcosq.f32.pop %v6699
        %v6702 = vsinq.f32.pop %v6699
        %vm6703 = vweird.f32 %v2468
        %v6704 = vand.u32 %v6700, 3
        %vm6705 = vcmp.lt.s32.totalorder %v6704, 2
        %vm6706 = vcmp.eq.s32.totalorder %v6704, 0
        %v6707 = vxor.u32 %v6702, 2147483648
        %v6708 = vsel %vm6706, %v6701, %v6707
        %vm6709 = vcmp.eq.s32.totalorder %v6704, 2
        %v6710 = vxor.u32 %v6701, 2147483648
        %v6711 = vsel %vm6709, %v6710, %v6702
        %v6712 = vsel %vm6705, %v6708, %v6711
        %v6713 = vsel %vm6703, nan, %v6712
        %6714 = vset.pattern.permute.xlu0 2
        %6715 = vperm.xlu0 %6714, %v2231
        %v6716 = vpop.permute.xlu0 %6715
        %6718 = vset.pattern.permute.xlu0 2
        %6719 = vperm.xlu0 %6718, %v2232
        %v6720 = vpop.permute.xlu0 %6719
        %6722 = vset.pattern.permute.xlu0 2
        %6723 = vperm.xlu0 %6722, %v2233
        %v6724 = vpop.permute.xlu0 %6723
        %6726 = vset.pattern.permute.xlu0 2
        %6727 = vperm.xlu0 %6726, %v2234
        %v6728 = vpop.permute.xlu0 %6727
        %6730 = vset.pattern.permute.xlu0 2
        %6731 = vperm.xlu0 %6730, %v2235
        %v6732 = vpop.permute.xlu0 %6731
        %v6734 = vmul.f32 %v6716, %v4756
        %v6735 = vmul.f32 %v6716, %v4859
        %v6736 = vmul.f32 %v6716, %v4962
        %v6737 = vmul.f32 %v6716, %v5065
        %v6738 = vmul.f32 %v6720, %v5168
        %v6739 = vmul.f32 %v6720, %v5271
        %v6740 = vmul.f32 %v6720, %v5374
        %v6741 = vmul.f32 %v6720, %v5477
        %v6742 = vmul.f32 %v6724, %v5580
        %v6743 = vmul.f32 %v6724, %v5683
        %v6744 = vmul.f32 %v6724, %v5786
        %v6745 = vmul.f32 %v6724, %v5889
        %v6746 = vmul.f32 %v6728, %v5992
        %v6747 = vmul.f32 %v6728, %v6095
        %v6748 = vmul.f32 %v6728, %v6198
        %v6749 = vmul.f32 %v6728, %v6301
        %v6750 = vmul.f32 %v6732, %v6404
        %v6751 = vmul.f32 %v6732, %v6507
        %v6752 = vmul.f32 %v6732, %v6610
        %v6753 = vmul.f32 %v6732, %v6713
        %v6754 = vadd.f32 %v4634, %v6734
        %v6755 = vadd.f32 %v4635, %v6735
        %v6756 = vadd.f32 %v4636, %v6736
        %v6757 = vadd.f32 %v4637, %v6737
        %v6758 = vadd.f32 %v4638, %v6738
        %v6759 = vadd.f32 %v4639, %v6739
        %v6760 = vadd.f32 %v4640, %v6740
        %v6761 = vadd.f32 %v4641, %v6741
        %v6762 = vadd.f32 %v4642, %v6742
        %v6763 = vadd.f32 %v4643, %v6743
        %v6764 = vadd.f32 %v4644, %v6744
        %v6765 = vadd.f32 %v4645, %v6745
        %v6766 = vadd.f32 %v4646, %v6746
        %v6767 = vadd.f32 %v4647, %v6747
        %v6768 = vadd.f32 %v4648, %v6748
        %v6769 = vadd.f32 %v4649, %v6749
        %v6770 = vadd.f32 %v4650, %v6750
        %v6771 = vadd.f32 %v4651, %v6751
        %v6772 = vadd.f32 %v4652, %v6752
        %v6773 = vadd.f32 %v4653, %v6753
        %v6774 = vld [vmem:[%s8] sm:$0xf]
        %v6775 = vld [vmem:[%s8 + $0x4] sm:$0xf]
        %v6776 = vld [vmem:[%s8 + $0x8] sm:$0xf]
        %v6777 = vld [vmem:[%s8 + $0xc] sm:$0xf]
        %v6778 = vld [vmem:[%s8 + $0x10] sm:$0xf]
        %v6779 = vld [vmem:[%s8 + $0x14] sm:$0xf]
        %v6780 = vld [vmem:[%s8 + $0x18] sm:$0xf]
        %v6781 = vld [vmem:[%s8 + $0x1c] sm:$0xf]
        %v6782 = vld [vmem:[%s8 + $0x20] sm:$0xf]
        %v6783 = vld [vmem:[%s8 + $0x24] sm:$0xf]
        %v6784 = vld [vmem:[%s8 + $0x28] sm:$0xf]
        %v6785 = vld [vmem:[%s8 + $0x2c] sm:$0xf]
        %v6786 = vld [vmem:[%s8 + $0x30] sm:$0xf]
        %v6787 = vld [vmem:[%s8 + $0x34] sm:$0xf]
        %v6788 = vld [vmem:[%s8 + $0x38] sm:$0xf]
        %v6789 = vld [vmem:[%s8 + $0x3c] sm:$0xf]
        %v6790 = vpack.c.bf16 %v6758, %v6754
        %v6791 = vpack.c.bf16 %v6759, %v6755
        %v6792 = vpack.c.bf16 %v6760, %v6756
        %v6793 = vpack.c.bf16 %v6761, %v6757
        %v6794 = vpack.c.bf16 %v6766, %v6762
        %v6795 = vpack.c.bf16 %v6767, %v6763
        %v6796 = vpack.c.bf16 %v6768, %v6764
        %v6797 = vpack.c.bf16 %v6769, %v6765
        %v6798 = vpack.c.bf16 %v6770, %v6770
        %v6799 = vpack.c.bf16 %v6771, %v6771
        %v6800 = vpack.c.bf16 %v6772, %v6772
        %v6801 = vpack.c.bf16 %v6773, %v6773
        %v6802 = vld [vmem:[%s9] sm:$0xff]
        %v6803 = vld [vmem:[%s9 + $0x8] sm:$0xff]
        %v6804 = vld [vmem:[%s9 + $0x10] sm:$0xff]
        %v6805 = vld [vmem:[%s9 + $0x18] sm:$0xff]
        %v6806 = vld [vmem:[%s9 + $0x20] sm:$0xff]
        %v6807 = vld [vmem:[%s9 + $0x28] sm:$0xff]
        %v6808 = vld [vmem:[%s9 + $0x30] sm:$0xff]
        %v6809 = vld [vmem:[%s9 + $0x38] sm:$0xff]
        %v6810 = vld [vmem:[%s9 + $0x40] sm:$0xff]
        %v6811 = vld [vmem:[%s9 + $0x48] sm:$0xff]
        %v6812 = vld [vmem:[%s9 + $0x50] sm:$0xff]
        %v6813 = vld [vmem:[%s9 + $0x58] sm:$0xff]
        %v6814 = vld [vmem:[%s9 + $0x60] sm:$0xff]
        %v6815 = vld [vmem:[%s9 + $0x68] sm:$0xff]
        %v6816 = vld [vmem:[%s9 + $0x70] sm:$0xff]
        %v6817 = vld [vmem:[%s9 + $0x78] sm:$0xff]
        %6819 = vset.pattern.permute.xlu0 0
        %6820 = vperm.xlu0 %6819, %v6802
        %v6821 = vpop.permute.xlu0 %6820
        %6824 = vset.pattern.permute.xlu0 0
        %6825 = vperm.xlu0 %6824, %v6803
        %v6826 = vpop.permute.xlu0 %6825
        %6829 = vset.pattern.permute.xlu0 0
        %6830 = vperm.xlu0 %6829, %v6804
        %v6831 = vpop.permute.xlu0 %6830
        %6834 = vset.pattern.permute.xlu0 0
        %6835 = vperm.xlu0 %6834, %v6805
        %v6836 = vpop.permute.xlu0 %6835
        %6839 = vset.pattern.permute.xlu0 0
        %6840 = vperm.xlu0 %6839, %v6806
        %v6841 = vpop.permute.xlu0 %6840
        %6844 = vset.pattern.permute.xlu0 0
        %6845 = vperm.xlu0 %6844, %v6807
        %v6846 = vpop.permute.xlu0 %6845
        %6849 = vset.pattern.permute.xlu0 0
        %6850 = vperm.xlu0 %6849, %v6808
        %v6851 = vpop.permute.xlu0 %6850
        %6854 = vset.pattern.permute.xlu0 0
        %6855 = vperm.xlu0 %6854, %v6809
        %v6856 = vpop.permute.xlu0 %6855
        %6859 = vset.pattern.permute.xlu0 0
        %6860 = vperm.xlu0 %6859, %v6810
        %v6861 = vpop.permute.xlu0 %6860
        %6864 = vset.pattern.permute.xlu0 0
        %6865 = vperm.xlu0 %6864, %v6811
        %v6866 = vpop.permute.xlu0 %6865
        %6869 = vset.pattern.permute.xlu0 0
        %6870 = vperm.xlu0 %6869, %v6812
        %v6871 = vpop.permute.xlu0 %6870
        %6874 = vset.pattern.permute.xlu0 0
        %6875 = vperm.xlu0 %6874, %v6813
        %v6876 = vpop.permute.xlu0 %6875
        %6879 = vset.pattern.permute.xlu0 0
        %6880 = vperm.xlu0 %6879, %v6814
        %v6881 = vpop.permute.xlu0 %6880
        %6884 = vset.pattern.permute.xlu0 0
        %6885 = vperm.xlu0 %6884, %v6815
        %v6886 = vpop.permute.xlu0 %6885
        %6889 = vset.pattern.permute.xlu0 0
        %6890 = vperm.xlu0 %6889, %v6816
        %v6891 = vpop.permute.xlu0 %6890
        %6894 = vset.pattern.permute.xlu0 0
        %6895 = vperm.xlu0 %6894, %v6817
        %v6896 = vpop.permute.xlu0 %6895
        %v6914 = vunpack.c.l.b16 %v6774
        %v6915 = vunpack.c.l.b16 %v6775
        %v6916 = vunpack.c.l.b16 %v6776
        %v6917 = vunpack.c.l.b16 %v6777
        %v6918 = vunpack.c.l.b16 %v6778
        %v6919 = vunpack.c.l.b16 %v6779
        %v6920 = vunpack.c.l.b16 %v6780
        %v6921 = vunpack.c.l.b16 %v6781
        %v6922 = vunpack.c.l.b16 %v6782
        %v6923 = vunpack.c.l.b16 %v6783
        %v6924 = vunpack.c.l.b16 %v6784
        %v6925 = vunpack.c.l.b16 %v6785
        %v6926 = vunpack.c.l.b16 %v6786
        %v6927 = vunpack.c.l.b16 %v6787
        %v6928 = vunpack.c.l.b16 %v6788
        %v6929 = vunpack.c.l.b16 %v6789
        %v6930 = vpack.c.b16 %v6915, %v6914
        %v6931 = vpack.c.b16 %v6917, %v6916
        %v6932 = vpack.c.b16 %v6919, %v6918
        %v6933 = vpack.c.b16 %v6921, %v6920
        %v6934 = vpack.c.b16 %v6923, %v6922
        %v6935 = vpack.c.b16 %v6925, %v6924
        %v6936 = vpack.c.b16 %v6927, %v6926
        %v6937 = vpack.c.b16 %v6929, %v6928
        %vm6938 = vcmask 326656
        %v6940 = vsel %vm6938, %v6930, 0
        %v6943 = vsel %vm6938, %v6931, 0
        %v6946 = vsel %vm6938, %v6932, 0
        %v6949 = vsel %vm6938, %v6933, 0
        %v6952 = vsel %vm6938, %v6934, 0
        %v6955 = vsel %vm6938, %v6935, 0
        %v6958 = vsel %vm6938, %v6936, 0
        %v6961 = vsel %vm6938, %v6937, 0
        %vm6963 = vcmask 1043456
        %v6965 = vsel %vm6963, %v6798, 0
        %v6968 = vsel %vm6963, %v6799, 0
        %v6971 = vsel %vm6963, %v6800, 0
        %v6974 = vsel %vm6963, %v6801, 0
        %6976 = vmatprep.subr.bf16.mxu0 %v6791
        %6977 = vmatpush1.bf16.msra.mxu0 %v6790
        %6978 = vmatprep.subr.bf16.mxu0 %v6795
        %6979 = vmatpush1.bf16.msra.mxu0 %v6794
        %6980 = vmatprep.subr.bf16.mxu0 %v6968
        %6981 = vmatpush1.bf16.msra.mxu0 %v6965
        %6982 = vmatprep.subr.bf16.mxu0 0
        %6983 = vmatpush1.bf16.msra.mxu0 0
        %6984 = vmatprep.subr.bf16.mxu0 0
        %6985 = vmatpush1.bf16.msra.mxu0 0
        %6986 = vmatprep.subr.bf16.mxu0 0
        %6987 = vmatpush1.bf16.msra.mxu0 0
        %6988 = vmatprep.subr.bf16.mxu0 0
        %6989 = vmatpush1.bf16.msra.mxu0 0
        %6990 = vmatprep.subr.bf16.mxu0 0
        %6991 = vmatpush1.bf16.msra.mxu0 0
        %6992 = vmatprep.subr.bf16.mxu0 0
        %6993 = vmatpush1.bf16.msra.mxu0 0
        %6994 = vmatprep.subr.bf16.mxu0 0
        %6995 = vmatpush1.bf16.msra.mxu0 0
        %6996 = vmatprep.subr.bf16.mxu0 0
        %6997 = vmatpush1.bf16.msra.mxu0 0
        %6998 = vmatprep.subr.bf16.mxu0 0
        %6999 = vmatpush1.bf16.msra.mxu0 0
        %7000 = vmatprep.subr.bf16.mxu0 0
        %7001 = vmatpush1.bf16.msra.mxu0 0
        %7002 = vmatprep.subr.bf16.mxu0 0
        %7003 = vmatpush1.bf16.msra.mxu0 0
        %7004 = vmatprep.subr.bf16.mxu0 0
        %7005 = vmatpush1.bf16.msra.mxu0 0
        %7006 = vmatprep.subr.bf16.mxu0 0
        %7007 = vmatpush1.bf16.msra.mxu0 0
        %7008 = vmatprep.mubr.bf16.mxu0 0
        %7009 = vmatmul.mubr.bf16.gmra.mrb[0].mxu0 %v6940
        %v7010 = vpop.f32.mrb[0].mxu0
        %v7011 = vadd.f32 %v6821, %v7010
        %v7012 = vpop.f32.mrb[0].mxu0
        %v7013 = vadd.f32 %v6821, %v7012
        %v7014 = vpop.f32.mrb[0].mxu0
        %v7015 = vadd.f32 %v6826, %v7014
        %v7016 = vpop.f32.mrb[0].mxu0
        %v7017 = vadd.f32 %v6826, %v7016
        %7018 = vmatprep.mubr.bf16.mxu0 0
        %7019 = vmatmul.mubr.bf16.gmra.mrb[0].mxu0 %v6943
        %v7020 = vpop.f32.mrb[0].mxu0
        %v7021 = vadd.f32 %v6831, %v7020
        %v7022 = vpop.f32.mrb[0].mxu0
        %v7023 = vadd.f32 %v6831, %v7022
        %v7024 = vpop.f32.mrb[0].mxu0
        %v7025 = vadd.f32 %v6836, %v7024
        %v7026 = vpop.f32.mrb[0].mxu0
        %v7027 = vadd.f32 %v6836, %v7026
        %7028 = vmatprep.mubr.bf16.mxu0 0
        %7029 = vmatmul.mubr.bf16.gmra.mrb[0].mxu0 %v6946
        %v7030 = vpop.f32.mrb[0].mxu0
        %v7031 = vadd.f32 %v6841, %v7030
        %v7032 = vpop.f32.mrb[0].mxu0
        %v7033 = vadd.f32 %v6841, %v7032
        %v7034 = vpop.f32.mrb[0].mxu0
        %v7035 = vadd.f32 %v6846, %v7034
        %v7036 = vpop.f32.mrb[0].mxu0
        %v7037 = vadd.f32 %v6846, %v7036
        %7038 = vmatprep.mubr.bf16.mxu0 0
        %7039 = vmatmul.mubr.bf16.gmra.mrb[0].mxu0 %v6949
        %v7040 = vpop.f32.mrb[0].mxu0
        %v7041 = vadd.f32 %v6851, %v7040
        %v7042 = vpop.f32.mrb[0].mxu0
        %v7043 = vadd.f32 %v6851, %v7042
        %v7044 = vpop.f32.mrb[0].mxu0
        %v7045 = vadd.f32 %v6856, %v7044
        %v7046 = vpop.f32.mrb[0].mxu0
        %v7047 = vadd.f32 %v6856, %v7046
        %7048 = vmatprep.mubr.bf16.mxu0 0
        %7049 = vmatmul.mubr.bf16.gmra.mrb[0].mxu0 %v6952
        %v7050 = vpop.f32.mrb[0].mxu0
        %v7051 = vadd.f32 %v6861, %v7050
        %v7052 = vpop.f32.mrb[0].mxu0
        %v7053 = vadd.f32 %v6861, %v7052
        %v7054 = vpop.f32.mrb[0].mxu0
        %v7055 = vadd.f32 %v6866, %v7054
        %v7056 = vpop.f32.mrb[0].mxu0
        %v7057 = vadd.f32 %v6866, %v7056
        %7058 = vmatprep.mubr.bf16.mxu0 0
        %7059 = vmatmul.mubr.bf16.gmra.mrb[0].mxu0 %v6955
        %v7060 = vpop.f32.mrb[0].mxu0
        %v7061 = vadd.f32 %v6871, %v7060
        %v7062 = vpop.f32.mrb[0].mxu0
        %v7063 = vadd.f32 %v6871, %v7062
        %v7064 = vpop.f32.mrb[0].mxu0
        %v7065 = vadd.f32 %v6876, %v7064
        %v7066 = vpop.f32.mrb[0].mxu0
        %v7067 = vadd.f32 %v6876, %v7066
        %7068 = vmatprep.mubr.bf16.mxu0 0
        %7069 = vmatmul.mubr.bf16.gmra.mrb[0].mxu0 %v6958
        %v7070 = vpop.f32.mrb[0].mxu0
        %v7071 = vadd.f32 %v6881, %v7070
        %v7072 = vpop.f32.mrb[0].mxu0
        %v7073 = vadd.f32 %v6881, %v7072
        %v7074 = vpop.f32.mrb[0].mxu0
        %v7075 = vadd.f32 %v6886, %v7074
        %v7076 = vpop.f32.mrb[0].mxu0
        %v7077 = vadd.f32 %v6886, %v7076
        %7078 = vmatprep.mubr.bf16.mxu0 0
        %7079 = vmatmul.mubr.bf16.gmra.mrb[0].mxu0 %v6961
        %v7080 = vpop.f32.mrb[0].mxu0
        %v7081 = vadd.f32 %v6891, %v7080
        %v7082 = vpop.f32.mrb[0].mxu0
        %v7083 = vadd.f32 %v6891, %v7082
        %v7084 = vpop.f32.mrb[0].mxu0
        %v7085 = vadd.f32 %v6896, %v7084
        %v7086 = vpop.f32.mrb[0].mxu0
        %v7087 = vadd.f32 %v6896, %v7086
        %7088 = vdwg.mxu0
        %7089 = vmatprep.subr.bf16.mxu0 %v6793
        %7090 = vmatpush1.bf16.msra.mxu0 %v6792
        %7091 = vmatprep.subr.bf16.mxu0 %v6797
        %7092 = vmatpush1.bf16.msra.mxu0 %v6796
        %7093 = vmatprep.subr.bf16.mxu0 %v6974
        %7094 = vmatpush1.bf16.msra.mxu0 %v6971
        %7095 = vmatprep.subr.bf16.mxu0 0
        %7096 = vmatpush1.bf16.msra.mxu0 0
        %7097 = vmatprep.subr.bf16.mxu0 0
        %7098 = vmatpush1.bf16.msra.mxu0 0
        %7099 = vmatprep.subr.bf16.mxu0 0
        %7100 = vmatpush1.bf16.msra.mxu0 0
        %7101 = vmatprep.subr.bf16.mxu0 0
        %7102 = vmatpush1.bf16.msra.mxu0 0
        %7103 = vmatprep.subr.bf16.mxu0 0
        %7104 = vmatpush1.bf16.msra.mxu0 0
        %7105 = vmatprep.subr.bf16.mxu0 0
        %7106 = vmatpush1.bf16.msra.mxu0 0
        %7107 = vmatprep.subr.bf16.mxu0 0
        %7108 = vmatpush1.bf16.msra.mxu0 0
        %7109 = vmatprep.subr.bf16.mxu0 0
        %7110 = vmatpush1.bf16.msra.mxu0 0
        %7111 = vmatprep.subr.bf16.mxu0 0
        %7112 = vmatpush1.bf16.msra.mxu0 0
        %7113 = vmatprep.subr.bf16.mxu0 0
        %7114 = vmatpush1.bf16.msra.mxu0 0
        %7115 = vmatprep.subr.bf16.mxu0 0
        %7116 = vmatpush1.bf16.msra.mxu0 0
        %7117 = vmatprep.subr.bf16.mxu0 0
        %7118 = vmatpush1.bf16.msra.mxu0 0
        %7119 = vmatprep.subr.bf16.mxu0 0
        %7120 = vmatpush1.bf16.msra.mxu0 0
        %7121 = vmatprep.mubr.bf16.mxu0 0
        %7122 = vmatmul.mubr.bf16.gmra.mrb[0].mxu0 %v6940
        %v7123 = vpop.f32.mrb[0].mxu0
        %v7124 = vadd.f32 %v6821, %v7123
        %v7125 = vpop.f32.mrb[0].mxu0
        %v7126 = vadd.f32 %v6821, %v7125
        %v7127 = vpop.f32.mrb[0].mxu0
        %v7128 = vadd.f32 %v6826, %v7127
        %v7129 = vpop.f32.mrb[0].mxu0
        %v7130 = vadd.f32 %v6826, %v7129
        %7131 = vmatprep.mubr.bf16.mxu0 0
        %7132 = vmatmul.mubr.bf16.gmra.mrb[0].mxu0 %v6943
        %v7133 = vpop.f32.mrb[0].mxu0
        %v7134 = vadd.f32 %v6831, %v7133
        %v7135 = vpop.f32.mrb[0].mxu0
        %v7136 = vadd.f32 %v6831, %v7135
        %v7137 = vpop.f32.mrb[0].mxu0
        %v7138 = vadd.f32 %v6836, %v7137
        %v7139 = vpop.f32.mrb[0].mxu0
        %v7140 = vadd.f32 %v6836, %v7139
        %7141 = vmatprep.mubr.bf16.mxu0 0
        %7142 = vmatmul.mubr.bf16.gmra.mrb[0].mxu0 %v6946
        %v7143 = vpop.f32.mrb[0].mxu0
        %v7144 = vadd.f32 %v6841, %v7143
        %v7145 = vpop.f32.mrb[0].mxu0
        %v7146 = vadd.f32 %v6841, %v7145
        %v7147 = vpop.f32.mrb[0].mxu0
        %v7148 = vadd.f32 %v6846, %v7147
        %v7149 = vpop.f32.mrb[0].mxu0
        %v7150 = vadd.f32 %v6846, %v7149
        %7151 = vmatprep.mubr.bf16.mxu0 0
        %7152 = vmatmul.mubr.bf16.gmra.mrb[0].mxu0 %v6949
        %v7153 = vpop.f32.mrb[0].mxu0
        %v7154 = vadd.f32 %v6851, %v7153
        %v7155 = vpop.f32.mrb[0].mxu0
        %v7156 = vadd.f32 %v6851, %v7155
        %v7157 = vpop.f32.mrb[0].mxu0
        %v7158 = vadd.f32 %v6856, %v7157
        %v7159 = vpop.f32.mrb[0].mxu0
        %v7160 = vadd.f32 %v6856, %v7159
        %7161 = vmatprep.mubr.bf16.mxu0 0
        %7162 = vmatmul.mubr.bf16.gmra.mrb[0].mxu0 %v6952
        %v7163 = vpop.f32.mrb[0].mxu0
        %v7164 = vadd.f32 %v6861, %v7163
        %v7165 = vpop.f32.mrb[0].mxu0
        %v7166 = vadd.f32 %v6861, %v7165
        %v7167 = vpop.f32.mrb[0].mxu0
        %v7168 = vadd.f32 %v6866, %v7167
        %v7169 = vpop.f32.mrb[0].mxu0
        %v7170 = vadd.f32 %v6866, %v7169
        %7171 = vmatprep.mubr.bf16.mxu0 0
        %7172 = vmatmul.mubr.bf16.gmra.mrb[0].mxu0 %v6955
        %v7173 = vpop.f32.mrb[0].mxu0
        %v7174 = vadd.f32 %v6871, %v7173
        %v7175 = vpop.f32.mrb[0].mxu0
        %v7176 = vadd.f32 %v6871, %v7175
        %v7177 = vpop.f32.mrb[0].mxu0
        %v7178 = vadd.f32 %v6876, %v7177
        %v7179 = vpop.f32.mrb[0].mxu0
        %v7180 = vadd.f32 %v6876, %v7179
        %7181 = vmatprep.mubr.bf16.mxu0 0
        %7182 = vmatmul.mubr.bf16.gmra.mrb[0].mxu0 %v6958
        %v7183 = vpop.f32.mrb[0].mxu0
        %v7184 = vadd.f32 %v6881, %v7183
        %v7185 = vpop.f32.mrb[0].mxu0
        %v7186 = vadd.f32 %v6881, %v7185
        %v7187 = vpop.f32.mrb[0].mxu0
        %v7188 = vadd.f32 %v6886, %v7187
        %v7189 = vpop.f32.mrb[0].mxu0
        %v7190 = vadd.f32 %v6886, %v7189
        %7191 = vmatprep.mubr.bf16.mxu0 0
        %7192 = vmatmul.mubr.bf16.gmra.mrb[0].mxu0 %v6961
        %v7193 = vpop.f32.mrb[0].mxu0
        %v7194 = vadd.f32 %v6891, %v7193
        %v7195 = vpop.f32.mrb[0].mxu0
        %v7196 = vadd.f32 %v6891, %v7195
        %v7197 = vpop.f32.mrb[0].mxu0
        %v7198 = vadd.f32 %v6896, %v7197
        %v7199 = vpop.f32.mrb[0].mxu0
        %v7200 = vadd.f32 %v6896, %v7199
        %7201 = vdwg.mxu0
        %vm7202 = vcmp.ge.f32.partialorder %v7011, 0.0
        %vm7203 = vcmp.ge.f32.partialorder %v7013, 0.0
        %vm7204 = vcmp.ge.f32.partialorder %v7124, 0.0
        %vm7205 = vcmp.ge.f32.partialorder %v7126, 0.0
        %vm7206 = vcmp.ge.f32.partialorder %v7015, 0.0
        %vm7207 = vcmp.ge.f32.partialorder %v7017, 0.0
        %vm7208 = vcmp.ge.f32.partialorder %v7128, 0.0
        %vm7209 = vcmp.ge.f32.partialorder %v7130, 0.0
        %vm7210 = vcmp.ge.f32.partialorder %v7021, 0.0
        %vm7211 = vcmp.ge.f32.partialorder %v7023, 0.0
        %vm7212 = vcmp.ge.f32.partialorder %v7134, 0.0
        %vm7213 = vcmp.ge.f32.partialorder %v7136, 0.0
        %vm7214 = vcmp.ge.f32.partialorder %v7025, 0.0
        %vm7215 = vcmp.ge.f32.partialorder %v7027, 0.0
        %vm7216 = vcmp.ge.f32.partialorder %v7138, 0.0
        %vm7217 = vcmp.ge.f32.partialorder %v7140, 0.0
        %vm7218 = vcmp.ge.f32.partialorder %v7031, 0.0
        %vm7219 = vcmp.ge.f32.partialorder %v7033, 0.0
        %vm7220 = vcmp.ge.f32.partialorder %v7144, 0.0
        %vm7221 = vcmp.ge.f32.partialorder %v7146, 0.0
        %vm7222 = vcmp.ge.f32.partialorder %v7035, 0.0
        %vm7223 = vcmp.ge.f32.partialorder %v7037, 0.0
        %vm7224 = vcmp.ge.f32.partialorder %v7148, 0.0
        %vm7225 = vcmp.ge.f32.partialorder %v7150, 0.0
        %vm7226 = vcmp.ge.f32.partialorder %v7041, 0.0
        %vm7227 = vcmp.ge.f32.partialorder %v7043, 0.0
        %vm7228 = vcmp.ge.f32.partialorder %v7154, 0.0
        %vm7229 = vcmp.ge.f32.partialorder %v7156, 0.0
        %vm7230 = vcmp.ge.f32.partialorder %v7045, 0.0
        %vm7231 = vcmp.ge.f32.partialorder %v7047, 0.0
        %vm7232 = vcmp.ge.f32.partialorder %v7158, 0.0
        %vm7233 = vcmp.ge.f32.partialorder %v7160, 0.0
        %vm7234 = vcmp.ge.f32.partialorder %v7051, 0.0
        %vm7235 = vcmp.ge.f32.partialorder %v7053, 0.0
        %vm7236 = vcmp.ge.f32.partialorder %v7164, 0.0
        %vm7237 = vcmp.ge.f32.partialorder %v7166, 0.0
        %vm7238 = vcmp.ge.f32.partialorder %v7055, 0.0
        %vm7239 = vcmp.ge.f32.partialorder %v7057, 0.0
        %vm7240 = vcmp.ge.f32.partialorder %v7168, 0.0
        %vm7241 = vcmp.ge.f32.partialorder %v7170, 0.0
        %vm7242 = vcmp.ge.f32.partialorder %v7061, 0.0
        %vm7243 = vcmp.ge.f32.partialorder %v7063, 0.0
        %vm7244 = vcmp.ge.f32.partialorder %v7174, 0.0
        %vm7245 = vcmp.ge.f32.partialorder %v7176, 0.0
        %vm7246 = vcmp.ge.f32.partialorder %v7065, 0.0
        %vm7247 = vcmp.ge.f32.partialorder %v7067, 0.0
        %vm7248 = vcmp.ge.f32.partialorder %v7178, 0.0
        %vm7249 = vcmp.ge.f32.partialorder %v7180, 0.0
        %vm7250 = vcmp.ge.f32.partialorder %v7071, 0.0
        %vm7251 = vcmp.ge.f32.partialorder %v7073, 0.0
        %vm7252 = vcmp.ge.f32.partialorder %v7184, 0.0
        %vm7253 = vcmp.ge.f32.partialorder %v7186, 0.0
        %vm7254 = vcmp.ge.f32.partialorder %v7075, 0.0
        %vm7255 = vcmp.ge.f32.partialorder %v7077, 0.0
        %vm7256 = vcmp.ge.f32.partialorder %v7188, 0.0
        %vm7257 = vcmp.ge.f32.partialorder %v7190, 0.0
        %vm7258 = vcmp.ge.f32.partialorder %v7081, 0.0
        %vm7259 = vcmp.ge.f32.partialorder %v7083, 0.0
        %vm7260 = vcmp.ge.f32.partialorder %v7194, 0.0
        %vm7261 = vcmp.ge.f32.partialorder %v7196, 0.0
        %vm7262 = vcmp.ge.f32.partialorder %v7085, 0.0
        %vm7263 = vcmp.ge.f32.partialorder %v7087, 0.0
        %vm7264 = vcmp.ge.f32.partialorder %v7198, 0.0
        %vm7265 = vcmp.ge.f32.partialorder %v7200, 0.0
        %v7266 = vmul.f32 %v7011, 0.01
        %v7267 = vmul.f32 %v7013, 0.01
        %v7268 = vmul.f32 %v7124, 0.01
        %v7269 = vmul.f32 %v7126, 0.01
        %v7270 = vmul.f32 %v7015, 0.01
        %v7271 = vmul.f32 %v7017, 0.01
        %v7272 = vmul.f32 %v7128, 0.01
        %v7273 = vmul.f32 %v7130, 0.01
        %v7274 = vmul.f32 %v7021, 0.01
        %v7275 = vmul.f32 %v7023, 0.01
        %v7276 = vmul.f32 %v7134, 0.01
        %v7277 = vmul.f32 %v7136, 0.01
        %v7278 = vmul.f32 %v7025, 0.01
        %v7279 = vmul.f32 %v7027, 0.01
        %v7280 = vmul.f32 %v7138, 0.01
        %v7281 = vmul.f32 %v7140, 0.01
        %v7282 = vmul.f32 %v7031, 0.01
        %v7283 = vmul.f32 %v7033, 0.01
        %v7284 = vmul.f32 %v7144, 0.01
        %v7285 = vmul.f32 %v7146, 0.01
        %v7286 = vmul.f32 %v7035, 0.01
        %v7287 = vmul.f32 %v7037, 0.01
        %v7288 = vmul.f32 %v7148, 0.01
        %v7289 = vmul.f32 %v7150, 0.01
        %v7290 = vmul.f32 %v7041, 0.01
        %v7291 = vmul.f32 %v7043, 0.01
        %v7292 = vmul.f32 %v7154, 0.01
        %v7293 = vmul.f32 %v7156, 0.01
        %v7294 = vmul.f32 %v7045, 0.01
        %v7295 = vmul.f32 %v7047, 0.01
        %v7296 = vmul.f32 %v7158, 0.01
        %v7297 = vmul.f32 %v7160, 0.01
        %v7298 = vmul.f32 %v7051, 0.01
        %v7299 = vmul.f32 %v7053, 0.01
        %v7300 = vmul.f32 %v7164, 0.01
        %v7301 = vmul.f32 %v7166, 0.01
        %v7302 = vmul.f32 %v7055, 0.01
        %v7303 = vmul.f32 %v7057, 0.01
        %v7304 = vmul.f32 %v7168, 0.01
        %v7305 = vmul.f32 %v7170, 0.01
        %v7306 = vmul.f32 %v7061, 0.01
        %v7307 = vmul.f32 %v7063, 0.01
        %v7308 = vmul.f32 %v7174, 0.01
        %v7309 = vmul.f32 %v7176, 0.01
        %v7310 = vmul.f32 %v7065, 0.01
        %v7311 = vmul.f32 %v7067, 0.01
        %v7312 = vmul.f32 %v7178, 0.01
        %v7313 = vmul.f32 %v7180, 0.01
        %v7314 = vmul.f32 %v7071, 0.01
        %v7315 = vmul.f32 %v7073, 0.01
        %v7316 = vmul.f32 %v7184, 0.01
        %v7317 = vmul.f32 %v7186, 0.01
        %v7318 = vmul.f32 %v7075, 0.01
        %v7319 = vmul.f32 %v7077, 0.01
        %v7320 = vmul.f32 %v7188, 0.01
        %v7321 = vmul.f32 %v7190, 0.01
        %v7322 = vmul.f32 %v7081, 0.01
        %v7323 = vmul.f32 %v7083, 0.01
        %v7324 = vmul.f32 %v7194, 0.01
        %v7325 = vmul.f32 %v7196, 0.01
        %v7326 = vmul.f32 %v7085, 0.01
        %v7327 = vmul.f32 %v7087, 0.01
        %v7328 = vmul.f32 %v7198, 0.01
        %v7329 = vmul.f32 %v7200, 0.01
        %v7330 = vsel %vm7202, %v7011, %v7266
        %v7331 = vsel %vm7203, %v7013, %v7267
        %v7332 = vsel %vm7204, %v7124, %v7268
        %v7333 = vsel %vm7205, %v7126, %v7269
        %v7334 = vsel %vm7206, %v7015, %v7270
        %v7335 = vsel %vm7207, %v7017, %v7271
        %v7336 = vsel %vm7208, %v7128, %v7272
        %v7337 = vsel %vm7209, %v7130, %v7273
        %v7338 = vsel %vm7210, %v7021, %v7274
        %v7339 = vsel %vm7211, %v7023, %v7275
        %v7340 = vsel %vm7212, %v7134, %v7276
        %v7341 = vsel %vm7213, %v7136, %v7277
        %v7342 = vsel %vm7214, %v7025, %v7278
        %v7343 = vsel %vm7215, %v7027, %v7279
        %v7344 = vsel %vm7216, %v7138, %v7280
        %v7345 = vsel %vm7217, %v7140, %v7281
        %v7346 = vsel %vm7218, %v7031, %v7282
        %v7347 = vsel %vm7219, %v7033, %v7283
        %v7348 = vsel %vm7220, %v7144, %v7284
        %v7349 = vsel %vm7221, %v7146, %v7285
        %v7350 = vsel %vm7222, %v7035, %v7286
        %v7351 = vsel %vm7223, %v7037, %v7287
        %v7352 = vsel %vm7224, %v7148, %v7288
        %v7353 = vsel %vm7225, %v7150, %v7289
        %v7354 = vsel %vm7226, %v7041, %v7290
        %v7355 = vsel %vm7227, %v7043, %v7291
        %v7356 = vsel %vm7228, %v7154, %v7292
        %v7357 = vsel %vm7229, %v7156, %v7293
        %v7358 = vsel %vm7230, %v7045, %v7294
        %v7359 = vsel %vm7231, %v7047, %v7295
        %v7360 = vsel %vm7232, %v7158, %v7296
        %v7361 = vsel %vm7233, %v7160, %v7297
        %v7362 = vsel %vm7234, %v7051, %v7298
        %v7363 = vsel %vm7235, %v7053, %v7299
        %v7364 = vsel %vm7236, %v7164, %v7300
        %v7365 = vsel %vm7237, %v7166, %v7301
        %v7366 = vsel %vm7238, %v7055, %v7302
        %v7367 = vsel %vm7239, %v7057, %v7303
        %v7368 = vsel %vm7240, %v7168, %v7304
        %v7369 = vsel %vm7241, %v7170, %v7305
        %v7370 = vsel %vm7242, %v7061, %v7306
        %v7371 = vsel %vm7243, %v7063, %v7307
        %v7372 = vsel %vm7244, %v7174, %v7308
        %v7373 = vsel %vm7245, %v7176, %v7309
        %v7374 = vsel %vm7246, %v7065, %v7310
        %v7375 = vsel %vm7247, %v7067, %v7311
        %v7376 = vsel %vm7248, %v7178, %v7312
        %v7377 = vsel %vm7249, %v7180, %v7313
        %v7378 = vsel %vm7250, %v7071, %v7314
        %v7379 = vsel %vm7251, %v7073, %v7315
        %v7380 = vsel %vm7252, %v7184, %v7316
        %v7381 = vsel %vm7253, %v7186, %v7317
        %v7382 = vsel %vm7254, %v7075, %v7318
        %v7383 = vsel %vm7255, %v7077, %v7319
        %v7384 = vsel %vm7256, %v7188, %v7320
        %v7385 = vsel %vm7257, %v7190, %v7321
        %v7386 = vsel %vm7258, %v7081, %v7322
        %v7387 = vsel %vm7259, %v7083, %v7323
        %v7388 = vsel %vm7260, %v7194, %v7324
        %v7389 = vsel %vm7261, %v7196, %v7325
        %v7390 = vsel %vm7262, %v7085, %v7326
        %v7391 = vsel %vm7263, %v7087, %v7327
        %v7392 = vsel %vm7264, %v7198, %v7328
        %v7393 = vsel %vm7265, %v7200, %v7329
        %v7394 = vld [vmem:[%s10] sm:$0xf]
        %v7395 = vld [vmem:[%s10 + $0x4] sm:$0xf]
        %v7396 = vld [vmem:[%s10 + $0x8] sm:$0xf]
        %v7397 = vld [vmem:[%s10 + $0xc] sm:$0xf]
        %v7398 = vld [vmem:[%s10 + $0x10] sm:$0xf]
        %v7399 = vld [vmem:[%s10 + $0x14] sm:$0xf]
        %v7400 = vld [vmem:[%s10 + $0x18] sm:$0xf]
        %v7401 = vld [vmem:[%s10 + $0x1c] sm:$0xf]
        %v7402 = vld [vmem:[%s10 + $0x20] sm:$0xf]
        %v7403 = vld [vmem:[%s10 + $0x24] sm:$0xf]
        %v7404 = vld [vmem:[%s10 + $0x28] sm:$0xf]
        %v7405 = vld [vmem:[%s10 + $0x2c] sm:$0xf]
        %v7406 = vld [vmem:[%s10 + $0x30] sm:$0xf]
        %v7407 = vld [vmem:[%s10 + $0x34] sm:$0xf]
        %v7408 = vld [vmem:[%s10 + $0x38] sm:$0xf]
        %v7409 = vld [vmem:[%s10 + $0x3c] sm:$0xf]
        %v7410 = vpack.c.bf16 %v7334, %v7330
        %v7411 = vpack.c.bf16 %v7335, %v7331
        %v7412 = vpack.c.bf16 %v7336, %v7332
        %v7413 = vpack.c.bf16 %v7337, %v7333
        %v7414 = vpack.c.bf16 %v7342, %v7338
        %v7415 = vpack.c.bf16 %v7343, %v7339
        %v7416 = vpack.c.bf16 %v7344, %v7340
        %v7417 = vpack.c.bf16 %v7345, %v7341
        %v7418 = vpack.c.bf16 %v7350, %v7346
        %v7419 = vpack.c.bf16 %v7351, %v7347
        %v7420 = vpack.c.bf16 %v7352, %v7348
        %v7421 = vpack.c.bf16 %v7353, %v7349
        %v7422 = vpack.c.bf16 %v7358, %v7354
        %v7423 = vpack.c.bf16 %v7359, %v7355
        %v7424 = vpack.c.bf16 %v7360, %v7356
        %v7425 = vpack.c.bf16 %v7361, %v7357
        %v7426 = vpack.c.bf16 %v7366, %v7362
        %v7427 = vpack.c.bf16 %v7367, %v7363
        %v7428 = vpack.c.bf16 %v7368, %v7364
        %v7429 = vpack.c.bf16 %v7369, %v7365
        %v7430 = vpack.c.bf16 %v7374, %v7370
        %v7431 = vpack.c.bf16 %v7375, %v7371
        %v7432 = vpack.c.bf16 %v7376, %v7372
        %v7433 = vpack.c.bf16 %v7377, %v7373
        %v7434 = vpack.c.bf16 %v7382, %v7378
        %v7435 = vpack.c.bf16 %v7383, %v7379
        %v7436 = vpack.c.bf16 %v7384, %v7380
        %v7437 = vpack.c.bf16 %v7385, %v7381
        %v7438 = vpack.c.bf16 %v7390, %v7386
        %v7439 = vpack.c.bf16 %v7391, %v7387
        %v7440 = vpack.c.bf16 %v7392, %v7388
        %v7441 = vpack.c.bf16 %v7393, %v7389
        %v7442 = vld [vmem:[%s11] sm:$0xff]
        %v7443 = vld [vmem:[%s11 + $0x8] sm:$0xff]
        %v7444 = vld [vmem:[%s11 + $0x10] sm:$0xff]
        %v7445 = vld [vmem:[%s11 + $0x18] sm:$0xff]
        %v7446 = vld [vmem:[%s11 + $0x20] sm:$0xff]
        %v7447 = vld [vmem:[%s11 + $0x28] sm:$0xff]
        %v7448 = vld [vmem:[%s11 + $0x30] sm:$0xff]
        %v7449 = vld [vmem:[%s11 + $0x38] sm:$0xff]
        %v7450 = vld [vmem:[%s11 + $0x40] sm:$0xff]
        %v7451 = vld [vmem:[%s11 + $0x48] sm:$0xff]
        %v7452 = vld [vmem:[%s11 + $0x50] sm:$0xff]
        %v7453 = vld [vmem:[%s11 + $0x58] sm:$0xff]
        %v7454 = vld [vmem:[%s11 + $0x60] sm:$0xff]
        %v7455 = vld [vmem:[%s11 + $0x68] sm:$0xff]
        %v7456 = vld [vmem:[%s11 + $0x70] sm:$0xff]
        %v7457 = vld [vmem:[%s11 + $0x78] sm:$0xff]
        %7459 = vset.pattern.permute.xlu0 0
        %7460 = vperm.xlu0 %7459, %v7442
        %v7461 = vpop.permute.xlu0 %7460
        %7464 = vset.pattern.permute.xlu0 0
        %7465 = vperm.xlu0 %7464, %v7443
        %v7466 = vpop.permute.xlu0 %7465
        %7469 = vset.pattern.permute.xlu0 0
        %7470 = vperm.xlu0 %7469, %v7444
        %v7471 = vpop.permute.xlu0 %7470
        %7474 = vset.pattern.permute.xlu0 0
        %7475 = vperm.xlu0 %7474, %v7445
        %v7476 = vpop.permute.xlu0 %7475
        %7479 = vset.pattern.permute.xlu0 0
        %7480 = vperm.xlu0 %7479, %v7446
        %v7481 = vpop.permute.xlu0 %7480
        %7484 = vset.pattern.permute.xlu0 0
        %7485 = vperm.xlu0 %7484, %v7447
        %v7486 = vpop.permute.xlu0 %7485
        %7489 = vset.pattern.permute.xlu0 0
        %7490 = vperm.xlu0 %7489, %v7448
        %v7491 = vpop.permute.xlu0 %7490
        %7494 = vset.pattern.permute.xlu0 0
        %7495 = vperm.xlu0 %7494, %v7449
        %v7496 = vpop.permute.xlu0 %7495
        %7499 = vset.pattern.permute.xlu0 0
        %7500 = vperm.xlu0 %7499, %v7450
        %v7501 = vpop.permute.xlu0 %7500
        %7504 = vset.pattern.permute.xlu0 0
        %7505 = vperm.xlu0 %7504, %v7451
        %v7506 = vpop.permute.xlu0 %7505
        %7509 = vset.pattern.permute.xlu0 0
        %7510 = vperm.xlu0 %7509, %v7452
        %v7511 = vpop.permute.xlu0 %7510
        %7514 = vset.pattern.permute.xlu0 0
        %7515 = vperm.xlu0 %7514, %v7453
        %v7516 = vpop.permute.xlu0 %7515
        %7519 = vset.pattern.permute.xlu0 0
        %7520 = vperm.xlu0 %7519, %v7454
        %v7521 = vpop.permute.xlu0 %7520
        %7524 = vset.pattern.permute.xlu0 0
        %7525 = vperm.xlu0 %7524, %v7455
        %v7526 = vpop.permute.xlu0 %7525
        %7529 = vset.pattern.permute.xlu0 0
        %7530 = vperm.xlu0 %7529, %v7456
        %v7531 = vpop.permute.xlu0 %7530
        %7534 = vset.pattern.permute.xlu0 0
        %7535 = vperm.xlu0 %7534, %v7457
        %v7536 = vpop.permute.xlu0 %7535
        %v7554 = vunpack.c.l.b16 %v7394
        %v7555 = vunpack.c.l.b16 %v7395
        %v7556 = vunpack.c.l.b16 %v7396
        %v7557 = vunpack.c.l.b16 %v7397
        %v7558 = vunpack.c.l.b16 %v7398
        %v7559 = vunpack.c.l.b16 %v7399
        %v7560 = vunpack.c.l.b16 %v7400
        %v7561 = vunpack.c.l.b16 %v7401
        %v7562 = vunpack.c.l.b16 %v7402
        %v7563 = vunpack.c.l.b16 %v7403
        %v7564 = vunpack.c.l.b16 %v7404
        %v7565 = vunpack.c.l.b16 %v7405
        %v7566 = vunpack.c.l.b16 %v7406
        %v7567 = vunpack.c.l.b16 %v7407
        %v7568 = vunpack.c.l.b16 %v7408
        %v7569 = vunpack.c.l.b16 %v7409
        %v7570 = vpack.c.b16 %v7555, %v7554
        %v7571 = vpack.c.b16 %v7557, %v7556
        %v7572 = vpack.c.b16 %v7559, %v7558
        %v7573 = vpack.c.b16 %v7561, %v7560
        %v7574 = vpack.c.b16 %v7563, %v7562
        %v7575 = vpack.c.b16 %v7565, %v7564
        %v7576 = vpack.c.b16 %v7567, %v7566
        %v7577 = vpack.c.b16 %v7569, %v7568
        %7586 = vmatprep.subr.bf16.mxu0 %v7411
        %7587 = vmatpush1.bf16.msra.mxu0 %v7410
        %7588 = vmatprep.subr.bf16.mxu0 %v7415
        %7589 = vmatpush1.bf16.msra.mxu0 %v7414
        %7590 = vmatprep.subr.bf16.mxu0 %v7419
        %7591 = vmatpush1.bf16.msra.mxu0 %v7418
        %7592 = vmatprep.subr.bf16.mxu0 %v7423
        %7593 = vmatpush1.bf16.msra.mxu0 %v7422
        %7594 = vmatprep.subr.bf16.mxu0 %v7427
        %7595 = vmatpush1.bf16.msra.mxu0 %v7426
        %7596 = vmatprep.subr.bf16.mxu0 %v7431
        %7597 = vmatpush1.bf16.msra.mxu0 %v7430
        %7598 = vmatprep.subr.bf16.mxu0 %v7435
        %7599 = vmatpush1.bf16.msra.mxu0 %v7434
        %7600 = vmatprep.subr.bf16.mxu0 %v7439
        %7601 = vmatpush1.bf16.msra.mxu0 %v7438
        %7602 = vmatprep.subr.bf16.mxu0 0
        %7603 = vmatpush1.bf16.msra.mxu0 0
        %7604 = vmatprep.subr.bf16.mxu0 0
        %7605 = vmatpush1.bf16.msra.mxu0 0
        %7606 = vmatprep.subr.bf16.mxu0 0
        %7607 = vmatpush1.bf16.msra.mxu0 0
        %7608 = vmatprep.subr.bf16.mxu0 0
        %7609 = vmatpush1.bf16.msra.mxu0 0
        %7610 = vmatprep.subr.bf16.mxu0 0
        %7611 = vmatpush1.bf16.msra.mxu0 0
        %7612 = vmatprep.subr.bf16.mxu0 0
        %7613 = vmatpush1.bf16.msra.mxu0 0
        %7614 = vmatprep.subr.bf16.mxu0 0
        %7615 = vmatpush1.bf16.msra.mxu0 0
        %7616 = vmatprep.subr.bf16.mxu0 0
        %7617 = vmatpush1.bf16.msra.mxu0 0
        %7618 = vmatprep.mubr.bf16.mxu0 0
        %7619 = vmatmul.mubr.bf16.gmra.mrb[0].mxu0 %v7570
        %v7620 = vpop.f32.mrb[0].mxu0
        %v7621 = vadd.f32 %v7461, %v7620
        %v7622 = vpop.f32.mrb[0].mxu0
        %v7623 = vadd.f32 %v7461, %v7622
        %v7624 = vpop.f32.mrb[0].mxu0
        %v7625 = vadd.f32 %v7466, %v7624
        %v7626 = vpop.f32.mrb[0].mxu0
        %v7627 = vadd.f32 %v7466, %v7626
        %7628 = vmatprep.mubr.bf16.mxu0 0
        %7629 = vmatmul.mubr.bf16.gmra.mrb[0].mxu0 %v7571
        %v7630 = vpop.f32.mrb[0].mxu0
        %v7631 = vadd.f32 %v7471, %v7630
        %v7632 = vpop.f32.mrb[0].mxu0
        %v7633 = vadd.f32 %v7471, %v7632
        %v7634 = vpop.f32.mrb[0].mxu0
        %v7635 = vadd.f32 %v7476, %v7634
        %v7636 = vpop.f32.mrb[0].mxu0
        %v7637 = vadd.f32 %v7476, %v7636
        %7638 = vmatprep.mubr.bf16.mxu0 0
        %7639 = vmatmul.mubr.bf16.gmra.mrb[0].mxu0 %v7572
        %v7640 = vpop.f32.mrb[0].mxu0
        %v7641 = vadd.f32 %v7481, %v7640
        %v7642 = vpop.f32.mrb[0].mxu0
        %v7643 = vadd.f32 %v7481, %v7642
        %v7644 = vpop.f32.mrb[0].mxu0
        %v7645 = vadd.f32 %v7486, %v7644
        %v7646 = vpop.f32.mrb[0].mxu0
        %v7647 = vadd.f32 %v7486, %v7646
        %7648 = vmatprep.mubr.bf16.mxu0 0
        %7649 = vmatmul.mubr.bf16.gmra.mrb[0].mxu0 %v7573
        %v7650 = vpop.f32.mrb[0].mxu0
        %v7651 = vadd.f32 %v7491, %v7650
        %v7652 = vpop.f32.mrb[0].mxu0
        %v7653 = vadd.f32 %v7491, %v7652
        %v7654 = vpop.f32.mrb[0].mxu0
        %v7655 = vadd.f32 %v7496, %v7654
        %v7656 = vpop.f32.mrb[0].mxu0
        %v7657 = vadd.f32 %v7496, %v7656
        %7658 = vmatprep.mubr.bf16.mxu0 0
        %7659 = vmatmul.mubr.bf16.gmra.mrb[0].mxu0 %v7574
        %v7660 = vpop.f32.mrb[0].mxu0
        %v7661 = vadd.f32 %v7501, %v7660
        %v7662 = vpop.f32.mrb[0].mxu0
        %v7663 = vadd.f32 %v7501, %v7662
        %v7664 = vpop.f32.mrb[0].mxu0
        %v7665 = vadd.f32 %v7506, %v7664
        %v7666 = vpop.f32.mrb[0].mxu0
        %v7667 = vadd.f32 %v7506, %v7666
        %7668 = vmatprep.mubr.bf16.mxu0 0
        %7669 = vmatmul.mubr.bf16.gmra.mrb[0].mxu0 %v7575
        %v7670 = vpop.f32.mrb[0].mxu0
        %v7671 = vadd.f32 %v7511, %v7670
        %v7672 = vpop.f32.mrb[0].mxu0
        %v7673 = vadd.f32 %v7511, %v7672
        %v7674 = vpop.f32.mrb[0].mxu0
        %v7675 = vadd.f32 %v7516, %v7674
        %v7676 = vpop.f32.mrb[0].mxu0
        %v7677 = vadd.f32 %v7516, %v7676
        %7678 = vmatprep.mubr.bf16.mxu0 0
        %7679 = vmatmul.mubr.bf16.gmra.mrb[0].mxu0 %v7576
        %v7680 = vpop.f32.mrb[0].mxu0
        %v7681 = vadd.f32 %v7521, %v7680
        %v7682 = vpop.f32.mrb[0].mxu0
        %v7683 = vadd.f32 %v7521, %v7682
        %v7684 = vpop.f32.mrb[0].mxu0
        %v7685 = vadd.f32 %v7526, %v7684
        %v7686 = vpop.f32.mrb[0].mxu0
        %v7687 = vadd.f32 %v7526, %v7686
        %7688 = vmatprep.mubr.bf16.mxu0 0
        %7689 = vmatmul.mubr.bf16.gmra.mrb[0].mxu0 %v7577
        %v7690 = vpop.f32.mrb[0].mxu0
        %v7691 = vadd.f32 %v7531, %v7690
        %v7692 = vpop.f32.mrb[0].mxu0
        %v7693 = vadd.f32 %v7531, %v7692
        %v7694 = vpop.f32.mrb[0].mxu0
        %v7695 = vadd.f32 %v7536, %v7694
        %v7696 = vpop.f32.mrb[0].mxu0
        %v7697 = vadd.f32 %v7536, %v7696
        %7698 = vdwg.mxu0
        %7699 = vmatprep.subr.bf16.mxu0 %v7413
        %7700 = vmatpush1.bf16.msra.mxu0 %v7412
        %7701 = vmatprep.subr.bf16.mxu0 %v7417
        %7702 = vmatpush1.bf16.msra.mxu0 %v7416
        %7703 = vmatprep.subr.bf16.mxu0 %v7421
        %7704 = vmatpush1.bf16.msra.mxu0 %v7420
        %7705 = vmatprep.subr.bf16.mxu0 %v7425
        %7706 = vmatpush1.bf16.msra.mxu0 %v7424
        %7707 = vmatprep.subr.bf16.mxu0 %v7429
        %7708 = vmatpush1.bf16.msra.mxu0 %v7428
        %7709 = vmatprep.subr.bf16.mxu0 %v7433
        %7710 = vmatpush1.bf16.msra.mxu0 %v7432
        %7711 = vmatprep.subr.bf16.mxu0 %v7437
        %7712 = vmatpush1.bf16.msra.mxu0 %v7436
        %7713 = vmatprep.subr.bf16.mxu0 %v7441
        %7714 = vmatpush1.bf16.msra.mxu0 %v7440
        %7715 = vmatprep.subr.bf16.mxu0 0
        %7716 = vmatpush1.bf16.msra.mxu0 0
        %7717 = vmatprep.subr.bf16.mxu0 0
        %7718 = vmatpush1.bf16.msra.mxu0 0
        %7719 = vmatprep.subr.bf16.mxu0 0
        %7720 = vmatpush1.bf16.msra.mxu0 0
        %7721 = vmatprep.subr.bf16.mxu0 0
        %7722 = vmatpush1.bf16.msra.mxu0 0
        %7723 = vmatprep.subr.bf16.mxu0 0
        %7724 = vmatpush1.bf16.msra.mxu0 0
        %7725 = vmatprep.subr.bf16.mxu0 0
        %7726 = vmatpush1.bf16.msra.mxu0 0
        %7727 = vmatprep.subr.bf16.mxu0 0
        %7728 = vmatpush1.bf16.msra.mxu0 0
        %7729 = vmatprep.subr.bf16.mxu0 0
        %7730 = vmatpush1.bf16.msra.mxu0 0
        %7731 = vmatprep.mubr.bf16.mxu0 0
        %7732 = vmatmul.mubr.bf16.gmra.mrb[0].mxu0 %v7570
        %v7733 = vpop.f32.mrb[0].mxu0
        %v7734 = vadd.f32 %v7461, %v7733
        %v7735 = vpop.f32.mrb[0].mxu0
        %v7736 = vadd.f32 %v7461, %v7735
        %v7737 = vpop.f32.mrb[0].mxu0
        %v7738 = vadd.f32 %v7466, %v7737
        %v7739 = vpop.f32.mrb[0].mxu0
        %v7740 = vadd.f32 %v7466, %v7739
        %7741 = vmatprep.mubr.bf16.mxu0 0
        %7742 = vmatmul.mubr.bf16.gmra.mrb[0].mxu0 %v7571
        %v7743 = vpop.f32.mrb[0].mxu0
        %v7744 = vadd.f32 %v7471, %v7743
        %v7745 = vpop.f32.mrb[0].mxu0
        %v7746 = vadd.f32 %v7471, %v7745
        %v7747 = vpop.f32.mrb[0].mxu0
        %v7748 = vadd.f32 %v7476, %v7747
        %v7749 = vpop.f32.mrb[0].mxu0
        %v7750 = vadd.f32 %v7476, %v7749
        %7751 = vmatprep.mubr.bf16.mxu0 0
        %7752 = vmatmul.mubr.bf16.gmra.mrb[0].mxu0 %v7572
        %v7753 = vpop.f32.mrb[0].mxu0
        %v7754 = vadd.f32 %v7481, %v7753
        %v7755 = vpop.f32.mrb[0].mxu0
        %v7756 = vadd.f32 %v7481, %v7755
        %v7757 = vpop.f32.mrb[0].mxu0
        %v7758 = vadd.f32 %v7486, %v7757
        %v7759 = vpop.f32.mrb[0].mxu0
        %v7760 = vadd.f32 %v7486, %v7759
        %7761 = vmatprep.mubr.bf16.mxu0 0
        %7762 = vmatmul.mubr.bf16.gmra.mrb[0].mxu0 %v7573
        %v7763 = vpop.f32.mrb[0].mxu0
        %v7764 = vadd.f32 %v7491, %v7763
        %v7765 = vpop.f32.mrb[0].mxu0
        %v7766 = vadd.f32 %v7491, %v7765
        %v7767 = vpop.f32.mrb[0].mxu0
        %v7768 = vadd.f32 %v7496, %v7767
        %v7769 = vpop.f32.mrb[0].mxu0
        %v7770 = vadd.f32 %v7496, %v7769
        %7771 = vmatprep.mubr.bf16.mxu0 0
        %7772 = vmatmul.mubr.bf16.gmra.mrb[0].mxu0 %v7574
        %v7773 = vpop.f32.mrb[0].mxu0
        %v7774 = vadd.f32 %v7501, %v7773
        %v7775 = vpop.f32.mrb[0].mxu0
        %v7776 = vadd.f32 %v7501, %v7775
        %v7777 = vpop.f32.mrb[0].mxu0
        %v7778 = vadd.f32 %v7506, %v7777
        %v7779 = vpop.f32.mrb[0].mxu0
        %v7780 = vadd.f32 %v7506, %v7779
        %7781 = vmatprep.mubr.bf16.mxu0 0
        %7782 = vmatmul.mubr.bf16.gmra.mrb[0].mxu0 %v7575
        %v7783 = vpop.f32.mrb[0].mxu0
        %v7784 = vadd.f32 %v7511, %v7783
        %v7785 = vpop.f32.mrb[0].mxu0
        %v7786 = vadd.f32 %v7511, %v7785
        %v7787 = vpop.f32.mrb[0].mxu0
        %v7788 = vadd.f32 %v7516, %v7787
        %v7789 = vpop.f32.mrb[0].mxu0
        %v7790 = vadd.f32 %v7516, %v7789
        %7791 = vmatprep.mubr.bf16.mxu0 0
        %7792 = vmatmul.mubr.bf16.gmra.mrb[0].mxu0 %v7576
        %v7793 = vpop.f32.mrb[0].mxu0
        %v7794 = vadd.f32 %v7521, %v7793
        %v7795 = vpop.f32.mrb[0].mxu0
        %v7796 = vadd.f32 %v7521, %v7795
        %v7797 = vpop.f32.mrb[0].mxu0
        %v7798 = vadd.f32 %v7526, %v7797
        %v7799 = vpop.f32.mrb[0].mxu0
        %v7800 = vadd.f32 %v7526, %v7799
        %7801 = vmatprep.mubr.bf16.mxu0 0
        %7802 = vmatmul.mubr.bf16.gmra.mrb[0].mxu0 %v7577
        %v7803 = vpop.f32.mrb[0].mxu0
        %v7804 = vadd.f32 %v7531, %v7803
        %v7805 = vpop.f32.mrb[0].mxu0
        %v7806 = vadd.f32 %v7531, %v7805
        %v7807 = vpop.f32.mrb[0].mxu0
        %v7808 = vadd.f32 %v7536, %v7807
        %v7809 = vpop.f32.mrb[0].mxu0
        %v7810 = vadd.f32 %v7536, %v7809
        %7811 = vdwg.mxu0
        %vm7812 = vcmp.ge.f32.partialorder %v7621, 0.0
        %vm7813 = vcmp.ge.f32.partialorder %v7623, 0.0
        %vm7814 = vcmp.ge.f32.partialorder %v7734, 0.0
        %vm7815 = vcmp.ge.f32.partialorder %v7736, 0.0
        %vm7816 = vcmp.ge.f32.partialorder %v7625, 0.0
        %vm7817 = vcmp.ge.f32.partialorder %v7627, 0.0
        %vm7818 = vcmp.ge.f32.partialorder %v7738, 0.0
        %vm7819 = vcmp.ge.f32.partialorder %v7740, 0.0
        %vm7820 = vcmp.ge.f32.partialorder %v7631, 0.0
        %vm7821 = vcmp.ge.f32.partialorder %v7633, 0.0
        %vm7822 = vcmp.ge.f32.partialorder %v7744, 0.0
        %vm7823 = vcmp.ge.f32.partialorder %v7746, 0.0
        %vm7824 = vcmp.ge.f32.partialorder %v7635, 0.0
        %vm7825 = vcmp.ge.f32.partialorder %v7637, 0.0
        %vm7826 = vcmp.ge.f32.partialorder %v7748, 0.0
        %vm7827 = vcmp.ge.f32.partialorder %v7750, 0.0
        %vm7828 = vcmp.ge.f32.partialorder %v7641, 0.0
        %vm7829 = vcmp.ge.f32.partialorder %v7643, 0.0
        %vm7830 = vcmp.ge.f32.partialorder %v7754, 0.0
        %vm7831 = vcmp.ge.f32.partialorder %v7756, 0.0
        %vm7832 = vcmp.ge.f32.partialorder %v7645, 0.0
        %vm7833 = vcmp.ge.f32.partialorder %v7647, 0.0
        %vm7834 = vcmp.ge.f32.partialorder %v7758, 0.0
        %vm7835 = vcmp.ge.f32.partialorder %v7760, 0.0
        %vm7836 = vcmp.ge.f32.partialorder %v7651, 0.0
        %vm7837 = vcmp.ge.f32.partialorder %v7653, 0.0
        %vm7838 = vcmp.ge.f32.partialorder %v7764, 0.0
        %vm7839 = vcmp.ge.f32.partialorder %v7766, 0.0
        %vm7840 = vcmp.ge.f32.partialorder %v7655, 0.0
        %vm7841 = vcmp.ge.f32.partialorder %v7657, 0.0
        %vm7842 = vcmp.ge.f32.partialorder %v7768, 0.0
        %vm7843 = vcmp.ge.f32.partialorder %v7770, 0.0
        %vm7844 = vcmp.ge.f32.partialorder %v7661, 0.0
        %vm7845 = vcmp.ge.f32.partialorder %v7663, 0.0
        %vm7846 = vcmp.ge.f32.partialorder %v7774, 0.0
        %vm7847 = vcmp.ge.f32.partialorder %v7776, 0.0
        %vm7848 = vcmp.ge.f32.partialorder %v7665, 0.0
        %vm7849 = vcmp.ge.f32.partialorder %v7667, 0.0
        %vm7850 = vcmp.ge.f32.partialorder %v7778, 0.0
        %vm7851 = vcmp.ge.f32.partialorder %v7780, 0.0
        %vm7852 = vcmp.ge.f32.partialorder %v7671, 0.0
        %vm7853 = vcmp.ge.f32.partialorder %v7673, 0.0
        %vm7854 = vcmp.ge.f32.partialorder %v7784, 0.0
        %vm7855 = vcmp.ge.f32.partialorder %v7786, 0.0
        %vm7856 = vcmp.ge.f32.partialorder %v7675, 0.0
        %vm7857 = vcmp.ge.f32.partialorder %v7677, 0.0
        %vm7858 = vcmp.ge.f32.partialorder %v7788, 0.0
        %vm7859 = vcmp.ge.f32.partialorder %v7790, 0.0
        %vm7860 = vcmp.ge.f32.partialorder %v7681, 0.0
        %vm7861 = vcmp.ge.f32.partialorder %v7683, 0.0
        %vm7862 = vcmp.ge.f32.partialorder %v7794, 0.0
        %vm7863 = vcmp.ge.f32.partialorder %v7796, 0.0
        %vm7864 = vcmp.ge.f32.partialorder %v7685, 0.0
        %vm7865 = vcmp.ge.f32.partialorder %v7687, 0.0
        %vm7866 = vcmp.ge.f32.partialorder %v7798, 0.0
        %vm7867 = vcmp.ge.f32.partialorder %v7800, 0.0
        %vm7868 = vcmp.ge.f32.partialorder %v7691, 0.0
        %vm7869 = vcmp.ge.f32.partialorder %v7693, 0.0
        %vm7870 = vcmp.ge.f32.partialorder %v7804, 0.0
        %vm7871 = vcmp.ge.f32.partialorder %v7806, 0.0
        %vm7872 = vcmp.ge.f32.partialorder %v7695, 0.0
        %vm7873 = vcmp.ge.f32.partialorder %v7697, 0.0
        %vm7874 = vcmp.ge.f32.partialorder %v7808, 0.0
        %vm7875 = vcmp.ge.f32.partialorder %v7810, 0.0
        %v7876 = vmul.f32 %v7621, 0.01
        %v7877 = vmul.f32 %v7623, 0.01
        %v7878 = vmul.f32 %v7734, 0.01
        %v7879 = vmul.f32 %v7736, 0.01
        %v7880 = vmul.f32 %v7625, 0.01
        %v7881 = vmul.f32 %v7627, 0.01
        %v7882 = vmul.f32 %v7738, 0.01
        %v7883 = vmul.f32 %v7740, 0.01
        %v7884 = vmul.f32 %v7631, 0.01
        %v7885 = vmul.f32 %v7633, 0.01
        %v7886 = vmul.f32 %v7744, 0.01
        %v7887 = vmul.f32 %v7746, 0.01
        %v7888 = vmul.f32 %v7635, 0.01
        %v7889 = vmul.f32 %v7637, 0.01
        %v7890 = vmul.f32 %v7748, 0.01
        %v7891 = vmul.f32 %v7750, 0.01
        %v7892 = vmul.f32 %v7641, 0.01
        %v7893 = vmul.f32 %v7643, 0.01
        %v7894 = vmul.f32 %v7754, 0.01
        %v7895 = vmul.f32 %v7756, 0.01
        %v7896 = vmul.f32 %v7645, 0.01
        %v7897 = vmul.f32 %v7647, 0.01
        %v7898 = vmul.f32 %v7758, 0.01
        %v7899 = vmul.f32 %v7760, 0.01
        %v7900 = vmul.f32 %v7651, 0.01
        %v7901 = vmul.f32 %v7653, 0.01
        %v7902 = vmul.f32 %v7764, 0.01
        %v7903 = vmul.f32 %v7766, 0.01
        %v7904 = vmul.f32 %v7655, 0.01
        %v7905 = vmul.f32 %v7657, 0.01
        %v7906 = vmul.f32 %v7768, 0.01
        %v7907 = vmul.f32 %v7770, 0.01
        %v7908 = vmul.f32 %v7661, 0.01
        %v7909 = vmul.f32 %v7663, 0.01
        %v7910 = vmul.f32 %v7774, 0.01
        %v7911 = vmul.f32 %v7776, 0.01
        %v7912 = vmul.f32 %v7665, 0.01
        %v7913 = vmul.f32 %v7667, 0.01
        %v7914 = vmul.f32 %v7778, 0.01
        %v7915 = vmul.f32 %v7780, 0.01
        %v7916 = vmul.f32 %v7671, 0.01
        %v7917 = vmul.f32 %v7673, 0.01
        %v7918 = vmul.f32 %v7784, 0.01
        %v7919 = vmul.f32 %v7786, 0.01
        %v7920 = vmul.f32 %v7675, 0.01
        %v7921 = vmul.f32 %v7677, 0.01
        %v7922 = vmul.f32 %v7788, 0.01
        %v7923 = vmul.f32 %v7790, 0.01
        %v7924 = vmul.f32 %v7681, 0.01
        %v7925 = vmul.f32 %v7683, 0.01
        %v7926 = vmul.f32 %v7794, 0.01
        %v7927 = vmul.f32 %v7796, 0.01
        %v7928 = vmul.f32 %v7685, 0.01
        %v7929 = vmul.f32 %v7687, 0.01
        %v7930 = vmul.f32 %v7798, 0.01
        %v7931 = vmul.f32 %v7800, 0.01
        %v7932 = vmul.f32 %v7691, 0.01
        %v7933 = vmul.f32 %v7693, 0.01
        %v7934 = vmul.f32 %v7804, 0.01
        %v7935 = vmul.f32 %v7806, 0.01
        %v7936 = vmul.f32 %v7695, 0.01
        %v7937 = vmul.f32 %v7697, 0.01
        %v7938 = vmul.f32 %v7808, 0.01
        %v7939 = vmul.f32 %v7810, 0.01
        %v7940 = vsel %vm7812, %v7621, %v7876
        %v7941 = vsel %vm7813, %v7623, %v7877
        %v7942 = vsel %vm7814, %v7734, %v7878
        %v7943 = vsel %vm7815, %v7736, %v7879
        %v7944 = vsel %vm7816, %v7625, %v7880
        %v7945 = vsel %vm7817, %v7627, %v7881
        %v7946 = vsel %vm7818, %v7738, %v7882
        %v7947 = vsel %vm7819, %v7740, %v7883
        %v7948 = vsel %vm7820, %v7631, %v7884
        %v7949 = vsel %vm7821, %v7633, %v7885
        %v7950 = vsel %vm7822, %v7744, %v7886
        %v7951 = vsel %vm7823, %v7746, %v7887
        %v7952 = vsel %vm7824, %v7635, %v7888
        %v7953 = vsel %vm7825, %v7637, %v7889
        %v7954 = vsel %vm7826, %v7748, %v7890
        %v7955 = vsel %vm7827, %v7750, %v7891
        %v7956 = vsel %vm7828, %v7641, %v7892
        %v7957 = vsel %vm7829, %v7643, %v7893
        %v7958 = vsel %vm7830, %v7754, %v7894
        %v7959 = vsel %vm7831, %v7756, %v7895
        %v7960 = vsel %vm7832, %v7645, %v7896
        %v7961 = vsel %vm7833, %v7647, %v7897
        %v7962 = vsel %vm7834, %v7758, %v7898
        %v7963 = vsel %vm7835, %v7760, %v7899
        %v7964 = vsel %vm7836, %v7651, %v7900
        %v7965 = vsel %vm7837, %v7653, %v7901
        %v7966 = vsel %vm7838, %v7764, %v7902
        %v7967 = vsel %vm7839, %v7766, %v7903
        %v7968 = vsel %vm7840, %v7655, %v7904
        %v7969 = vsel %vm7841, %v7657, %v7905
        %v7970 = vsel %vm7842, %v7768, %v7906
        %v7971 = vsel %vm7843, %v7770, %v7907
        %v7972 = vsel %vm7844, %v7661, %v7908
        %v7973 = vsel %vm7845, %v7663, %v7909
        %v7974 = vsel %vm7846, %v7774, %v7910
        %v7975 = vsel %vm7847, %v7776, %v7911
        %v7976 = vsel %vm7848, %v7665, %v7912
        %v7977 = vsel %vm7849, %v7667, %v7913
        %v7978 = vsel %vm7850, %v7778, %v7914
        %v7979 = vsel %vm7851, %v7780, %v7915
        %v7980 = vsel %vm7852, %v7671, %v7916
        %v7981 = vsel %vm7853, %v7673, %v7917
        %v7982 = vsel %vm7854, %v7784, %v7918
        %v7983 = vsel %vm7855, %v7786, %v7919
        %v7984 = vsel %vm7856, %v7675, %v7920
        %v7985 = vsel %vm7857, %v7677, %v7921
        %v7986 = vsel %vm7858, %v7788, %v7922
        %v7987 = vsel %vm7859, %v7790, %v7923
        %v7988 = vsel %vm7860, %v7681, %v7924
        %v7989 = vsel %vm7861, %v7683, %v7925
        %v7990 = vsel %vm7862, %v7794, %v7926
        %v7991 = vsel %vm7863, %v7796, %v7927
        %v7992 = vsel %vm7864, %v7685, %v7928
        %v7993 = vsel %vm7865, %v7687, %v7929
        %v7994 = vsel %vm7866, %v7798, %v7930
        %v7995 = vsel %vm7867, %v7800, %v7931
        %v7996 = vsel %vm7868, %v7691, %v7932
        %v7997 = vsel %vm7869, %v7693, %v7933
        %v7998 = vsel %vm7870, %v7804, %v7934
        %v7999 = vsel %vm7871, %v7806, %v7935
        %v8000 = vsel %vm7872, %v7695, %v7936
        %v8001 = vsel %vm7873, %v7697, %v7937
        %v8002 = vsel %vm7874, %v7808, %v7938
        %v8003 = vsel %vm7875, %v7810, %v7939
        %v8004 = vadd.f32 %v7940, %v7330
        %v8005 = vadd.f32 %v7941, %v7331
        %v8006 = vadd.f32 %v7942, %v7332
        %v8007 = vadd.f32 %v7943, %v7333
        %v8008 = vadd.f32 %v7944, %v7334
        %v8009 = vadd.f32 %v7945, %v7335
        %v8010 = vadd.f32 %v7946, %v7336
        %v8011 = vadd.f32 %v7947, %v7337
        %v8012 = vadd.f32 %v7948, %v7338
        %v8013 = vadd.f32 %v7949, %v7339
        %v8014 = vadd.f32 %v7950, %v7340
        %v8015 = vadd.f32 %v7951, %v7341
        %v8016 = vadd.f32 %v7952, %v7342
        %v8017 = vadd.f32 %v7953, %v7343
        %v8018 = vadd.f32 %v7954, %v7344
        %v8019 = vadd.f32 %v7955, %v7345
        %v8020 = vadd.f32 %v7956, %v7346
        %v8021 = vadd.f32 %v7957, %v7347
        %v8022 = vadd.f32 %v7958, %v7348
        %v8023 = vadd.f32 %v7959, %v7349
        %v8024 = vadd.f32 %v7960, %v7350
        %v8025 = vadd.f32 %v7961, %v7351
        %v8026 = vadd.f32 %v7962, %v7352
        %v8027 = vadd.f32 %v7963, %v7353
        %v8028 = vadd.f32 %v7964, %v7354
        %v8029 = vadd.f32 %v7965, %v7355
        %v8030 = vadd.f32 %v7966, %v7356
        %v8031 = vadd.f32 %v7967, %v7357
        %v8032 = vadd.f32 %v7968, %v7358
        %v8033 = vadd.f32 %v7969, %v7359
        %v8034 = vadd.f32 %v7970, %v7360
        %v8035 = vadd.f32 %v7971, %v7361
        %v8036 = vadd.f32 %v7972, %v7362
        %v8037 = vadd.f32 %v7973, %v7363
        %v8038 = vadd.f32 %v7974, %v7364
        %v8039 = vadd.f32 %v7975, %v7365
        %v8040 = vadd.f32 %v7976, %v7366
        %v8041 = vadd.f32 %v7977, %v7367
        %v8042 = vadd.f32 %v7978, %v7368
        %v8043 = vadd.f32 %v7979, %v7369
        %v8044 = vadd.f32 %v7980, %v7370
        %v8045 = vadd.f32 %v7981, %v7371
        %v8046 = vadd.f32 %v7982, %v7372
        %v8047 = vadd.f32 %v7983, %v7373
        %v8048 = vadd.f32 %v7984, %v7374
        %v8049 = vadd.f32 %v7985, %v7375
        %v8050 = vadd.f32 %v7986, %v7376
        %v8051 = vadd.f32 %v7987, %v7377
        %v8052 = vadd.f32 %v7988, %v7378
        %v8053 = vadd.f32 %v7989, %v7379
        %v8054 = vadd.f32 %v7990, %v7380
        %v8055 = vadd.f32 %v7991, %v7381
        %v8056 = vadd.f32 %v7992, %v7382
        %v8057 = vadd.f32 %v7993, %v7383
        %v8058 = vadd.f32 %v7994, %v7384
        %v8059 = vadd.f32 %v7995, %v7385
        %v8060 = vadd.f32 %v7996, %v7386
        %v8061 = vadd.f32 %v7997, %v7387
        %v8062 = vadd.f32 %v7998, %v7388
        %v8063 = vadd.f32 %v7999, %v7389
        %v8064 = vadd.f32 %v8000, %v7390
        %v8065 = vadd.f32 %v8001, %v7391
        %v8066 = vadd.f32 %v8002, %v7392
        %v8067 = vadd.f32 %v8003, %v7393
        %s8068 = scalar_lea.vmem %s10, 64
        %v8069 = vld [vmem:[%s8068] sm:$0xf]
        %v8070 = vld [vmem:[%s8068 + $0x4] sm:$0xf]
        %v8071 = vld [vmem:[%s8068 + $0x8] sm:$0xf]
        %v8072 = vld [vmem:[%s8068 + $0xc] sm:$0xf]
        %v8073 = vld [vmem:[%s8068 + $0x10] sm:$0xf]
        %v8074 = vld [vmem:[%s8068 + $0x14] sm:$0xf]
        %v8075 = vld [vmem:[%s8068 + $0x18] sm:$0xf]
        %v8076 = vld [vmem:[%s8068 + $0x1c] sm:$0xf]
        %v8077 = vld [vmem:[%s8068 + $0x20] sm:$0xf]
        %v8078 = vld [vmem:[%s8068 + $0x24] sm:$0xf]
        %v8079 = vld [vmem:[%s8068 + $0x28] sm:$0xf]
        %v8080 = vld [vmem:[%s8068 + $0x2c] sm:$0xf]
        %v8081 = vld [vmem:[%s8068 + $0x30] sm:$0xf]
        %v8082 = vld [vmem:[%s8068 + $0x34] sm:$0xf]
        %v8083 = vld [vmem:[%s8068 + $0x38] sm:$0xf]
        %v8084 = vld [vmem:[%s8068 + $0x3c] sm:$0xf]
        %v8085 = vpack.c.bf16 %v8008, %v8004
        %v8086 = vpack.c.bf16 %v8009, %v8005
        %v8087 = vpack.c.bf16 %v8010, %v8006
        %v8088 = vpack.c.bf16 %v8011, %v8007
        %v8089 = vpack.c.bf16 %v8016, %v8012
        %v8090 = vpack.c.bf16 %v8017, %v8013
        %v8091 = vpack.c.bf16 %v8018, %v8014
        %v8092 = vpack.c.bf16 %v8019, %v8015
        %v8093 = vpack.c.bf16 %v8024, %v8020
        %v8094 = vpack.c.bf16 %v8025, %v8021
        %v8095 = vpack.c.bf16 %v8026, %v8022
        %v8096 = vpack.c.bf16 %v8027, %v8023
        %v8097 = vpack.c.bf16 %v8032, %v8028
        %v8098 = vpack.c.bf16 %v8033, %v8029
        %v8099 = vpack.c.bf16 %v8034, %v8030
        %v8100 = vpack.c.bf16 %v8035, %v8031
        %v8101 = vpack.c.bf16 %v8040, %v8036
        %v8102 = vpack.c.bf16 %v8041, %v8037
        %v8103 = vpack.c.bf16 %v8042, %v8038
        %v8104 = vpack.c.bf16 %v8043, %v8039
        %v8105 = vpack.c.bf16 %v8048, %v8044
        %v8106 = vpack.c.bf16 %v8049, %v8045
        %v8107 = vpack.c.bf16 %v8050, %v8046
        %v8108 = vpack.c.bf16 %v8051, %v8047
        %v8109 = vpack.c.bf16 %v8056, %v8052
        %v8110 = vpack.c.bf16 %v8057, %v8053
        %v8111 = vpack.c.bf16 %v8058, %v8054
        %v8112 = vpack.c.bf16 %v8059, %v8055
        %v8113 = vpack.c.bf16 %v8064, %v8060
        %v8114 = vpack.c.bf16 %v8065, %v8061
        %v8115 = vpack.c.bf16 %v8066, %v8062
        %v8116 = vpack.c.bf16 %v8067, %v8063
        %s8117 = scalar_lea.vmem %s11, 128
        %v8118 = vld [vmem:[%s8117] sm:$0xff]
        %v8119 = vld [vmem:[%s8117 + $0x8] sm:$0xff]
        %v8120 = vld [vmem:[%s8117 + $0x10] sm:$0xff]
        %v8121 = vld [vmem:[%s8117 + $0x18] sm:$0xff]
        %v8122 = vld [vmem:[%s8117 + $0x20] sm:$0xff]
        %v8123 = vld [vmem:[%s8117 + $0x28] sm:$0xff]
        %v8124 = vld [vmem:[%s8117 + $0x30] sm:$0xff]
        %v8125 = vld [vmem:[%s8117 + $0x38] sm:$0xff]
        %v8126 = vld [vmem:[%s8117 + $0x40] sm:$0xff]
        %v8127 = vld [vmem:[%s8117 + $0x48] sm:$0xff]
        %v8128 = vld [vmem:[%s8117 + $0x50] sm:$0xff]
        %v8129 = vld [vmem:[%s8117 + $0x58] sm:$0xff]
        %v8130 = vld [vmem:[%s8117 + $0x60] sm:$0xff]
        %v8131 = vld [vmem:[%s8117 + $0x68] sm:$0xff]
        %v8132 = vld [vmem:[%s8117 + $0x70] sm:$0xff]
        %v8133 = vld [vmem:[%s8117 + $0x78] sm:$0xff]
        %8135 = vset.pattern.permute.xlu0 0
        %8136 = vperm.xlu0 %8135, %v8118
        %v8137 = vpop.permute.xlu0 %8136
        %8140 = vset.pattern.permute.xlu0 0
        %8141 = vperm.xlu0 %8140, %v8119
        %v8142 = vpop.permute.xlu0 %8141
        %8145 = vset.pattern.permute.xlu0 0
        %8146 = vperm.xlu0 %8145, %v8120
        %v8147 = vpop.permute.xlu0 %8146
        %8150 = vset.pattern.permute.xlu0 0
        %8151 = vperm.xlu0 %8150, %v8121
        %v8152 = vpop.permute.xlu0 %8151
        %8155 = vset.pattern.permute.xlu0 0
        %8156 = vperm.xlu0 %8155, %v8122
        %v8157 = vpop.permute.xlu0 %8156
        %8160 = vset.pattern.permute.xlu0 0
        %8161 = vperm.xlu0 %8160, %v8123
        %v8162 = vpop.permute.xlu0 %8161
        %8165 = vset.pattern.permute.xlu0 0
        %8166 = vperm.xlu0 %8165, %v8124
        %v8167 = vpop.permute.xlu0 %8166
        %8170 = vset.pattern.permute.xlu0 0
        %8171 = vperm.xlu0 %8170, %v8125
        %v8172 = vpop.permute.xlu0 %8171
        %8175 = vset.pattern.permute.xlu0 0
        %8176 = vperm.xlu0 %8175, %v8126
        %v8177 = vpop.permute.xlu0 %8176
        %8180 = vset.pattern.permute.xlu0 0
        %8181 = vperm.xlu0 %8180, %v8127
        %v8182 = vpop.permute.xlu0 %8181
        %8185 = vset.pattern.permute.xlu0 0
        %8186 = vperm.xlu0 %8185, %v8128
        %v8187 = vpop.permute.xlu0 %8186
        %8190 = vset.pattern.permute.xlu0 0
        %8191 = vperm.xlu0 %8190, %v8129
        %v8192 = vpop.permute.xlu0 %8191
        %8195 = vset.pattern.permute.xlu0 0
        %8196 = vperm.xlu0 %8195, %v8130
        %v8197 = vpop.permute.xlu0 %8196
        %8200 = vset.pattern.permute.xlu0 0
        %8201 = vperm.xlu0 %8200, %v8131
        %v8202 = vpop.permute.xlu0 %8201
        %8205 = vset.pattern.permute.xlu0 0
        %8206 = vperm.xlu0 %8205, %v8132
        %v8207 = vpop.permute.xlu0 %8206
        %8210 = vset.pattern.permute.xlu0 0
        %8211 = vperm.xlu0 %8210, %v8133
        %v8212 = vpop.permute.xlu0 %8211
        %v8230 = vunpack.c.l.b16 %v8069
        %v8231 = vunpack.c.l.b16 %v8070
        %v8232 = vunpack.c.l.b16 %v8071
        %v8233 = vunpack.c.l.b16 %v8072
        %v8234 = vunpack.c.l.b16 %v8073
        %v8235 = vunpack.c.l.b16 %v8074
        %v8236 = vunpack.c.l.b16 %v8075
        %v8237 = vunpack.c.l.b16 %v8076
        %v8238 = vunpack.c.l.b16 %v8077
        %v8239 = vunpack.c.l.b16 %v8078
        %v8240 = vunpack.c.l.b16 %v8079
        %v8241 = vunpack.c.l.b16 %v8080
        %v8242 = vunpack.c.l.b16 %v8081
        %v8243 = vunpack.c.l.b16 %v8082
        %v8244 = vunpack.c.l.b16 %v8083
        %v8245 = vunpack.c.l.b16 %v8084
        %v8246 = vpack.c.b16 %v8231, %v8230
        %v8247 = vpack.c.b16 %v8233, %v8232
        %v8248 = vpack.c.b16 %v8235, %v8234
        %v8249 = vpack.c.b16 %v8237, %v8236
        %v8250 = vpack.c.b16 %v8239, %v8238
        %v8251 = vpack.c.b16 %v8241, %v8240
        %v8252 = vpack.c.b16 %v8243, %v8242
        %v8253 = vpack.c.b16 %v8245, %v8244
        %8262 = vmatprep.subr.bf16.mxu0 %v8086
        %8263 = vmatpush1.bf16.msra.mxu0 %v8085
        %8264 = vmatprep.subr.bf16.mxu0 %v8090
        %8265 = vmatpush1.bf16.msra.mxu0 %v8089
        %8266 = vmatprep.subr.bf16.mxu0 %v8094
        %8267 = vmatpush1.bf16.msra.mxu0 %v8093
        %8268 = vmatprep.subr.bf16.mxu0 %v8098
        %8269 = vmatpush1.bf16.msra.mxu0 %v8097
        %8270 = vmatprep.subr.bf16.mxu0 %v8102
        %8271 = vmatpush1.bf16.msra.mxu0 %v8101
        %8272 = vmatprep.subr.bf16.mxu0 %v8106
        %8273 = vmatpush1.bf16.msra.mxu0 %v8105
        %8274 = vmatprep.subr.bf16.mxu0 %v8110
        %8275 = vmatpush1.bf16.msra.mxu0 %v8109
        %8276 = vmatprep.subr.bf16.mxu0 %v8114
        %8277 = vmatpush1.bf16.msra.mxu0 %v8113
        %8278 = vmatprep.subr.bf16.mxu0 0
        %8279 = vmatpush1.bf16.msra.mxu0 0
        %8280 = vmatprep.subr.bf16.mxu0 0
        %8281 = vmatpush1.bf16.msra.mxu0 0
        %8282 = vmatprep.subr.bf16.mxu0 0
        %8283 = vmatpush1.bf16.msra.mxu0 0
        %8284 = vmatprep.subr.bf16.mxu0 0
        %8285 = vmatpush1.bf16.msra.mxu0 0
        %8286 = vmatprep.subr.bf16.mxu0 0
        %8287 = vmatpush1.bf16.msra.mxu0 0
        %8288 = vmatprep.subr.bf16.mxu0 0
        %8289 = vmatpush1.bf16.msra.mxu0 0
        %8290 = vmatprep.subr.bf16.mxu0 0
        %8291 = vmatpush1.bf16.msra.mxu0 0
        %8292 = vmatprep.subr.bf16.mxu0 0
        %8293 = vmatpush1.bf16.msra.mxu0 0
        %8294 = vmatprep.mubr.bf16.mxu0 0
        %8295 = vmatmul.mubr.bf16.gmra.mrb[0].mxu0 %v8246
        %v8296 = vpop.f32.mrb[0].mxu0
        %v8297 = vadd.f32 %v8137, %v8296
        %v8298 = vpop.f32.mrb[0].mxu0
        %v8299 = vadd.f32 %v8137, %v8298
        %v8300 = vpop.f32.mrb[0].mxu0
        %v8301 = vadd.f32 %v8142, %v8300
        %v8302 = vpop.f32.mrb[0].mxu0
        %v8303 = vadd.f32 %v8142, %v8302
        %8304 = vmatprep.mubr.bf16.mxu0 0
        %8305 = vmatmul.mubr.bf16.gmra.mrb[0].mxu0 %v8247
        %v8306 = vpop.f32.mrb[0].mxu0
        %v8307 = vadd.f32 %v8147, %v8306
        %v8308 = vpop.f32.mrb[0].mxu0
        %v8309 = vadd.f32 %v8147, %v8308
        %v8310 = vpop.f32.mrb[0].mxu0
        %v8311 = vadd.f32 %v8152, %v8310
        %v8312 = vpop.f32.mrb[0].mxu0
        %v8313 = vadd.f32 %v8152, %v8312
        %8314 = vmatprep.mubr.bf16.mxu0 0
        %8315 = vmatmul.mubr.bf16.gmra.mrb[0].mxu0 %v8248
        %v8316 = vpop.f32.mrb[0].mxu0
        %v8317 = vadd.f32 %v8157, %v8316
        %v8318 = vpop.f32.mrb[0].mxu0
        %v8319 = vadd.f32 %v8157, %v8318
        %v8320 = vpop.f32.mrb[0].mxu0
        %v8321 = vadd.f32 %v8162, %v8320
        %v8322 = vpop.f32.mrb[0].mxu0
        %v8323 = vadd.f32 %v8162, %v8322
        %8324 = vmatprep.mubr.bf16.mxu0 0
        %8325 = vmatmul.mubr.bf16.gmra.mrb[0].mxu0 %v8249
        %v8326 = vpop.f32.mrb[0].mxu0
        %v8327 = vadd.f32 %v8167, %v8326
        %v8328 = vpop.f32.mrb[0].mxu0
        %v8329 = vadd.f32 %v8167, %v8328
        %v8330 = vpop.f32.mrb[0].mxu0
        %v8331 = vadd.f32 %v8172, %v8330
        %v8332 = vpop.f32.mrb[0].mxu0
        %v8333 = vadd.f32 %v8172, %v8332
        %8334 = vmatprep.mubr.bf16.mxu0 0
        %8335 = vmatmul.mubr.bf16.gmra.mrb[0].mxu0 %v8250
        %v8336 = vpop.f32.mrb[0].mxu0
        %v8337 = vadd.f32 %v8177, %v8336
        %v8338 = vpop.f32.mrb[0].mxu0
        %v8339 = vadd.f32 %v8177, %v8338
        %v8340 = vpop.f32.mrb[0].mxu0
        %v8341 = vadd.f32 %v8182, %v8340
        %v8342 = vpop.f32.mrb[0].mxu0
        %v8343 = vadd.f32 %v8182, %v8342
        %8344 = vmatprep.mubr.bf16.mxu0 0
        %8345 = vmatmul.mubr.bf16.gmra.mrb[0].mxu0 %v8251
        %v8346 = vpop.f32.mrb[0].mxu0
        %v8347 = vadd.f32 %v8187, %v8346
        %v8348 = vpop.f32.mrb[0].mxu0
        %v8349 = vadd.f32 %v8187, %v8348
        %v8350 = vpop.f32.mrb[0].mxu0
        %v8351 = vadd.f32 %v8192, %v8350
        %v8352 = vpop.f32.mrb[0].mxu0
        %v8353 = vadd.f32 %v8192, %v8352
        %8354 = vmatprep.mubr.bf16.mxu0 0
        %8355 = vmatmul.mubr.bf16.gmra.mrb[0].mxu0 %v8252
        %v8356 = vpop.f32.mrb[0].mxu0
        %v8357 = vadd.f32 %v8197, %v8356
        %v8358 = vpop.f32.mrb[0].mxu0
        %v8359 = vadd.f32 %v8197, %v8358
        %v8360 = vpop.f32.mrb[0].mxu0
        %v8361 = vadd.f32 %v8202, %v8360
        %v8362 = vpop.f32.mrb[0].mxu0
        %v8363 = vadd.f32 %v8202, %v8362
        %8364 = vmatprep.mubr.bf16.mxu0 0
        %8365 = vmatmul.mubr.bf16.gmra.mrb[0].mxu0 %v8253
        %v8366 = vpop.f32.mrb[0].mxu0
        %v8367 = vadd.f32 %v8207, %v8366
        %v8368 = vpop.f32.mrb[0].mxu0
        %v8369 = vadd.f32 %v8207, %v8368
        %v8370 = vpop.f32.mrb[0].mxu0
        %v8371 = vadd.f32 %v8212, %v8370
        %v8372 = vpop.f32.mrb[0].mxu0
        %v8373 = vadd.f32 %v8212, %v8372
        %8374 = vdwg.mxu0
        %8375 = vmatprep.subr.bf16.mxu0 %v8088
        %8376 = vmatpush1.bf16.msra.mxu0 %v8087
        %8377 = vmatprep.subr.bf16.mxu0 %v8092
        %8378 = vmatpush1.bf16.msra.mxu0 %v8091
        %8379 = vmatprep.subr.bf16.mxu0 %v8096
        %8380 = vmatpush1.bf16.msra.mxu0 %v8095
        %8381 = vmatprep.subr.bf16.mxu0 %v8100
        %8382 = vmatpush1.bf16.msra.mxu0 %v8099
        %8383 = vmatprep.subr.bf16.mxu0 %v8104
        %8384 = vmatpush1.bf16.msra.mxu0 %v8103
        %8385 = vmatprep.subr.bf16.mxu0 %v8108
        %8386 = vmatpush1.bf16.msra.mxu0 %v8107
        %8387 = vmatprep.subr.bf16.mxu0 %v8112
        %8388 = vmatpush1.bf16.msra.mxu0 %v8111
        %8389 = vmatprep.subr.bf16.mxu0 %v8116
        %8390 = vmatpush1.bf16.msra.mxu0 %v8115
        %8391 = vmatprep.subr.bf16.mxu0 0
        %8392 = vmatpush1.bf16.msra.mxu0 0
        %8393 = vmatprep.subr.bf16.mxu0 0
        %8394 = vmatpush1.bf16.msra.mxu0 0
        %8395 = vmatprep.subr.bf16.mxu0 0
        %8396 = vmatpush1.bf16.msra.mxu0 0
        %8397 = vmatprep.subr.bf16.mxu0 0
        %8398 = vmatpush1.bf16.msra.mxu0 0
        %8399 = vmatprep.subr.bf16.mxu0 0
        %8400 = vmatpush1.bf16.msra.mxu0 0
        %8401 = vmatprep.subr.bf16.mxu0 0
        %8402 = vmatpush1.bf16.msra.mxu0 0
        %8403 = vmatprep.subr.bf16.mxu0 0
        %8404 = vmatpush1.bf16.msra.mxu0 0
        %8405 = vmatprep.subr.bf16.mxu0 0
        %8406 = vmatpush1.bf16.msra.mxu0 0
        %8407 = vmatprep.mubr.bf16.mxu0 0
        %8408 = vmatmul.mubr.bf16.gmra.mrb[0].mxu0 %v8246
        %v8409 = vpop.f32.mrb[0].mxu0
        %v8410 = vadd.f32 %v8137, %v8409
        %v8411 = vpop.f32.mrb[0].mxu0
        %v8412 = vadd.f32 %v8137, %v8411
        %v8413 = vpop.f32.mrb[0].mxu0
        %v8414 = vadd.f32 %v8142, %v8413
        %v8415 = vpop.f32.mrb[0].mxu0
        %v8416 = vadd.f32 %v8142, %v8415
        %8417 = vmatprep.mubr.bf16.mxu0 0
        %8418 = vmatmul.mubr.bf16.gmra.mrb[0].mxu0 %v8247
        %v8419 = vpop.f32.mrb[0].mxu0
        %v8420 = vadd.f32 %v8147, %v8419
        %v8421 = vpop.f32.mrb[0].mxu0
        %v8422 = vadd.f32 %v8147, %v8421
        %v8423 = vpop.f32.mrb[0].mxu0
        %v8424 = vadd.f32 %v8152, %v8423
        %v8425 = vpop.f32.mrb[0].mxu0
        %v8426 = vadd.f32 %v8152, %v8425
        %8427 = vmatprep.mubr.bf16.mxu0 0
        %8428 = vmatmul.mubr.bf16.gmra.mrb[0].mxu0 %v8248
        %v8429 = vpop.f32.mrb[0].mxu0
        %v8430 = vadd.f32 %v8157, %v8429
        %v8431 = vpop.f32.mrb[0].mxu0
        %v8432 = vadd.f32 %v8157, %v8431
        %v8433 = vpop.f32.mrb[0].mxu0
        %v8434 = vadd.f32 %v8162, %v8433
        %v8435 = vpop.f32.mrb[0].mxu0
        %v8436 = vadd.f32 %v8162, %v8435
        %8437 = vmatprep.mubr.bf16.mxu0 0
        %8438 = vmatmul.mubr.bf16.gmra.mrb[0].mxu0 %v8249
        %v8439 = vpop.f32.mrb[0].mxu0
        %v8440 = vadd.f32 %v8167, %v8439
        %v8441 = vpop.f32.mrb[0].mxu0
        %v8442 = vadd.f32 %v8167, %v8441
        %v8443 = vpop.f32.mrb[0].mxu0
        %v8444 = vadd.f32 %v8172, %v8443
        %v8445 = vpop.f32.mrb[0].mxu0
        %v8446 = vadd.f32 %v8172, %v8445
        %8447 = vmatprep.mubr.bf16.mxu0 0
        %8448 = vmatmul.mubr.bf16.gmra.mrb[0].mxu0 %v8250
        %v8449 = vpop.f32.mrb[0].mxu0
        %v8450 = vadd.f32 %v8177, %v8449
        %v8451 = vpop.f32.mrb[0].mxu0
        %v8452 = vadd.f32 %v8177, %v8451
        %v8453 = vpop.f32.mrb[0].mxu0
        %v8454 = vadd.f32 %v8182, %v8453
        %v8455 = vpop.f32.mrb[0].mxu0
        %v8456 = vadd.f32 %v8182, %v8455
        %8457 = vmatprep.mubr.bf16.mxu0 0
        %8458 = vmatmul.mubr.bf16.gmra.mrb[0].mxu0 %v8251
        %v8459 = vpop.f32.mrb[0].mxu0
        %v8460 = vadd.f32 %v8187, %v8459
        %v8461 = vpop.f32.mrb[0].mxu0
        %v8462 = vadd.f32 %v8187, %v8461
        %v8463 = vpop.f32.mrb[0].mxu0
        %v8464 = vadd.f32 %v8192, %v8463
        %v8465 = vpop.f32.mrb[0].mxu0
        %v8466 = vadd.f32 %v8192, %v8465
        %8467 = vmatprep.mubr.bf16.mxu0 0
        %8468 = vmatmul.mubr.bf16.gmra.mrb[0].mxu0 %v8252
        %v8469 = vpop.f32.mrb[0].mxu0
        %v8470 = vadd.f32 %v8197, %v8469
        %v8471 = vpop.f32.mrb[0].mxu0
        %v8472 = vadd.f32 %v8197, %v8471
        %v8473 = vpop.f32.mrb[0].mxu0
        %v8474 = vadd.f32 %v8202, %v8473
        %v8475 = vpop.f32.mrb[0].mxu0
        %v8476 = vadd.f32 %v8202, %v8475
        %8477 = vmatprep.mubr.bf16.mxu0 0
        %8478 = vmatmul.mubr.bf16.gmra.mrb[0].mxu0 %v8253
        %v8479 = vpop.f32.mrb[0].mxu0
        %v8480 = vadd.f32 %v8207, %v8479
        %v8481 = vpop.f32.mrb[0].mxu0
        %v8482 = vadd.f32 %v8207, %v8481
        %v8483 = vpop.f32.mrb[0].mxu0
        %v8484 = vadd.f32 %v8212, %v8483
        %v8485 = vpop.f32.mrb[0].mxu0
        %v8486 = vadd.f32 %v8212, %v8485
        %8487 = vdwg.mxu0
        %vm8488 = vcmp.ge.f32.partialorder %v8297, 0.0
        %vm8489 = vcmp.ge.f32.partialorder %v8299, 0.0
        %vm8490 = vcmp.ge.f32.partialorder %v8410, 0.0
        %vm8491 = vcmp.ge.f32.partialorder %v8412, 0.0
        %vm8492 = vcmp.ge.f32.partialorder %v8301, 0.0
        %vm8493 = vcmp.ge.f32.partialorder %v8303, 0.0
        %vm8494 = vcmp.ge.f32.partialorder %v8414, 0.0
        %vm8495 = vcmp.ge.f32.partialorder %v8416, 0.0
        %vm8496 = vcmp.ge.f32.partialorder %v8307, 0.0
        %vm8497 = vcmp.ge.f32.partialorder %v8309, 0.0
        %vm8498 = vcmp.ge.f32.partialorder %v8420, 0.0
        %vm8499 = vcmp.ge.f32.partialorder %v8422, 0.0
        %vm8500 = vcmp.ge.f32.partialorder %v8311, 0.0
        %vm8501 = vcmp.ge.f32.partialorder %v8313, 0.0
        %vm8502 = vcmp.ge.f32.partialorder %v8424, 0.0
        %vm8503 = vcmp.ge.f32.partialorder %v8426, 0.0
        %vm8504 = vcmp.ge.f32.partialorder %v8317, 0.0
        %vm8505 = vcmp.ge.f32.partialorder %v8319, 0.0
        %vm8506 = vcmp.ge.f32.partialorder %v8430, 0.0
        %vm8507 = vcmp.ge.f32.partialorder %v8432, 0.0
        %vm8508 = vcmp.ge.f32.partialorder %v8321, 0.0
        %vm8509 = vcmp.ge.f32.partialorder %v8323, 0.0
        %vm8510 = vcmp.ge.f32.partialorder %v8434, 0.0
        %vm8511 = vcmp.ge.f32.partialorder %v8436, 0.0
        %vm8512 = vcmp.ge.f32.partialorder %v8327, 0.0
        %vm8513 = vcmp.ge.f32.partialorder %v8329, 0.0
        %vm8514 = vcmp.ge.f32.partialorder %v8440, 0.0
        %vm8515 = vcmp.ge.f32.partialorder %v8442, 0.0
        %vm8516 = vcmp.ge.f32.partialorder %v8331, 0.0
        %vm8517 = vcmp.ge.f32.partialorder %v8333, 0.0
        %vm8518 = vcmp.ge.f32.partialorder %v8444, 0.0
        %vm8519 = vcmp.ge.f32.partialorder %v8446, 0.0
        %vm8520 = vcmp.ge.f32.partialorder %v8337, 0.0
        %vm8521 = vcmp.ge.f32.partialorder %v8339, 0.0
        %vm8522 = vcmp.ge.f32.partialorder %v8450, 0.0
        %vm8523 = vcmp.ge.f32.partialorder %v8452, 0.0
        %vm8524 = vcmp.ge.f32.partialorder %v8341, 0.0
        %vm8525 = vcmp.ge.f32.partialorder %v8343, 0.0
        %vm8526 = vcmp.ge.f32.partialorder %v8454, 0.0
        %vm8527 = vcmp.ge.f32.partialorder %v8456, 0.0
        %vm8528 = vcmp.ge.f32.partialorder %v8347, 0.0
        %vm8529 = vcmp.ge.f32.partialorder %v8349, 0.0
        %vm8530 = vcmp.ge.f32.partialorder %v8460, 0.0
        %vm8531 = vcmp.ge.f32.partialorder %v8462, 0.0
        %vm8532 = vcmp.ge.f32.partialorder %v8351, 0.0
        %vm8533 = vcmp.ge.f32.partialorder %v8353, 0.0
        %vm8534 = vcmp.ge.f32.partialorder %v8464, 0.0
        %vm8535 = vcmp.ge.f32.partialorder %v8466, 0.0
        %vm8536 = vcmp.ge.f32.partialorder %v8357, 0.0
        %vm8537 = vcmp.ge.f32.partialorder %v8359, 0.0
        %vm8538 = vcmp.ge.f32.partialorder %v8470, 0.0
        %vm8539 = vcmp.ge.f32.partialorder %v8472, 0.0
        %vm8540 = vcmp.ge.f32.partialorder %v8361, 0.0
        %vm8541 = vcmp.ge.f32.partialorder %v8363, 0.0
        %vm8542 = vcmp.ge.f32.partialorder %v8474, 0.0
        %vm8543 = vcmp.ge.f32.partialorder %v8476, 0.0
        %vm8544 = vcmp.ge.f32.partialorder %v8367, 0.0
        %vm8545 = vcmp.ge.f32.partialorder %v8369, 0.0
        %vm8546 = vcmp.ge.f32.partialorder %v8480, 0.0
        %vm8547 = vcmp.ge.f32.partialorder %v8482, 0.0
        %vm8548 = vcmp.ge.f32.partialorder %v8371, 0.0
        %vm8549 = vcmp.ge.f32.partialorder %v8373, 0.0
        %vm8550 = vcmp.ge.f32.partialorder %v8484, 0.0
        %vm8551 = vcmp.ge.f32.partialorder %v8486, 0.0
        %v8552 = vmul.f32 %v8297, 0.01
        %v8553 = vmul.f32 %v8299, 0.01
        %v8554 = vmul.f32 %v8410, 0.01
        %v8555 = vmul.f32 %v8412, 0.01
        %v8556 = vmul.f32 %v8301, 0.01
        %v8557 = vmul.f32 %v8303, 0.01
        %v8558 = vmul.f32 %v8414, 0.01
        %v8559 = vmul.f32 %v8416, 0.01
        %v8560 = vmul.f32 %v8307, 0.01
        %v8561 = vmul.f32 %v8309, 0.01
        %v8562 = vmul.f32 %v8420, 0.01
        %v8563 = vmul.f32 %v8422, 0.01
        %v8564 = vmul.f32 %v8311, 0.01
        %v8565 = vmul.f32 %v8313, 0.01
        %v8566 = vmul.f32 %v8424, 0.01
        %v8567 = vmul.f32 %v8426, 0.01
        %v8568 = vmul.f32 %v8317, 0.01
        %v8569 = vmul.f32 %v8319, 0.01
        %v8570 = vmul.f32 %v8430, 0.01
        %v8571 = vmul.f32 %v8432, 0.01
        %v8572 = vmul.f32 %v8321, 0.01
        %v8573 = vmul.f32 %v8323, 0.01
        %v8574 = vmul.f32 %v8434, 0.01
        %v8575 = vmul.f32 %v8436, 0.01
        %v8576 = vmul.f32 %v8327, 0.01
        %v8577 = vmul.f32 %v8329, 0.01
        %v8578 = vmul.f32 %v8440, 0.01
        %v8579 = vmul.f32 %v8442, 0.01
        %v8580 = vmul.f32 %v8331, 0.01
        %v8581 = vmul.f32 %v8333, 0.01
        %v8582 = vmul.f32 %v8444, 0.01
        %v8583 = vmul.f32 %v8446, 0.01
        %v8584 = vmul.f32 %v8337, 0.01
        %v8585 = vmul.f32 %v8339, 0.01
        %v8586 = vmul.f32 %v8450, 0.01
        %v8587 = vmul.f32 %v8452, 0.01
        %v8588 = vmul.f32 %v8341, 0.01
        %v8589 = vmul.f32 %v8343, 0.01
        %v8590 = vmul.f32 %v8454, 0.01
        %v8591 = vmul.f32 %v8456, 0.01
        %v8592 = vmul.f32 %v8347, 0.01
        %v8593 = vmul.f32 %v8349, 0.01
        %v8594 = vmul.f32 %v8460, 0.01
        %v8595 = vmul.f32 %v8462, 0.01
        %v8596 = vmul.f32 %v8351, 0.01
        %v8597 = vmul.f32 %v8353, 0.01
        %v8598 = vmul.f32 %v8464, 0.01
        %v8599 = vmul.f32 %v8466, 0.01
        %v8600 = vmul.f32 %v8357, 0.01
        %v8601 = vmul.f32 %v8359, 0.01
        %v8602 = vmul.f32 %v8470, 0.01
        %v8603 = vmul.f32 %v8472, 0.01
        %v8604 = vmul.f32 %v8361, 0.01
        %v8605 = vmul.f32 %v8363, 0.01
        %v8606 = vmul.f32 %v8474, 0.01
        %v8607 = vmul.f32 %v8476, 0.01
        %v8608 = vmul.f32 %v8367, 0.01
        %v8609 = vmul.f32 %v8369, 0.01
        %v8610 = vmul.f32 %v8480, 0.01
        %v8611 = vmul.f32 %v8482, 0.01
        %v8612 = vmul.f32 %v8371, 0.01
        %v8613 = vmul.f32 %v8373, 0.01
        %v8614 = vmul.f32 %v8484, 0.01
        %v8615 = vmul.f32 %v8486, 0.01
        %v8616 = vsel %vm8488, %v8297, %v8552
        %v8617 = vsel %vm8489, %v8299, %v8553
        %v8618 = vsel %vm8490, %v8410, %v8554
        %v8619 = vsel %vm8491, %v8412, %v8555
        %v8620 = vsel %vm8492, %v8301, %v8556
        %v8621 = vsel %vm8493, %v8303, %v8557
        %v8622 = vsel %vm8494, %v8414, %v8558
        %v8623 = vsel %vm8495, %v8416, %v8559
        %v8624 = vsel %vm8496, %v8307, %v8560
        %v8625 = vsel %vm8497, %v8309, %v8561
        %v8626 = vsel %vm8498, %v8420, %v8562
        %v8627 = vsel %vm8499, %v8422, %v8563
        %v8628 = vsel %vm8500, %v8311, %v8564
        %v8629 = vsel %vm8501, %v8313, %v8565
        %v8630 = vsel %vm8502, %v8424, %v8566
        %v8631 = vsel %vm8503, %v8426, %v8567
        %v8632 = vsel %vm8504, %v8317, %v8568
        %v8633 = vsel %vm8505, %v8319, %v8569
        %v8634 = vsel %vm8506, %v8430, %v8570
        %v8635 = vsel %vm8507, %v8432, %v8571
        %v8636 = vsel %vm8508, %v8321, %v8572
        %v8637 = vsel %vm8509, %v8323, %v8573
        %v8638 = vsel %vm8510, %v8434, %v8574
        %v8639 = vsel %vm8511, %v8436, %v8575
        %v8640 = vsel %vm8512, %v8327, %v8576
        %v8641 = vsel %vm8513, %v8329, %v8577
        %v8642 = vsel %vm8514, %v8440, %v8578
        %v8643 = vsel %vm8515, %v8442, %v8579
        %v8644 = vsel %vm8516, %v8331, %v8580
        %v8645 = vsel %vm8517, %v8333, %v8581
        %v8646 = vsel %vm8518, %v8444, %v8582
        %v8647 = vsel %vm8519, %v8446, %v8583
        %v8648 = vsel %vm8520, %v8337, %v8584
        %v8649 = vsel %vm8521, %v8339, %v8585
        %v8650 = vsel %vm8522, %v8450, %v8586
        %v8651 = vsel %vm8523, %v8452, %v8587
        %v8652 = vsel %vm8524, %v8341, %v8588
        %v8653 = vsel %vm8525, %v8343, %v8589
        %v8654 = vsel %vm8526, %v8454, %v8590
        %v8655 = vsel %vm8527, %v8456, %v8591
        %v8656 = vsel %vm8528, %v8347, %v8592
        %v8657 = vsel %vm8529, %v8349, %v8593
        %v8658 = vsel %vm8530, %v8460, %v8594
        %v8659 = vsel %vm8531, %v8462, %v8595
        %v8660 = vsel %vm8532, %v8351, %v8596
        %v8661 = vsel %vm8533, %v8353, %v8597
        %v8662 = vsel %vm8534, %v8464, %v8598
        %v8663 = vsel %vm8535, %v8466, %v8599
        %v8664 = vsel %vm8536, %v8357, %v8600
        %v8665 = vsel %vm8537, %v8359, %v8601
        %v8666 = vsel %vm8538, %v8470, %v8602
        %v8667 = vsel %vm8539, %v8472, %v8603
        %v8668 = vsel %vm8540, %v8361, %v8604
        %v8669 = vsel %vm8541, %v8363, %v8605
        %v8670 = vsel %vm8542, %v8474, %v8606
        %v8671 = vsel %vm8543, %v8476, %v8607
        %v8672 = vsel %vm8544, %v8367, %v8608
        %v8673 = vsel %vm8545, %v8369, %v8609
        %v8674 = vsel %vm8546, %v8480, %v8610
        %v8675 = vsel %vm8547, %v8482, %v8611
        %v8676 = vsel %vm8548, %v8371, %v8612
        %v8677 = vsel %vm8549, %v8373, %v8613
        %v8678 = vsel %vm8550, %v8484, %v8614
        %v8679 = vsel %vm8551, %v8486, %v8615
        %v8680 = vadd.f32 %v8616, %v8004
        %v8681 = vadd.f32 %v8617, %v8005
        %v8682 = vadd.f32 %v8618, %v8006
        %v8683 = vadd.f32 %v8619, %v8007
        %v8684 = vadd.f32 %v8620, %v8008
        %v8685 = vadd.f32 %v8621, %v8009
        %v8686 = vadd.f32 %v8622, %v8010
        %v8687 = vadd.f32 %v8623, %v8011
        %v8688 = vadd.f32 %v8624, %v8012
        %v8689 = vadd.f32 %v8625, %v8013
        %v8690 = vadd.f32 %v8626, %v8014
        %v8691 = vadd.f32 %v8627, %v8015
        %v8692 = vadd.f32 %v8628, %v8016
        %v8693 = vadd.f32 %v8629, %v8017
        %v8694 = vadd.f32 %v8630, %v8018
        %v8695 = vadd.f32 %v8631, %v8019
        %v8696 = vadd.f32 %v8632, %v8020
        %v8697 = vadd.f32 %v8633, %v8021
        %v8698 = vadd.f32 %v8634, %v8022
        %v8699 = vadd.f32 %v8635, %v8023
        %v8700 = vadd.f32 %v8636, %v8024
        %v8701 = vadd.f32 %v8637, %v8025
        %v8702 = vadd.f32 %v8638, %v8026
        %v8703 = vadd.f32 %v8639, %v8027
        %v8704 = vadd.f32 %v8640, %v8028
        %v8705 = vadd.f32 %v8641, %v8029
        %v8706 = vadd.f32 %v8642, %v8030
        %v8707 = vadd.f32 %v8643, %v8031
        %v8708 = vadd.f32 %v8644, %v8032
        %v8709 = vadd.f32 %v8645, %v8033
        %v8710 = vadd.f32 %v8646, %v8034
        %v8711 = vadd.f32 %v8647, %v8035
        %v8712 = vadd.f32 %v8648, %v8036
        %v8713 = vadd.f32 %v8649, %v8037
        %v8714 = vadd.f32 %v8650, %v8038
        %v8715 = vadd.f32 %v8651, %v8039
        %v8716 = vadd.f32 %v8652, %v8040
        %v8717 = vadd.f32 %v8653, %v8041
        %v8718 = vadd.f32 %v8654, %v8042
        %v8719 = vadd.f32 %v8655, %v8043
        %v8720 = vadd.f32 %v8656, %v8044
        %v8721 = vadd.f32 %v8657, %v8045
        %v8722 = vadd.f32 %v8658, %v8046
        %v8723 = vadd.f32 %v8659, %v8047
        %v8724 = vadd.f32 %v8660, %v8048
        %v8725 = vadd.f32 %v8661, %v8049
        %v8726 = vadd.f32 %v8662, %v8050
        %v8727 = vadd.f32 %v8663, %v8051
        %v8728 = vadd.f32 %v8664, %v8052
        %v8729 = vadd.f32 %v8665, %v8053
        %v8730 = vadd.f32 %v8666, %v8054
        %v8731 = vadd.f32 %v8667, %v8055
        %v8732 = vadd.f32 %v8668, %v8056
        %v8733 = vadd.f32 %v8669, %v8057
        %v8734 = vadd.f32 %v8670, %v8058
        %v8735 = vadd.f32 %v8671, %v8059
        %v8736 = vadd.f32 %v8672, %v8060
        %v8737 = vadd.f32 %v8673, %v8061
        %v8738 = vadd.f32 %v8674, %v8062
        %v8739 = vadd.f32 %v8675, %v8063
        %v8740 = vadd.f32 %v8676, %v8064
        %v8741 = vadd.f32 %v8677, %v8065
        %v8742 = vadd.f32 %v8678, %v8066
        %v8743 = vadd.f32 %v8679, %v8067
        %s8744 = scalar_lea.vmem %s10, 128
        %v8745 = vld [vmem:[%s8744] sm:$0xf]
        %v8746 = vld [vmem:[%s8744 + $0x4] sm:$0xf]
        %v8747 = vld [vmem:[%s8744 + $0x8] sm:$0xf]
        %v8748 = vld [vmem:[%s8744 + $0xc] sm:$0xf]
        %v8749 = vld [vmem:[%s8744 + $0x10] sm:$0xf]
        %v8750 = vld [vmem:[%s8744 + $0x14] sm:$0xf]
        %v8751 = vld [vmem:[%s8744 + $0x18] sm:$0xf]
        %v8752 = vld [vmem:[%s8744 + $0x1c] sm:$0xf]
        %v8753 = vld [vmem:[%s8744 + $0x20] sm:$0xf]
        %v8754 = vld [vmem:[%s8744 + $0x24] sm:$0xf]
        %v8755 = vld [vmem:[%s8744 + $0x28] sm:$0xf]
        %v8756 = vld [vmem:[%s8744 + $0x2c] sm:$0xf]
        %v8757 = vld [vmem:[%s8744 + $0x30] sm:$0xf]
        %v8758 = vld [vmem:[%s8744 + $0x34] sm:$0xf]
        %v8759 = vld [vmem:[%s8744 + $0x38] sm:$0xf]
        %v8760 = vld [vmem:[%s8744 + $0x3c] sm:$0xf]
        %v8761 = vpack.c.bf16 %v8684, %v8680
        %v8762 = vpack.c.bf16 %v8685, %v8681
        %v8763 = vpack.c.bf16 %v8686, %v8682
        %v8764 = vpack.c.bf16 %v8687, %v8683
        %v8765 = vpack.c.bf16 %v8692, %v8688
        %v8766 = vpack.c.bf16 %v8693, %v8689
        %v8767 = vpack.c.bf16 %v8694, %v8690
        %v8768 = vpack.c.bf16 %v8695, %v8691
        %v8769 = vpack.c.bf16 %v8700, %v8696
        %v8770 = vpack.c.bf16 %v8701, %v8697
        %v8771 = vpack.c.bf16 %v8702, %v8698
        %v8772 = vpack.c.bf16 %v8703, %v8699
        %v8773 = vpack.c.bf16 %v8708, %v8704
        %v8774 = vpack.c.bf16 %v8709, %v8705
        %v8775 = vpack.c.bf16 %v8710, %v8706
        %v8776 = vpack.c.bf16 %v8711, %v8707
        %v8777 = vpack.c.bf16 %v8716, %v8712
        %v8778 = vpack.c.bf16 %v8717, %v8713
        %v8779 = vpack.c.bf16 %v8718, %v8714
        %v8780 = vpack.c.bf16 %v8719, %v8715
        %v8781 = vpack.c.bf16 %v8724, %v8720
        %v8782 = vpack.c.bf16 %v8725, %v8721
        %v8783 = vpack.c.bf16 %v8726, %v8722
        %v8784 = vpack.c.bf16 %v8727, %v8723
        %v8785 = vpack.c.bf16 %v8732, %v8728
        %v8786 = vpack.c.bf16 %v8733, %v8729
        %v8787 = vpack.c.bf16 %v8734, %v8730
        %v8788 = vpack.c.bf16 %v8735, %v8731
        %v8789 = vpack.c.bf16 %v8740, %v8736
        %v8790 = vpack.c.bf16 %v8741, %v8737
        %v8791 = vpack.c.bf16 %v8742, %v8738
        %v8792 = vpack.c.bf16 %v8743, %v8739
        %s8793 = scalar_lea.vmem %s11, 256
        %v8794 = vld [vmem:[%s8793] sm:$0xff]
        %v8795 = vld [vmem:[%s8793 + $0x8] sm:$0xff]
        %v8796 = vld [vmem:[%s8793 + $0x10] sm:$0xff]
        %v8797 = vld [vmem:[%s8793 + $0x18] sm:$0xff]
        %v8798 = vld [vmem:[%s8793 + $0x20] sm:$0xff]
        %v8799 = vld [vmem:[%s8793 + $0x28] sm:$0xff]
        %v8800 = vld [vmem:[%s8793 + $0x30] sm:$0xff]
        %v8801 = vld [vmem:[%s8793 + $0x38] sm:$0xff]
        %v8802 = vld [vmem:[%s8793 + $0x40] sm:$0xff]
        %v8803 = vld [vmem:[%s8793 + $0x48] sm:$0xff]
        %v8804 = vld [vmem:[%s8793 + $0x50] sm:$0xff]
        %v8805 = vld [vmem:[%s8793 + $0x58] sm:$0xff]
        %v8806 = vld [vmem:[%s8793 + $0x60] sm:$0xff]
        %v8807 = vld [vmem:[%s8793 + $0x68] sm:$0xff]
        %v8808 = vld [vmem:[%s8793 + $0x70] sm:$0xff]
        %v8809 = vld [vmem:[%s8793 + $0x78] sm:$0xff]
        %8811 = vset.pattern.permute.xlu0 0
        %8812 = vperm.xlu0 %8811, %v8794
        %v8813 = vpop.permute.xlu0 %8812
        %8816 = vset.pattern.permute.xlu0 0
        %8817 = vperm.xlu0 %8816, %v8795
        %v8818 = vpop.permute.xlu0 %8817
        %8821 = vset.pattern.permute.xlu0 0
        %8822 = vperm.xlu0 %8821, %v8796
        %v8823 = vpop.permute.xlu0 %8822
        %8826 = vset.pattern.permute.xlu0 0
        %8827 = vperm.xlu0 %8826, %v8797
        %v8828 = vpop.permute.xlu0 %8827
        %8831 = vset.pattern.permute.xlu0 0
        %8832 = vperm.xlu0 %8831, %v8798
        %v8833 = vpop.permute.xlu0 %8832
        %8836 = vset.pattern.permute.xlu0 0
        %8837 = vperm.xlu0 %8836, %v8799
        %v8838 = vpop.permute.xlu0 %8837
        %8841 = vset.pattern.permute.xlu0 0
        %8842 = vperm.xlu0 %8841, %v8800
        %v8843 = vpop.permute.xlu0 %8842
        %8846 = vset.pattern.permute.xlu0 0
        %8847 = vperm.xlu0 %8846, %v8801
        %v8848 = vpop.permute.xlu0 %8847
        %8851 = vset.pattern.permute.xlu0 0
        %8852 = vperm.xlu0 %8851, %v8802
        %v8853 = vpop.permute.xlu0 %8852
        %8856 = vset.pattern.permute.xlu0 0
        %8857 = vperm.xlu0 %8856, %v8803
        %v8858 = vpop.permute.xlu0 %8857
        %8861 = vset.pattern.permute.xlu0 0
        %8862 = vperm.xlu0 %8861, %v8804
        %v8863 = vpop.permute.xlu0 %8862
        %8866 = vset.pattern.permute.xlu0 0
        %8867 = vperm.xlu0 %8866, %v8805
        %v8868 = vpop.permute.xlu0 %8867
        %8871 = vset.pattern.permute.xlu0 0
        %8872 = vperm.xlu0 %8871, %v8806
        %v8873 = vpop.permute.xlu0 %8872
        %8876 = vset.pattern.permute.xlu0 0
        %8877 = vperm.xlu0 %8876, %v8807
        %v8878 = vpop.permute.xlu0 %8877
        %8881 = vset.pattern.permute.xlu0 0
        %8882 = vperm.xlu0 %8881, %v8808
        %v8883 = vpop.permute.xlu0 %8882
        %8886 = vset.pattern.permute.xlu0 0
        %8887 = vperm.xlu0 %8886, %v8809
        %v8888 = vpop.permute.xlu0 %8887
        %v8906 = vunpack.c.l.b16 %v8745
        %v8907 = vunpack.c.l.b16 %v8746
        %v8908 = vunpack.c.l.b16 %v8747
        %v8909 = vunpack.c.l.b16 %v8748
        %v8910 = vunpack.c.l.b16 %v8749
        %v8911 = vunpack.c.l.b16 %v8750
        %v8912 = vunpack.c.l.b16 %v8751
        %v8913 = vunpack.c.l.b16 %v8752
        %v8914 = vunpack.c.l.b16 %v8753
        %v8915 = vunpack.c.l.b16 %v8754
        %v8916 = vunpack.c.l.b16 %v8755
        %v8917 = vunpack.c.l.b16 %v8756
        %v8918 = vunpack.c.l.b16 %v8757
        %v8919 = vunpack.c.l.b16 %v8758
        %v8920 = vunpack.c.l.b16 %v8759
        %v8921 = vunpack.c.l.b16 %v8760
        %v8922 = vpack.c.b16 %v8907, %v8906
        %v8923 = vpack.c.b16 %v8909, %v8908
        %v8924 = vpack.c.b16 %v8911, %v8910
        %v8925 = vpack.c.b16 %v8913, %v8912
        %v8926 = vpack.c.b16 %v8915, %v8914
        %v8927 = vpack.c.b16 %v8917, %v8916
        %v8928 = vpack.c.b16 %v8919, %v8918
        %v8929 = vpack.c.b16 %v8921, %v8920
        %8938 = vmatprep.subr.bf16.mxu0 %v8762
        %8939 = vmatpush1.bf16.msra.mxu0 %v8761
        %8940 = vmatprep.subr.bf16.mxu0 %v8766
        %8941 = vmatpush1.bf16.msra.mxu0 %v8765
        %8942 = vmatprep.subr.bf16.mxu0 %v8770
        %8943 = vmatpush1.bf16.msra.mxu0 %v8769
        %8944 = vmatprep.subr.bf16.mxu0 %v8774
        %8945 = vmatpush1.bf16.msra.mxu0 %v8773
        %8946 = vmatprep.subr.bf16.mxu0 %v8778
        %8947 = vmatpush1.bf16.msra.mxu0 %v8777
        %8948 = vmatprep.subr.bf16.mxu0 %v8782
        %8949 = vmatpush1.bf16.msra.mxu0 %v8781
        %8950 = vmatprep.subr.bf16.mxu0 %v8786
        %8951 = vmatpush1.bf16.msra.mxu0 %v8785
        %8952 = vmatprep.subr.bf16.mxu0 %v8790
        %8953 = vmatpush1.bf16.msra.mxu0 %v8789
        %8954 = vmatprep.subr.bf16.mxu0 0
        %8955 = vmatpush1.bf16.msra.mxu0 0
        %8956 = vmatprep.subr.bf16.mxu0 0
        %8957 = vmatpush1.bf16.msra.mxu0 0
        %8958 = vmatprep.subr.bf16.mxu0 0
        %8959 = vmatpush1.bf16.msra.mxu0 0
        %8960 = vmatprep.subr.bf16.mxu0 0
        %8961 = vmatpush1.bf16.msra.mxu0 0
        %8962 = vmatprep.subr.bf16.mxu0 0
        %8963 = vmatpush1.bf16.msra.mxu0 0
        %8964 = vmatprep.subr.bf16.mxu0 0
        %8965 = vmatpush1.bf16.msra.mxu0 0
        %8966 = vmatprep.subr.bf16.mxu0 0
        %8967 = vmatpush1.bf16.msra.mxu0 0
        %8968 = vmatprep.subr.bf16.mxu0 0
        %8969 = vmatpush1.bf16.msra.mxu0 0
        %8970 = vmatprep.mubr.bf16.mxu0 0
        %8971 = vmatmul.mubr.bf16.gmra.mrb[0].mxu0 %v8922
        %v8972 = vpop.f32.mrb[0].mxu0
        %v8973 = vadd.f32 %v8813, %v8972
        %v8974 = vpop.f32.mrb[0].mxu0
        %v8975 = vadd.f32 %v8813, %v8974
        %v8976 = vpop.f32.mrb[0].mxu0
        %v8977 = vadd.f32 %v8818, %v8976
        %v8978 = vpop.f32.mrb[0].mxu0
        %v8979 = vadd.f32 %v8818, %v8978
        %8980 = vmatprep.mubr.bf16.mxu0 0
        %8981 = vmatmul.mubr.bf16.gmra.mrb[0].mxu0 %v8923
        %v8982 = vpop.f32.mrb[0].mxu0
        %v8983 = vadd.f32 %v8823, %v8982
        %v8984 = vpop.f32.mrb[0].mxu0
        %v8985 = vadd.f32 %v8823, %v8984
        %v8986 = vpop.f32.mrb[0].mxu0
        %v8987 = vadd.f32 %v8828, %v8986
        %v8988 = vpop.f32.mrb[0].mxu0
        %v8989 = vadd.f32 %v8828, %v8988
        %8990 = vmatprep.mubr.bf16.mxu0 0
        %8991 = vmatmul.mubr.bf16.gmra.mrb[0].mxu0 %v8924
        %v8992 = vpop.f32.mrb[0].mxu0
        %v8993 = vadd.f32 %v8833, %v8992
        %v8994 = vpop.f32.mrb[0].mxu0
        %v8995 = vadd.f32 %v8833, %v8994
        %v8996 = vpop.f32.mrb[0].mxu0
        %v8997 = vadd.f32 %v8838, %v8996
        %v8998 = vpop.f32.mrb[0].mxu0
        %v8999 = vadd.f32 %v8838, %v8998
        %9000 = vmatprep.mubr.bf16.mxu0 0
        %9001 = vmatmul.mubr.bf16.gmra.mrb[0].mxu0 %v8925
        %v9002 = vpop.f32.mrb[0].mxu0
        %v9003 = vadd.f32 %v8843, %v9002
        %v9004 = vpop.f32.mrb[0].mxu0
        %v9005 = vadd.f32 %v8843, %v9004
        %v9006 = vpop.f32.mrb[0].mxu0
        %v9007 = vadd.f32 %v8848, %v9006
        %v9008 = vpop.f32.mrb[0].mxu0
        %v9009 = vadd.f32 %v8848, %v9008
        %9010 = vmatprep.mubr.bf16.mxu0 0
        %9011 = vmatmul.mubr.bf16.gmra.mrb[0].mxu0 %v8926
        %v9012 = vpop.f32.mrb[0].mxu0
        %v9013 = vadd.f32 %v8853, %v9012
        %v9014 = vpop.f32.mrb[0].mxu0
        %v9015 = vadd.f32 %v8853, %v9014
        %v9016 = vpop.f32.mrb[0].mxu0
        %v9017 = vadd.f32 %v8858, %v9016
        %v9018 = vpop.f32.mrb[0].mxu0
        %v9019 = vadd.f32 %v8858, %v9018
        %9020 = vmatprep.mubr.bf16.mxu0 0
        %9021 = vmatmul.mubr.bf16.gmra.mrb[0].mxu0 %v8927
        %v9022 = vpop.f32.mrb[0].mxu0
        %v9023 = vadd.f32 %v8863, %v9022
        %v9024 = vpop.f32.mrb[0].mxu0
        %v9025 = vadd.f32 %v8863, %v9024
        %v9026 = vpop.f32.mrb[0].mxu0
        %v9027 = vadd.f32 %v8868, %v9026
        %v9028 = vpop.f32.mrb[0].mxu0
        %v9029 = vadd.f32 %v8868, %v9028
        %9030 = vmatprep.mubr.bf16.mxu0 0
        %9031 = vmatmul.mubr.bf16.gmra.mrb[0].mxu0 %v8928
        %v9032 = vpop.f32.mrb[0].mxu0
        %v9033 = vadd.f32 %v8873, %v9032
        %v9034 = vpop.f32.mrb[0].mxu0
        %v9035 = vadd.f32 %v8873, %v9034
        %v9036 = vpop.f32.mrb[0].mxu0
        %v9037 = vadd.f32 %v8878, %v9036
        %v9038 = vpop.f32.mrb[0].mxu0
        %v9039 = vadd.f32 %v8878, %v9038
        %9040 = vmatprep.mubr.bf16.mxu0 0
        %9041 = vmatmul.mubr.bf16.gmra.mrb[0].mxu0 %v8929
        %v9042 = vpop.f32.mrb[0].mxu0
        %v9043 = vadd.f32 %v8883, %v9042
        %v9044 = vpop.f32.mrb[0].mxu0
        %v9045 = vadd.f32 %v8883, %v9044
        %v9046 = vpop.f32.mrb[0].mxu0
        %v9047 = vadd.f32 %v8888, %v9046
        %v9048 = vpop.f32.mrb[0].mxu0
        %v9049 = vadd.f32 %v8888, %v9048
        %9050 = vdwg.mxu0
        %9051 = vmatprep.subr.bf16.mxu0 %v8764
        %9052 = vmatpush1.bf16.msra.mxu0 %v8763
        %9053 = vmatprep.subr.bf16.mxu0 %v8768
        %9054 = vmatpush1.bf16.msra.mxu0 %v8767
        %9055 = vmatprep.subr.bf16.mxu0 %v8772
        %9056 = vmatpush1.bf16.msra.mxu0 %v8771
        %9057 = vmatprep.subr.bf16.mxu0 %v8776
        %9058 = vmatpush1.bf16.msra.mxu0 %v8775
        %9059 = vmatprep.subr.bf16.mxu0 %v8780
        %9060 = vmatpush1.bf16.msra.mxu0 %v8779
        %9061 = vmatprep.subr.bf16.mxu0 %v8784
        %9062 = vmatpush1.bf16.msra.mxu0 %v8783
        %9063 = vmatprep.subr.bf16.mxu0 %v8788
        %9064 = vmatpush1.bf16.msra.mxu0 %v8787
        %9065 = vmatprep.subr.bf16.mxu0 %v8792
        %9066 = vmatpush1.bf16.msra.mxu0 %v8791
        %9067 = vmatprep.subr.bf16.mxu0 0
        %9068 = vmatpush1.bf16.msra.mxu0 0
        %9069 = vmatprep.subr.bf16.mxu0 0
        %9070 = vmatpush1.bf16.msra.mxu0 0
        %9071 = vmatprep.subr.bf16.mxu0 0
        %9072 = vmatpush1.bf16.msra.mxu0 0
        %9073 = vmatprep.subr.bf16.mxu0 0
        %9074 = vmatpush1.bf16.msra.mxu0 0
        %9075 = vmatprep.subr.bf16.mxu0 0
        %9076 = vmatpush1.bf16.msra.mxu0 0
        %9077 = vmatprep.subr.bf16.mxu0 0
        %9078 = vmatpush1.bf16.msra.mxu0 0
        %9079 = vmatprep.subr.bf16.mxu0 0
        %9080 = vmatpush1.bf16.msra.mxu0 0
        %9081 = vmatprep.subr.bf16.mxu0 0
        %9082 = vmatpush1.bf16.msra.mxu0 0
        %9083 = vmatprep.mubr.bf16.mxu0 0
        %9084 = vmatmul.mubr.bf16.gmra.mrb[0].mxu0 %v8922
        %v9085 = vpop.f32.mrb[0].mxu0
        %v9086 = vadd.f32 %v8813, %v9085
        %v9087 = vpop.f32.mrb[0].mxu0
        %v9088 = vadd.f32 %v8813, %v9087
        %v9089 = vpop.f32.mrb[0].mxu0
        %v9090 = vadd.f32 %v8818, %v9089
        %v9091 = vpop.f32.mrb[0].mxu0
        %v9092 = vadd.f32 %v8818, %v9091
        %9093 = vmatprep.mubr.bf16.mxu0 0
        %9094 = vmatmul.mubr.bf16.gmra.mrb[0].mxu0 %v8923
        %v9095 = vpop.f32.mrb[0].mxu0
        %v9096 = vadd.f32 %v8823, %v9095
        %v9097 = vpop.f32.mrb[0].mxu0
        %v9098 = vadd.f32 %v8823, %v9097
        %v9099 = vpop.f32.mrb[0].mxu0
        %v9100 = vadd.f32 %v8828, %v9099
        %v9101 = vpop.f32.mrb[0].mxu0
        %v9102 = vadd.f32 %v8828, %v9101
        %9103 = vmatprep.mubr.bf16.mxu0 0
        %9104 = vmatmul.mubr.bf16.gmra.mrb[0].mxu0 %v8924
        %v9105 = vpop.f32.mrb[0].mxu0
        %v9106 = vadd.f32 %v8833, %v9105
        %v9107 = vpop.f32.mrb[0].mxu0
        %v9108 = vadd.f32 %v8833, %v9107
        %v9109 = vpop.f32.mrb[0].mxu0
        %v9110 = vadd.f32 %v8838, %v9109
        %v9111 = vpop.f32.mrb[0].mxu0
        %v9112 = vadd.f32 %v8838, %v9111
        %9113 = vmatprep.mubr.bf16.mxu0 0
        %9114 = vmatmul.mubr.bf16.gmra.mrb[0].mxu0 %v8925
        %v9115 = vpop.f32.mrb[0].mxu0
        %v9116 = vadd.f32 %v8843, %v9115
        %v9117 = vpop.f32.mrb[0].mxu0
        %v9118 = vadd.f32 %v8843, %v9117
        %v9119 = vpop.f32.mrb[0].mxu0
        %v9120 = vadd.f32 %v8848, %v9119
        %v9121 = vpop.f32.mrb[0].mxu0
        %v9122 = vadd.f32 %v8848, %v9121
        %9123 = vmatprep.mubr.bf16.mxu0 0
        %9124 = vmatmul.mubr.bf16.gmra.mrb[0].mxu0 %v8926
        %v9125 = vpop.f32.mrb[0].mxu0
        %v9126 = vadd.f32 %v8853, %v9125
        %v9127 = vpop.f32.mrb[0].mxu0
        %v9128 = vadd.f32 %v8853, %v9127
        %v9129 = vpop.f32.mrb[0].mxu0
        %v9130 = vadd.f32 %v8858, %v9129
        %v9131 = vpop.f32.mrb[0].mxu0
        %v9132 = vadd.f32 %v8858, %v9131
        %9133 = vmatprep.mubr.bf16.mxu0 0
        %9134 = vmatmul.mubr.bf16.gmra.mrb[0].mxu0 %v8927
        %v9135 = vpop.f32.mrb[0].mxu0
        %v9136 = vadd.f32 %v8863, %v9135
        %v9137 = vpop.f32.mrb[0].mxu0
        %v9138 = vadd.f32 %v8863, %v9137
        %v9139 = vpop.f32.mrb[0].mxu0
        %v9140 = vadd.f32 %v8868, %v9139
        %v9141 = vpop.f32.mrb[0].mxu0
        %v9142 = vadd.f32 %v8868, %v9141
        %9143 = vmatprep.mubr.bf16.mxu0 0
        %9144 = vmatmul.mubr.bf16.gmra.mrb[0].mxu0 %v8928
        %v9145 = vpop.f32.mrb[0].mxu0
        %v9146 = vadd.f32 %v8873, %v9145
        %v9147 = vpop.f32.mrb[0].mxu0
        %v9148 = vadd.f32 %v8873, %v9147
        %v9149 = vpop.f32.mrb[0].mxu0
        %v9150 = vadd.f32 %v8878, %v9149
        %v9151 = vpop.f32.mrb[0].mxu0
        %v9152 = vadd.f32 %v8878, %v9151
        %9153 = vmatprep.mubr.bf16.mxu0 0
        %9154 = vmatmul.mubr.bf16.gmra.mrb[0].mxu0 %v8929
        %v9155 = vpop.f32.mrb[0].mxu0
        %v9156 = vadd.f32 %v8883, %v9155
        %v9157 = vpop.f32.mrb[0].mxu0
        %v9158 = vadd.f32 %v8883, %v9157
        %v9159 = vpop.f32.mrb[0].mxu0
        %v9160 = vadd.f32 %v8888, %v9159
        %v9161 = vpop.f32.mrb[0].mxu0
        %v9162 = vadd.f32 %v8888, %v9161
        %9163 = vdwg.mxu0
        %vm9164 = vcmp.ge.f32.partialorder %v8973, 0.0
        %vm9165 = vcmp.ge.f32.partialorder %v8975, 0.0
        %vm9166 = vcmp.ge.f32.partialorder %v9086, 0.0
        %vm9167 = vcmp.ge.f32.partialorder %v9088, 0.0
        %vm9168 = vcmp.ge.f32.partialorder %v8977, 0.0
        %vm9169 = vcmp.ge.f32.partialorder %v8979, 0.0
        %vm9170 = vcmp.ge.f32.partialorder %v9090, 0.0
        %vm9171 = vcmp.ge.f32.partialorder %v9092, 0.0
        %vm9172 = vcmp.ge.f32.partialorder %v8983, 0.0
        %vm9173 = vcmp.ge.f32.partialorder %v8985, 0.0
        %vm9174 = vcmp.ge.f32.partialorder %v9096, 0.0
        %vm9175 = vcmp.ge.f32.partialorder %v9098, 0.0
        %vm9176 = vcmp.ge.f32.partialorder %v8987, 0.0
        %vm9177 = vcmp.ge.f32.partialorder %v8989, 0.0
        %vm9178 = vcmp.ge.f32.partialorder %v9100, 0.0
        %vm9179 = vcmp.ge.f32.partialorder %v9102, 0.0
        %vm9180 = vcmp.ge.f32.partialorder %v8993, 0.0
        %vm9181 = vcmp.ge.f32.partialorder %v8995, 0.0
        %vm9182 = vcmp.ge.f32.partialorder %v9106, 0.0
        %vm9183 = vcmp.ge.f32.partialorder %v9108, 0.0
        %vm9184 = vcmp.ge.f32.partialorder %v8997, 0.0
        %vm9185 = vcmp.ge.f32.partialorder %v8999, 0.0
        %vm9186 = vcmp.ge.f32.partialorder %v9110, 0.0
        %vm9187 = vcmp.ge.f32.partialorder %v9112, 0.0
        %vm9188 = vcmp.ge.f32.partialorder %v9003, 0.0
        %vm9189 = vcmp.ge.f32.partialorder %v9005, 0.0
        %vm9190 = vcmp.ge.f32.partialorder %v9116, 0.0
        %vm9191 = vcmp.ge.f32.partialorder %v9118, 0.0
        %vm9192 = vcmp.ge.f32.partialorder %v9007, 0.0
        %vm9193 = vcmp.ge.f32.partialorder %v9009, 0.0
        %vm9194 = vcmp.ge.f32.partialorder %v9120, 0.0
        %vm9195 = vcmp.ge.f32.partialorder %v9122, 0.0
        %vm9196 = vcmp.ge.f32.partialorder %v9013, 0.0
        %vm9197 = vcmp.ge.f32.partialorder %v9015, 0.0
        %vm9198 = vcmp.ge.f32.partialorder %v9126, 0.0
        %vm9199 = vcmp.ge.f32.partialorder %v9128, 0.0
        %vm9200 = vcmp.ge.f32.partialorder %v9017, 0.0
        %vm9201 = vcmp.ge.f32.partialorder %v9019, 0.0
        %vm9202 = vcmp.ge.f32.partialorder %v9130, 0.0
        %vm9203 = vcmp.ge.f32.partialorder %v9132, 0.0
        %vm9204 = vcmp.ge.f32.partialorder %v9023, 0.0
        %vm9205 = vcmp.ge.f32.partialorder %v9025, 0.0
        %vm9206 = vcmp.ge.f32.partialorder %v9136, 0.0
        %vm9207 = vcmp.ge.f32.partialorder %v9138, 0.0
        %vm9208 = vcmp.ge.f32.partialorder %v9027, 0.0
        %vm9209 = vcmp.ge.f32.partialorder %v9029, 0.0
        %vm9210 = vcmp.ge.f32.partialorder %v9140, 0.0
        %vm9211 = vcmp.ge.f32.partialorder %v9142, 0.0
        %vm9212 = vcmp.ge.f32.partialorder %v9033, 0.0
        %vm9213 = vcmp.ge.f32.partialorder %v9035, 0.0
        %vm9214 = vcmp.ge.f32.partialorder %v9146, 0.0
        %vm9215 = vcmp.ge.f32.partialorder %v9148, 0.0
        %vm9216 = vcmp.ge.f32.partialorder %v9037, 0.0
        %vm9217 = vcmp.ge.f32.partialorder %v9039, 0.0
        %vm9218 = vcmp.ge.f32.partialorder %v9150, 0.0
        %vm9219 = vcmp.ge.f32.partialorder %v9152, 0.0
        %vm9220 = vcmp.ge.f32.partialorder %v9043, 0.0
        %vm9221 = vcmp.ge.f32.partialorder %v9045, 0.0
        %vm9222 = vcmp.ge.f32.partialorder %v9156, 0.0
        %vm9223 = vcmp.ge.f32.partialorder %v9158, 0.0
        %vm9224 = vcmp.ge.f32.partialorder %v9047, 0.0
        %vm9225 = vcmp.ge.f32.partialorder %v9049, 0.0
        %vm9226 = vcmp.ge.f32.partialorder %v9160, 0.0
        %vm9227 = vcmp.ge.f32.partialorder %v9162, 0.0
        %v9228 = vmul.f32 %v8973, 0.01
        %v9229 = vmul.f32 %v8975, 0.01
        %v9230 = vmul.f32 %v9086, 0.01
        %v9231 = vmul.f32 %v9088, 0.01
        %v9232 = vmul.f32 %v8977, 0.01
        %v9233 = vmul.f32 %v8979, 0.01
        %v9234 = vmul.f32 %v9090, 0.01
        %v9235 = vmul.f32 %v9092, 0.01
        %v9236 = vmul.f32 %v8983, 0.01
        %v9237 = vmul.f32 %v8985, 0.01
        %v9238 = vmul.f32 %v9096, 0.01
        %v9239 = vmul.f32 %v9098, 0.01
        %v9240 = vmul.f32 %v8987, 0.01
        %v9241 = vmul.f32 %v8989, 0.01
        %v9242 = vmul.f32 %v9100, 0.01
        %v9243 = vmul.f32 %v9102, 0.01
        %v9244 = vmul.f32 %v8993, 0.01
        %v9245 = vmul.f32 %v8995, 0.01
        %v9246 = vmul.f32 %v9106, 0.01
        %v9247 = vmul.f32 %v9108, 0.01
        %v9248 = vmul.f32 %v8997, 0.01
        %v9249 = vmul.f32 %v8999, 0.01
        %v9250 = vmul.f32 %v9110, 0.01
        %v9251 = vmul.f32 %v9112, 0.01
        %v9252 = vmul.f32 %v9003, 0.01
        %v9253 = vmul.f32 %v9005, 0.01
        %v9254 = vmul.f32 %v9116, 0.01
        %v9255 = vmul.f32 %v9118, 0.01
        %v9256 = vmul.f32 %v9007, 0.01
        %v9257 = vmul.f32 %v9009, 0.01
        %v9258 = vmul.f32 %v9120, 0.01
        %v9259 = vmul.f32 %v9122, 0.01
        %v9260 = vmul.f32 %v9013, 0.01
        %v9261 = vmul.f32 %v9015, 0.01
        %v9262 = vmul.f32 %v9126, 0.01
        %v9263 = vmul.f32 %v9128, 0.01
        %v9264 = vmul.f32 %v9017, 0.01
        %v9265 = vmul.f32 %v9019, 0.01
        %v9266 = vmul.f32 %v9130, 0.01
        %v9267 = vmul.f32 %v9132, 0.01
        %v9268 = vmul.f32 %v9023, 0.01
        %v9269 = vmul.f32 %v9025, 0.01
        %v9270 = vmul.f32 %v9136, 0.01
        %v9271 = vmul.f32 %v9138, 0.01
        %v9272 = vmul.f32 %v9027, 0.01
        %v9273 = vmul.f32 %v9029, 0.01
        %v9274 = vmul.f32 %v9140, 0.01
        %v9275 = vmul.f32 %v9142, 0.01
        %v9276 = vmul.f32 %v9033, 0.01
        %v9277 = vmul.f32 %v9035, 0.01
        %v9278 = vmul.f32 %v9146, 0.01
        %v9279 = vmul.f32 %v9148, 0.01
        %v9280 = vmul.f32 %v9037, 0.01
        %v9281 = vmul.f32 %v9039, 0.01
        %v9282 = vmul.f32 %v9150, 0.01
        %v9283 = vmul.f32 %v9152, 0.01
        %v9284 = vmul.f32 %v9043, 0.01
        %v9285 = vmul.f32 %v9045, 0.01
        %v9286 = vmul.f32 %v9156, 0.01
        %v9287 = vmul.f32 %v9158, 0.01
        %v9288 = vmul.f32 %v9047, 0.01
        %v9289 = vmul.f32 %v9049, 0.01
        %v9290 = vmul.f32 %v9160, 0.01
        %v9291 = vmul.f32 %v9162, 0.01
        %v9292 = vsel %vm9164, %v8973, %v9228
        %v9293 = vsel %vm9165, %v8975, %v9229
        %v9294 = vsel %vm9166, %v9086, %v9230
        %v9295 = vsel %vm9167, %v9088, %v9231
        %v9296 = vsel %vm9168, %v8977, %v9232
        %v9297 = vsel %vm9169, %v8979, %v9233
        %v9298 = vsel %vm9170, %v9090, %v9234
        %v9299 = vsel %vm9171, %v9092, %v9235
        %v9300 = vsel %vm9172, %v8983, %v9236
        %v9301 = vsel %vm9173, %v8985, %v9237
        %v9302 = vsel %vm9174, %v9096, %v9238
        %v9303 = vsel %vm9175, %v9098, %v9239
        %v9304 = vsel %vm9176, %v8987, %v9240
        %v9305 = vsel %vm9177, %v8989, %v9241
        %v9306 = vsel %vm9178, %v9100, %v9242
        %v9307 = vsel %vm9179, %v9102, %v9243
        %v9308 = vsel %vm9180, %v8993, %v9244
        %v9309 = vsel %vm9181, %v8995, %v9245
        %v9310 = vsel %vm9182, %v9106, %v9246
        %v9311 = vsel %vm9183, %v9108, %v9247
        %v9312 = vsel %vm9184, %v8997, %v9248
        %v9313 = vsel %vm9185, %v8999, %v9249
        %v9314 = vsel %vm9186, %v9110, %v9250
        %v9315 = vsel %vm9187, %v9112, %v9251
        %v9316 = vsel %vm9188, %v9003, %v9252
        %v9317 = vsel %vm9189, %v9005, %v9253
        %v9318 = vsel %vm9190, %v9116, %v9254
        %v9319 = vsel %vm9191, %v9118, %v9255
        %v9320 = vsel %vm9192, %v9007, %v9256
        %v9321 = vsel %vm9193, %v9009, %v9257
        %v9322 = vsel %vm9194, %v9120, %v9258
        %v9323 = vsel %vm9195, %v9122, %v9259
        %v9324 = vsel %vm9196, %v9013, %v9260
        %v9325 = vsel %vm9197, %v9015, %v9261
        %v9326 = vsel %vm9198, %v9126, %v9262
        %v9327 = vsel %vm9199, %v9128, %v9263
        %v9328 = vsel %vm9200, %v9017, %v9264
        %v9329 = vsel %vm9201, %v9019, %v9265
        %v9330 = vsel %vm9202, %v9130, %v9266
        %v9331 = vsel %vm9203, %v9132, %v9267
        %v9332 = vsel %vm9204, %v9023, %v9268
        %v9333 = vsel %vm9205, %v9025, %v9269
        %v9334 = vsel %vm9206, %v9136, %v9270
        %v9335 = vsel %vm9207, %v9138, %v9271
        %v9336 = vsel %vm9208, %v9027, %v9272
        %v9337 = vsel %vm9209, %v9029, %v9273
        %v9338 = vsel %vm9210, %v9140, %v9274
        %v9339 = vsel %vm9211, %v9142, %v9275
        %v9340 = vsel %vm9212, %v9033, %v9276
        %v9341 = vsel %vm9213, %v9035, %v9277
        %v9342 = vsel %vm9214, %v9146, %v9278
        %v9343 = vsel %vm9215, %v9148, %v9279
        %v9344 = vsel %vm9216, %v9037, %v9280
        %v9345 = vsel %vm9217, %v9039, %v9281
        %v9346 = vsel %vm9218, %v9150, %v9282
        %v9347 = vsel %vm9219, %v9152, %v9283
        %v9348 = vsel %vm9220, %v9043, %v9284
        %v9349 = vsel %vm9221, %v9045, %v9285
        %v9350 = vsel %vm9222, %v9156, %v9286
        %v9351 = vsel %vm9223, %v9158, %v9287
        %v9352 = vsel %vm9224, %v9047, %v9288
        %v9353 = vsel %vm9225, %v9049, %v9289
        %v9354 = vsel %vm9226, %v9160, %v9290
        %v9355 = vsel %vm9227, %v9162, %v9291
        %v9356 = vadd.f32 %v9292, %v8680
        %v9357 = vadd.f32 %v9293, %v8681
        %v9358 = vadd.f32 %v9294, %v8682
        %v9359 = vadd.f32 %v9295, %v8683
        %v9360 = vadd.f32 %v9296, %v8684
        %v9361 = vadd.f32 %v9297, %v8685
        %v9362 = vadd.f32 %v9298, %v8686
        %v9363 = vadd.f32 %v9299, %v8687
        %v9364 = vadd.f32 %v9300, %v8688
        %v9365 = vadd.f32 %v9301, %v8689
        %v9366 = vadd.f32 %v9302, %v8690
        %v9367 = vadd.f32 %v9303, %v8691
        %v9368 = vadd.f32 %v9304, %v8692
        %v9369 = vadd.f32 %v9305, %v8693
        %v9370 = vadd.f32 %v9306, %v8694
        %v9371 = vadd.f32 %v9307, %v8695
        %v9372 = vadd.f32 %v9308, %v8696
        %v9373 = vadd.f32 %v9309, %v8697
        %v9374 = vadd.f32 %v9310, %v8698
        %v9375 = vadd.f32 %v9311, %v8699
        %v9376 = vadd.f32 %v9312, %v8700
        %v9377 = vadd.f32 %v9313, %v8701
        %v9378 = vadd.f32 %v9314, %v8702
        %v9379 = vadd.f32 %v9315, %v8703
        %v9380 = vadd.f32 %v9316, %v8704
        %v9381 = vadd.f32 %v9317, %v8705
        %v9382 = vadd.f32 %v9318, %v8706
        %v9383 = vadd.f32 %v9319, %v8707
        %v9384 = vadd.f32 %v9320, %v8708
        %v9385 = vadd.f32 %v9321, %v8709
        %v9386 = vadd.f32 %v9322, %v8710
        %v9387 = vadd.f32 %v9323, %v8711
        %v9388 = vadd.f32 %v9324, %v8712
        %v9389 = vadd.f32 %v9325, %v8713
        %v9390 = vadd.f32 %v9326, %v8714
        %v9391 = vadd.f32 %v9327, %v8715
        %v9392 = vadd.f32 %v9328, %v8716
        %v9393 = vadd.f32 %v9329, %v8717
        %v9394 = vadd.f32 %v9330, %v8718
        %v9395 = vadd.f32 %v9331, %v8719
        %v9396 = vadd.f32 %v9332, %v8720
        %v9397 = vadd.f32 %v9333, %v8721
        %v9398 = vadd.f32 %v9334, %v8722
        %v9399 = vadd.f32 %v9335, %v8723
        %v9400 = vadd.f32 %v9336, %v8724
        %v9401 = vadd.f32 %v9337, %v8725
        %v9402 = vadd.f32 %v9338, %v8726
        %v9403 = vadd.f32 %v9339, %v8727
        %v9404 = vadd.f32 %v9340, %v8728
        %v9405 = vadd.f32 %v9341, %v8729
        %v9406 = vadd.f32 %v9342, %v8730
        %v9407 = vadd.f32 %v9343, %v8731
        %v9408 = vadd.f32 %v9344, %v8732
        %v9409 = vadd.f32 %v9345, %v8733
        %v9410 = vadd.f32 %v9346, %v8734
        %v9411 = vadd.f32 %v9347, %v8735
        %v9412 = vadd.f32 %v9348, %v8736
        %v9413 = vadd.f32 %v9349, %v8737
        %v9414 = vadd.f32 %v9350, %v8738
        %v9415 = vadd.f32 %v9351, %v8739
        %v9416 = vadd.f32 %v9352, %v8740
        %v9417 = vadd.f32 %v9353, %v8741
        %v9418 = vadd.f32 %v9354, %v8742
        %v9419 = vadd.f32 %v9355, %v8743
        %s9420 = scalar_lea.vmem %s10, 192
        %v9421 = vld [vmem:[%s9420] sm:$0xf]
        %v9422 = vld [vmem:[%s9420 + $0x4] sm:$0xf]
        %v9423 = vld [vmem:[%s9420 + $0x8] sm:$0xf]
        %v9424 = vld [vmem:[%s9420 + $0xc] sm:$0xf]
        %v9425 = vld [vmem:[%s9420 + $0x10] sm:$0xf]
        %v9426 = vld [vmem:[%s9420 + $0x14] sm:$0xf]
        %v9427 = vld [vmem:[%s9420 + $0x18] sm:$0xf]
        %v9428 = vld [vmem:[%s9420 + $0x1c] sm:$0xf]
        %v9429 = vld [vmem:[%s9420 + $0x20] sm:$0xf]
        %v9430 = vld [vmem:[%s9420 + $0x24] sm:$0xf]
        %v9431 = vld [vmem:[%s9420 + $0x28] sm:$0xf]
        %v9432 = vld [vmem:[%s9420 + $0x2c] sm:$0xf]
        %v9433 = vld [vmem:[%s9420 + $0x30] sm:$0xf]
        %v9434 = vld [vmem:[%s9420 + $0x34] sm:$0xf]
        %v9435 = vld [vmem:[%s9420 + $0x38] sm:$0xf]
        %v9436 = vld [vmem:[%s9420 + $0x3c] sm:$0xf]
        %v9437 = vpack.c.bf16 %v9360, %v9356
        %v9438 = vpack.c.bf16 %v9361, %v9357
        %v9439 = vpack.c.bf16 %v9362, %v9358
        %v9440 = vpack.c.bf16 %v9363, %v9359
        %v9441 = vpack.c.bf16 %v9368, %v9364
        %v9442 = vpack.c.bf16 %v9369, %v9365
        %v9443 = vpack.c.bf16 %v9370, %v9366
        %v9444 = vpack.c.bf16 %v9371, %v9367
        %v9445 = vpack.c.bf16 %v9376, %v9372
        %v9446 = vpack.c.bf16 %v9377, %v9373
        %v9447 = vpack.c.bf16 %v9378, %v9374
        %v9448 = vpack.c.bf16 %v9379, %v9375
        %v9449 = vpack.c.bf16 %v9384, %v9380
        %v9450 = vpack.c.bf16 %v9385, %v9381
        %v9451 = vpack.c.bf16 %v9386, %v9382
        %v9452 = vpack.c.bf16 %v9387, %v9383
        %v9453 = vpack.c.bf16 %v9392, %v9388
        %v9454 = vpack.c.bf16 %v9393, %v9389
        %v9455 = vpack.c.bf16 %v9394, %v9390
        %v9456 = vpack.c.bf16 %v9395, %v9391
        %v9457 = vpack.c.bf16 %v9400, %v9396
        %v9458 = vpack.c.bf16 %v9401, %v9397
        %v9459 = vpack.c.bf16 %v9402, %v9398
        %v9460 = vpack.c.bf16 %v9403, %v9399
        %v9461 = vpack.c.bf16 %v9408, %v9404
        %v9462 = vpack.c.bf16 %v9409, %v9405
        %v9463 = vpack.c.bf16 %v9410, %v9406
        %v9464 = vpack.c.bf16 %v9411, %v9407
        %v9465 = vpack.c.bf16 %v9416, %v9412
        %v9466 = vpack.c.bf16 %v9417, %v9413
        %v9467 = vpack.c.bf16 %v9418, %v9414
        %v9468 = vpack.c.bf16 %v9419, %v9415
        %s9469 = scalar_lea.vmem %s11, 384
        %v9470 = vld [vmem:[%s9469] sm:$0xff]
        %v9471 = vld [vmem:[%s9469 + $0x8] sm:$0xff]
        %v9472 = vld [vmem:[%s9469 + $0x10] sm:$0xff]
        %v9473 = vld [vmem:[%s9469 + $0x18] sm:$0xff]
        %v9474 = vld [vmem:[%s9469 + $0x20] sm:$0xff]
        %v9475 = vld [vmem:[%s9469 + $0x28] sm:$0xff]
        %v9476 = vld [vmem:[%s9469 + $0x30] sm:$0xff]
        %v9477 = vld [vmem:[%s9469 + $0x38] sm:$0xff]
        %v9478 = vld [vmem:[%s9469 + $0x40] sm:$0xff]
        %v9479 = vld [vmem:[%s9469 + $0x48] sm:$0xff]
        %v9480 = vld [vmem:[%s9469 + $0x50] sm:$0xff]
        %v9481 = vld [vmem:[%s9469 + $0x58] sm:$0xff]
        %v9482 = vld [vmem:[%s9469 + $0x60] sm:$0xff]
        %v9483 = vld [vmem:[%s9469 + $0x68] sm:$0xff]
        %v9484 = vld [vmem:[%s9469 + $0x70] sm:$0xff]
        %v9485 = vld [vmem:[%s9469 + $0x78] sm:$0xff]
        %9487 = vset.pattern.permute.xlu0 0
        %9488 = vperm.xlu0 %9487, %v9470
        %v9489 = vpop.permute.xlu0 %9488
        %9492 = vset.pattern.permute.xlu0 0
        %9493 = vperm.xlu0 %9492, %v9471
        %v9494 = vpop.permute.xlu0 %9493
        %9497 = vset.pattern.permute.xlu0 0
        %9498 = vperm.xlu0 %9497, %v9472
        %v9499 = vpop.permute.xlu0 %9498
        %9502 = vset.pattern.permute.xlu0 0
        %9503 = vperm.xlu0 %9502, %v9473
        %v9504 = vpop.permute.xlu0 %9503
        %9507 = vset.pattern.permute.xlu0 0
        %9508 = vperm.xlu0 %9507, %v9474
        %v9509 = vpop.permute.xlu0 %9508
        %9512 = vset.pattern.permute.xlu0 0
        %9513 = vperm.xlu0 %9512, %v9475
        %v9514 = vpop.permute.xlu0 %9513
        %9517 = vset.pattern.permute.xlu0 0
        %9518 = vperm.xlu0 %9517, %v9476
        %v9519 = vpop.permute.xlu0 %9518
        %9522 = vset.pattern.permute.xlu0 0
        %9523 = vperm.xlu0 %9522, %v9477
        %v9524 = vpop.permute.xlu0 %9523
        %9527 = vset.pattern.permute.xlu0 0
        %9528 = vperm.xlu0 %9527, %v9478
        %v9529 = vpop.permute.xlu0 %9528
        %9532 = vset.pattern.permute.xlu0 0
        %9533 = vperm.xlu0 %9532, %v9479
        %v9534 = vpop.permute.xlu0 %9533
        %9537 = vset.pattern.permute.xlu0 0
        %9538 = vperm.xlu0 %9537, %v9480
        %v9539 = vpop.permute.xlu0 %9538
        %9542 = vset.pattern.permute.xlu0 0
        %9543 = vperm.xlu0 %9542, %v9481
        %v9544 = vpop.permute.xlu0 %9543
        %9547 = vset.pattern.permute.xlu0 0
        %9548 = vperm.xlu0 %9547, %v9482
        %v9549 = vpop.permute.xlu0 %9548
        %9552 = vset.pattern.permute.xlu0 0
        %9553 = vperm.xlu0 %9552, %v9483
        %v9554 = vpop.permute.xlu0 %9553
        %9557 = vset.pattern.permute.xlu0 0
        %9558 = vperm.xlu0 %9557, %v9484
        %v9559 = vpop.permute.xlu0 %9558
        %9562 = vset.pattern.permute.xlu0 0
        %9563 = vperm.xlu0 %9562, %v9485
        %v9564 = vpop.permute.xlu0 %9563
        %v9582 = vunpack.c.l.b16 %v9421
        %v9583 = vunpack.c.l.b16 %v9422
        %v9584 = vunpack.c.l.b16 %v9423
        %v9585 = vunpack.c.l.b16 %v9424
        %v9586 = vunpack.c.l.b16 %v9425
        %v9587 = vunpack.c.l.b16 %v9426
        %v9588 = vunpack.c.l.b16 %v9427
        %v9589 = vunpack.c.l.b16 %v9428
        %v9590 = vunpack.c.l.b16 %v9429
        %v9591 = vunpack.c.l.b16 %v9430
        %v9592 = vunpack.c.l.b16 %v9431
        %v9593 = vunpack.c.l.b16 %v9432
        %v9594 = vunpack.c.l.b16 %v9433
        %v9595 = vunpack.c.l.b16 %v9434
        %v9596 = vunpack.c.l.b16 %v9435
        %v9597 = vunpack.c.l.b16 %v9436
        %v9598 = vpack.c.b16 %v9583, %v9582
        %v9599 = vpack.c.b16 %v9585, %v9584
        %v9600 = vpack.c.b16 %v9587, %v9586
        %v9601 = vpack.c.b16 %v9589, %v9588
        %v9602 = vpack.c.b16 %v9591, %v9590
        %v9603 = vpack.c.b16 %v9593, %v9592
        %v9604 = vpack.c.b16 %v9595, %v9594
        %v9605 = vpack.c.b16 %v9597, %v9596
        %9614 = vmatprep.subr.bf16.mxu0 %v9438
        %9615 = vmatpush1.bf16.msra.mxu0 %v9437
        %9616 = vmatprep.subr.bf16.mxu0 %v9442
        %9617 = vmatpush1.bf16.msra.mxu0 %v9441
        %9618 = vmatprep.subr.bf16.mxu0 %v9446
        %9619 = vmatpush1.bf16.msra.mxu0 %v9445
        %9620 = vmatprep.subr.bf16.mxu0 %v9450
        %9621 = vmatpush1.bf16.msra.mxu0 %v9449
        %9622 = vmatprep.subr.bf16.mxu0 %v9454
        %9623 = vmatpush1.bf16.msra.mxu0 %v9453
        %9624 = vmatprep.subr.bf16.mxu0 %v9458
        %9625 = vmatpush1.bf16.msra.mxu0 %v9457
        %9626 = vmatprep.subr.bf16.mxu0 %v9462
        %9627 = vmatpush1.bf16.msra.mxu0 %v9461
        %9628 = vmatprep.subr.bf16.mxu0 %v9466
        %9629 = vmatpush1.bf16.msra.mxu0 %v9465
        %9630 = vmatprep.subr.bf16.mxu0 0
        %9631 = vmatpush1.bf16.msra.mxu0 0
        %9632 = vmatprep.subr.bf16.mxu0 0
        %9633 = vmatpush1.bf16.msra.mxu0 0
        %9634 = vmatprep.subr.bf16.mxu0 0
        %9635 = vmatpush1.bf16.msra.mxu0 0
        %9636 = vmatprep.subr.bf16.mxu0 0
        %9637 = vmatpush1.bf16.msra.mxu0 0
        %9638 = vmatprep.subr.bf16.mxu0 0
        %9639 = vmatpush1.bf16.msra.mxu0 0
        %9640 = vmatprep.subr.bf16.mxu0 0
        %9641 = vmatpush1.bf16.msra.mxu0 0
        %9642 = vmatprep.subr.bf16.mxu0 0
        %9643 = vmatpush1.bf16.msra.mxu0 0
        %9644 = vmatprep.subr.bf16.mxu0 0
        %9645 = vmatpush1.bf16.msra.mxu0 0
        %9646 = vmatprep.mubr.bf16.mxu0 0
        %9647 = vmatmul.mubr.bf16.gmra.mrb[0].mxu0 %v9598
        %v9648 = vpop.f32.mrb[0].mxu0
        %v9649 = vadd.f32 %v9489, %v9648
        %v9650 = vpop.f32.mrb[0].mxu0
        %v9651 = vadd.f32 %v9489, %v9650
        %v9652 = vpop.f32.mrb[0].mxu0
        %v9653 = vadd.f32 %v9494, %v9652
        %v9654 = vpop.f32.mrb[0].mxu0
        %v9655 = vadd.f32 %v9494, %v9654
        %9656 = vmatprep.mubr.bf16.mxu0 0
        %9657 = vmatmul.mubr.bf16.gmra.mrb[0].mxu0 %v9599
        %v9658 = vpop.f32.mrb[0].mxu0
        %v9659 = vadd.f32 %v9499, %v9658
        %v9660 = vpop.f32.mrb[0].mxu0
        %v9661 = vadd.f32 %v9499, %v9660
        %v9662 = vpop.f32.mrb[0].mxu0
        %v9663 = vadd.f32 %v9504, %v9662
        %v9664 = vpop.f32.mrb[0].mxu0
        %v9665 = vadd.f32 %v9504, %v9664
        %9666 = vmatprep.mubr.bf16.mxu0 0
        %9667 = vmatmul.mubr.bf16.gmra.mrb[0].mxu0 %v9600
        %v9668 = vpop.f32.mrb[0].mxu0
        %v9669 = vadd.f32 %v9509, %v9668
        %v9670 = vpop.f32.mrb[0].mxu0
        %v9671 = vadd.f32 %v9509, %v9670
        %v9672 = vpop.f32.mrb[0].mxu0
        %v9673 = vadd.f32 %v9514, %v9672
        %v9674 = vpop.f32.mrb[0].mxu0
        %v9675 = vadd.f32 %v9514, %v9674
        %9676 = vmatprep.mubr.bf16.mxu0 0
        %9677 = vmatmul.mubr.bf16.gmra.mrb[0].mxu0 %v9601
        %v9678 = vpop.f32.mrb[0].mxu0
        %v9679 = vadd.f32 %v9519, %v9678
        %v9680 = vpop.f32.mrb[0].mxu0
        %v9681 = vadd.f32 %v9519, %v9680
        %v9682 = vpop.f32.mrb[0].mxu0
        %v9683 = vadd.f32 %v9524, %v9682
        %v9684 = vpop.f32.mrb[0].mxu0
        %v9685 = vadd.f32 %v9524, %v9684
        %9686 = vmatprep.mubr.bf16.mxu0 0
        %9687 = vmatmul.mubr.bf16.gmra.mrb[0].mxu0 %v9602
        %v9688 = vpop.f32.mrb[0].mxu0
        %v9689 = vadd.f32 %v9529, %v9688
        %v9690 = vpop.f32.mrb[0].mxu0
        %v9691 = vadd.f32 %v9529, %v9690
        %v9692 = vpop.f32.mrb[0].mxu0
        %v9693 = vadd.f32 %v9534, %v9692
        %v9694 = vpop.f32.mrb[0].mxu0
        %v9695 = vadd.f32 %v9534, %v9694
        %9696 = vmatprep.mubr.bf16.mxu0 0
        %9697 = vmatmul.mubr.bf16.gmra.mrb[0].mxu0 %v9603
        %v9698 = vpop.f32.mrb[0].mxu0
        %v9699 = vadd.f32 %v9539, %v9698
        %v9700 = vpop.f32.mrb[0].mxu0
        %v9701 = vadd.f32 %v9539, %v9700
        %v9702 = vpop.f32.mrb[0].mxu0
        %v9703 = vadd.f32 %v9544, %v9702
        %v9704 = vpop.f32.mrb[0].mxu0
        %v9705 = vadd.f32 %v9544, %v9704
        %9706 = vmatprep.mubr.bf16.mxu0 0
        %9707 = vmatmul.mubr.bf16.gmra.mrb[0].mxu0 %v9604
        %v9708 = vpop.f32.mrb[0].mxu0
        %v9709 = vadd.f32 %v9549, %v9708
        %v9710 = vpop.f32.mrb[0].mxu0
        %v9711 = vadd.f32 %v9549, %v9710
        %v9712 = vpop.f32.mrb[0].mxu0
        %v9713 = vadd.f32 %v9554, %v9712
        %v9714 = vpop.f32.mrb[0].mxu0
        %v9715 = vadd.f32 %v9554, %v9714
        %9716 = vmatprep.mubr.bf16.mxu0 0
        %9717 = vmatmul.mubr.bf16.gmra.mrb[0].mxu0 %v9605
        %v9718 = vpop.f32.mrb[0].mxu0
        %v9719 = vadd.f32 %v9559, %v9718
        %v9720 = vpop.f32.mrb[0].mxu0
        %v9721 = vadd.f32 %v9559, %v9720
        %v9722 = vpop.f32.mrb[0].mxu0
        %v9723 = vadd.f32 %v9564, %v9722
        %v9724 = vpop.f32.mrb[0].mxu0
        %v9725 = vadd.f32 %v9564, %v9724
        %9726 = vdwg.mxu0
        %9727 = vmatprep.subr.bf16.mxu0 %v9440
        %9728 = vmatpush1.bf16.msra.mxu0 %v9439
        %9729 = vmatprep.subr.bf16.mxu0 %v9444
        %9730 = vmatpush1.bf16.msra.mxu0 %v9443
        %9731 = vmatprep.subr.bf16.mxu0 %v9448
        %9732 = vmatpush1.bf16.msra.mxu0 %v9447
        %9733 = vmatprep.subr.bf16.mxu0 %v9452
        %9734 = vmatpush1.bf16.msra.mxu0 %v9451
        %9735 = vmatprep.subr.bf16.mxu0 %v9456
        %9736 = vmatpush1.bf16.msra.mxu0 %v9455
        %9737 = vmatprep.subr.bf16.mxu0 %v9460
        %9738 = vmatpush1.bf16.msra.mxu0 %v9459
        %9739 = vmatprep.subr.bf16.mxu0 %v9464
        %9740 = vmatpush1.bf16.msra.mxu0 %v9463
        %9741 = vmatprep.subr.bf16.mxu0 %v9468
        %9742 = vmatpush1.bf16.msra.mxu0 %v9467
        %9743 = vmatprep.subr.bf16.mxu0 0
        %9744 = vmatpush1.bf16.msra.mxu0 0
        %9745 = vmatprep.subr.bf16.mxu0 0
        %9746 = vmatpush1.bf16.msra.mxu0 0
        %9747 = vmatprep.subr.bf16.mxu0 0
        %9748 = vmatpush1.bf16.msra.mxu0 0
        %9749 = vmatprep.subr.bf16.mxu0 0
        %9750 = vmatpush1.bf16.msra.mxu0 0
        %9751 = vmatprep.subr.bf16.mxu0 0
        %9752 = vmatpush1.bf16.msra.mxu0 0
        %9753 = vmatprep.subr.bf16.mxu0 0
        %9754 = vmatpush1.bf16.msra.mxu0 0
        %9755 = vmatprep.subr.bf16.mxu0 0
        %9756 = vmatpush1.bf16.msra.mxu0 0
        %9757 = vmatprep.subr.bf16.mxu0 0
        %9758 = vmatpush1.bf16.msra.mxu0 0
        %9759 = vmatprep.mubr.bf16.mxu0 0
        %9760 = vmatmul.mubr.bf16.gmra.mrb[0].mxu0 %v9598
        %v9761 = vpop.f32.mrb[0].mxu0
        %v9762 = vadd.f32 %v9489, %v9761
        %v9763 = vpop.f32.mrb[0].mxu0
        %v9764 = vadd.f32 %v9489, %v9763
        %v9765 = vpop.f32.mrb[0].mxu0
        %v9766 = vadd.f32 %v9494, %v9765
        %v9767 = vpop.f32.mrb[0].mxu0
        %v9768 = vadd.f32 %v9494, %v9767
        %9769 = vmatprep.mubr.bf16.mxu0 0
        %9770 = vmatmul.mubr.bf16.gmra.mrb[0].mxu0 %v9599
        %v9771 = vpop.f32.mrb[0].mxu0
        %v9772 = vadd.f32 %v9499, %v9771
        %v9773 = vpop.f32.mrb[0].mxu0
        %v9774 = vadd.f32 %v9499, %v9773
        %v9775 = vpop.f32.mrb[0].mxu0
        %v9776 = vadd.f32 %v9504, %v9775
        %v9777 = vpop.f32.mrb[0].mxu0
        %v9778 = vadd.f32 %v9504, %v9777
        %9779 = vmatprep.mubr.bf16.mxu0 0
        %9780 = vmatmul.mubr.bf16.gmra.mrb[0].mxu0 %v9600
        %v9781 = vpop.f32.mrb[0].mxu0
        %v9782 = vadd.f32 %v9509, %v9781
        %v9783 = vpop.f32.mrb[0].mxu0
        %v9784 = vadd.f32 %v9509, %v9783
        %v9785 = vpop.f32.mrb[0].mxu0
        %v9786 = vadd.f32 %v9514, %v9785
        %v9787 = vpop.f32.mrb[0].mxu0
        %v9788 = vadd.f32 %v9514, %v9787
        %9789 = vmatprep.mubr.bf16.mxu0 0
        %9790 = vmatmul.mubr.bf16.gmra.mrb[0].mxu0 %v9601
        %v9791 = vpop.f32.mrb[0].mxu0
        %v9792 = vadd.f32 %v9519, %v9791
        %v9793 = vpop.f32.mrb[0].mxu0
        %v9794 = vadd.f32 %v9519, %v9793
        %v9795 = vpop.f32.mrb[0].mxu0
        %v9796 = vadd.f32 %v9524, %v9795
        %v9797 = vpop.f32.mrb[0].mxu0
        %v9798 = vadd.f32 %v9524, %v9797
        %9799 = vmatprep.mubr.bf16.mxu0 0
        %9800 = vmatmul.mubr.bf16.gmra.mrb[0].mxu0 %v9602
        %v9801 = vpop.f32.mrb[0].mxu0
        %v9802 = vadd.f32 %v9529, %v9801
        %v9803 = vpop.f32.mrb[0].mxu0
        %v9804 = vadd.f32 %v9529, %v9803
        %v9805 = vpop.f32.mrb[0].mxu0
        %v9806 = vadd.f32 %v9534, %v9805
        %v9807 = vpop.f32.mrb[0].mxu0
        %v9808 = vadd.f32 %v9534, %v9807
        %9809 = vmatprep.mubr.bf16.mxu0 0
        %9810 = vmatmul.mubr.bf16.gmra.mrb[0].mxu0 %v9603
        %v9811 = vpop.f32.mrb[0].mxu0
        %v9812 = vadd.f32 %v9539, %v9811
        %v9813 = vpop.f32.mrb[0].mxu0
        %v9814 = vadd.f32 %v9539, %v9813
        %v9815 = vpop.f32.mrb[0].mxu0
        %v9816 = vadd.f32 %v9544, %v9815
        %v9817 = vpop.f32.mrb[0].mxu0
        %v9818 = vadd.f32 %v9544, %v9817
        %9819 = vmatprep.mubr.bf16.mxu0 0
        %9820 = vmatmul.mubr.bf16.gmra.mrb[0].mxu0 %v9604
        %v9821 = vpop.f32.mrb[0].mxu0
        %v9822 = vadd.f32 %v9549, %v9821
        %v9823 = vpop.f32.mrb[0].mxu0
        %v9824 = vadd.f32 %v9549, %v9823
        %v9825 = vpop.f32.mrb[0].mxu0
        %v9826 = vadd.f32 %v9554, %v9825
        %v9827 = vpop.f32.mrb[0].mxu0
        %v9828 = vadd.f32 %v9554, %v9827
        %9829 = vmatprep.mubr.bf16.mxu0 0
        %9830 = vmatmul.mubr.bf16.gmra.mrb[0].mxu0 %v9605
        %v9831 = vpop.f32.mrb[0].mxu0
        %v9832 = vadd.f32 %v9559, %v9831
        %v9833 = vpop.f32.mrb[0].mxu0
        %v9834 = vadd.f32 %v9559, %v9833
        %v9835 = vpop.f32.mrb[0].mxu0
        %v9836 = vadd.f32 %v9564, %v9835
        %v9837 = vpop.f32.mrb[0].mxu0
        %v9838 = vadd.f32 %v9564, %v9837
        %9839 = vdwg.mxu0
        %vm9840 = vcmp.ge.f32.partialorder %v9649, 0.0
        %vm9841 = vcmp.ge.f32.partialorder %v9651, 0.0
        %vm9842 = vcmp.ge.f32.partialorder %v9762, 0.0
        %vm9843 = vcmp.ge.f32.partialorder %v9764, 0.0
        %vm9844 = vcmp.ge.f32.partialorder %v9653, 0.0
        %vm9845 = vcmp.ge.f32.partialorder %v9655, 0.0
        %vm9846 = vcmp.ge.f32.partialorder %v9766, 0.0
        %vm9847 = vcmp.ge.f32.partialorder %v9768, 0.0
        %vm9848 = vcmp.ge.f32.partialorder %v9659, 0.0
        %vm9849 = vcmp.ge.f32.partialorder %v9661, 0.0
        %vm9850 = vcmp.ge.f32.partialorder %v9772, 0.0
        %vm9851 = vcmp.ge.f32.partialorder %v9774, 0.0
        %vm9852 = vcmp.ge.f32.partialorder %v9663, 0.0
        %vm9853 = vcmp.ge.f32.partialorder %v9665, 0.0
        %vm9854 = vcmp.ge.f32.partialorder %v9776, 0.0
        %vm9855 = vcmp.ge.f32.partialorder %v9778, 0.0
        %vm9856 = vcmp.ge.f32.partialorder %v9669, 0.0
        %vm9857 = vcmp.ge.f32.partialorder %v9671, 0.0
        %vm9858 = vcmp.ge.f32.partialorder %v9782, 0.0
        %vm9859 = vcmp.ge.f32.partialorder %v9784, 0.0
        %vm9860 = vcmp.ge.f32.partialorder %v9673, 0.0
        %vm9861 = vcmp.ge.f32.partialorder %v9675, 0.0
        %vm9862 = vcmp.ge.f32.partialorder %v9786, 0.0
        %vm9863 = vcmp.ge.f32.partialorder %v9788, 0.0
        %vm9864 = vcmp.ge.f32.partialorder %v9679, 0.0
        %vm9865 = vcmp.ge.f32.partialorder %v9681, 0.0
        %vm9866 = vcmp.ge.f32.partialorder %v9792, 0.0
        %vm9867 = vcmp.ge.f32.partialorder %v9794, 0.0
        %vm9868 = vcmp.ge.f32.partialorder %v9683, 0.0
        %vm9869 = vcmp.ge.f32.partialorder %v9685, 0.0
        %vm9870 = vcmp.ge.f32.partialorder %v9796, 0.0
        %vm9871 = vcmp.ge.f32.partialorder %v9798, 0.0
        %vm9872 = vcmp.ge.f32.partialorder %v9689, 0.0
        %vm9873 = vcmp.ge.f32.partialorder %v9691, 0.0
        %vm9874 = vcmp.ge.f32.partialorder %v9802, 0.0
        %vm9875 = vcmp.ge.f32.partialorder %v9804, 0.0
        %vm9876 = vcmp.ge.f32.partialorder %v9693, 0.0
        %vm9877 = vcmp.ge.f32.partialorder %v9695, 0.0
        %vm9878 = vcmp.ge.f32.partialorder %v9806, 0.0
        %vm9879 = vcmp.ge.f32.partialorder %v9808, 0.0
        %vm9880 = vcmp.ge.f32.partialorder %v9699, 0.0
        %vm9881 = vcmp.ge.f32.partialorder %v9701, 0.0
        %vm9882 = vcmp.ge.f32.partialorder %v9812, 0.0
        %vm9883 = vcmp.ge.f32.partialorder %v9814, 0.0
        %vm9884 = vcmp.ge.f32.partialorder %v9703, 0.0
        %vm9885 = vcmp.ge.f32.partialorder %v9705, 0.0
        %vm9886 = vcmp.ge.f32.partialorder %v9816, 0.0
        %vm9887 = vcmp.ge.f32.partialorder %v9818, 0.0
        %vm9888 = vcmp.ge.f32.partialorder %v9709, 0.0
        %vm9889 = vcmp.ge.f32.partialorder %v9711, 0.0
        %vm9890 = vcmp.ge.f32.partialorder %v9822, 0.0
        %vm9891 = vcmp.ge.f32.partialorder %v9824, 0.0
        %vm9892 = vcmp.ge.f32.partialorder %v9713, 0.0
        %vm9893 = vcmp.ge.f32.partialorder %v9715, 0.0
        %vm9894 = vcmp.ge.f32.partialorder %v9826, 0.0
        %vm9895 = vcmp.ge.f32.partialorder %v9828, 0.0
        %vm9896 = vcmp.ge.f32.partialorder %v9719, 0.0
        %vm9897 = vcmp.ge.f32.partialorder %v9721, 0.0
        %vm9898 = vcmp.ge.f32.partialorder %v9832, 0.0
        %vm9899 = vcmp.ge.f32.partialorder %v9834, 0.0
        %vm9900 = vcmp.ge.f32.partialorder %v9723, 0.0
        %vm9901 = vcmp.ge.f32.partialorder %v9725, 0.0
        %vm9902 = vcmp.ge.f32.partialorder %v9836, 0.0
        %vm9903 = vcmp.ge.f32.partialorder %v9838, 0.0
        %v9904 = vmul.f32 %v9649, 0.01
        %v9905 = vmul.f32 %v9651, 0.01
        %v9906 = vmul.f32 %v9762, 0.01
        %v9907 = vmul.f32 %v9764, 0.01
        %v9908 = vmul.f32 %v9653, 0.01
        %v9909 = vmul.f32 %v9655, 0.01
        %v9910 = vmul.f32 %v9766, 0.01
        %v9911 = vmul.f32 %v9768, 0.01
        %v9912 = vmul.f32 %v9659, 0.01
        %v9913 = vmul.f32 %v9661, 0.01
        %v9914 = vmul.f32 %v9772, 0.01
        %v9915 = vmul.f32 %v9774, 0.01
        %v9916 = vmul.f32 %v9663, 0.01
        %v9917 = vmul.f32 %v9665, 0.01
        %v9918 = vmul.f32 %v9776, 0.01
        %v9919 = vmul.f32 %v9778, 0.01
        %v9920 = vmul.f32 %v9669, 0.01
        %v9921 = vmul.f32 %v9671, 0.01
        %v9922 = vmul.f32 %v9782, 0.01
        %v9923 = vmul.f32 %v9784, 0.01
        %v9924 = vmul.f32 %v9673, 0.01
        %v9925 = vmul.f32 %v9675, 0.01
        %v9926 = vmul.f32 %v9786, 0.01
        %v9927 = vmul.f32 %v9788, 0.01
        %v9928 = vmul.f32 %v9679, 0.01
        %v9929 = vmul.f32 %v9681, 0.01
        %v9930 = vmul.f32 %v9792, 0.01
        %v9931 = vmul.f32 %v9794, 0.01
        %v9932 = vmul.f32 %v9683, 0.01
        %v9933 = vmul.f32 %v9685, 0.01
        %v9934 = vmul.f32 %v9796, 0.01
        %v9935 = vmul.f32 %v9798, 0.01
        %v9936 = vmul.f32 %v9689, 0.01
        %v9937 = vmul.f32 %v9691, 0.01
        %v9938 = vmul.f32 %v9802, 0.01
        %v9939 = vmul.f32 %v9804, 0.01
        %v9940 = vmul.f32 %v9693, 0.01
        %v9941 = vmul.f32 %v9695, 0.01
        %v9942 = vmul.f32 %v9806, 0.01
        %v9943 = vmul.f32 %v9808, 0.01
        %v9944 = vmul.f32 %v9699, 0.01
        %v9945 = vmul.f32 %v9701, 0.01
        %v9946 = vmul.f32 %v9812, 0.01
        %v9947 = vmul.f32 %v9814, 0.01
        %v9948 = vmul.f32 %v9703, 0.01
        %v9949 = vmul.f32 %v9705, 0.01
        %v9950 = vmul.f32 %v9816, 0.01
        %v9951 = vmul.f32 %v9818, 0.01
        %v9952 = vmul.f32 %v9709, 0.01
        %v9953 = vmul.f32 %v9711, 0.01
        %v9954 = vmul.f32 %v9822, 0.01
        %v9955 = vmul.f32 %v9824, 0.01
        %v9956 = vmul.f32 %v9713, 0.01
        %v9957 = vmul.f32 %v9715, 0.01
        %v9958 = vmul.f32 %v9826, 0.01
        %v9959 = vmul.f32 %v9828, 0.01
        %v9960 = vmul.f32 %v9719, 0.01
        %v9961 = vmul.f32 %v9721, 0.01
        %v9962 = vmul.f32 %v9832, 0.01
        %v9963 = vmul.f32 %v9834, 0.01
        %v9964 = vmul.f32 %v9723, 0.01
        %v9965 = vmul.f32 %v9725, 0.01
        %v9966 = vmul.f32 %v9836, 0.01
        %v9967 = vmul.f32 %v9838, 0.01
        %v9968 = vsel %vm9840, %v9649, %v9904
        %v9969 = vsel %vm9841, %v9651, %v9905
        %v9970 = vsel %vm9842, %v9762, %v9906
        %v9971 = vsel %vm9843, %v9764, %v9907
        %v9972 = vsel %vm9844, %v9653, %v9908
        %v9973 = vsel %vm9845, %v9655, %v9909
        %v9974 = vsel %vm9846, %v9766, %v9910
        %v9975 = vsel %vm9847, %v9768, %v9911
        %v9976 = vsel %vm9848, %v9659, %v9912
        %v9977 = vsel %vm9849, %v9661, %v9913
        %v9978 = vsel %vm9850, %v9772, %v9914
        %v9979 = vsel %vm9851, %v9774, %v9915
        %v9980 = vsel %vm9852, %v9663, %v9916
        %v9981 = vsel %vm9853, %v9665, %v9917
        %v9982 = vsel %vm9854, %v9776, %v9918
        %v9983 = vsel %vm9855, %v9778, %v9919
        %v9984 = vsel %vm9856, %v9669, %v9920
        %v9985 = vsel %vm9857, %v9671, %v9921
        %v9986 = vsel %vm9858, %v9782, %v9922
        %v9987 = vsel %vm9859, %v9784, %v9923
        %v9988 = vsel %vm9860, %v9673, %v9924
        %v9989 = vsel %vm9861, %v9675, %v9925
        %v9990 = vsel %vm9862, %v9786, %v9926
        %v9991 = vsel %vm9863, %v9788, %v9927
        %v9992 = vsel %vm9864, %v9679, %v9928
        %v9993 = vsel %vm9865, %v9681, %v9929
        %v9994 = vsel %vm9866, %v9792, %v9930
        %v9995 = vsel %vm9867, %v9794, %v9931
        %v9996 = vsel %vm9868, %v9683, %v9932
        %v9997 = vsel %vm9869, %v9685, %v9933
        %v9998 = vsel %vm9870, %v9796, %v9934
        %v9999 = vsel %vm9871, %v9798, %v9935
        %v10000 = vsel %vm9872, %v9689, %v9936
        %v10001 = vsel %vm9873, %v9691, %v9937
        %v10002 = vsel %vm9874, %v9802, %v9938
        %v10003 = vsel %vm9875, %v9804, %v9939
        %v10004 = vsel %vm9876, %v9693, %v9940
        %v10005 = vsel %vm9877, %v9695, %v9941
        %v10006 = vsel %vm9878, %v9806, %v9942
        %v10007 = vsel %vm9879, %v9808, %v9943
        %v10008 = vsel %vm9880, %v9699, %v9944
        %v10009 = vsel %vm9881, %v9701, %v9945
        %v10010 = vsel %vm9882, %v9812, %v9946
        %v10011 = vsel %vm9883, %v9814, %v9947
        %v10012 = vsel %vm9884, %v9703, %v9948
        %v10013 = vsel %vm9885, %v9705, %v9949
        %v10014 = vsel %vm9886, %v9816, %v9950
        %v10015 = vsel %vm9887, %v9818, %v9951
        %v10016 = vsel %vm9888, %v9709, %v9952
        %v10017 = vsel %vm9889, %v9711, %v9953
        %v10018 = vsel %vm9890, %v9822, %v9954
        %v10019 = vsel %vm9891, %v9824, %v9955
        %v10020 = vsel %vm9892, %v9713, %v9956
        %v10021 = vsel %vm9893, %v9715, %v9957
        %v10022 = vsel %vm9894, %v9826, %v9958
        %v10023 = vsel %vm9895, %v9828, %v9959
        %v10024 = vsel %vm9896, %v9719, %v9960
        %v10025 = vsel %vm9897, %v9721, %v9961
        %v10026 = vsel %vm9898, %v9832, %v9962
        %v10027 = vsel %vm9899, %v9834, %v9963
        %v10028 = vsel %vm9900, %v9723, %v9964
        %v10029 = vsel %vm9901, %v9725, %v9965
        %v10030 = vsel %vm9902, %v9836, %v9966
        %v10031 = vsel %vm9903, %v9838, %v9967
        %v10032 = vadd.f32 %v9968, %v9356
        %v10033 = vadd.f32 %v9969, %v9357
        %v10034 = vadd.f32 %v9970, %v9358
        %v10035 = vadd.f32 %v9971, %v9359
        %v10036 = vadd.f32 %v9972, %v9360
        %v10037 = vadd.f32 %v9973, %v9361
        %v10038 = vadd.f32 %v9974, %v9362
        %v10039 = vadd.f32 %v9975, %v9363
        %v10040 = vadd.f32 %v9976, %v9364
        %v10041 = vadd.f32 %v9977, %v9365
        %v10042 = vadd.f32 %v9978, %v9366
        %v10043 = vadd.f32 %v9979, %v9367
        %v10044 = vadd.f32 %v9980, %v9368
        %v10045 = vadd.f32 %v9981, %v9369
        %v10046 = vadd.f32 %v9982, %v9370
        %v10047 = vadd.f32 %v9983, %v9371
        %v10048 = vadd.f32 %v9984, %v9372
        %v10049 = vadd.f32 %v9985, %v9373
        %v10050 = vadd.f32 %v9986, %v9374
        %v10051 = vadd.f32 %v9987, %v9375
        %v10052 = vadd.f32 %v9988, %v9376
        %v10053 = vadd.f32 %v9989, %v9377
        %v10054 = vadd.f32 %v9990, %v9378
        %v10055 = vadd.f32 %v9991, %v9379
        %v10056 = vadd.f32 %v9992, %v9380
        %v10057 = vadd.f32 %v9993, %v9381
        %v10058 = vadd.f32 %v9994, %v9382
        %v10059 = vadd.f32 %v9995, %v9383
        %v10060 = vadd.f32 %v9996, %v9384
        %v10061 = vadd.f32 %v9997, %v9385
        %v10062 = vadd.f32 %v9998, %v9386
        %v10063 = vadd.f32 %v9999, %v9387
        %v10064 = vadd.f32 %v10000, %v9388
        %v10065 = vadd.f32 %v10001, %v9389
        %v10066 = vadd.f32 %v10002, %v9390
        %v10067 = vadd.f32 %v10003, %v9391
        %v10068 = vadd.f32 %v10004, %v9392
        %v10069 = vadd.f32 %v10005, %v9393
        %v10070 = vadd.f32 %v10006, %v9394
        %v10071 = vadd.f32 %v10007, %v9395
        %v10072 = vadd.f32 %v10008, %v9396
        %v10073 = vadd.f32 %v10009, %v9397
        %v10074 = vadd.f32 %v10010, %v9398
        %v10075 = vadd.f32 %v10011, %v9399
        %v10076 = vadd.f32 %v10012, %v9400
        %v10077 = vadd.f32 %v10013, %v9401
        %v10078 = vadd.f32 %v10014, %v9402
        %v10079 = vadd.f32 %v10015, %v9403
        %v10080 = vadd.f32 %v10016, %v9404
        %v10081 = vadd.f32 %v10017, %v9405
        %v10082 = vadd.f32 %v10018, %v9406
        %v10083 = vadd.f32 %v10019, %v9407
        %v10084 = vadd.f32 %v10020, %v9408
        %v10085 = vadd.f32 %v10021, %v9409
        %v10086 = vadd.f32 %v10022, %v9410
        %v10087 = vadd.f32 %v10023, %v9411
        %v10088 = vadd.f32 %v10024, %v9412
        %v10089 = vadd.f32 %v10025, %v9413
        %v10090 = vadd.f32 %v10026, %v9414
        %v10091 = vadd.f32 %v10027, %v9415
        %v10092 = vadd.f32 %v10028, %v9416
        %v10093 = vadd.f32 %v10029, %v9417
        %v10094 = vadd.f32 %v10030, %v9418
        %v10095 = vadd.f32 %v10031, %v9419
        %v10096 = vld [vmem:[%s12] sm:$0xf]
        %v10097 = vld [vmem:[%s12 + $0x4] sm:$0xf]
        %v10098 = vld [vmem:[%s12 + $0x8] sm:$0xf]
        %v10099 = vld [vmem:[%s12 + $0xc] sm:$0xf]
        %v10100 = vld [vmem:[%s12 + $0x10] sm:$0xf]
        %v10101 = vld [vmem:[%s12 + $0x14] sm:$0xf]
        %v10102 = vpack.c.bf16 %v10036, %v10032
        %v10103 = vpack.c.bf16 %v10037, %v10033
        %v10104 = vpack.c.bf16 %v10038, %v10034
        %v10105 = vpack.c.bf16 %v10039, %v10035
        %v10106 = vpack.c.bf16 %v10044, %v10040
        %v10107 = vpack.c.bf16 %v10045, %v10041
        %v10108 = vpack.c.bf16 %v10046, %v10042
        %v10109 = vpack.c.bf16 %v10047, %v10043
        %v10110 = vpack.c.bf16 %v10052, %v10048
        %v10111 = vpack.c.bf16 %v10053, %v10049
        %v10112 = vpack.c.bf16 %v10054, %v10050
        %v10113 = vpack.c.bf16 %v10055, %v10051
        %v10114 = vpack.c.bf16 %v10060, %v10056
        %v10115 = vpack.c.bf16 %v10061, %v10057
        %v10116 = vpack.c.bf16 %v10062, %v10058
        %v10117 = vpack.c.bf16 %v10063, %v10059
        %v10118 = vpack.c.bf16 %v10068, %v10064
        %v10119 = vpack.c.bf16 %v10069, %v10065
        %v10120 = vpack.c.bf16 %v10070, %v10066
        %v10121 = vpack.c.bf16 %v10071, %v10067
        %v10122 = vpack.c.bf16 %v10076, %v10072
        %v10123 = vpack.c.bf16 %v10077, %v10073
        %v10124 = vpack.c.bf16 %v10078, %v10074
        %v10125 = vpack.c.bf16 %v10079, %v10075
        %v10126 = vpack.c.bf16 %v10084, %v10080
        %v10127 = vpack.c.bf16 %v10085, %v10081
        %v10128 = vpack.c.bf16 %v10086, %v10082
        %v10129 = vpack.c.bf16 %v10087, %v10083
        %v10130 = vpack.c.bf16 %v10092, %v10088
        %v10131 = vpack.c.bf16 %v10093, %v10089
        %v10132 = vpack.c.bf16 %v10094, %v10090
        %v10133 = vpack.c.bf16 %v10095, %v10091
        %v10134 = vld [vmem:[%s13] sm:$0xff]
        %v10135 = vld [vmem:[%s13 + $0x8] sm:$0xff]
        %v10136 = vld [vmem:[%s13 + $0x10] sm:$0xff]
        %v10137 = vld [vmem:[%s13 + $0x18] sm:$0xff]
        %v10138 = vld [vmem:[%s13 + $0x20] sm:$0xff]
        %v10139 = vld [vmem:[%s13 + $0x28] sm:$0xff]
        %10141 = vset.pattern.permute.xlu0 0
        %10142 = vperm.xlu0 %10141, %v10134
        %v10143 = vpop.permute.xlu0 %10142
        %10146 = vset.pattern.permute.xlu0 0
        %10147 = vperm.xlu0 %10146, %v10135
        %v10148 = vpop.permute.xlu0 %10147
        %10151 = vset.pattern.permute.xlu0 0
        %10152 = vperm.xlu0 %10151, %v10136
        %v10153 = vpop.permute.xlu0 %10152
        %10156 = vset.pattern.permute.xlu0 0
        %10157 = vperm.xlu0 %10156, %v10137
        %v10158 = vpop.permute.xlu0 %10157
        %10161 = vset.pattern.permute.xlu0 0
        %10162 = vperm.xlu0 %10161, %v10138
        %v10163 = vpop.permute.xlu0 %10162
        %10166 = vset.pattern.permute.xlu0 0
        %10167 = vperm.xlu0 %10166, %v10139
        %v10168 = vpop.permute.xlu0 %10167
        %v10176 = vunpack.c.l.b16 %v10096
        %v10177 = vunpack.c.l.b16 %v10097
        %v10178 = vunpack.c.l.b16 %v10098
        %v10179 = vunpack.c.l.b16 %v10099
        %v10180 = vunpack.c.l.b16 %v10100
        %v10181 = vunpack.c.l.b16 %v10101
        %v10182 = vpack.c.b16 %v10177, %v10176
        %v10183 = vpack.c.b16 %v10179, %v10178
        %v10184 = vpack.c.b16 %v10181, %v10180
        %10188 = vmatprep.subr.bf16.mxu0 %v10103
        %10189 = vmatpush1.bf16.msra.mxu0 %v10102
        %10190 = vmatprep.subr.bf16.mxu0 %v10107
        %10191 = vmatpush1.bf16.msra.mxu0 %v10106
        %10192 = vmatprep.subr.bf16.mxu0 %v10111
        %10193 = vmatpush1.bf16.msra.mxu0 %v10110
        %10194 = vmatprep.subr.bf16.mxu0 %v10115
        %10195 = vmatpush1.bf16.msra.mxu0 %v10114
        %10196 = vmatprep.subr.bf16.mxu0 %v10119
        %10197 = vmatpush1.bf16.msra.mxu0 %v10118
        %10198 = vmatprep.subr.bf16.mxu0 %v10123
        %10199 = vmatpush1.bf16.msra.mxu0 %v10122
        %10200 = vmatprep.subr.bf16.mxu0 %v10127
        %10201 = vmatpush1.bf16.msra.mxu0 %v10126
        %10202 = vmatprep.subr.bf16.mxu0 %v10131
        %10203 = vmatpush1.bf16.msra.mxu0 %v10130
        %10204 = vmatprep.subr.bf16.mxu0 0
        %10205 = vmatpush1.bf16.msra.mxu0 0
        %10206 = vmatprep.subr.bf16.mxu0 0
        %10207 = vmatpush1.bf16.msra.mxu0 0
        %10208 = vmatprep.subr.bf16.mxu0 0
        %10209 = vmatpush1.bf16.msra.mxu0 0
        %10210 = vmatprep.subr.bf16.mxu0 0
        %10211 = vmatpush1.bf16.msra.mxu0 0
        %10212 = vmatprep.subr.bf16.mxu0 0
        %10213 = vmatpush1.bf16.msra.mxu0 0
        %10214 = vmatprep.subr.bf16.mxu0 0
        %10215 = vmatpush1.bf16.msra.mxu0 0
        %10216 = vmatprep.subr.bf16.mxu0 0
        %10217 = vmatpush1.bf16.msra.mxu0 0
        %10218 = vmatprep.subr.bf16.mxu0 0
        %10219 = vmatpush1.bf16.msra.mxu0 0
        %10220 = vmatprep.mubr.bf16.mxu0 0
        %10221 = vmatmul.mubr.bf16.gmra.mrb[0].mxu0 %v10182
        %v10222 = vpop.f32.mrb[0].mxu0
        %v10223 = vadd.f32 %v10143, %v10222
        %v10224 = vpop.f32.mrb[0].mxu0
        %v10225 = vadd.f32 %v10143, %v10224
        %v10226 = vpop.f32.mrb[0].mxu0
        %v10227 = vadd.f32 %v10148, %v10226
        %v10228 = vpop.f32.mrb[0].mxu0
        %v10229 = vadd.f32 %v10148, %v10228
        %10230 = vmatprep.mubr.bf16.mxu0 0
        %10231 = vmatmul.mubr.bf16.gmra.mrb[0].mxu0 %v10183
        %v10232 = vpop.f32.mrb[0].mxu0
        %v10233 = vadd.f32 %v10153, %v10232
        %v10234 = vpop.f32.mrb[0].mxu0
        %v10235 = vadd.f32 %v10153, %v10234
        %v10236 = vpop.f32.mrb[0].mxu0
        %v10237 = vadd.f32 %v10158, %v10236
        %v10238 = vpop.f32.mrb[0].mxu0
        %v10239 = vadd.f32 %v10158, %v10238
        %10240 = vmatprep.mubr.bf16.mxu0 0
        %10241 = vmatmul.mubr.bf16.gmra.mrb[0].mxu0 %v10184
        %v10242 = vpop.f32.mrb[0].mxu0
        %v10243 = vadd.f32 %v10163, %v10242
        %v10244 = vpop.f32.mrb[0].mxu0
        %v10245 = vadd.f32 %v10163, %v10244
        %v10246 = vpop.f32.mrb[0].mxu0
        %v10247 = vadd.f32 %v10168, %v10246
        %v10248 = vpop.f32.mrb[0].mxu0
        %v10249 = vadd.f32 %v10168, %v10248
        %10250 = vdwg.mxu0
        %10251 = vmatprep.subr.bf16.mxu0 %v10105
        %10252 = vmatpush1.bf16.msra.mxu0 %v10104
        %10253 = vmatprep.subr.bf16.mxu0 %v10109
        %10254 = vmatpush1.bf16.msra.mxu0 %v10108
        %10255 = vmatprep.subr.bf16.mxu0 %v10113
        %10256 = vmatpush1.bf16.msra.mxu0 %v10112
        %10257 = vmatprep.subr.bf16.mxu0 %v10117
        %10258 = vmatpush1.bf16.msra.mxu0 %v10116
        %10259 = vmatprep.subr.bf16.mxu0 %v10121
        %10260 = vmatpush1.bf16.msra.mxu0 %v10120
        %10261 = vmatprep.subr.bf16.mxu0 %v10125
        %10262 = vmatpush1.bf16.msra.mxu0 %v10124
        %10263 = vmatprep.subr.bf16.mxu0 %v10129
        %10264 = vmatpush1.bf16.msra.mxu0 %v10128
        %10265 = vmatprep.subr.bf16.mxu0 %v10133
        %10266 = vmatpush1.bf16.msra.mxu0 %v10132
        %10267 = vmatprep.subr.bf16.mxu0 0
        %10268 = vmatpush1.bf16.msra.mxu0 0
        %10269 = vmatprep.subr.bf16.mxu0 0
        %10270 = vmatpush1.bf16.msra.mxu0 0
        %10271 = vmatprep.subr.bf16.mxu0 0
        %10272 = vmatpush1.bf16.msra.mxu0 0
        %10273 = vmatprep.subr.bf16.mxu0 0
        %10274 = vmatpush1.bf16.msra.mxu0 0
        %10275 = vmatprep.subr.bf16.mxu0 0
        %10276 = vmatpush1.bf16.msra.mxu0 0
        %10277 = vmatprep.subr.bf16.mxu0 0
        %10278 = vmatpush1.bf16.msra.mxu0 0
        %10279 = vmatprep.subr.bf16.mxu0 0
        %10280 = vmatpush1.bf16.msra.mxu0 0
        %10281 = vmatprep.subr.bf16.mxu0 0
        %10282 = vmatpush1.bf16.msra.mxu0 0
        %10283 = vmatprep.mubr.bf16.mxu0 0
        %10284 = vmatmul.mubr.bf16.gmra.mrb[0].mxu0 %v10182
        %v10285 = vpop.f32.mrb[0].mxu0
        %v10286 = vadd.f32 %v10143, %v10285
        %v10287 = vpop.f32.mrb[0].mxu0
        %v10288 = vadd.f32 %v10143, %v10287
        %v10289 = vpop.f32.mrb[0].mxu0
        %v10290 = vadd.f32 %v10148, %v10289
        %v10291 = vpop.f32.mrb[0].mxu0
        %v10292 = vadd.f32 %v10148, %v10291
        %10293 = vmatprep.mubr.bf16.mxu0 0
        %10294 = vmatmul.mubr.bf16.gmra.mrb[0].mxu0 %v10183
        %v10295 = vpop.f32.mrb[0].mxu0
        %v10296 = vadd.f32 %v10153, %v10295
        %v10297 = vpop.f32.mrb[0].mxu0
        %v10298 = vadd.f32 %v10153, %v10297
        %v10299 = vpop.f32.mrb[0].mxu0
        %v10300 = vadd.f32 %v10158, %v10299
        %v10301 = vpop.f32.mrb[0].mxu0
        %v10302 = vadd.f32 %v10158, %v10301
        %10303 = vmatprep.mubr.bf16.mxu0 0
        %10304 = vmatmul.mubr.bf16.gmra.mrb[0].mxu0 %v10184
        %v10305 = vpop.f32.mrb[0].mxu0
        %v10306 = vadd.f32 %v10163, %v10305
        %v10307 = vpop.f32.mrb[0].mxu0
        %v10308 = vadd.f32 %v10163, %v10307
        %v10309 = vpop.f32.mrb[0].mxu0
        %v10310 = vadd.f32 %v10168, %v10309
        %v10311 = vpop.f32.mrb[0].mxu0
        %v10312 = vadd.f32 %v10168, %v10311
        %10313 = vdwg.mxu0
        %v10314 = vmul.f32 %v10223, %v2202
        %v10315 = vmul.f32 %v10225, %v2203
        %v10316 = vmul.f32 %v10286, %v2204
        %v10317 = vmul.f32 %v10288, %v2205
        %v10318 = vmul.f32 %v10227, %v2206
        %v10319 = vmul.f32 %v10229, %v2207
        %v10320 = vmul.f32 %v10290, %v2208
        %v10321 = vmul.f32 %v10292, %v2209
        %v10322 = vmul.f32 %v10233, %v2210
        %v10323 = vmul.f32 %v10235, %v2211
        %v10324 = vmul.f32 %v10296, %v2212
        %v10325 = vmul.f32 %v10298, %v2213
        %v10326 = vmul.f32 %v10237, %v2214
        %v10327 = vmul.f32 %v10239, %v2215
        %v10328 = vmul.f32 %v10300, %v2216
        %v10329 = vmul.f32 %v10302, %v2217
        %v10330 = vmul.f32 %v10243, %v2218
        %v10331 = vmul.f32 %v10245, %v2219
        %v10332 = vmul.f32 %v10306, %v2220
        %v10333 = vmul.f32 %v10308, %v2221
        %v10334 = vmul.f32 %v10247, %v2222
        %v10335 = vmul.f32 %v10249, %v2223
        %v10336 = vmul.f32 %v10310, %v2224
        %v10337 = vmul.f32 %v10312, %v2225
        %v10338 = vld [vmem:[%s7] sm:$0x7]
        %vm10339 = vcmask 392192
        %v10341 = vsel %vm10339, %v10338, 0
        %10343 = vmatprep.subr.mxu0 %v10315
        %10344 = vmatpush1.msra.mxu0 %v10314
        %10345 = vmatprep.subr.mxu0 %v10319
        %10346 = vmatpush1.msra.mxu0 %v10318
        %10347 = vmatprep.subr.mxu0 %v10323
        %10348 = vmatpush1.msra.mxu0 %v10322
        %10349 = vmatprep.subr.mxu0 %v10327
        %10350 = vmatpush1.msra.mxu0 %v10326
        %10351 = vmatprep.subr.mxu0 %v10331
        %10352 = vmatpush1.msra.mxu0 %v10330
        %10353 = vmatprep.subr.mxu0 %v10335
        %10354 = vmatpush1.msra.mxu0 %v10334
        %10355 = vmatprep.subr.mxu0 0.0
        %10356 = vmatpush1.msra.mxu0 0.0
        %10357 = vmatprep.subr.mxu0 0.0
        %10358 = vmatpush1.msra.mxu0 0.0
        %10359 = vmatprep.subr.mxu0 0.0
        %10360 = vmatpush1.msra.mxu0 0.0
        %10361 = vmatprep.subr.mxu0 0.0
        %10362 = vmatpush1.msra.mxu0 0.0
        %10363 = vmatprep.subr.mxu0 0.0
        %10364 = vmatpush1.msra.mxu0 0.0
        %10365 = vmatprep.subr.mxu0 0.0
        %10366 = vmatpush1.msra.mxu0 0.0
        %10367 = vmatprep.subr.mxu0 0.0
        %10368 = vmatpush1.msra.mxu0 0.0
        %10369 = vmatprep.subr.mxu0 0.0
        %10370 = vmatpush1.msra.mxu0 0.0
        %10371 = vmatprep.subr.mxu0 0.0
        %10372 = vmatpush1.msra.mxu0 0.0
        %10373 = vmatprep.subr.mxu0 0.0
        %10374 = vmatpush1.msra.mxu0 0.0
        %10375 = vmatprep.subr.mxu0 0.0
        %10376 = vmatpush1.msra.mxu0 0.0
        %10377 = vmatprep.subr.mxu0 0.0
        %10378 = vmatpush1.msra.mxu0 0.0
        %10379 = vmatprep.subr.mxu0 0.0
        %10380 = vmatpush1.msra.mxu0 0.0
        %10381 = vmatprep.subr.mxu0 0.0
        %10382 = vmatpush1.msra.mxu0 0.0
        %10383 = vmatprep.subr.mxu0 0.0
        %10384 = vmatpush1.msra.mxu0 0.0
        %10385 = vmatprep.subr.mxu0 0.0
        %10386 = vmatpush1.msra.mxu0 0.0
        %10387 = vmatprep.subr.mxu0 0.0
        %10388 = vmatpush1.msra.mxu0 0.0
        %10389 = vmatprep.subr.mxu0 0.0
        %10390 = vmatpush1.msra.mxu0 0.0
        %10391 = vmatprep.subr.mxu0 0.0
        %10392 = vmatpush1.msra.mxu0 0.0
        %10393 = vmatprep.subr.mxu0 0.0
        %10394 = vmatpush1.msra.mxu0 0.0
        %10395 = vmatprep.subr.mxu0 0.0
        %10396 = vmatpush1.msra.mxu0 0.0
        %10397 = vmatprep.subr.mxu0 0.0
        %10398 = vmatpush1.msra.mxu0 0.0
        %10399 = vmatprep.subr.mxu0 0.0
        %10400 = vmatpush1.msra.mxu0 0.0
        %10401 = vmatprep.subr.mxu0 0.0
        %10402 = vmatpush1.msra.mxu0 0.0
        %10403 = vmatprep.subr.mxu0 0.0
        %10404 = vmatpush1.msra.mxu0 0.0
        %10405 = vmatprep.subr.mxu0 0.0
        %10406 = vmatpush1.msra.mxu0 0.0
        %10407 = vmatprep.mubr.f32.mxu0 0.0
        %10408 = vmatmul.mubr.f32.gmra.mrb[0].mxu0 %v10341
        %v10409 = vpop.f32.mrb[0].mxu0
        %v10410 = vadd.f32 0.0, %v10409
        %v10411 = vpop.f32.mrb[0].mxu0
        %v10412 = vadd.f32 0.0, %v10411
        %10413 = vdwg.mxu0
        %10414 = vmatprep.subr.mxu0 %v10317
        %10415 = vmatpush1.msra.mxu0 %v10316
        %10416 = vmatprep.subr.mxu0 %v10321
        %10417 = vmatpush1.msra.mxu0 %v10320
        %10418 = vmatprep.subr.mxu0 %v10325
        %10419 = vmatpush1.msra.mxu0 %v10324
        %10420 = vmatprep.subr.mxu0 %v10329
        %10421 = vmatpush1.msra.mxu0 %v10328
        %10422 = vmatprep.subr.mxu0 %v10333
        %10423 = vmatpush1.msra.mxu0 %v10332
        %10424 = vmatprep.subr.mxu0 %v10337
        %10425 = vmatpush1.msra.mxu0 %v10336
        %10426 = vmatprep.subr.mxu0 0.0
        %10427 = vmatpush1.msra.mxu0 0.0
        %10428 = vmatprep.subr.mxu0 0.0
        %10429 = vmatpush1.msra.mxu0 0.0
        %10430 = vmatprep.subr.mxu0 0.0
        %10431 = vmatpush1.msra.mxu0 0.0
        %10432 = vmatprep.subr.mxu0 0.0
        %10433 = vmatpush1.msra.mxu0 0.0
        %10434 = vmatprep.subr.mxu0 0.0
        %10435 = vmatpush1.msra.mxu0 0.0
        %10436 = vmatprep.subr.mxu0 0.0
        %10437 = vmatpush1.msra.mxu0 0.0
        %10438 = vmatprep.subr.mxu0 0.0
        %10439 = vmatpush1.msra.mxu0 0.0
        %10440 = vmatprep.subr.mxu0 0.0
        %10441 = vmatpush1.msra.mxu0 0.0
        %10442 = vmatprep.subr.mxu0 0.0
        %10443 = vmatpush1.msra.mxu0 0.0
        %10444 = vmatprep.subr.mxu0 0.0
        %10445 = vmatpush1.msra.mxu0 0.0
        %10446 = vmatprep.subr.mxu0 0.0
        %10447 = vmatpush1.msra.mxu0 0.0
        %10448 = vmatprep.subr.mxu0 0.0
        %10449 = vmatpush1.msra.mxu0 0.0
        %10450 = vmatprep.subr.mxu0 0.0
        %10451 = vmatpush1.msra.mxu0 0.0
        %10452 = vmatprep.subr.mxu0 0.0
        %10453 = vmatpush1.msra.mxu0 0.0
        %10454 = vmatprep.subr.mxu0 0.0
        %10455 = vmatpush1.msra.mxu0 0.0
        %10456 = vmatprep.subr.mxu0 0.0
        %10457 = vmatpush1.msra.mxu0 0.0
        %10458 = vmatprep.subr.mxu0 0.0
        %10459 = vmatpush1.msra.mxu0 0.0
        %10460 = vmatprep.subr.mxu0 0.0
        %10461 = vmatpush1.msra.mxu0 0.0
        %10462 = vmatprep.subr.mxu0 0.0
        %10463 = vmatpush1.msra.mxu0 0.0
        %10464 = vmatprep.subr.mxu0 0.0
        %10465 = vmatpush1.msra.mxu0 0.0
        %10466 = vmatprep.subr.mxu0 0.0
        %10467 = vmatpush1.msra.mxu0 0.0
        %10468 = vmatprep.subr.mxu0 0.0
        %10469 = vmatpush1.msra.mxu0 0.0
        %10470 = vmatprep.subr.mxu0 0.0
        %10471 = vmatpush1.msra.mxu0 0.0
        %10472 = vmatprep.subr.mxu0 0.0
        %10473 = vmatpush1.msra.mxu0 0.0
        %10474 = vmatprep.subr.mxu0 0.0
        %10475 = vmatpush1.msra.mxu0 0.0
        %10476 = vmatprep.subr.mxu0 0.0
        %10477 = vmatpush1.msra.mxu0 0.0
        %10478 = vmatprep.mubr.f32.mxu0 0.0
        %10479 = vmatmul.mubr.f32.gmra.mrb[0].mxu0 %v10341
        %v10480 = vpop.f32.mrb[0].mxu0
        %v10481 = vadd.f32 0.0, %v10480
        %v10482 = vpop.f32.mrb[0].mxu0
        %v10483 = vadd.f32 0.0, %v10482
        %10484 = vdwg.mxu0
        %v10489 = vcombine.low %v10410, %v10412
        %v10490 = vcombine.low %v10481, %v10483
        %10493 = vst [vmem:[%s509] sm:$0x77] %v10489
        %10494 = vst [vmem:[%s509 + $0x8] sm:$0x77] %v10490
        %s10495 = sand.u32 %s350, 1
        %s10496 = scalar_lea.sflag [#allocation3], %s10495
        %s10497 = sand.u32 %s350, 1
        %s10498 = smul.addr %s10497, 16
        %s10499 = scalar_lea.vmem [#allocation2], %s10498
        // Predicated region
        $region77: #{tpu_custom_call.1} parent=75 // pred_check
          %p10500 = pneg %p360
        $region78: #{tpu_custom_call.1} parent=75 // pred_check_branch
          %10502 = sbr.rel (%p10500) target = $region80
        $region79: #{tpu_custom_call.1} parent=75 // pred_region
          %s10503 = smul.u32 4, %s28
          %s10505 = ssub.s32 256, 256
          %10506 = vsyncadd %s10496, %s10505
          %s10507 = smul.addr %s10503, 64
          %s10508 = scalar_lea.hbm %s14, %s10507
          %s10510 = sshll.u32 %s10499, 4
          %s10511 = int_to_ptr.vmem [resolvable:$true] %s10510
          %10513 = dma.vmem_to_hbm [thread:$0]  %s10511, 256, %s10508, %s10496
        $region80: #{tpu_custom_call.1} parent=75 // pred_fallthru
          _
      $region76: #{tpu_custom_call.1} parent=5 // pred_fallthru
        _
      %p10514 = scmp.le.s32.totalorder 2, %s23
      // Predicated region
      $region81: #{tpu_custom_call.1} parent=5 // pred_check
        %p10515 = pneg %p10514
      $region82: #{tpu_custom_call.1} parent=5 // pred_check_branch
        %10517 = sbr.rel (%p10515) target = $region84
      $region83: #{tpu_custom_call.1} parent=5 // pred_region
        %s10518 = ssub.s32 %s23, 2
        // Predicated region
        $region85: #{tpu_custom_call.1} parent=83 // pred_check
          %p10519 = pneg %p366
        $region86: #{tpu_custom_call.1} parent=83 // pred_check_branch
          %10521 = sbr.rel (%p10519) target = $region88
        $region87: #{tpu_custom_call.1} parent=83 // pred_region
          %s10522 = sand.u32 %s351, 1
          %s10523 = scalar_lea.sflag [#allocation3], %s10522
          %s10524 = sand.u32 %s351, 1
          %s10525 = smul.addr %s10524, 16
          %s10526 = scalar_lea.vmem [#allocation2], %s10525
          %10527 = dma.done %s10523, 256
        $region88: #{tpu_custom_call.1} parent=83 // pred_fallthru
          _
      $region84: #{tpu_custom_call.1} parent=5 // pred_fallthru
        _
    $region6: #{tpu_custom_call.1} parent=1 // loop_footer
      %s27 = sadd.s32 1, %s23
    $region7: #{tpu_custom_call.1} parent=1 // loop_footer_branch
      %22 = sbr.rel target = $region3
    $region8: #{tpu_custom_call.1} parent=1 // loop_exit
      _
    %10528 = vsyncpa [#allocation3], 1
    %s10529 = scalar_lea.sflag [#allocation3], 1
    %10530 = vsyncpa %s10529, 1

</llo_original>
